<compile_context>
chip_gen: v7x
topology: tpu7x:2x2x1
jax: 0.10.0
libtpu: 0.0.40
codegen_flags: <defaults>
</compile_context>

<pallas_src>
import math

import jax
import jax.numpy as jnp
from jax.experimental import pallas as pl
from jax.experimental.pallas import tpu as pltpu

NEG_SLOPE = 0.2  # LeakyReLU(0.2), the module's default activation


def _leaky(x):
    return jnp.where(x > 0, x, NEG_SLOPE * x)


# ---------------------------------------------------------------- linear ----
def linear_kernel(x_ref, w_ref, b_ref, o_ref):
    o_ref[...] = (
        jnp.dot(x_ref[...], w_ref[...], preferred_element_type=jnp.float32)
        + b_ref[...]
    )


def initial_linear_nhwc(z, w_nhwc, b_nhwc, c0):
    """Fused Linear + bias producing the NHWC (B, 4, 4, c0) tensor directly.

    w_nhwc / b_nhwc already have their columns permuted (done once in
    init_params) so the trailing reshape below is metadata-only.
    """
    B = z.shape[0]
    out0 = w_nhwc.shape[1]
    y = pl.pallas_call(
        linear_kernel,
        out_shape=jax.ShapeDtypeStruct((B, out0), jnp.float32),
        in_specs=[pl.BlockSpec(memory_space=pltpu.MemorySpace.VMEM)] * 3,
        out_specs=pl.BlockSpec(memory_space=pltpu.MemorySpace.VMEM),
    )(z, w_nhwc, b_nhwc)
    return y.reshape(B, 4, 4, c0)


# --------------------------------------------- fused residual block kernel ----
def resblock_kernel(scale_ref, x_ref, w1_ref, b1_ref, w2_ref, b2_ref, ws_ref,
                    o_ref, xp_ref, hp_ref):
    """One full ResGeneratorBlock on one batch element (already upsampled).

    x_ref  : (1, H, W, Cin)   NHWC input (post nearest-x2 upsample)
    w1_ref : (9*Cin, Chid)    im2col-flattened conv1 weight, b1_ref: (1, Chid)
    w2_ref : (9*Chid, Cout)   im2col-flattened conv2 weight, b2_ref: (1, Cout)
    ws_ref : (Cin, Cout)      1x1 skip conv (no bias)
    scale_ref : (1,) in SMEM  residual branch weight
    o_ref  : (1, H, W, Cout)
    xp_ref : (1, H+2, W+2, Cin)  VMEM scratch (zero-padded activated input)
    hp_ref : (1, H+2, W+2, Chid) VMEM scratch (zero-padded activated hidden)
    """
    _, H, W, Cin = x_ref.shape
    Chid = b1_ref.shape[-1]
    Cout = o_ref.shape[-1]
    N = H * W

    x = x_ref[...]                                            # (1, H, W, Cin)

    # ---- conv1: LeakyReLU -> zero-pad -> 3x3 conv (one im2col matmul) ----
    # Activated data goes straight into the scratch interior; only the four
    # 1-wide border strips are zeroed (per grid step, never program_id-gated).
    xp_ref[:, 0:1, :, :] = jnp.zeros((1, 1, W + 2, Cin), jnp.float32)
    xp_ref[:, H + 1:H + 2, :, :] = jnp.zeros((1, 1, W + 2, Cin), jnp.float32)
    xp_ref[:, :, 0:1, :] = jnp.zeros((1, H + 2, 1, Cin), jnp.float32)
    xp_ref[:, :, W + 1:W + 2, :] = jnp.zeros((1, H + 2, 1, Cin), jnp.float32)
    xp_ref[:, 1:H + 1, 1:W + 1, :] = _leaky(x)

    ap = xp_ref[...]                                          # (1, H+2, W+2, Cin)
    # im2col: gather the 9 taps into one (N, 9*Cin) matrix -> single MXU push
    # with K = 9*Cin against the pre-flattened weight (tap order (kh, kw, ci)
    # matches w1_ref's row order, which is a plain reshape of HWIO).
    p1 = jnp.concatenate(
        [ap[:, kh:kh + H, kw:kw + W, :].reshape(N, Cin)
         for kh in range(3) for kw in range(3)],
        axis=-1)                                              # (N, 9*Cin)
    h = jnp.dot(p1, w1_ref[...],
                preferred_element_type=jnp.float32) + b1_ref[...]

    # ---- conv2: same scheme on the hidden activation ----
    hp_ref[:, 0:1, :, :] = jnp.zeros((1, 1, W + 2, Chid), jnp.float32)
    hp_ref[:, H + 1:H + 2, :, :] = jnp.zeros((1, 1, W + 2, Chid), jnp.float32)
    hp_ref[:, :, 0:1, :] = jnp.zeros((1, H + 2, 1, Chid), jnp.float32)
    hp_ref[:, :, W + 1:W + 2, :] = jnp.zeros((1, H + 2, 1, Chid), jnp.float32)
    hp_ref[:, 1:H + 1, 1:W + 1, :] = _leaky(h).reshape(1, H, W, Chid)

    a2 = hp_ref[...]
    p2 = jnp.concatenate(
        [a2[:, kh:kh + H, kw:kw + W, :].reshape(N, Chid)
         for kh in range(3) for kw in range(3)],
        axis=-1)                                              # (N, 9*Chid)
    y = jnp.dot(p2, w2_ref[...],
                preferred_element_type=jnp.float32) + b2_ref[...]

    # ---- 1x1-conv skip on the unactivated input + fused residual combine ----
    skip = jnp.dot(x.reshape(N, Cin), ws_ref[...],
                   preferred_element_type=jnp.float32)
    o_ref[...] = (scale_ref[0] * y + skip).reshape(1, H, W, Cout)


def res_block(x_up, blk):
    """x_up: (B, H, W, Cin) NHWC, already nearest-x2 upsampled."""
    B, H, W, Cin = x_up.shape
    Chid = int(blk["w1_flat"].shape[1])
    Cout = int(blk["w2_flat"].shape[1])
    # TODO(synk): at production channel counts on v7x (64 MiB VMEM) the
    # grid-invariant weight specs below should be single-buffered via
    # pipeline_mode=pl.Buffered(1) and a spatial row-tile grid axis added;
    # at this config the weights are a few KB and H,W <= 16, so neither pays.
    return pl.pallas_call(
        resblock_kernel,
        out_shape=jax.ShapeDtypeStruct((B, H, W, Cout), jnp.float32),
        grid=(B,),
        in_specs=[
            pl.BlockSpec(memory_space=pltpu.MemorySpace.SMEM),           # scale
            pl.BlockSpec((1, H, W, Cin), lambda b: (b, 0, 0, 0)),        # x
            pl.BlockSpec((9 * Cin, Chid), lambda b: (0, 0)),             # w1_flat
            pl.BlockSpec((1, Chid), lambda b: (0, 0)),                   # b1
            pl.BlockSpec((9 * Chid, Cout), lambda b: (0, 0)),            # w2_flat
            pl.BlockSpec((1, Cout), lambda b: (0, 0)),                   # b2
            pl.BlockSpec((Cin, Cout), lambda b: (0, 0)),                 # wskip
        ],
        out_specs=pl.BlockSpec((1, H, W, Cout), lambda b: (b, 0, 0, 0)),
        scratch_shapes=[
            pltpu.VMEM((1, H + 2, W + 2, Cin), jnp.float32),
            pltpu.VMEM((1, H + 2, W + 2, Chid), jnp.float32),
        ],
        compiler_params=pltpu.CompilerParams(
            dimension_semantics=("parallel",),
            vmem_limit_bytes=64 * 1024 * 1024),
    )(blk["scale"], x_up, blk["w1_flat"], blk["b1"],
      blk["w2_flat"], blk["b2"], blk["wskip"])


# ------------------------------------------------------------- parameters ----
def _uniform(key, shape, fan_in):
    bound = 1.0 / math.sqrt(fan_in)
    return jax.random.uniform(
        key, shape, dtype=jnp.float32, minval=-bound, maxval=bound
    )


def init_params(key, in_size, base_channels, channel_factors, kernel_size=3):
    assert kernel_size == 3
    keys = jax.random.split(key, 2 + 5 * (len(channel_factors) - 1))
    ki = iter(keys)

    c0 = base_channels * channel_factors[0]
    out0 = 4 * 4 * c0
    w0 = _uniform(next(ki), (in_size, out0), in_size)
    b0 = _uniform(next(ki), (out0,), in_size)
    params = {
        # torch layout (used by the pure-JAX reference)
        "initial_w": w0,
        "initial_b": b0,
        # one-time relayout for the kernel: columns permuted so the fused
        # Linear writes NHWC directly (hoisted out of the jitted forward).
        "initial_w_nhwc": w0.reshape(in_size, c0, 4, 4)
        .transpose(0, 2, 3, 1).reshape(in_size, out0),
        "initial_b_nhwc": b0.reshape(c0, 4, 4)
        .transpose(1, 2, 0).reshape(1, out0),
        "blocks": [],
    }
    for in_f, out_f in zip(channel_factors[:-1], channel_factors[1:]):
        cin = in_f * base_channels
        cout = out_f * base_channels
        chid = min(cin, cout)
        w1 = _uniform(next(ki), (3, 3, cin, chid), cin * 9)
        b1 = _uniform(next(ki), (chid,), cin * 9)
        w2 = _uniform(next(ki), (3, 3, chid, cout), chid * 9)
        b2 = _uniform(next(ki), (cout,), chid * 9)
        blk = {
            # HWIO weights for the reference convs
            "w1": w1, "w2": w2,
            # pre-flattened im2col weights for the kernel (row order =
            # (kh, kw, ci), i.e. a plain row-major reshape of HWIO)
            "w1_flat": w1.reshape(9 * cin, chid),
            "w2_flat": w2.reshape(9 * chid, cout),
            "b1": b1.reshape(1, chid),
            "b2": b2.reshape(1, cout),
            "wskip": _uniform(next(ki), (cin, cout), cin),  # 1x1 conv, no bias
            # PyTorch default init is 0.0; we pick a nonzero deterministic
            # value so the conv branch actually contributes to the output.
            "scale": jnp.array([0.1], dtype=jnp.float32),
        }
        params["blocks"].append(blk)
    return params


# ----------------------------------------------------------------- forward ----
def _upsample2x_nhwc(x):
    """Nearest-neighbour x2 upsample as a single broadcast+reshape HBM pass."""
    B, H, W, C = x.shape
    x = jnp.broadcast_to(x[:, :, None, :, None, :], (B, H, 2, W, 2, C))
    return x.reshape(B, 2 * H, 2 * W, C)


def res_generator_forward(params, z):
    c0 = params["initial_w_nhwc"].shape[1] // 16
    out = initial_linear_nhwc(
        z, params["initial_w_nhwc"], params["initial_b_nhwc"], c0)
    for blk in params["blocks"]:
        # TODO(synk): the x2 upsample stays in XLA (one broadcast+reshape
        # pass); fusing it into the block kernel needs factor-2 sublane
        # interleave stores with no robust Mosaic lowering at these shapes.
        out = _upsample2x_nhwc(out)
        out = res_block(out, blk)
    return jnp.transpose(out, (0, 3, 1, 2))  # NHWC -> NCHW, like PyTorch


# -------------------------------------------------------- pure-JAX reference --
def reference_forward(params, z):
    hp = jax.lax.Precision.HIGHEST
    B = z.shape[0]
    out = z @ params["initial_w"] + params["initial_b"]
    c0 = out.shape[1] // 16
    out = jnp.transpose(out.reshape(B, c0, 4, 4), (0, 2, 3, 1))
    for blk in params["blocks"]:
        out = jnp.repeat(jnp.repeat(out, 2, axis=1), 2, axis=2)
        a = jnp.where(out > 0, out, NEG_SLOPE * out)
        h = jax.lax.conv_general_dilated(
            a, blk["w1"], (1, 1), "SAME",
            dimension_numbers=("NHWC", "HWIO", "NHWC"), precision=hp,
        ) + blk["b1"]
        a2 = jnp.where(h > 0, h, NEG_SLOPE * h)
        y = jax.lax.conv_general_dilated(
            a2, blk["w2"], (1, 1), "SAME",
            dimension_numbers=("NHWC", "HWIO", "NHWC"), precision=hp,
        ) + blk["b2"]
        skip = jnp.einsum("bhwc,co->bhwo", out, blk["wskip"], precision=hp)
        out = blk["scale"][0] * y + skip
    return jnp.transpose(out, (0, 3, 1, 2))


if __name__ == "__main__":
    # Small config: in_size=32, base_channels=8, channel_factors=[2, 2, 1]
    #   latent (2, 32) -> (2, 16, 4, 4) -> block -> (2, 16, 8, 8)
    #                                   -> block -> (2, 8, 16, 16)
    in_size = 32
    base_channels = 8
    channel_factors = [2, 2, 1]
    batch = 2

    root = jax.random.PRNGKey(0)
    k_param, k_data = jax.random.split(root)
    params = init_params(k_param, in_size, base_channels, channel_factors)
    z = jax.random.normal(k_data, (batch, in_size), dtype=jnp.float32)

    out = jax.block_until_ready(jax.jit(res_generator_forward)(params, z))
    ref = jax.block_until_ready(jax.jit(reference_forward)(params, z))

    assert out.shape == (batch, channel_factors[-1] * base_channels, 16, 16)
    # kernel uses default-precision f32 MXU passes (kept f32, not bf16) vs
    # HIGHEST in the reference; tolerance documents that gap.
    assert jnp.allclose(out, ref, atol=3e-3, rtol=3e-3), (
        float(jnp.max(jnp.abs(out - ref)))
    )
    print("KERNEL_OK")
</pallas_src>

<mosaic_0001>
module attributes {stable_mosaic.version = 11 : i64} {
  func.func @linear_kernel(%arg0: memref<2x32xf32, #tpu.memory_space<vmem>>, %arg1: memref<32x256xf32, #tpu.memory_space<vmem>>, %arg2: memref<1x256xf32, #tpu.memory_space<vmem>>, %arg3: memref<2x256xf32, #tpu.memory_space<vmem>>) attributes {dimension_semantics = [], scalar_prefetch = 0 : i64, scratch_operands = 0 : i64, tpu.core_type = #tpu.core_type<tc>} {
    %c0 = arith.constant 0 : index
    %c0_0 = arith.constant 0 : index
    %0 = vector.load %arg0[%c0, %c0_0] : memref<2x32xf32, #tpu.memory_space<vmem>>, vector<2x32xf32>
    %c0_1 = arith.constant 0 : index
    %c0_2 = arith.constant 0 : index
    %1 = vector.load %arg1[%c0_1, %c0_2] : memref<32x256xf32, #tpu.memory_space<vmem>>, vector<32x256xf32>
    %cst = arith.constant dense<0.000000e+00> : vector<2x256xf32>
    %2 = tpu.matmul %0, %1, %cst {dimension_numbers = #tpu.dot_dimension_numbers<[1], [0], [0], [1], [0, 0, 1, 1], [], []>} : vector<2x32xf32>, vector<32x256xf32>, vector<2x256xf32> -> vector<2x256xf32>
    %c0_3 = arith.constant 0 : index
    %c0_4 = arith.constant 0 : index
    %3 = vector.load %arg2[%c0_3, %c0_4] : memref<1x256xf32, #tpu.memory_space<vmem>>, vector<1x256xf32>
    %4 = vector.broadcast %3 : vector<1x256xf32> to vector<2x256xf32>
    %5 = arith.addf %2, %4 : vector<2x256xf32>
    %c0_5 = arith.constant 0 : index
    %c0_6 = arith.constant 0 : index
    %6 = vector.load %arg3[%c0_5, %c0_6] : memref<2x256xf32, #tpu.memory_space<vmem>>, vector<2x256xf32>
    tpu.vector_store %arg3[%c0_5, %c0_6], %5 {strides = array<i32>} : memref<2x256xf32, #tpu.memory_space<vmem>>, vector<2x256xf32>,
    return
  }
}

module attributes {stable_mosaic.version = 11 : i64} {
  func.func @resblock_kernel(%arg0: i32, %arg1: memref<1xf32, #tpu.memory_space<smem>>, %arg2: memref<1x8x8x16xf32, #tpu.memory_space<vmem>>, %arg3: memref<144x16xf32, #tpu.memory_space<vmem>>, %arg4: memref<1x16xf32, #tpu.memory_space<vmem>>, %arg5: memref<144x16xf32, #tpu.memory_space<vmem>>, %arg6: memref<1x16xf32, #tpu.memory_space<vmem>>, %arg7: memref<16x16xf32, #tpu.memory_space<vmem>>, %arg8: memref<1x8x8x16xf32, #tpu.memory_space<vmem>>, %arg9: memref<1x10x10x16xf32, #tpu.memory_space<vmem>>, %arg10: memref<1x10x10x16xf32, #tpu.memory_space<vmem>>) attributes {dimension_semantics = [#tpu.dimension_semantics<parallel>], iteration_bounds = array<i64: 2>, scalar_prefetch = 0 : i64, scratch_operands = 2 : i64, tpu.core_type = #tpu.core_type<tc>, window_params = [{transform_indices = @transform_0, window_bounds = array<i64: 1>}, {transform_indices = @transform_1, window_bounds = array<i64: 1, 8, 8, 16>}, {pipeline_mode = #tpu.pipeline_mode<synchronous>, transform_indices = @transform_2, window_bounds = array<i64: 144, 16>}, {pipeline_mode = #tpu.pipeline_mode<synchronous>, transform_indices = @transform_3, window_bounds = array<i64: 1, 16>}, {pipeline_mode = #tpu.pipeline_mode<synchronous>, transform_indices = @transform_4, window_bounds = array<i64: 144, 16>}, {pipeline_mode = #tpu.pipeline_mode<synchronous>, transform_indices = @transform_5, window_bounds = array<i64: 1, 16>}, {pipeline_mode = #tpu.pipeline_mode<synchronous>, transform_indices = @transform_6, window_bounds = array<i64: 16, 16>}, {transform_indices = @transform_7, window_bounds = array<i64: 1, 8, 8, 16>}]} {
    %c0 = arith.constant 0 : index
    %c0_0 = arith.constant 0 : index
    %c0_1 = arith.constant 0 : index
    %c0_2 = arith.constant 0 : index
    %0 = vector.load %arg2[%c0, %c0_0, %c0_1, %c0_2] : memref<1x8x8x16xf32, #tpu.memory_space<vmem>>, vector<1x8x8x16xf32>
    %cst = arith.constant 0.000000e+00 : f32
    %1 = vector.broadcast %cst : f32 to vector<1x1x10x16xf32>
    %c0_3 = arith.constant 0 : index
    %c0_4 = arith.constant 0 : index
    %c0_5 = arith.constant 0 : index
    %c0_6 = arith.constant 0 : index
    %2 = vector.load %arg9[%c0_3, %c0_4, %c0_5, %c0_6] : memref<1x10x10x16xf32, #tpu.memory_space<vmem>>, vector<1x1x10x16xf32>
    tpu.vector_store %arg9[%c0_3, %c0_4, %c0_5, %c0_6], %1 {strides = array<i32>} : memref<1x10x10x16xf32, #tpu.memory_space<vmem>>, vector<1x1x10x16xf32>,
    %cst_7 = arith.constant 0.000000e+00 : f32
    %3 = vector.broadcast %cst_7 : f32 to vector<1x1x10x16xf32>
    %c0_8 = arith.constant 0 : index
    %c9 = arith.constant 9 : index
    %c0_9 = arith.constant 0 : index
    %c0_10 = arith.constant 0 : index
    %4 = vector.load %arg9[%c0_8, %c9, %c0_9, %c0_10] : memref<1x10x10x16xf32, #tpu.memory_space<vmem>>, vector<1x1x10x16xf32>
    tpu.vector_store %arg9[%c0_8, %c9, %c0_9, %c0_10], %3 {strides = array<i32>} : memref<1x10x10x16xf32, #tpu.memory_space<vmem>>, vector<1x1x10x16xf32>,
    %cst_11 = arith.constant 0.000000e+00 : f32
    %5 = vector.broadcast %cst_11 : f32 to vector<1x10x1x16xf32>
    %c0_12 = arith.constant 0 : index
    %c0_13 = arith.constant 0 : index
    %c0_14 = arith.constant 0 : index
    %c0_15 = arith.constant 0 : index
    %6 = vector.load %arg9[%c0_12, %c0_13, %c0_14, %c0_15] : memref<1x10x10x16xf32, #tpu.memory_space<vmem>>, vector<1x10x1x16xf32>
    tpu.vector_store %arg9[%c0_12, %c0_13, %c0_14, %c0_15], %5 {strides = array<i32>} : memref<1x10x10x16xf32, #tpu.memory_space<vmem>>, vector<1x10x1x16xf32>,
    %cst_16 = arith.constant 0.000000e+00 : f32
    %7 = vector.broadcast %cst_16 : f32 to vector<1x10x1x16xf32>
    %c0_17 = arith.constant 0 : index
    %c0_18 = arith.constant 0 : index
    %c9_19 = arith.constant 9 : index
    %c0_20 = arith.constant 0 : index
    %8 = vector.load %arg9[%c0_17, %c0_18, %c9_19, %c0_20] : memref<1x10x10x16xf32, #tpu.memory_space<vmem>>, vector<1x10x1x16xf32>
    tpu.vector_store %arg9[%c0_17, %c0_18, %c9_19, %c0_20], %7 {strides = array<i32>} : memref<1x10x10x16xf32, #tpu.memory_space<vmem>>, vector<1x10x1x16xf32>,
    %cst_21 = arith.constant 0.000000e+00 : f32
    %9 = vector.broadcast %cst_21 : f32 to vector<1x8x8x16xf32>
    %10 = arith.cmpf ogt, %0, %9 : vector<1x8x8x16xf32>
    %cst_22 = arith.constant 2.000000e-01 : f32
    %11 = vector.broadcast %cst_22 : f32 to vector<1x8x8x16xf32>
    %12 = arith.mulf %11, %0 : vector<1x8x8x16xf32>
    %13 = arith.select %10, %0, %12 : vector<1x8x8x16xi1>, vector<1x8x8x16xf32>
    %c0_23 = arith.constant 0 : index
    %c1 = arith.constant 1 : index
    %c1_24 = arith.constant 1 : index
    %c0_25 = arith.constant 0 : index
    %14 = vector.load %arg9[%c0_23, %c1, %c1_24, %c0_25] : memref<1x10x10x16xf32, #tpu.memory_space<vmem>>, vector<1x8x8x16xf32>
    tpu.vector_store %arg9[%c0_23, %c1, %c1_24, %c0_25], %13 {strides = array<i32>} : memref<1x10x10x16xf32, #tpu.memory_space<vmem>>, vector<1x8x8x16xf32>,
    %c0_26 = arith.constant 0 : index
    %c0_27 = arith.constant 0 : index
    %c0_28 = arith.constant 0 : index
    %c0_29 = arith.constant 0 : index
    %15 = vector.load %arg9[%c0_26, %c0_27, %c0_28, %c0_29] : memref<1x10x10x16xf32, #tpu.memory_space<vmem>>, vector<1x10x10x16xf32>
    %16 = vector.extract_strided_slice %15 {offsets = [0, 0, 0, 0], sizes = [1, 8, 8, 16], strides = [1, 1, 1, 1]} : vector<1x10x10x16xf32> to vector<1x8x8x16xf32>
    %17 = vector.shape_cast %16 : vector<1x8x8x16xf32> to vector<64x16xf32>
    %18 = vector.extract_strided_slice %15 {offsets = [0, 0, 1, 0], sizes = [1, 8, 8, 16], strides = [1, 1, 1, 1]} : vector<1x10x10x16xf32> to vector<1x8x8x16xf32>
    %19 = vector.shape_cast %18 : vector<1x8x8x16xf32> to vector<64x16xf32>
    %20 = vector.extract_strided_slice %15 {offsets = [0, 0, 2, 0], sizes = [1, 8, 8, 16], strides = [1, 1, 1, 1]} : vector<1x10x10x16xf32> to vector<1x8x8x16xf32>
    %21 = vector.shape_cast %20 : vector<1x8x8x16xf32> to vector<64x16xf32>
    %22 = vector.extract_strided_slice %15 {offsets = [0, 1, 0, 0], sizes = [1, 8, 8, 16], strides = [1, 1, 1, 1]} : vector<1x10x10x16xf32> to vector<1x8x8x16xf32>
    %23 = vector.shape_cast %22 : vector<1x8x8x16xf32> to vector<64x16xf32>
    %24 = vector.extract_strided_slice %15 {offsets = [0, 1, 1, 0], sizes = [1, 8, 8, 16], strides = [1, 1, 1, 1]} : vector<1x10x10x16xf32> to vector<1x8x8x16xf32>
    %25 = vector.shape_cast %24 : vector<1x8x8x16xf32> to vector<64x16xf32>
    %26 = vector.extract_strided_slice %15 {offsets = [0, 1, 2, 0], sizes = [1, 8, 8, 16], strides = [1, 1, 1, 1]} : vector<1x10x10x16xf32> to vector<1x8x8x16xf32>
    %27 = vector.shape_cast %26 : vector<1x8x8x16xf32> to vector<64x16xf32>
    %28 = vector.extract_strided_slice %15 {offsets = [0, 2, 0, 0], sizes = [1, 8, 8, 16], strides = [1, 1, 1, 1]} : vector<1x10x10x16xf32> to vector<1x8x8x16xf32>
    %29 = vector.shape_cast %28 : vector<1x8x8x16xf32> to vector<64x16xf32>
    %30 = vector.extract_strided_slice %15 {offsets = [0, 2, 1, 0], sizes = [1, 8, 8, 16], strides = [1, 1, 1, 1]} : vector<1x10x10x16xf32> to vector<1x8x8x16xf32>
    %31 = vector.shape_cast %30 : vector<1x8x8x16xf32> to vector<64x16xf32>
    %32 = vector.extract_strided_slice %15 {offsets = [0, 2, 2, 0], sizes = [1, 8, 8, 16], strides = [1, 1, 1, 1]} : vector<1x10x10x16xf32> to vector<1x8x8x16xf32>
    %33 = vector.shape_cast %32 : vector<1x8x8x16xf32> to vector<64x16xf32>
    %34 = tpu.concatenate %17, %19, %21, %23, %25, %27, %29, %31, %33 in 1 : vector<64x16xf32>, vector<64x16xf32>, vector<64x16xf32>, vector<64x16xf32>, vector<64x16xf32>, vector<64x16xf32>, vector<64x16xf32>, vector<64x16xf32>, vector<64x16xf32> -> vector<64x144xf32>
    %c0_30 = arith.constant 0 : index
    %c0_31 = arith.constant 0 : index
    %35 = vector.load %arg3[%c0_30, %c0_31] : memref<144x16xf32, #tpu.memory_space<vmem>>, vector<144x16xf32>
    %cst_32 = arith.constant dense<0.000000e+00> : vector<64x16xf32>
    %36 = tpu.matmul %34, %35, %cst_32 {dimension_numbers = #tpu.dot_dimension_numbers<[1], [0], [0], [1], [0, 0, 1, 1], [], []>} : vector<64x144xf32>, vector<144x16xf32>, vector<64x16xf32> -> vector<64x16xf32>
    %c0_33 = arith.constant 0 : index
    %c0_34 = arith.constant 0 : index
    %37 = vector.load %arg4[%c0_33, %c0_34] : memref<1x16xf32, #tpu.memory_space<vmem>>, vector<1x16xf32>
    %38 = vector.broadcast %37 : vector<1x16xf32> to vector<64x16xf32>
    %39 = arith.addf %36, %38 : vector<64x16xf32>
    %cst_35 = arith.constant 0.000000e+00 : f32
    %40 = vector.broadcast %cst_35 : f32 to vector<1x1x10x16xf32>
    %c0_36 = arith.constant 0 : index
    %c0_37 = arith.constant 0 : index
    %c0_38 = arith.constant 0 : index
    %c0_39 = arith.constant 0 : index
    %41 = vector.load %arg10[%c0_36, %c0_37, %c0_38, %c0_39] : memref<1x10x10x16xf32, #tpu.memory_space<vmem>>, vector<1x1x10x16xf32>
    tpu.vector_store %arg10[%c0_36, %c0_37, %c0_38, %c0_39], %40 {strides = array<i32>} : memref<1x10x10x16xf32, #tpu.memory_space<vmem>>, vector<1x1x10x16xf32>,
    %cst_40 = arith.constant 0.000000e+00 : f32
    %42 = vector.broadcast %cst_40 : f32 to vector<1x1x10x16xf32>
    %c0_41 = arith.constant 0 : index
    %c9_42 = arith.constant 9 : index
    %c0_43 = arith.constant 0 : index
    %c0_44 = arith.constant 0 : index
    %43 = vector.load %arg10[%c0_41, %c9_42, %c0_43, %c0_44] : memref<1x10x10x16xf32, #tpu.memory_space<vmem>>, vector<1x1x10x16xf32>
    tpu.vector_store %arg10[%c0_41, %c9_42, %c0_43, %c0_44], %42 {strides = array<i32>} : memref<1x10x10x16xf32, #tpu.memory_space<vmem>>, vector<1x1x10x16xf32>,
    %cst_45 = arith.constant 0.000000e+00 : f32
    %44 = vector.broadcast %cst_45 : f32 to vector<1x10x1x16xf32>
    %c0_46 = arith.constant 0 : index
    %c0_47 = arith.constant 0 : index
    %c0_48 = arith.constant 0 : index
    %c0_49 = arith.constant 0 : index
    %45 = vector.load %arg10[%c0_46, %c0_47, %c0_48, %c0_49] : memref<1x10x10x16xf32, #tpu.memory_space<vmem>>, vector<1x10x1x16xf32>
    tpu.vector_store %arg10[%c0_46, %c0_47, %c0_48, %c0_49], %44 {strides = array<i32>} : memref<1x10x10x16xf32, #tpu.memory_space<vmem>>, vector<1x10x1x16xf32>,
    %cst_50 = arith.constant 0.000000e+00 : f32
    %46 = vector.broadcast %cst_50 : f32 to vector<1x10x1x16xf32>
    %c0_51 = arith.constant 0 : index
    %c0_52 = arith.constant 0 : index
    %c9_53 = arith.constant 9 : index
    %c0_54 = arith.constant 0 : index
    %47 = vector.load %arg10[%c0_51, %c0_52, %c9_53, %c0_54] : memref<1x10x10x16xf32, #tpu.memory_space<vmem>>, vector<1x10x1x16xf32>
    tpu.vector_store %arg10[%c0_51, %c0_52, %c9_53, %c0_54], %46 {strides = array<i32>} : memref<1x10x10x16xf32, #tpu.memory_space<vmem>>, vector<1x10x1x16xf32>,
    %cst_55 = arith.constant 0.000000e+00 : f32
    %48 = vector.broadcast %cst_55 : f32 to vector<64x16xf32>
    %49 = arith.cmpf ogt, %39, %48 : vector<64x16xf32>
    %cst_56 = arith.constant 2.000000e-01 : f32
    %50 = vector.broadcast %cst_56 : f32 to vector<64x16xf32>
    %51 = arith.mulf %50, %39 : vector<64x16xf32>
    %52 = arith.select %49, %39, %51 : vector<64x16xi1>, vector<64x16xf32>
    %53 = vector.shape_cast %52 : vector<64x16xf32> to vector<1x8x8x16xf32>
    %c0_57 = arith.constant 0 : index
    %c1_58 = arith.constant 1 : index
    %c1_59 = arith.constant 1 : index
    %c0_60 = arith.constant 0 : index
    %54 = vector.load %arg10[%c0_57, %c1_58, %c1_59, %c0_60] : memref<1x10x10x16xf32, #tpu.memory_space<vmem>>, vector<1x8x8x16xf32>
    tpu.vector_store %arg10[%c0_57, %c1_58, %c1_59, %c0_60], %53 {strides = array<i32>} : memref<1x10x10x16xf32, #tpu.memory_space<vmem>>, vector<1x8x8x16xf32>,
    %c0_61 = arith.constant 0 : index
    %c0_62 = arith.constant 0 : index
    %c0_63 = arith.constant 0 : index
    %c0_64 = arith.constant 0 : index
    %55 = vector.load %arg10[%c0_61, %c0_62, %c0_63, %c0_64] : memref<1x10x10x16xf32, #tpu.memory_space<vmem>>, vector<1x10x10x16xf32>
    %56 = vector.extract_strided_slice %55 {offsets = [0, 0, 0, 0], sizes = [1, 8, 8, 16], strides = [1, 1, 1, 1]} : vector<1x10x10x16xf32> to vector<1x8x8x16xf32>
    %57 = vector.shape_cast %56 : vector<1x8x8x16xf32> to vector<64x16xf32>
    %58 = vector.extract_strided_slice %55 {offsets = [0, 0, 1, 0], sizes = [1, 8, 8, 16], strides = [1, 1, 1, 1]} : vector<1x10x10x16xf32> to vector<1x8x8x16xf32>
    %59 = vector.shape_cast %58 : vector<1x8x8x16xf32> to vector<64x16xf32>
    %60 = vector.extract_strided_slice %55 {offsets = [0, 0, 2, 0], sizes = [1, 8, 8, 16], strides = [1, 1, 1, 1]} : vector<1x10x10x16xf32> to vector<1x8x8x16xf32>
    %61 = vector.shape_cast %60 : vector<1x8x8x16xf32> to vector<64x16xf32>
    %62 = vector.extract_strided_slice %55 {offsets = [0, 1, 0, 0], sizes = [1, 8, 8, 16], strides = [1, 1, 1, 1]} : vector<1x10x10x16xf32> to vector<1x8x8x16xf32>
    %63 = vector.shape_cast %62 : vector<1x8x8x16xf32> to vector<64x16xf32>
    %64 = vector.extract_strided_slice %55 {offsets = [0, 1, 1, 0], sizes = [1, 8, 8, 16], strides = [1, 1, 1, 1]} : vector<1x10x10x16xf32> to vector<1x8x8x16xf32>
    %65 = vector.shape_cast %64 : vector<1x8x8x16xf32> to vector<64x16xf32>
    %66 = vector.extract_strided_slice %55 {offsets = [0, 1, 2, 0], sizes = [1, 8, 8, 16], strides = [1, 1, 1, 1]} : vector<1x10x10x16xf32> to vector<1x8x8x16xf32>
    %67 = vector.shape_cast %66 : vector<1x8x8x16xf32> to vector<64x16xf32>
    %68 = vector.extract_strided_slice %55 {offsets = [0, 2, 0, 0], sizes = [1, 8, 8, 16], strides = [1, 1, 1, 1]} : vector<1x10x10x16xf32> to vector<1x8x8x16xf32>
    %69 = vector.shape_cast %68 : vector<1x8x8x16xf32> to vector<64x16xf32>
    %70 = vector.extract_strided_slice %55 {offsets = [0, 2, 1, 0], sizes = [1, 8, 8, 16], strides = [1, 1, 1, 1]} : vector<1x10x10x16xf32> to vector<1x8x8x16xf32>
    %71 = vector.shape_cast %70 : vector<1x8x8x16xf32> to vector<64x16xf32>
    %72 = vector.extract_strided_slice %55 {offsets = [0, 2, 2, 0], sizes = [1, 8, 8, 16], strides = [1, 1, 1, 1]} : vector<1x10x10x16xf32> to vector<1x8x8x16xf32>
    %73 = vector.shape_cast %72 : vector<1x8x8x16xf32> to vector<64x16xf32>
    %74 = tpu.concatenate %57, %59, %61, %63, %65, %67, %69, %71, %73 in 1 : vector<64x16xf32>, vector<64x16xf32>, vector<64x16xf32>, vector<64x16xf32>, vector<64x16xf32>, vector<64x16xf32>, vector<64x16xf32>, vector<64x16xf32>, vector<64x16xf32> -> vector<64x144xf32>
    %c0_65 = arith.constant 0 : index
    %c0_66 = arith.constant 0 : index
    %75 = vector.load %arg5[%c0_65, %c0_66] : memref<144x16xf32, #tpu.memory_space<vmem>>, vector<144x16xf32>
    %cst_67 = arith.constant dense<0.000000e+00> : vector<64x16xf32>
    %76 = tpu.matmul %74, %75, %cst_67 {dimension_numbers = #tpu.dot_dimension_numbers<[1], [0], [0], [1], [0, 0, 1, 1], [], []>} : vector<64x144xf32>, vector<144x16xf32>, vector<64x16xf32> -> vector<64x16xf32>
    %c0_68 = arith.constant 0 : index
    %c0_69 = arith.constant 0 : index
    %77 = vector.load %arg6[%c0_68, %c0_69] : memref<1x16xf32, #tpu.memory_space<vmem>>, vector<1x16xf32>
    %78 = vector.broadcast %77 : vector<1x16xf32> to vector<64x16xf32>
    %79 = arith.addf %76, %78 : vector<64x16xf32>
    %80 = vector.shape_cast %0 : vector<1x8x8x16xf32> to vector<64x16xf32>
    %c0_70 = arith.constant 0 : index
    %c0_71 = arith.constant 0 : index
    %81 = vector.load %arg7[%c0_70, %c0_71] : memref<16x16xf32, #tpu.memory_space<vmem>>, vector<16x16xf32>
    %cst_72 = arith.constant dense<0.000000e+00> : vector<64x16xf32>
    %82 = tpu.matmul %80, %81, %cst_72 {dimension_numbers = #tpu.dot_dimension_numbers<[1], [0], [0], [1], [0, 0, 1, 1], [], []>} : vector<64x16xf32>, vector<16x16xf32>, vector<64x16xf32> -> vector<64x16xf32>
    %c0_73 = arith.constant 0 : index
    %83 = memref.load %arg1[%c0_73] : memref<1xf32, #tpu.memory_space<smem>>
    %84 = vector.broadcast %83 : f32 to vector<64x16xf32>
    %85 = arith.mulf %84, %79 : vector<64x16xf32>
    %86 = arith.addf %85, %82 : vector<64x16xf32>
    %87 = vector.shape_cast %86 : vector<64x16xf32> to vector<1x8x8x16xf32>
    %c0_74 = arith.constant 0 : index
    %c0_75 = arith.constant 0 : index
    %c0_76 = arith.constant 0 : index
    %c0_77 = arith.constant 0 : index
    %88 = vector.load %arg8[%c0_74, %c0_75, %c0_76, %c0_77] : memref<1x8x8x16xf32, #tpu.memory_space<vmem>>, vector<1x8x8x16xf32>
    tpu.vector_store %arg8[%c0_74, %c0_75, %c0_76, %c0_77], %87 {strides = array<i32>} : memref<1x8x8x16xf32, #tpu.memory_space<vmem>>, vector<1x8x8x16xf32>,
    return
  }
  func.func @transform_0(%arg0: i32) -> i32 {
    %c0_i32 = arith.constant 0 : i32
    %c0_i32_0 = arith.constant 0 : i32
    return %c0_i32 : i32
  }
  func.func @transform_1(%arg0: i32) -> (i32, i32, i32, i32) {
    %c0_i32 = arith.constant 0 : i32
    %c0_i32_0 = arith.constant 0 : i32
    %c0_i32_1 = arith.constant 0 : i32
    %c0_i32_2 = arith.constant 0 : i32
    return %arg0, %c0_i32, %c0_i32_0, %c0_i32_1 : i32, i32, i32, i32
  }
  func.func @transform_2(%arg0: i32) -> (i32, i32) {
    %c0_i32 = arith.constant 0 : i32
    %c0_i32_0 = arith.constant 0 : i32
    %c0_i32_1 = arith.constant 0 : i32
    return %c0_i32, %c0_i32_0 : i32, i32
  }
  func.func @transform_3(%arg0: i32) -> (i32, i32) {
    %c0_i32 = arith.constant 0 : i32
    %c0_i32_0 = arith.constant 0 : i32
    %c0_i32_1 = arith.constant 0 : i32
    return %c0_i32, %c0_i32_0 : i32, i32
  }
  func.func @transform_4(%arg0: i32) -> (i32, i32) {
    %c0_i32 = arith.constant 0 : i32
    %c0_i32_0 = arith.constant 0 : i32
    %c0_i32_1 = arith.constant 0 : i32
    return %c0_i32, %c0_i32_0 : i32, i32
  }
  func.func @transform_5(%arg0: i32) -> (i32, i32) {
    %c0_i32 = arith.constant 0 : i32
    %c0_i32_0 = arith.constant 0 : i32
    %c0_i32_1 = arith.constant 0 : i32
    return %c0_i32, %c0_i32_0 : i32, i32
  }
  func.func @transform_6(%arg0: i32) -> (i32, i32) {
    %c0_i32 = arith.constant 0 : i32
    %c0_i32_0 = arith.constant 0 : i32
    %c0_i32_1 = arith.constant 0 : i32
    return %c0_i32, %c0_i32_0 : i32, i32
  }
  func.func @transform_7(%arg0: i32) -> (i32, i32, i32, i32) {
    %c0_i32 = arith.constant 0 : i32
    %c0_i32_0 = arith.constant 0 : i32
    %c0_i32_1 = arith.constant 0 : i32
    %c0_i32_2 = arith.constant 0 : i32
    return %arg0, %c0_i32, %c0_i32_0, %c0_i32_1 : i32, i32, i32, i32
  }
}

module attributes {stable_mosaic.version = 11 : i64} {
  func.func @resblock_kernel(%arg0: i32, %arg1: memref<1xf32, #tpu.memory_space<smem>>, %arg2: memref<1x16x16x16xf32, #tpu.memory_space<vmem>>, %arg3: memref<144x8xf32, #tpu.memory_space<vmem>>, %arg4: memref<1x8xf32, #tpu.memory_space<vmem>>, %arg5: memref<72x8xf32, #tpu.memory_space<vmem>>, %arg6: memref<1x8xf32, #tpu.memory_space<vmem>>, %arg7: memref<16x8xf32, #tpu.memory_space<vmem>>, %arg8: memref<1x16x16x8xf32, #tpu.memory_space<vmem>>, %arg9: memref<1x18x18x16xf32, #tpu.memory_space<vmem>>, %arg10: memref<1x18x18x8xf32, #tpu.memory_space<vmem>>) attributes {dimension_semantics = [#tpu.dimension_semantics<parallel>], iteration_bounds = array<i64: 2>, scalar_prefetch = 0 : i64, scratch_operands = 2 : i64, tpu.core_type = #tpu.core_type<tc>, window_params = [{transform_indices = @transform_0, window_bounds = array<i64: 1>}, {transform_indices = @transform_1, window_bounds = array<i64: 1, 16, 16, 16>}, {pipeline_mode = #tpu.pipeline_mode<synchronous>, transform_indices = @transform_2, window_bounds = array<i64: 144, 8>}, {pipeline_mode = #tpu.pipeline_mode<synchronous>, transform_indices = @transform_3, window_bounds = array<i64: 1, 8>}, {pipeline_mode = #tpu.pipeline_mode<synchronous>, transform_indices = @transform_4, window_bounds = array<i64: 72, 8>}, {pipeline_mode = #tpu.pipeline_mode<synchronous>, transform_indices = @transform_5, window_bounds = array<i64: 1, 8>}, {pipeline_mode = #tpu.pipeline_mode<synchronous>, transform_indices = @transform_6, window_bounds = array<i64: 16, 8>}, {transform_indices = @transform_7, window_bounds = array<i64: 1, 16, 16, 8>}]} {
    %c0 = arith.constant 0 : index
    %c0_0 = arith.constant 0 : index
    %c0_1 = arith.constant 0 : index
    %c0_2 = arith.constant 0 : index
    %0 = vector.load %arg2[%c0, %c0_0, %c0_1, %c0_2] : memref<1x16x16x16xf32, #tpu.memory_space<vmem>>, vector<1x16x16x16xf32>
    %cst = arith.constant 0.000000e+00 : f32
    %1 = vector.broadcast %cst : f32 to vector<1x1x18x16xf32>
    %c0_3 = arith.constant 0 : index
    %c0_4 = arith.constant 0 : index
    %c0_5 = arith.constant 0 : index
    %c0_6 = arith.constant 0 : index
    %2 = vector.load %arg9[%c0_3, %c0_4, %c0_5, %c0_6] : memref<1x18x18x16xf32, #tpu.memory_space<vmem>>, vector<1x1x18x16xf32>
    tpu.vector_store %arg9[%c0_3, %c0_4, %c0_5, %c0_6], %1 {strides = array<i32>} : memref<1x18x18x16xf32, #tpu.memory_space<vmem>>, vector<1x1x18x16xf32>,
    %cst_7 = arith.constant 0.000000e+00 : f32
    %3 = vector.broadcast %cst_7 : f32 to vector<1x1x18x16xf32>
    %c0_8 = arith.constant 0 : index
    %c17 = arith.constant 17 : index
    %c0_9 = arith.constant 0 : index
    %c0_10 = arith.constant 0 : index
    %4 = vector.load %arg9[%c0_8, %c17, %c0_9, %c0_10] : memref<1x18x18x16xf32, #tpu.memory_space<vmem>>, vector<1x1x18x16xf32>
    tpu.vector_store %arg9[%c0_8, %c17, %c0_9, %c0_10], %3 {strides = array<i32>} : memref<1x18x18x16xf32, #tpu.memory_space<vmem>>, vector<1x1x18x16xf32>,
    %cst_11 = arith.constant 0.000000e+00 : f32
    %5 = vector.broadcast %cst_11 : f32 to vector<1x18x1x16xf32>
    %c0_12 = arith.constant 0 : index
    %c0_13 = arith.constant 0 : index
    %c0_14 = arith.constant 0 : index
    %c0_15 = arith.constant 0 : index
    %6 = vector.load %arg9[%c0_12, %c0_13, %c0_14, %c0_15] : memref<1x18x18x16xf32, #tpu.memory_space<vmem>>, vector<1x18x1x16xf32>
    tpu.vector_store %arg9[%c0_12, %c0_13, %c0_14, %c0_15], %5 {strides = array<i32>} : memref<1x18x18x16xf32, #tpu.memory_space<vmem>>, vector<1x18x1x16xf32>,
    %cst_16 = arith.constant 0.000000e+00 : f32
    %7 = vector.broadcast %cst_16 : f32 to vector<1x18x1x16xf32>
    %c0_17 = arith.constant 0 : index
    %c0_18 = arith.constant 0 : index
    %c17_19 = arith.constant 17 : index
    %c0_20 = arith.constant 0 : index
    %8 = vector.load %arg9[%c0_17, %c0_18, %c17_19, %c0_20] : memref<1x18x18x16xf32, #tpu.memory_space<vmem>>, vector<1x18x1x16xf32>
    tpu.vector_store %arg9[%c0_17, %c0_18, %c17_19, %c0_20], %7 {strides = array<i32>} : memref<1x18x18x16xf32, #tpu.memory_space<vmem>>, vector<1x18x1x16xf32>,
    %cst_21 = arith.constant 0.000000e+00 : f32
    %9 = vector.broadcast %cst_21 : f32 to vector<1x16x16x16xf32>
    %10 = arith.cmpf ogt, %0, %9 : vector<1x16x16x16xf32>
    %cst_22 = arith.constant 2.000000e-01 : f32
    %11 = vector.broadcast %cst_22 : f32 to vector<1x16x16x16xf32>
    %12 = arith.mulf %11, %0 : vector<1x16x16x16xf32>
    %13 = arith.select %10, %0, %12 : vector<1x16x16x16xi1>, vector<1x16x16x16xf32>
    %c0_23 = arith.constant 0 : index
    %c1 = arith.constant 1 : index
    %c1_24 = arith.constant 1 : index
    %c0_25 = arith.constant 0 : index
    %14 = vector.load %arg9[%c0_23, %c1, %c1_24, %c0_25] : memref<1x18x18x16xf32, #tpu.memory_space<vmem>>, vector<1x16x16x16xf32>
    tpu.vector_store %arg9[%c0_23, %c1, %c1_24, %c0_25], %13 {strides = array<i32>} : memref<1x18x18x16xf32, #tpu.memory_space<vmem>>, vector<1x16x16x16xf32>,
    %c0_26 = arith.constant 0 : index
    %c0_27 = arith.constant 0 : index
    %c0_28 = arith.constant 0 : index
    %c0_29 = arith.constant 0 : index
    %15 = vector.load %arg9[%c0_26, %c0_27, %c0_28, %c0_29] : memref<1x18x18x16xf32, #tpu.memory_space<vmem>>, vector<1x18x18x16xf32>
    %16 = vector.extract_strided_slice %15 {offsets = [0, 0, 0, 0], sizes = [1, 16, 16, 16], strides = [1, 1, 1, 1]} : vector<1x18x18x16xf32> to vector<1x16x16x16xf32>
    %17 = vector.shape_cast %16 : vector<1x16x16x16xf32> to vector<256x16xf32>
    %18 = vector.extract_strided_slice %15 {offsets = [0, 0, 1, 0], sizes = [1, 16, 16, 16], strides = [1, 1, 1, 1]} : vector<1x18x18x16xf32> to vector<1x16x16x16xf32>
    %19 = vector.shape_cast %18 : vector<1x16x16x16xf32> to vector<256x16xf32>
    %20 = vector.extract_strided_slice %15 {offsets = [0, 0, 2, 0], sizes = [1, 16, 16, 16], strides = [1, 1, 1, 1]} : vector<1x18x18x16xf32> to vector<1x16x16x16xf32>
    %21 = vector.shape_cast %20 : vector<1x16x16x16xf32> to vector<256x16xf32>
    %22 = vector.extract_strided_slice %15 {offsets = [0, 1, 0, 0], sizes = [1, 16, 16, 16], strides = [1, 1, 1, 1]} : vector<1x18x18x16xf32> to vector<1x16x16x16xf32>
    %23 = vector.shape_cast %22 : vector<1x16x16x16xf32> to vector<256x16xf32>
    %24 = vector.extract_strided_slice %15 {offsets = [0, 1, 1, 0], sizes = [1, 16, 16, 16], strides = [1, 1, 1, 1]} : vector<1x18x18x16xf32> to vector<1x16x16x16xf32>
    %25 = vector.shape_cast %24 : vector<1x16x16x16xf32> to vector<256x16xf32>
    %26 = vector.extract_strided_slice %15 {offsets = [0, 1, 2, 0], sizes = [1, 16, 16, 16], strides = [1, 1, 1, 1]} : vector<1x18x18x16xf32> to vector<1x16x16x16xf32>
    %27 = vector.shape_cast %26 : vector<1x16x16x16xf32> to vector<256x16xf32>
    %28 = vector.extract_strided_slice %15 {offsets = [0, 2, 0, 0], sizes = [1, 16, 16, 16], strides = [1, 1, 1, 1]} : vector<1x18x18x16xf32> to vector<1x16x16x16xf32>
    %29 = vector.shape_cast %28 : vector<1x16x16x16xf32> to vector<256x16xf32>
    %30 = vector.extract_strided_slice %15 {offsets = [0, 2, 1, 0], sizes = [1, 16, 16, 16], strides = [1, 1, 1, 1]} : vector<1x18x18x16xf32> to vector<1x16x16x16xf32>
    %31 = vector.shape_cast %30 : vector<1x16x16x16xf32> to vector<256x16xf32>
    %32 = vector.extract_strided_slice %15 {offsets = [0, 2, 2, 0], sizes = [1, 16, 16, 16], strides = [1, 1, 1, 1]} : vector<1x18x18x16xf32> to vector<1x16x16x16xf32>
    %33 = vector.shape_cast %32 : vector<1x16x16x16xf32> to vector<256x16xf32>
    %34 = tpu.concatenate %17, %19, %21, %23, %25, %27, %29, %31, %33 in 1 : vector<256x16xf32>, vector<256x16xf32>, vector<256x16xf32>, vector<256x16xf32>, vector<256x16xf32>, vector<256x16xf32>, vector<256x16xf32>, vector<256x16xf32>, vector<256x16xf32> -> vector<256x144xf32>
    %c0_30 = arith.constant 0 : index
    %c0_31 = arith.constant 0 : index
    %35 = vector.load %arg3[%c0_30, %c0_31] : memref<144x8xf32, #tpu.memory_space<vmem>>, vector<144x8xf32>
    %cst_32 = arith.constant dense<0.000000e+00> : vector<256x8xf32>
    %36 = tpu.matmul %34, %35, %cst_32 {dimension_numbers = #tpu.dot_dimension_numbers<[1], [0], [0], [1], [0, 0, 1, 1], [], []>} : vector<256x144xf32>, vector<144x8xf32>, vector<256x8xf32> -> vector<256x8xf32>
    %c0_33 = arith.constant 0 : index
    %c0_34 = arith.constant 0 : index
    %37 = vector.load %arg4[%c0_33, %c0_34] : memref<1x8xf32, #tpu.memory_space<vmem>>, vector<1x8xf32>
    %38 = vector.broadcast %37 : vector<1x8xf32> to vector<256x8xf32>
    %39 = arith.addf %36, %38 : vector<256x8xf32>
    %cst_35 = arith.constant 0.000000e+00 : f32
    %40 = vector.broadcast %cst_35 : f32 to vector<1x1x18x8xf32>
    %c0_36 = arith.constant 0 : index
    %c0_37 = arith.constant 0 : index
    %c0_38 = arith.constant 0 : index
    %c0_39 = arith.constant 0 : index
    %41 = vector.load %arg10[%c0_36, %c0_37, %c0_38, %c0_39] : memref<1x18x18x8xf32, #tpu.memory_space<vmem>>, vector<1x1x18x8xf32>
    tpu.vector_store %arg10[%c0_36, %c0_37, %c0_38, %c0_39], %40 {strides = array<i32>} : memref<1x18x18x8xf32, #tpu.memory_space<vmem>>, vector<1x1x18x8xf32>,
    %cst_40 = arith.constant 0.000000e+00 : f32
    %42 = vector.broadcast %cst_40 : f32 to vector<1x1x18x8xf32>
    %c0_41 = arith.constant 0 : index
    %c17_42 = arith.constant 17 : index
    %c0_43 = arith.constant 0 : index
    %c0_44 = arith.constant 0 : index
    %43 = vector.load %arg10[%c0_41, %c17_42, %c0_43, %c0_44] : memref<1x18x18x8xf32, #tpu.memory_space<vmem>>, vector<1x1x18x8xf32>
    tpu.vector_store %arg10[%c0_41, %c17_42, %c0_43, %c0_44], %42 {strides = array<i32>} : memref<1x18x18x8xf32, #tpu.memory_space<vmem>>, vector<1x1x18x8xf32>,
    %cst_45 = arith.constant 0.000000e+00 : f32
    %44 = vector.broadcast %cst_45 : f32 to vector<1x18x1x8xf32>
    %c0_46 = arith.constant 0 : index
    %c0_47 = arith.constant 0 : index
    %c0_48 = arith.constant 0 : index
    %c0_49 = arith.constant 0 : index
    %45 = vector.load %arg10[%c0_46, %c0_47, %c0_48, %c0_49] : memref<1x18x18x8xf32, #tpu.memory_space<vmem>>, vector<1x18x1x8xf32>
    tpu.vector_store %arg10[%c0_46, %c0_47, %c0_48, %c0_49], %44 {strides = array<i32>} : memref<1x18x18x8xf32, #tpu.memory_space<vmem>>, vector<1x18x1x8xf32>,
    %cst_50 = arith.constant 0.000000e+00 : f32
    %46 = vector.broadcast %cst_50 : f32 to vector<1x18x1x8xf32>
    %c0_51 = arith.constant 0 : index
    %c0_52 = arith.constant 0 : index
    %c17_53 = arith.constant 17 : index
    %c0_54 = arith.constant 0 : index
    %47 = vector.load %arg10[%c0_51, %c0_52, %c17_53, %c0_54] : memref<1x18x18x8xf32, #tpu.memory_space<vmem>>, vector<1x18x1x8xf32>
    tpu.vector_store %arg10[%c0_51, %c0_52, %c17_53, %c0_54], %46 {strides = array<i32>} : memref<1x18x18x8xf32, #tpu.memory_space<vmem>>, vector<1x18x1x8xf32>,
    %cst_55 = arith.constant 0.000000e+00 : f32
    %48 = vector.broadcast %cst_55 : f32 to vector<256x8xf32>
    %49 = arith.cmpf ogt, %39, %48 : vector<256x8xf32>
    %cst_56 = arith.constant 2.000000e-01 : f32
    %50 = vector.broadcast %cst_56 : f32 to vector<256x8xf32>
    %51 = arith.mulf %50, %39 : vector<256x8xf32>
    %52 = arith.select %49, %39, %51 : vector<256x8xi1>, vector<256x8xf32>
    %53 = vector.shape_cast %52 : vector<256x8xf32> to vector<1x16x16x8xf32>
    %c0_57 = arith.constant 0 : index
    %c1_58 = arith.constant 1 : index
    %c1_59 = arith.constant 1 : index
    %c0_60 = arith.constant 0 : index
    %54 = vector.load %arg10[%c0_57, %c1_58, %c1_59, %c0_60] : memref<1x18x18x8xf32, #tpu.memory_space<vmem>>, vector<1x16x16x8xf32>
    tpu.vector_store %arg10[%c0_57, %c1_58, %c1_59, %c0_60], %53 {strides = array<i32>} : memref<1x18x18x8xf32, #tpu.memory_space<vmem>>, vector<1x16x16x8xf32>,
    %c0_61 = arith.constant 0 : index
    %c0_62 = arith.constant 0 : index
    %c0_63 = arith.constant 0 : index
    %c0_64 = arith.constant 0 : index
    %55 = vector.load %arg10[%c0_61, %c0_62, %c0_63, %c0_64] : memref<1x18x18x8xf32, #tpu.memory_space<vmem>>, vector<1x18x18x8xf32>
    %56 = vector.extract_strided_slice %55 {offsets = [0, 0, 0, 0], sizes = [1, 16, 16, 8], strides = [1, 1, 1, 1]} : vector<1x18x18x8xf32> to vector<1x16x16x8xf32>
    %57 = vector.shape_cast %56 : vector<1x16x16x8xf32> to vector<256x8xf32>
    %58 = vector.extract_strided_slice %55 {offsets = [0, 0, 1, 0], sizes = [1, 16, 16, 8], strides = [1, 1, 1, 1]} : vector<1x18x18x8xf32> to vector<1x16x16x8xf32>
    %59 = vector.shape_cast %58 : vector<1x16x16x8xf32> to vector<256x8xf32>
    %60 = vector.extract_strided_slice %55 {offsets = [0, 0, 2, 0], sizes = [1, 16, 16, 8], strides = [1, 1, 1, 1]} : vector<1x18x18x8xf32> to vector<1x16x16x8xf32>
    %61 = vector.shape_cast %60 : vector<1x16x16x8xf32> to vector<256x8xf32>
    %62 = vector.extract_strided_slice %55 {offsets = [0, 1, 0, 0], sizes = [1, 16, 16, 8], strides = [1, 1, 1, 1]} : vector<1x18x18x8xf32> to vector<1x16x16x8xf32>
    %63 = vector.shape_cast %62 : vector<1x16x16x8xf32> to vector<256x8xf32>
    %64 = vector.extract_strided_slice %55 {offsets = [0, 1, 1, 0], sizes = [1, 16, 16, 8], strides = [1, 1, 1, 1]} : vector<1x18x18x8xf32> to vector<1x16x16x8xf32>
    %65 = vector.shape_cast %64 : vector<1x16x16x8xf32> to vector<256x8xf32>
    %66 = vector.extract_strided_slice %55 {offsets = [0, 1, 2, 0], sizes = [1, 16, 16, 8], strides = [1, 1, 1, 1]} : vector<1x18x18x8xf32> to vector<1x16x16x8xf32>
    %67 = vector.shape_cast %66 : vector<1x16x16x8xf32> to vector<256x8xf32>
    %68 = vector.extract_strided_slice %55 {offsets = [0, 2, 0, 0], sizes = [1, 16, 16, 8], strides = [1, 1, 1, 1]} : vector<1x18x18x8xf32> to vector<1x16x16x8xf32>
    %69 = vector.shape_cast %68 : vector<1x16x16x8xf32> to vector<256x8xf32>
    %70 = vector.extract_strided_slice %55 {offsets = [0, 2, 1, 0], sizes = [1, 16, 16, 8], strides = [1, 1, 1, 1]} : vector<1x18x18x8xf32> to vector<1x16x16x8xf32>
    %71 = vector.shape_cast %70 : vector<1x16x16x8xf32> to vector<256x8xf32>
    %72 = vector.extract_strided_slice %55 {offsets = [0, 2, 2, 0], sizes = [1, 16, 16, 8], strides = [1, 1, 1, 1]} : vector<1x18x18x8xf32> to vector<1x16x16x8xf32>
    %73 = vector.shape_cast %72 : vector<1x16x16x8xf32> to vector<256x8xf32>
    %74 = tpu.concatenate %57, %59, %61, %63, %65, %67, %69, %71, %73 in 1 : vector<256x8xf32>, vector<256x8xf32>, vector<256x8xf32>, vector<256x8xf32>, vector<256x8xf32>, vector<256x8xf32>, vector<256x8xf32>, vector<256x8xf32>, vector<256x8xf32> -> vector<256x72xf32>
    %c0_65 = arith.constant 0 : index
    %c0_66 = arith.constant 0 : index
    %75 = vector.load %arg5[%c0_65, %c0_66] : memref<72x8xf32, #tpu.memory_space<vmem>>, vector<72x8xf32>
    %cst_67 = arith.constant dense<0.000000e+00> : vector<256x8xf32>
    %76 = tpu.matmul %74, %75, %cst_67 {dimension_numbers = #tpu.dot_dimension_numbers<[1], [0], [0], [1], [0, 0, 1, 1], [], []>} : vector<256x72xf32>, vector<72x8xf32>, vector<256x8xf32> -> vector<256x8xf32>
    %c0_68 = arith.constant 0 : index
    %c0_69 = arith.constant 0 : index
    %77 = vector.load %arg6[%c0_68, %c0_69] : memref<1x8xf32, #tpu.memory_space<vmem>>, vector<1x8xf32>
    %78 = vector.broadcast %77 : vector<1x8xf32> to vector<256x8xf32>
    %79 = arith.addf %76, %78 : vector<256x8xf32>
    %80 = vector.shape_cast %0 : vector<1x16x16x16xf32> to vector<256x16xf32>
    %c0_70 = arith.constant 0 : index
    %c0_71 = arith.constant 0 : index
    %81 = vector.load %arg7[%c0_70, %c0_71] : memref<16x8xf32, #tpu.memory_space<vmem>>, vector<16x8xf32>
    %cst_72 = arith.constant dense<0.000000e+00> : vector<256x8xf32>
    %82 = tpu.matmul %80, %81, %cst_72 {dimension_numbers = #tpu.dot_dimension_numbers<[1], [0], [0], [1], [0, 0, 1, 1], [], []>} : vector<256x16xf32>, vector<16x8xf32>, vector<256x8xf32> -> vector<256x8xf32>
    %c0_73 = arith.constant 0 : index
    %83 = memref.load %arg1[%c0_73] : memref<1xf32, #tpu.memory_space<smem>>
    %84 = vector.broadcast %83 : f32 to vector<256x8xf32>
    %85 = arith.mulf %84, %79 : vector<256x8xf32>
    %86 = arith.addf %85, %82 : vector<256x8xf32>
    %87 = vector.shape_cast %86 : vector<256x8xf32> to vector<1x16x16x8xf32>
    %c0_74 = arith.constant 0 : index
    %c0_75 = arith.constant 0 : index
    %c0_76 = arith.constant 0 : index
    %c0_77 = arith.constant 0 : index
    %88 = vector.load %arg8[%c0_74, %c0_75, %c0_76, %c0_77] : memref<1x16x16x8xf32, #tpu.memory_space<vmem>>, vector<1x16x16x8xf32>
    tpu.vector_store %arg8[%c0_74, %c0_75, %c0_76, %c0_77], %87 {strides = array<i32>} : memref<1x16x16x8xf32, #tpu.memory_space<vmem>>, vector<1x16x16x8xf32>,
    return
  }
  func.func @transform_0(%arg0: i32) -> i32 {
    %c0_i32 = arith.constant 0 : i32
    %c0_i32_0 = arith.constant 0 : i32
    return %c0_i32 : i32
  }
  func.func @transform_1(%arg0: i32) -> (i32, i32, i32, i32) {
    %c0_i32 = arith.constant 0 : i32
    %c0_i32_0 = arith.constant 0 : i32
    %c0_i32_1 = arith.constant 0 : i32
    %c0_i32_2 = arith.constant 0 : i32
    return %arg0, %c0_i32, %c0_i32_0, %c0_i32_1 : i32, i32, i32, i32
  }
  func.func @transform_2(%arg0: i32) -> (i32, i32) {
    %c0_i32 = arith.constant 0 : i32
    %c0_i32_0 = arith.constant 0 : i32
    %c0_i32_1 = arith.constant 0 : i32
    return %c0_i32, %c0_i32_0 : i32, i32
  }
  func.func @transform_3(%arg0: i32) -> (i32, i32) {
    %c0_i32 = arith.constant 0 : i32
    %c0_i32_0 = arith.constant 0 : i32
    %c0_i32_1 = arith.constant 0 : i32
    return %c0_i32, %c0_i32_0 : i32, i32
  }
  func.func @transform_4(%arg0: i32) -> (i32, i32) {
    %c0_i32 = arith.constant 0 : i32
    %c0_i32_0 = arith.constant 0 : i32
    %c0_i32_1 = arith.constant 0 : i32
    return %c0_i32, %c0_i32_0 : i32, i32
  }
  func.func @transform_5(%arg0: i32) -> (i32, i32) {
    %c0_i32 = arith.constant 0 : i32
    %c0_i32_0 = arith.constant 0 : i32
    %c0_i32_1 = arith.constant 0 : i32
    return %c0_i32, %c0_i32_0 : i32, i32
  }
  func.func @transform_6(%arg0: i32) -> (i32, i32) {
    %c0_i32 = arith.constant 0 : i32
    %c0_i32_0 = arith.constant 0 : i32
    %c0_i32_1 = arith.constant 0 : i32
    return %c0_i32, %c0_i32_0 : i32, i32
  }
  func.func @transform_7(%arg0: i32) -> (i32, i32, i32, i32) {
    %c0_i32 = arith.constant 0 : i32
    %c0_i32_0 = arith.constant 0 : i32
    %c0_i32_1 = arith.constant 0 : i32
    %c0_i32_2 = arith.constant 0 : i32
    return %arg0, %c0_i32, %c0_i32_0, %c0_i32_1 : i32, i32, i32, i32
  }
}

</mosaic_0001>

<llo_original>
// kernel: res_generator_forward.3
$region0: #{res_generator_forward.3}
  #allocation0 [shape = 'u32[]', space=smem, size = 0x4, offset = 0x4, fixed_abs, tag = 'smem constant byte address 0x4 - core index']
  #allocation1 [shape = 'u32[144,128]{1,0:T(1,128)}', space=vmem, size = 0x12000, scoped, tag = 'internal scratch']
  %s0 = inlined_call_operand.vmem [shape: f32[2,32], index: 0, kind: input, shape index: {}]
  %s1 = inlined_call_operand.hbm [shape: f32[32,256], index: 1, kind: input, shape index: {}]
  %s2 = inlined_call_operand.vmem [shape: f32[1,256], index: 2, kind: input, shape index: {}]
  %s3 = inlined_call_operand.vmem [shape: f32[2,256], index: 3, kind: output, shape index: {}]
  %s4 = sld [smem:[#allocation0]]
  $region26: #{res_generator_forward.3} parent=0
    _
  %s6 = ssub.s32 1, %s4
  %s7 = scalar_select 0, %s6, %s4
  $region1: #{res_generator_forward.3} parent=0
    #allocation2 [shape = 'u8[32768]{0}', space=vmem, size = 0x8000, scoped, tag = 'input window, operand 1, single buffered']
    #allocation3 [shape = 's32[1]{0}', space=sflag, size = 0x4, scoped, tag = 'scoped memory for res_generator_forward.3']
    %8 = vsyncpa [#allocation3], 0
    // Predicated region
    $region2: #{res_generator_forward.3} parent=1 // pred_check
      _
    $region3: #{res_generator_forward.3} parent=1 // pred_check_branch
      %10 = sbr.rel (0) target = $region5
    $region4: #{res_generator_forward.3} parent=1 // pred_region
      _
    $region5: #{res_generator_forward.3} parent=1 // pred_fallthru
      _
    // Predicated region
    $region6: #{res_generator_forward.3} parent=1 // pred_check
      _
    $region7: #{res_generator_forward.3} parent=1 // pred_check_branch
      %12 = sbr.rel (0) target = $region9
    $region8: #{res_generator_forward.3} parent=1 // pred_region
      %s14 = ssub.s32 1024, 1024
      %15 = vsyncadd [#allocation3], %s14
      %s16 = sshll.u32 [#allocation2], 4
      %s17 = int_to_ptr.vmem [resolvable:$true] %s16
      %22 = dma.hbm_to_vmem [thread:$0]  %s1, 1024, %s17, [#allocation3], 256, 256, 16
    $region9: #{res_generator_forward.3} parent=1 // pred_fallthru
      _
    // Predicated region
    $region10: #{res_generator_forward.3} parent=1 // pred_check
      _
    $region11: #{res_generator_forward.3} parent=1 // pred_check_branch
      %24 = sbr.rel (0) target = $region13
    $region12: #{res_generator_forward.3} parent=1 // pred_region
      _
    $region13: #{res_generator_forward.3} parent=1 // pred_fallthru
      _
    // Predicated region
    $region14: #{res_generator_forward.3} parent=1 // pred_check
      _
    $region15: #{res_generator_forward.3} parent=1 // pred_check_branch
      %26 = sbr.rel (0) target = $region17
    $region16: #{res_generator_forward.3} parent=1 // pred_region
      %27 = dma.done [#allocation3], 1024
    $region17: #{res_generator_forward.3} parent=1 // pred_fallthru
      _
    %v28 = vld [vmem:[%s0] sm:$0x3]
    %v29 = vld [vmem:[#allocation2] sm:$0xff]
    %v30 = vld [vmem:[#allocation2 + $0x8] sm:$0xff]
    %v31 = vld [vmem:[#allocation2 + $0x10] sm:$0xff]
    %v32 = vld [vmem:[#allocation2 + $0x18] sm:$0xff]
    %v33 = vld [vmem:[#allocation2 + $0x20] sm:$0xff]
    %v34 = vld [vmem:[#allocation2 + $0x28] sm:$0xff]
    %v35 = vld [vmem:[#allocation2 + $0x30] sm:$0xff]
    %v36 = vld [vmem:[#allocation2 + $0x38] sm:$0xff]
    %v37 = vld [vmem:[%s2] sm:$0x3]
    %v39 = vlaneseq
    %v40 = vshrl.u32 %v39, 7
    %v41 = vsub.s32 0, %v40
    %v42 = vrot.slane %v37, %v41
    %v43 = vlaneseq
    %v44 = vshrl.u32 %v43, 7
    %v45 = vsub.s32 1, %v44
    %v46 = vrot.slane %v37, %v45
    %vm49 = vcmask 261120
    %v51 = vsel %vm49, %v28, 0
    %53 = vmatprep.subr.mxu0 %v30
    %54 = vmatpush1.msra.mxu0 %v29
    %55 = vmatprep.subr.mxu0 %v32
    %56 = vmatpush1.msra.mxu0 %v31
    %57 = vmatprep.subr.mxu0 %v34
    %58 = vmatpush1.msra.mxu0 %v33
    %59 = vmatprep.subr.mxu0 %v36
    %60 = vmatpush1.msra.mxu0 %v35
    %61 = vmatprep.subr.mxu0 0.0
    %62 = vmatpush1.msra.mxu0 0.0
    %63 = vmatprep.subr.mxu0 0.0
    %64 = vmatpush1.msra.mxu0 0.0
    %65 = vmatprep.subr.mxu0 0.0
    %66 = vmatpush1.msra.mxu0 0.0
    %67 = vmatprep.subr.mxu0 0.0
    %68 = vmatpush1.msra.mxu0 0.0
    %69 = vmatprep.subr.mxu0 0.0
    %70 = vmatpush1.msra.mxu0 0.0
    %71 = vmatprep.subr.mxu0 0.0
    %72 = vmatpush1.msra.mxu0 0.0
    %73 = vmatprep.subr.mxu0 0.0
    %74 = vmatpush1.msra.mxu0 0.0
    %75 = vmatprep.subr.mxu0 0.0
    %76 = vmatpush1.msra.mxu0 0.0
    %77 = vmatprep.subr.mxu0 0.0
    %78 = vmatpush1.msra.mxu0 0.0
    %79 = vmatprep.subr.mxu0 0.0
    %80 = vmatpush1.msra.mxu0 0.0
    %81 = vmatprep.subr.mxu0 0.0
    %82 = vmatpush1.msra.mxu0 0.0
    %83 = vmatprep.subr.mxu0 0.0
    %84 = vmatpush1.msra.mxu0 0.0
    %85 = vmatprep.subr.mxu0 0.0
    %86 = vmatpush1.msra.mxu0 0.0
    %87 = vmatprep.subr.mxu0 0.0
    %88 = vmatpush1.msra.mxu0 0.0
    %89 = vmatprep.subr.mxu0 0.0
    %90 = vmatpush1.msra.mxu0 0.0
    %91 = vmatprep.subr.mxu0 0.0
    %92 = vmatpush1.msra.mxu0 0.0
    %93 = vmatprep.subr.mxu0 0.0
    %94 = vmatpush1.msra.mxu0 0.0
    %95 = vmatprep.subr.mxu0 0.0
    %96 = vmatpush1.msra.mxu0 0.0
    %97 = vmatprep.subr.mxu0 0.0
    %98 = vmatpush1.msra.mxu0 0.0
    %99 = vmatprep.subr.mxu0 0.0
    %100 = vmatpush1.msra.mxu0 0.0
    %101 = vmatprep.subr.mxu0 0.0
    %102 = vmatpush1.msra.mxu0 0.0
    %103 = vmatprep.subr.mxu0 0.0
    %104 = vmatpush1.msra.mxu0 0.0
    %105 = vmatprep.subr.mxu0 0.0
    %106 = vmatpush1.msra.mxu0 0.0
    %107 = vmatprep.subr.mxu0 0.0
    %108 = vmatpush1.msra.mxu0 0.0
    %109 = vmatprep.subr.mxu0 0.0
    %110 = vmatpush1.msra.mxu0 0.0
    %111 = vmatprep.subr.mxu0 0.0
    %112 = vmatpush1.msra.mxu0 0.0
    %113 = vmatprep.subr.mxu0 0.0
    %114 = vmatpush1.msra.mxu0 0.0
    %115 = vmatprep.subr.mxu0 0.0
    %116 = vmatpush1.msra.mxu0 0.0
    %117 = vmatprep.mubr.f32.mxu0 0.0
    %118 = vmatmul.mubr.f32.gmra.mrb[0].mxu0 %v51
    %v119 = vpop.f32.mrb[0].mxu0
    %v120 = vadd.f32 %v42, %v119
    %v121 = vpop.f32.mrb[0].mxu0
    %v122 = vadd.f32 %v46, %v121
    %123 = vdwg.mxu0
    %v126 = vcombine.low %v120, %v122
    %v128 = vunpack.c.l.s4 1983009808
    %v129 = vunpack.c.0.s8 %v128
    %v130 = vlaneseq
    %v131 = vshrl.u32 %v130, 7
    %v132 = vsub.s32 %v129, %v131
    %v133 = vrot.slane %v126, %v132
    %135 = vst [vmem:[%s3] sm:$0xf] %v133
    // Predicated region
    $region18: #{res_generator_forward.3} parent=1 // pred_check
      _
    $region19: #{res_generator_forward.3} parent=1 // pred_check_branch
      %137 = sbr.rel (0) target = $region21
    $region20: #{res_generator_forward.3} parent=1 // pred_region
      _
    $region21: #{res_generator_forward.3} parent=1 // pred_fallthru
      _
    // Predicated region
    $region22: #{res_generator_forward.3} parent=1 // pred_check
      _
    $region23: #{res_generator_forward.3} parent=1 // pred_check_branch
      %139 = sbr.rel (0) target = $region25
    $region24: #{res_generator_forward.3} parent=1 // pred_region
      _
    $region25: #{res_generator_forward.3} parent=1 // pred_fallthru
      _
    %140 = vsyncpa [#allocation3], 1

// kernel: res_generator_forward.4
$region0: #{res_generator_forward.4}
  #allocation0 [shape = 'u32[]', space=smem, size = 0x4, offset = 0x4, fixed_abs, tag = 'smem constant byte address 0x4 - core index']
  #allocation1 [shape = 'u32[144,128]{1,0:T(1,128)}', space=vmem, size = 0x12000, scoped, tag = 'internal scratch']
  #allocation2 [shape = 'f32[1,10,10,16]{3,2,1,0:T(8,128)}', space=vmem, size = 0x14000, scoped, tag = 'scratch operand']
  #allocation3 [shape = 'f32[1,10,10,16]{3,2,1,0:T(8,128)}', space=vmem, size = 0x14000, scoped, tag = 'scratch operand']
  #allocation4 [shape = 'f32[1]{0:T(128)S(6)}', space=smem, size = 0x200, scoped, tag = 'scoped memory for res_generator_forward.4']
  %s0 = inlined_call_operand.<no memory space> [shape: f32[1], index: 0, kind: input, shape index: {}]
  %s1 = inlined_call_operand.hbm [shape: f32[2,8,8,16], index: 1, kind: input, shape index: {}]
  %s2 = inlined_call_operand.hbm [shape: f32[144,16], index: 2, kind: input, shape index: {}]
  %s3 = inlined_call_operand.hbm [shape: f32[1,16], index: 3, kind: input, shape index: {}]
  %s4 = inlined_call_operand.hbm [shape: f32[144,16], index: 4, kind: input, shape index: {}]
  %s5 = inlined_call_operand.hbm [shape: f32[1,16], index: 5, kind: input, shape index: {}]
  %s6 = inlined_call_operand.hbm [shape: f32[16,16], index: 6, kind: input, shape index: {}]
  %s7 = inlined_call_operand.hbm [shape: f32[2,8,8,16], index: 7, kind: output, shape index: {}]
  %s8 = sld [smem:[#allocation0]]
  $region85: #{res_generator_forward.4} parent=0
    _
  %s10 = ssub.s32 1, %s8
  %s11 = scalar_select 0, %s10, %s8
  %12 = sst [smem:[#allocation4]] %s0
  $region1: #{res_generator_forward.4} parent=0
    #allocation5 [shape = 'u8[65536]{0}', space=vmem, size = 0x10000, scoped, tag = 'input window, operand 1']
    #allocation6 [shape = 's32[2]{0}', space=sflag, size = 0x8, scoped, tag = 'scoped memory for res_generator_forward.4']
    #allocation7 [shape = 's32[2]{0}', space=sflag, size = 0x8, scoped, tag = 'scoped memory for res_generator_forward.4']
    #allocation8 [shape = 'u8[73728]{0}', space=vmem, size = 0x12000, scoped, tag = 'input window, operand 2, single buffered']
    #allocation9 [shape = 's32[1]{0}', space=sflag, size = 0x4, scoped, tag = 'scoped memory for res_generator_forward.4']
    #allocation10 [shape = 'u8[512]{0}', space=vmem, size = 0x400, scoped, tag = 'input window, operand 3, single buffered']
    #allocation11 [shape = 'u8[73728]{0}', space=vmem, size = 0x12000, scoped, tag = 'input window, operand 4, single buffered']
    #allocation12 [shape = 's32[1]{0}', space=sflag, size = 0x4, scoped, tag = 'scoped memory for res_generator_forward.4']
    #allocation13 [shape = 'u8[512]{0}', space=vmem, size = 0x400, scoped, tag = 'input window, operand 5, single buffered']
    #allocation14 [shape = 'u8[8192]{0}', space=vmem, size = 0x2000, scoped, tag = 'input window, operand 6, single buffered']
    #allocation15 [shape = 's32[1]{0}', space=sflag, size = 0x4, scoped, tag = 'scoped memory for res_generator_forward.4']
    #allocation16 [shape = 'u8[65536]{0}', space=vmem, size = 0x10000, scoped, tag = 'output window, operand 0']
    %13 = vsyncpa [#allocation6], 0
    %s14 = scalar_lea.sflag [#allocation6], 1
    %15 = vsyncpa %s14, 0
    %16 = vsyncpa [#allocation9], 0
    %17 = vsyncpa [#allocation12], 0
    %18 = vsyncpa [#allocation15], 0
    %19 = vsyncpa [#allocation7], 0
    %s20 = scalar_lea.sflag [#allocation7], 1
    %21 = vsyncpa %s20, 0
    loop: start=0, step=1, limit=4
    $region2: #{res_generator_forward.4} parent=1 // loop_pre_header
      _
    $region3: #{res_generator_forward.4} parent=1 // loop_header
      %s23 = sphi 0, %s27
      %p24 = scmp.ge.s32.totalorder %s23, 4
      %s31 = sphi 0, %s31
      %s33 = sphi 0, %s31
      %s34 = sphi 0, %s33
      %s48 = sphi 0, %s34
      %s54 = sphi 0, %s56
      %s57 = sphi 0, %s54
      %s58 = sphi 0, %s57
      %s74 = sphi 0, %s58
      %s78 = sphi 0, %s78
      %s80 = sphi 0, %s78
      %s81 = sphi 0, %s80
      %s95 = sphi 0, %s81
      %s99 = sphi 0, %s99
      %s101 = sphi 0, %s99
      %s102 = sphi 0, %s101
      %s116 = sphi 0, %s102
      %s120 = sphi 0, %s120
      %s122 = sphi 0, %s120
      %s123 = sphi 0, %s122
      %s137 = sphi 0, %s123
      %s141 = sphi 0, %s141
      %s143 = sphi 0, %s141
      %s144 = sphi 0, %s143
      %s158 = sphi 0, %s144
      %s162 = sphi 0, %s162
      %s164 = sphi 0, %s162
      %s165 = sphi 0, %s164
      %s179 = sphi 0, %s165
      %s185 = sphi 0, %s187
      %s188 = sphi 0, %s185
      %s189 = sphi 0, %s188
      %s205 = sphi 0, %s189
    $region4: #{res_generator_forward.4} parent=1 // loop_header_branch
      %26 = sbr.rel (%p24) target = $region8
    $region5: #{res_generator_forward.4} parent=1 // loop_body
      %s28 = ssub.s32 %s23, 1
      %s29 = ssub.s32 %s23, 2
      %s30 = sadd.s32 %s23, 1
      %s32 = sadd.s32 %s31, 1
      %p35 = scmp.eq.s32.totalorder %s23, 1
      %p36 = scmp.ne.s32.totalorder %s31, %s33
      %p37 = scmp.eq.s32.totalorder %s23, 0
      %p38 = por %p36, %p37
      %p39 = scmp.ne.s32.totalorder %s31, %s33
      %p40 = scmp.eq.s32.totalorder %s28, 1
      %p41 = por %p39, %p40
      %p42 = scmp.ne.s32.totalorder %s33, %s34
      %p43 = scmp.eq.s32.totalorder %s28, 0
      %p44 = por %p42, %p43
      %p45 = scmp.ne.s32.totalorder %s33, %s34
      %p46 = scmp.eq.s32.totalorder %s29, 1
      %p47 = por %p45, %p46
      %p49 = scmp.ne.s32.totalorder %s34, %s48
      %p50 = scmp.eq.s32.totalorder %s29, 0
      %p51 = por %p49, %p50
      %s52 = ssub.s32 %s23, %s30
      %p53 = scmp.eq.s32.totalorder %s52, 0
      %s55 = sadd.s32 %s54, 1
      %s56 = scalar_select %p53, %s54, %s55
      %p59 = pneg %p53
      %p60 = scmp.eq.s32.totalorder %s23, 1
      %p61 = por %p59, %p60
      %p62 = scmp.ne.s32.totalorder %s54, %s57
      %p63 = scmp.eq.s32.totalorder %s23, 0
      %p64 = por %p62, %p63
      %p65 = scmp.ne.s32.totalorder %s54, %s57
      %p66 = scmp.eq.s32.totalorder %s28, 1
      %p67 = por %p65, %p66
      %p68 = scmp.ne.s32.totalorder %s57, %s58
      %p69 = scmp.eq.s32.totalorder %s28, 0
      %p70 = por %p68, %p69
      %p71 = scmp.ne.s32.totalorder %s57, %s58
      %p72 = scmp.eq.s32.totalorder %s29, 1
      %p73 = por %p71, %p72
      %p75 = scmp.ne.s32.totalorder %s58, %s74
      %p76 = scmp.eq.s32.totalorder %s29, 0
      %p77 = por %p75, %p76
      %s79 = sadd.s32 %s78, 1
      %p82 = scmp.eq.s32.totalorder %s23, 1
      %p83 = scmp.ne.s32.totalorder %s78, %s80
      %p84 = scmp.eq.s32.totalorder %s23, 0
      %p85 = por %p83, %p84
      %p86 = scmp.ne.s32.totalorder %s78, %s80
      %p87 = scmp.eq.s32.totalorder %s28, 1
      %p88 = por %p86, %p87
      %p89 = scmp.ne.s32.totalorder %s80, %s81
      %p90 = scmp.eq.s32.totalorder %s28, 0
      %p91 = por %p89, %p90
      %p92 = scmp.ne.s32.totalorder %s80, %s81
      %p93 = scmp.eq.s32.totalorder %s29, 1
      %p94 = por %p92, %p93
      %p96 = scmp.ne.s32.totalorder %s81, %s95
      %p97 = scmp.eq.s32.totalorder %s29, 0
      %p98 = por %p96, %p97
      %s100 = sadd.s32 %s99, 1
      %p103 = scmp.eq.s32.totalorder %s23, 1
      %p104 = scmp.ne.s32.totalorder %s99, %s101
      %p105 = scmp.eq.s32.totalorder %s23, 0
      %p106 = por %p104, %p105
      %p107 = scmp.ne.s32.totalorder %s99, %s101
      %p108 = scmp.eq.s32.totalorder %s28, 1
      %p109 = por %p107, %p108
      %p110 = scmp.ne.s32.totalorder %s101, %s102
      %p111 = scmp.eq.s32.totalorder %s28, 0
      %p112 = por %p110, %p111
      %p113 = scmp.ne.s32.totalorder %s101, %s102
      %p114 = scmp.eq.s32.totalorder %s29, 1
      %p115 = por %p113, %p114
      %p117 = scmp.ne.s32.totalorder %s102, %s116
      %p118 = scmp.eq.s32.totalorder %s29, 0
      %p119 = por %p117, %p118
      %s121 = sadd.s32 %s120, 1
      %p124 = scmp.eq.s32.totalorder %s23, 1
      %p125 = scmp.ne.s32.totalorder %s120, %s122
      %p126 = scmp.eq.s32.totalorder %s23, 0
      %p127 = por %p125, %p126
      %p128 = scmp.ne.s32.totalorder %s120, %s122
      %p129 = scmp.eq.s32.totalorder %s28, 1
      %p130 = por %p128, %p129
      %p131 = scmp.ne.s32.totalorder %s122, %s123
      %p132 = scmp.eq.s32.totalorder %s28, 0
      %p133 = por %p131, %p132
      %p134 = scmp.ne.s32.totalorder %s122, %s123
      %p135 = scmp.eq.s32.totalorder %s29, 1
      %p136 = por %p134, %p135
      %p138 = scmp.ne.s32.totalorder %s123, %s137
      %p139 = scmp.eq.s32.totalorder %s29, 0
      %p140 = por %p138, %p139
      %s142 = sadd.s32 %s141, 1
      %p145 = scmp.eq.s32.totalorder %s23, 1
      %p146 = scmp.ne.s32.totalorder %s141, %s143
      %p147 = scmp.eq.s32.totalorder %s23, 0
      %p148 = por %p146, %p147
      %p149 = scmp.ne.s32.totalorder %s141, %s143
      %p150 = scmp.eq.s32.totalorder %s28, 1
      %p151 = por %p149, %p150
      %p152 = scmp.ne.s32.totalorder %s143, %s144
      %p153 = scmp.eq.s32.totalorder %s28, 0
      %p154 = por %p152, %p153
      %p155 = scmp.ne.s32.totalorder %s143, %s144
      %p156 = scmp.eq.s32.totalorder %s29, 1
      %p157 = por %p155, %p156
      %p159 = scmp.ne.s32.totalorder %s144, %s158
      %p160 = scmp.eq.s32.totalorder %s29, 0
      %p161 = por %p159, %p160
      %s163 = sadd.s32 %s162, 1
      %p166 = scmp.eq.s32.totalorder %s23, 1
      %p167 = scmp.ne.s32.totalorder %s162, %s164
      %p168 = scmp.eq.s32.totalorder %s23, 0
      %p169 = por %p167, %p168
      %p170 = scmp.ne.s32.totalorder %s162, %s164
      %p171 = scmp.eq.s32.totalorder %s28, 1
      %p172 = por %p170, %p171
      %p173 = scmp.ne.s32.totalorder %s164, %s165
      %p174 = scmp.eq.s32.totalorder %s28, 0
      %p175 = por %p173, %p174
      %p176 = scmp.ne.s32.totalorder %s164, %s165
      %p177 = scmp.eq.s32.totalorder %s29, 1
      %p178 = por %p176, %p177
      %p180 = scmp.ne.s32.totalorder %s165, %s179
      %p181 = scmp.eq.s32.totalorder %s29, 0
      %p182 = por %p180, %p181
      %s183 = ssub.s32 %s23, %s30
      %p184 = scmp.eq.s32.totalorder %s183, 0
      %s186 = sadd.s32 %s185, 1
      %s187 = scalar_select %p184, %s185, %s186
      %p190 = pneg %p184
      %p191 = scmp.eq.s32.totalorder %s23, 1
      %p192 = por %p190, %p191
      %p193 = scmp.ne.s32.totalorder %s185, %s188
      %p194 = scmp.eq.s32.totalorder %s23, 0
      %p195 = por %p193, %p194
      %p196 = scmp.ne.s32.totalorder %s185, %s188
      %p197 = scmp.eq.s32.totalorder %s28, 1
      %p198 = por %p196, %p197
      %p199 = scmp.ne.s32.totalorder %s188, %s189
      %p200 = scmp.eq.s32.totalorder %s28, 0
      %p201 = por %p199, %p200
      %p202 = scmp.ne.s32.totalorder %s188, %s189
      %p203 = scmp.eq.s32.totalorder %s29, 1
      %p204 = por %p202, %p203
      %p206 = scmp.ne.s32.totalorder %s189, %s205
      %p207 = scmp.eq.s32.totalorder %s29, 0
      %p208 = por %p206, %p207
      %p209 = scmp.le.s32.totalorder 1, %s23
      %p210 = scmp.lt.s32.totalorder %s23, 3
      %p211 = pnand %p209, %p210
      %p212 = pneg %p211
      // Predicated region
      $region9: #{res_generator_forward.4} parent=5 // pred_check
        _
      $region10: #{res_generator_forward.4} parent=5 // pred_check_branch
        %214 = sbr.rel (%p211) target = $region12
      $region11: #{res_generator_forward.4} parent=5 // pred_region
        %s215 = ssub.s32 %s23, 1
        // Predicated region
        $region13: #{res_generator_forward.4} parent=11 // pred_check
          %p216 = pneg %p44
        $region14: #{res_generator_forward.4} parent=11 // pred_check_branch
          %218 = sbr.rel (%p216) target = $region16
        $region15: #{res_generator_forward.4} parent=11 // pred_region
          _
        $region16: #{res_generator_forward.4} parent=11 // pred_fallthru
          _
        // Predicated region
        $region17: #{res_generator_forward.4} parent=11 // pred_check
          %p219 = pneg %p91
        $region18: #{res_generator_forward.4} parent=11 // pred_check_branch
          %221 = sbr.rel (%p219) target = $region20
        $region19: #{res_generator_forward.4} parent=11 // pred_region
          %s223 = ssub.s32 2304, 2304
          %224 = vsyncadd [#allocation9], %s223
          %s225 = sshll.u32 [#allocation8], 4
          %s226 = int_to_ptr.vmem [resolvable:$true] %s225
          %231 = dma.hbm_to_vmem [thread:$0]  %s2, 2304, %s226, [#allocation9], 128, 128, 8
        $region20: #{res_generator_forward.4} parent=11 // pred_fallthru
          _
        // Predicated region
        $region21: #{res_generator_forward.4} parent=11 // pred_check
          %p232 = pneg %p112
        $region22: #{res_generator_forward.4} parent=11 // pred_check_branch
          %234 = sbr.rel (%p232) target = $region24
        $region23: #{res_generator_forward.4} parent=11 // pred_region
          %s236 = ssub.s32 16, 16
          %237 = vsyncadd [#allocation9], %s236
          %s239 = sshll.u32 [#allocation10], 4
          %s240 = int_to_ptr.vmem [resolvable:$true] %s239
          %242 = dma.hbm_to_vmem [thread:$0]  %s3, 16, %s240, [#allocation9]
        $region24: #{res_generator_forward.4} parent=11 // pred_fallthru
          _
        // Predicated region
        $region25: #{res_generator_forward.4} parent=11 // pred_check
          %p243 = pneg %p133
        $region26: #{res_generator_forward.4} parent=11 // pred_check_branch
          %245 = sbr.rel (%p243) target = $region28
        $region27: #{res_generator_forward.4} parent=11 // pred_region
          %s247 = ssub.s32 2304, 2304
          %248 = vsyncadd [#allocation12], %s247
          %s249 = sshll.u32 [#allocation11], 4
          %s250 = int_to_ptr.vmem [resolvable:$true] %s249
          %255 = dma.hbm_to_vmem [thread:$0]  %s4, 2304, %s250, [#allocation12], 128, 128, 8
        $region28: #{res_generator_forward.4} parent=11 // pred_fallthru
          _
        // Predicated region
        $region29: #{res_generator_forward.4} parent=11 // pred_check
          %p256 = pneg %p154
        $region30: #{res_generator_forward.4} parent=11 // pred_check_branch
          %258 = sbr.rel (%p256) target = $region32
        $region31: #{res_generator_forward.4} parent=11 // pred_region
          %s260 = ssub.s32 16, 16
          %261 = vsyncadd [#allocation12], %s260
          %s263 = sshll.u32 [#allocation13], 4
          %s264 = int_to_ptr.vmem [resolvable:$true] %s263
          %266 = dma.hbm_to_vmem [thread:$0]  %s5, 16, %s264, [#allocation12]
        $region32: #{res_generator_forward.4} parent=11 // pred_fallthru
          _
        // Predicated region
        $region33: #{res_generator_forward.4} parent=11 // pred_check
          %p267 = pneg %p175
        $region34: #{res_generator_forward.4} parent=11 // pred_check_branch
          %269 = sbr.rel (%p267) target = $region36
        $region35: #{res_generator_forward.4} parent=11 // pred_region
          %s271 = ssub.s32 256, 256
          %272 = vsyncadd [#allocation15], %s271
          %s273 = sshll.u32 [#allocation14], 4
          %s274 = int_to_ptr.vmem [resolvable:$true] %s273
          %279 = dma.hbm_to_vmem [thread:$0]  %s6, 256, %s274, [#allocation15], 128, 128, 8
        $region36: #{res_generator_forward.4} parent=11 // pred_fallthru
          _
      $region12: #{res_generator_forward.4} parent=5 // pred_fallthru
        _
      %p280 = scmp.lt.s32.totalorder %s23, 2
      // Predicated region
      $region37: #{res_generator_forward.4} parent=5 // pred_check
        %p281 = pneg %p280
      $region38: #{res_generator_forward.4} parent=5 // pred_check_branch
        %283 = sbr.rel (%p281) target = $region40
      $region39: #{res_generator_forward.4} parent=5 // pred_region
        // Predicated region
        $region41: #{res_generator_forward.4} parent=39 // pred_check
          %p284 = pneg %p64
        $region42: #{res_generator_forward.4} parent=39 // pred_check_branch
          %286 = sbr.rel (%p284) target = $region44
        $region43: #{res_generator_forward.4} parent=39 // pred_region
          %s287 = sand.u32 %s54, 1
          %s288 = scalar_lea.sflag [#allocation6], %s287
          %s289 = sand.u32 %s54, 1
          %s290 = smul.addr %s289, 64
          %s291 = scalar_lea.vmem [#allocation5], %s290
          %s293 = ssub.s32 1024, 1024
          %294 = vsyncadd %s288, %s293
          %s295 = smul.addr %s23, 8
          %s296 = smul.addr %s295, 128
          %s297 = scalar_lea.hbm %s1, %s296
          %s298 = sshll.u32 %s291, 4
          %s299 = int_to_ptr.vmem [resolvable:$true] %s298
          %304 = dma.hbm_to_vmem [thread:$0]  %s297, 1024, %s299, %s288, 128, 128, 8
        $region44: #{res_generator_forward.4} parent=39 // pred_fallthru
          _
      $region40: #{res_generator_forward.4} parent=5 // pred_fallthru
        _
      %p305 = scmp.le.s32.totalorder 1, %s23
      %p306 = scmp.lt.s32.totalorder %s23, 3
      %p307 = pnand %p305, %p306
      %p308 = pneg %p307
      // Predicated region
      $region45: #{res_generator_forward.4} parent=5 // pred_check
        _
      $region46: #{res_generator_forward.4} parent=5 // pred_check_branch
        %310 = sbr.rel (%p307) target = $region48
      $region47: #{res_generator_forward.4} parent=5 // pred_region
        %s311 = ssub.s32 %s23, 1
        %s312 = sand.u32 %s57, 1
        %s313 = scalar_lea.sflag [#allocation6], %s312
        %s314 = sand.u32 %s57, 1
        %s315 = smul.addr %s314, 64
        %s316 = scalar_lea.vmem [#allocation5], %s315
        // Predicated region
        $region49: #{res_generator_forward.4} parent=47 // pred_check
          %p317 = pneg %p70
        $region50: #{res_generator_forward.4} parent=47 // pred_check_branch
          %319 = sbr.rel (%p317) target = $region52
        $region51: #{res_generator_forward.4} parent=47 // pred_region
          %320 = dma.done %s313, 1024
        $region52: #{res_generator_forward.4} parent=47 // pred_fallthru
          _
        // Predicated region
        $region53: #{res_generator_forward.4} parent=47 // pred_check
          %p321 = pneg %p91
        $region54: #{res_generator_forward.4} parent=47 // pred_check_branch
          %323 = sbr.rel (%p321) target = $region56
        $region55: #{res_generator_forward.4} parent=47 // pred_region
          %324 = dma.done [#allocation9], 2304
        $region56: #{res_generator_forward.4} parent=47 // pred_fallthru
          _
        // Predicated region
        $region57: #{res_generator_forward.4} parent=47 // pred_check
          %p325 = pneg %p112
        $region58: #{res_generator_forward.4} parent=47 // pred_check_branch
          %327 = sbr.rel (%p325) target = $region60
        $region59: #{res_generator_forward.4} parent=47 // pred_region
          %328 = dma.done [#allocation9], 16
        $region60: #{res_generator_forward.4} parent=47 // pred_fallthru
          _
        // Predicated region
        $region61: #{res_generator_forward.4} parent=47 // pred_check
          %p329 = pneg %p133
        $region62: #{res_generator_forward.4} parent=47 // pred_check_branch
          %331 = sbr.rel (%p329) target = $region64
        $region63: #{res_generator_forward.4} parent=47 // pred_region
          %332 = dma.done [#allocation12], 2304
        $region64: #{res_generator_forward.4} parent=47 // pred_fallthru
          _
        // Predicated region
        $region65: #{res_generator_forward.4} parent=47 // pred_check
          %p333 = pneg %p154
        $region66: #{res_generator_forward.4} parent=47 // pred_check_branch
          %335 = sbr.rel (%p333) target = $region68
        $region67: #{res_generator_forward.4} parent=47 // pred_region
          %336 = dma.done [#allocation12], 16
        $region68: #{res_generator_forward.4} parent=47 // pred_fallthru
          _
        // Predicated region
        $region69: #{res_generator_forward.4} parent=47 // pred_check
          %p337 = pneg %p175
        $region70: #{res_generator_forward.4} parent=47 // pred_check_branch
          %339 = sbr.rel (%p337) target = $region72
        $region71: #{res_generator_forward.4} parent=47 // pred_region
          %340 = dma.done [#allocation15], 256
        $region72: #{res_generator_forward.4} parent=47 // pred_fallthru
          _
        %p341 = pneg %p44
        %p342 = pneg %p41
        %s343 = sand.u32 %s57, 1
        %s344 = scalar_lea.sflag [#allocation6], %s343
        %s345 = sand.u32 %s57, 1
        %s346 = smul.addr %s345, 64
        %s347 = scalar_lea.vmem [#allocation5], %s346
        %p348 = pneg %p70
        %p349 = pneg %p67
        %p350 = pneg %p91
        %p351 = pneg %p88
        %p352 = pneg %p112
        %p353 = pneg %p109
        %p354 = pneg %p133
        %p355 = pneg %p130
        %p356 = pneg %p154
        %p357 = pneg %p151
        %p358 = pneg %p175
        %p359 = pneg %p172
        %p360 = pneg %p201
        %p361 = pneg %p198
        %s362 = sand.u32 %s188, 1
        %s363 = scalar_lea.sflag [#allocation7], %s362
        %s364 = sand.u32 %s188, 1
        %s365 = smul.addr %s364, 64
        %s366 = scalar_lea.vmem [#allocation16], %s365
        %v367 = vld [vmem:[%s316] sm:$0xff]
        %v368 = vld [vmem:[%s316 + $0x8] sm:$0xff]
        %v369 = vld [vmem:[%s316 + $0x10] sm:$0xff]
        %v370 = vld [vmem:[%s316 + $0x18] sm:$0xff]
        %v371 = vld [vmem:[%s316 + $0x20] sm:$0xff]
        %v372 = vld [vmem:[%s316 + $0x28] sm:$0xff]
        %v373 = vld [vmem:[%s316 + $0x30] sm:$0xff]
        %v374 = vld [vmem:[%s316 + $0x38] sm:$0xff]
        %vm375 = vcmask 130048
        %376 = vst.msk [vmem:[#allocation2] sm:$0xff] %vm375, 0.0
        %vm377 = vcmask 123904
        %378 = vst.msk [vmem:[#allocation2 + $0x8] sm:$0x3] %vm377, 0.0
        %s379 = scalar_lea.vmem [#allocation2], 144
        %380 = vst.msk [vmem:[%s379] sm:$0xff] %vm375, 0.0
        %381 = vst.msk [vmem:[%s379 + $0x8] sm:$0x3] %vm377, 0.0
        %vm382 = vcmask 122880
        %383 = vst.msk [vmem:[#allocation2] sm:$0x1] %vm382, 0.0
        %384 = vst.msk [vmem:[#allocation2 + $0x10] sm:$0x1] %vm382, 0.0
        %385 = vst.msk [vmem:[#allocation2 + $0x20] sm:$0x1] %vm382, 0.0
        %386 = vst.msk [vmem:[#allocation2 + $0x30] sm:$0x1] %vm382, 0.0
        %387 = vst.msk [vmem:[#allocation2 + $0x40] sm:$0x1] %vm382, 0.0
        %388 = vst.msk [vmem:[#allocation2 + $0x50] sm:$0x1] %vm382, 0.0
        %389 = vst.msk [vmem:[#allocation2 + $0x60] sm:$0x1] %vm382, 0.0
        %390 = vst.msk [vmem:[#allocation2 + $0x70] sm:$0x1] %vm382, 0.0
        %391 = vst.msk [vmem:[#allocation2 + $0x80] sm:$0x1] %vm382, 0.0
        %392 = vst.msk [vmem:[#allocation2 + $0x90] sm:$0x1] %vm382, 0.0
        %393 = vst.msk [vmem:[#allocation2 + $0x9] sm:$0x1] %vm382, 0.0
        %394 = vst.msk [vmem:[#allocation2 + $0x19] sm:$0x1] %vm382, 0.0
        %395 = vst.msk [vmem:[#allocation2 + $0x29] sm:$0x1] %vm382, 0.0
        %396 = vst.msk [vmem:[#allocation2 + $0x39] sm:$0x1] %vm382, 0.0
        %397 = vst.msk [vmem:[#allocation2 + $0x49] sm:$0x1] %vm382, 0.0
        %398 = vst.msk [vmem:[#allocation2 + $0x59] sm:$0x1] %vm382, 0.0
        %399 = vst.msk [vmem:[#allocation2 + $0x69] sm:$0x1] %vm382, 0.0
        %400 = vst.msk [vmem:[#allocation2 + $0x79] sm:$0x1] %vm382, 0.0
        %401 = vst.msk [vmem:[#allocation2 + $0x89] sm:$0x1] %vm382, 0.0
        %402 = vst.msk [vmem:[#allocation2 + $0x99] sm:$0x1] %vm382, 0.0
        %vm403 = vcmp.gt.f32.partialorder %v367, 0.0
        %vm404 = vcmp.gt.f32.partialorder %v368, 0.0
        %vm405 = vcmp.gt.f32.partialorder %v369, 0.0
        %vm406 = vcmp.gt.f32.partialorder %v370, 0.0
        %vm407 = vcmp.gt.f32.partialorder %v371, 0.0
        %vm408 = vcmp.gt.f32.partialorder %v372, 0.0
        %vm409 = vcmp.gt.f32.partialorder %v373, 0.0
        %vm410 = vcmp.gt.f32.partialorder %v374, 0.0
        %v411 = vmul.f32 %v367, 0.2
        %v412 = vmul.f32 %v368, 0.2
        %v413 = vmul.f32 %v369, 0.2
        %v414 = vmul.f32 %v370, 0.2
        %v415 = vmul.f32 %v371, 0.2
        %v416 = vmul.f32 %v372, 0.2
        %v417 = vmul.f32 %v373, 0.2
        %v418 = vmul.f32 %v374, 0.2
        %v419 = vsel %vm403, %v367, %v411
        %v420 = vsel %vm404, %v368, %v412
        %v421 = vsel %vm405, %v369, %v413
        %v422 = vsel %vm406, %v370, %v414
        %v423 = vsel %vm407, %v371, %v415
        %v424 = vsel %vm408, %v372, %v416
        %v425 = vsel %vm409, %v373, %v417
        %v426 = vsel %vm410, %v374, %v418
        %s427 = scalar_lea.vmem [#allocation2], 16
        %428 = vst.msk [vmem:[%s427 + $0x1] sm:$0xff] %vm375, %v419
        %429 = vst.msk [vmem:[%s427 + $0x11] sm:$0xff] %vm375, %v420
        %430 = vst.msk [vmem:[%s427 + $0x21] sm:$0xff] %vm375, %v421
        %431 = vst.msk [vmem:[%s427 + $0x31] sm:$0xff] %vm375, %v422
        %432 = vst.msk [vmem:[%s427 + $0x41] sm:$0xff] %vm375, %v423
        %433 = vst.msk [vmem:[%s427 + $0x51] sm:$0xff] %vm375, %v424
        %434 = vst.msk [vmem:[%s427 + $0x61] sm:$0xff] %vm375, %v425
        %435 = vst.msk [vmem:[%s427 + $0x71] sm:$0xff] %vm375, %v426
        %v436 = vld [vmem:[#allocation2] sm:$0xff]
        %v437 = vld [vmem:[#allocation2 + $0x8] sm:$0x3]
        %v438 = vld [vmem:[#allocation2 + $0x10] sm:$0xff]
        %v439 = vld [vmem:[#allocation2 + $0x18] sm:$0x3]
        %v440 = vld [vmem:[#allocation2 + $0x20] sm:$0xff]
        %v441 = vld [vmem:[#allocation2 + $0x28] sm:$0x3]
        %v442 = vld [vmem:[#allocation2 + $0x30] sm:$0xff]
        %v443 = vld [vmem:[#allocation2 + $0x38] sm:$0x3]
        %v444 = vld [vmem:[#allocation2 + $0x40] sm:$0xff]
        %v445 = vld [vmem:[#allocation2 + $0x48] sm:$0x3]
        %v446 = vld [vmem:[#allocation2 + $0x50] sm:$0xff]
        %v447 = vld [vmem:[#allocation2 + $0x58] sm:$0x3]
        %v448 = vld [vmem:[#allocation2 + $0x60] sm:$0xff]
        %v449 = vld [vmem:[#allocation2 + $0x68] sm:$0x3]
        %v450 = vld [vmem:[#allocation2 + $0x70] sm:$0xff]
        %v451 = vld [vmem:[#allocation2 + $0x78] sm:$0x3]
        %v452 = vld [vmem:[#allocation2 + $0x80] sm:$0xff]
        %v453 = vld [vmem:[#allocation2 + $0x88] sm:$0x3]
        %v454 = vld [vmem:[#allocation2 + $0x90] sm:$0xff]
        %v455 = vld [vmem:[#allocation2 + $0x98] sm:$0x3]
        %vm472 = vcmask 1046528
        %v473 = vrot.slane %v436, 1
        %v474 = vrot.slane %v437, 1
        %v475 = vsel %vm472, %v473, %v474
        %v476 = vrot.slane %v438, 1
        %v477 = vrot.slane %v439, 1
        %v478 = vsel %vm472, %v476, %v477
        %v479 = vrot.slane %v440, 1
        %v480 = vrot.slane %v441, 1
        %v481 = vsel %vm472, %v479, %v480
        %v482 = vrot.slane %v442, 1
        %v483 = vrot.slane %v443, 1
        %v484 = vsel %vm472, %v482, %v483
        %v485 = vrot.slane %v444, 1
        %v486 = vrot.slane %v445, 1
        %v487 = vsel %vm472, %v485, %v486
        %v488 = vrot.slane %v446, 1
        %v489 = vrot.slane %v447, 1
        %v490 = vsel %vm472, %v488, %v489
        %v491 = vrot.slane %v448, 1
        %v492 = vrot.slane %v449, 1
        %v493 = vsel %vm472, %v491, %v492
        %v494 = vrot.slane %v450, 1
        %v495 = vrot.slane %v451, 1
        %v496 = vsel %vm472, %v494, %v495
        %vm497 = vcmask 1045504
        %v498 = vrot.slane %v436, 2
        %v499 = vrot.slane %v437, 2
        %v500 = vsel %vm497, %v498, %v499
        %v501 = vrot.slane %v438, 2
        %v502 = vrot.slane %v439, 2
        %v503 = vsel %vm497, %v501, %v502
        %v504 = vrot.slane %v440, 2
        %v505 = vrot.slane %v441, 2
        %v506 = vsel %vm497, %v504, %v505
        %v507 = vrot.slane %v442, 2
        %v508 = vrot.slane %v443, 2
        %v509 = vsel %vm497, %v507, %v508
        %v510 = vrot.slane %v444, 2
        %v511 = vrot.slane %v445, 2
        %v512 = vsel %vm497, %v510, %v511
        %v513 = vrot.slane %v446, 2
        %v514 = vrot.slane %v447, 2
        %v515 = vsel %vm497, %v513, %v514
        %v516 = vrot.slane %v448, 2
        %v517 = vrot.slane %v449, 2
        %v518 = vsel %vm497, %v516, %v517
        %v519 = vrot.slane %v450, 2
        %v520 = vrot.slane %v451, 2
        %v521 = vsel %vm497, %v519, %v520
        %v524 = vrot.slane %v452, 1
        %v525 = vrot.slane %v453, 1
        %v526 = vsel %vm472, %v524, %v525
        %v527 = vrot.slane %v452, 2
        %v528 = vrot.slane %v453, 2
        %v529 = vsel %vm497, %v527, %v528
        %v532 = vrot.slane %v454, 1
        %v533 = vrot.slane %v455, 1
        %v534 = vsel %vm472, %v532, %v533
        %v535 = vrot.slane %v454, 2
        %v536 = vrot.slane %v455, 2
        %v537 = vsel %vm497, %v535, %v536
        %538 = vrot.lane.b32.xlu0 %v475, 16
        %v539 = vpop.permute.xlu0 %538
        %540 = vrot.lane.b32.xlu0 %v478, 16
        %v541 = vpop.permute.xlu0 %540
        %542 = vrot.lane.b32.xlu0 %v481, 16
        %v543 = vpop.permute.xlu0 %542
        %544 = vrot.lane.b32.xlu0 %v484, 16
        %v545 = vpop.permute.xlu0 %544
        %546 = vrot.lane.b32.xlu0 %v487, 16
        %v547 = vpop.permute.xlu0 %546
        %548 = vrot.lane.b32.xlu0 %v490, 16
        %v549 = vpop.permute.xlu0 %548
        %550 = vrot.lane.b32.xlu0 %v493, 16
        %v551 = vpop.permute.xlu0 %550
        %552 = vrot.lane.b32.xlu0 %v496, 16
        %v553 = vpop.permute.xlu0 %552
        %562 = vrot.lane.b32.xlu0 %v500, 32
        %v563 = vpop.permute.xlu0 %562
        %564 = vrot.lane.b32.xlu0 %v503, 32
        %v565 = vpop.permute.xlu0 %564
        %566 = vrot.lane.b32.xlu0 %v506, 32
        %v567 = vpop.permute.xlu0 %566
        %568 = vrot.lane.b32.xlu0 %v509, 32
        %v569 = vpop.permute.xlu0 %568
        %570 = vrot.lane.b32.xlu0 %v512, 32
        %v571 = vpop.permute.xlu0 %570
        %572 = vrot.lane.b32.xlu0 %v515, 32
        %v573 = vpop.permute.xlu0 %572
        %574 = vrot.lane.b32.xlu0 %v518, 32
        %v575 = vpop.permute.xlu0 %574
        %576 = vrot.lane.b32.xlu0 %v521, 32
        %v577 = vpop.permute.xlu0 %576
        %586 = vrot.lane.b32.xlu0 %v438, 48
        %v587 = vpop.permute.xlu0 %586
        %588 = vrot.lane.b32.xlu0 %v440, 48
        %v589 = vpop.permute.xlu0 %588
        %590 = vrot.lane.b32.xlu0 %v442, 48
        %v591 = vpop.permute.xlu0 %590
        %592 = vrot.lane.b32.xlu0 %v444, 48
        %v593 = vpop.permute.xlu0 %592
        %594 = vrot.lane.b32.xlu0 %v446, 48
        %v595 = vpop.permute.xlu0 %594
        %596 = vrot.lane.b32.xlu0 %v448, 48
        %v597 = vpop.permute.xlu0 %596
        %598 = vrot.lane.b32.xlu0 %v450, 48
        %v599 = vpop.permute.xlu0 %598
        %600 = vrot.lane.b32.xlu0 %v452, 48
        %v601 = vpop.permute.xlu0 %600
        %610 = vrot.lane.b32.xlu0 %v478, 64
        %v611 = vpop.permute.xlu0 %610
        %612 = vrot.lane.b32.xlu0 %v481, 64
        %v613 = vpop.permute.xlu0 %612
        %614 = vrot.lane.b32.xlu0 %v484, 64
        %v615 = vpop.permute.xlu0 %614
        %616 = vrot.lane.b32.xlu0 %v487, 64
        %v617 = vpop.permute.xlu0 %616
        %618 = vrot.lane.b32.xlu0 %v490, 64
        %v619 = vpop.permute.xlu0 %618
        %620 = vrot.lane.b32.xlu0 %v493, 64
        %v621 = vpop.permute.xlu0 %620
        %622 = vrot.lane.b32.xlu0 %v496, 64
        %v623 = vpop.permute.xlu0 %622
        %624 = vrot.lane.b32.xlu0 %v526, 64
        %v625 = vpop.permute.xlu0 %624
        %634 = vrot.lane.b32.xlu0 %v503, 80
        %v635 = vpop.permute.xlu0 %634
        %636 = vrot.lane.b32.xlu0 %v506, 80
        %v637 = vpop.permute.xlu0 %636
        %638 = vrot.lane.b32.xlu0 %v509, 80
        %v639 = vpop.permute.xlu0 %638
        %640 = vrot.lane.b32.xlu0 %v512, 80
        %v641 = vpop.permute.xlu0 %640
        %642 = vrot.lane.b32.xlu0 %v515, 80
        %v643 = vpop.permute.xlu0 %642
        %644 = vrot.lane.b32.xlu0 %v518, 80
        %v645 = vpop.permute.xlu0 %644
        %646 = vrot.lane.b32.xlu0 %v521, 80
        %v647 = vpop.permute.xlu0 %646
        %648 = vrot.lane.b32.xlu0 %v529, 80
        %v649 = vpop.permute.xlu0 %648
        %658 = vrot.lane.b32.xlu0 %v440, 96
        %v659 = vpop.permute.xlu0 %658
        %660 = vrot.lane.b32.xlu0 %v442, 96
        %v661 = vpop.permute.xlu0 %660
        %662 = vrot.lane.b32.xlu0 %v444, 96
        %v663 = vpop.permute.xlu0 %662
        %664 = vrot.lane.b32.xlu0 %v446, 96
        %v665 = vpop.permute.xlu0 %664
        %666 = vrot.lane.b32.xlu0 %v448, 96
        %v667 = vpop.permute.xlu0 %666
        %668 = vrot.lane.b32.xlu0 %v450, 96
        %v669 = vpop.permute.xlu0 %668
        %670 = vrot.lane.b32.xlu0 %v452, 96
        %v671 = vpop.permute.xlu0 %670
        %672 = vrot.lane.b32.xlu0 %v454, 96
        %v673 = vpop.permute.xlu0 %672
        %682 = vrot.lane.b32.xlu0 %v481, 112
        %v683 = vpop.permute.xlu0 %682
        %684 = vrot.lane.b32.xlu0 %v484, 112
        %v685 = vpop.permute.xlu0 %684
        %686 = vrot.lane.b32.xlu0 %v487, 112
        %v687 = vpop.permute.xlu0 %686
        %688 = vrot.lane.b32.xlu0 %v490, 112
        %v689 = vpop.permute.xlu0 %688
        %690 = vrot.lane.b32.xlu0 %v493, 112
        %v691 = vpop.permute.xlu0 %690
        %692 = vrot.lane.b32.xlu0 %v496, 112
        %v693 = vpop.permute.xlu0 %692
        %694 = vrot.lane.b32.xlu0 %v526, 112
        %v695 = vpop.permute.xlu0 %694
        %696 = vrot.lane.b32.xlu0 %v534, 112
        %v697 = vpop.permute.xlu0 %696
        %v706 = vsel %vm375, %v436, %v539
        %v707 = vsel %vm375, %v438, %v541
        %v708 = vsel %vm375, %v440, %v543
        %v709 = vsel %vm375, %v442, %v545
        %v710 = vsel %vm375, %v444, %v547
        %v711 = vsel %vm375, %v446, %v549
        %v712 = vsel %vm375, %v448, %v551
        %v713 = vsel %vm375, %v450, %v553
        %vm714 = vcmask 261120
        %v715 = vsel %vm714, %v706, %v563
        %v716 = vsel %vm714, %v707, %v565
        %v717 = vsel %vm714, %v708, %v567
        %v718 = vsel %vm714, %v709, %v569
        %v719 = vsel %vm714, %v710, %v571
        %v720 = vsel %vm714, %v711, %v573
        %v721 = vsel %vm714, %v712, %v575
        %v722 = vsel %vm714, %v713, %v577
        %vm723 = vcmask 392192
        %v724 = vsel %vm723, %v715, %v587
        %v725 = vsel %vm723, %v716, %v589
        %v726 = vsel %vm723, %v717, %v591
        %v727 = vsel %vm723, %v718, %v593
        %v728 = vsel %vm723, %v719, %v595
        %v729 = vsel %vm723, %v720, %v597
        %v730 = vsel %vm723, %v721, %v599
        %v731 = vsel %vm723, %v722, %v601
        %vm732 = vcmask 523264
        %v733 = vsel %vm732, %v724, %v611
        %v734 = vsel %vm732, %v725, %v613
        %v735 = vsel %vm732, %v726, %v615
        %v736 = vsel %vm732, %v727, %v617
        %v737 = vsel %vm732, %v728, %v619
        %v738 = vsel %vm732, %v729, %v621
        %v739 = vsel %vm732, %v730, %v623
        %v740 = vsel %vm732, %v731, %v625
        %vm741 = vcmask 654336
        %v742 = vsel %vm741, %v733, %v635
        %v743 = vsel %vm741, %v734, %v637
        %v744 = vsel %vm741, %v735, %v639
        %v745 = vsel %vm741, %v736, %v641
        %v746 = vsel %vm741, %v737, %v643
        %v747 = vsel %vm741, %v738, %v645
        %v748 = vsel %vm741, %v739, %v647
        %v749 = vsel %vm741, %v740, %v649
        %vm750 = vcmask 785408
        %v751 = vsel %vm750, %v742, %v659
        %v752 = vsel %vm750, %v743, %v661
        %v753 = vsel %vm750, %v744, %v663
        %v754 = vsel %vm750, %v745, %v665
        %v755 = vsel %vm750, %v746, %v667
        %v756 = vsel %vm750, %v747, %v669
        %v757 = vsel %vm750, %v748, %v671
        %v758 = vsel %vm750, %v749, %v673
        %vm759 = vcmask 916480
        %v760 = vsel %vm759, %v751, %v683
        %v761 = vsel %vm759, %v752, %v685
        %v762 = vsel %vm759, %v753, %v687
        %v763 = vsel %vm759, %v754, %v689
        %v764 = vsel %vm759, %v755, %v691
        %v765 = vsel %vm759, %v756, %v693
        %v766 = vsel %vm759, %v757, %v695
        %v767 = vsel %vm759, %v758, %v697
        %v768 = vld [vmem:[#allocation8] sm:$0xff]
        %v769 = vld [vmem:[#allocation8 + $0x8] sm:$0xff]
        %v770 = vld [vmem:[#allocation8 + $0x10] sm:$0xff]
        %v771 = vld [vmem:[#allocation8 + $0x18] sm:$0xff]
        %v772 = vld [vmem:[#allocation8 + $0x20] sm:$0xff]
        %v773 = vld [vmem:[#allocation8 + $0x28] sm:$0xff]
        %v774 = vld [vmem:[#allocation8 + $0x30] sm:$0xff]
        %v775 = vld [vmem:[#allocation8 + $0x38] sm:$0xff]
        %v776 = vld [vmem:[#allocation8 + $0x40] sm:$0xff]
        %v777 = vld [vmem:[#allocation8 + $0x48] sm:$0xff]
        %v778 = vld [vmem:[#allocation8 + $0x50] sm:$0xff]
        %v779 = vld [vmem:[#allocation8 + $0x58] sm:$0xff]
        %v780 = vld [vmem:[#allocation8 + $0x60] sm:$0xff]
        %v781 = vld [vmem:[#allocation8 + $0x68] sm:$0xff]
        %v782 = vld [vmem:[#allocation8 + $0x70] sm:$0xff]
        %v783 = vld [vmem:[#allocation8 + $0x78] sm:$0xff]
        %v784 = vld [vmem:[#allocation8 + $0x80] sm:$0xff]
        %v785 = vld [vmem:[#allocation8 + $0x88] sm:$0xff]
        %v786 = vld [vmem:[#allocation10] sm:$0x1]
        %v788 = vlaneseq
        %v789 = vshrl.u32 %v788, 7
        %v790 = vsub.s32 0, %v789
        %v791 = vrot.slane %v786, %v790
        %v793 = vsel %vm375, %v506, 0
        %v795 = vsel %vm375, %v509, 0
        %v797 = vsel %vm375, %v512, 0
        %v799 = vsel %vm375, %v515, 0
        %v801 = vsel %vm375, %v518, 0
        %v803 = vsel %vm375, %v521, 0
        %v805 = vsel %vm375, %v529, 0
        %v807 = vsel %vm375, %v537, 0
        %809 = vmatprep.subr.mxu0 0.0
        %810 = vmatpush1.msra.mxu0 %v768
        %811 = vmatprep.subr.mxu0 0.0
        %812 = vmatpush1.msra.mxu0 %v769
        %813 = vmatprep.subr.mxu0 0.0
        %814 = vmatpush1.msra.mxu0 %v770
        %815 = vmatprep.subr.mxu0 0.0
        %816 = vmatpush1.msra.mxu0 %v771
        %817 = vmatprep.subr.mxu0 0.0
        %818 = vmatpush1.msra.mxu0 %v772
        %819 = vmatprep.subr.mxu0 0.0
        %820 = vmatpush1.msra.mxu0 %v773
        %821 = vmatprep.subr.mxu0 0.0
        %822 = vmatpush1.msra.mxu0 %v774
        %823 = vmatprep.subr.mxu0 0.0
        %824 = vmatpush1.msra.mxu0 %v775
        %825 = vmatprep.subr.mxu0 0.0
        %826 = vmatpush1.msra.mxu0 %v776
        %827 = vmatprep.subr.mxu0 0.0
        %828 = vmatpush1.msra.mxu0 %v777
        %829 = vmatprep.subr.mxu0 0.0
        %830 = vmatpush1.msra.mxu0 %v778
        %831 = vmatprep.subr.mxu0 0.0
        %832 = vmatpush1.msra.mxu0 %v779
        %833 = vmatprep.subr.mxu0 0.0
        %834 = vmatpush1.msra.mxu0 %v780
        %835 = vmatprep.subr.mxu0 0.0
        %836 = vmatpush1.msra.mxu0 %v781
        %837 = vmatprep.subr.mxu0 0.0
        %838 = vmatpush1.msra.mxu0 %v782
        %839 = vmatprep.subr.mxu0 0.0
        %840 = vmatpush1.msra.mxu0 %v783
        %841 = vmatprep.subr.mxu0 0.0
        %842 = vmatpush1.msra.mxu0 %v784
        %843 = vmatprep.subr.mxu0 0.0
        %844 = vmatpush1.msra.mxu0 %v785
        %845 = vmatprep.subr.mxu0 0.0
        %846 = vmatpush1.msra.mxu0 0.0
        %847 = vmatprep.subr.mxu0 0.0
        %848 = vmatpush1.msra.mxu0 0.0
        %849 = vmatprep.subr.mxu0 0.0
        %850 = vmatpush1.msra.mxu0 0.0
        %851 = vmatprep.subr.mxu0 0.0
        %852 = vmatpush1.msra.mxu0 0.0
        %853 = vmatprep.subr.mxu0 0.0
        %854 = vmatpush1.msra.mxu0 0.0
        %855 = vmatprep.subr.mxu0 0.0
        %856 = vmatpush1.msra.mxu0 0.0
        %857 = vmatprep.subr.mxu0 0.0
        %858 = vmatpush1.msra.mxu0 0.0
        %859 = vmatprep.subr.mxu0 0.0
        %860 = vmatpush1.msra.mxu0 0.0
        %861 = vmatprep.subr.mxu0 0.0
        %862 = vmatpush1.msra.mxu0 0.0
        %863 = vmatprep.subr.mxu0 0.0
        %864 = vmatpush1.msra.mxu0 0.0
        %865 = vmatprep.subr.mxu0 0.0
        %866 = vmatpush1.msra.mxu0 0.0
        %867 = vmatprep.subr.mxu0 0.0
        %868 = vmatpush1.msra.mxu0 0.0
        %869 = vmatprep.subr.mxu0 0.0
        %870 = vmatpush1.msra.mxu0 0.0
        %871 = vmatprep.subr.mxu0 0.0
        %872 = vmatpush1.msra.mxu0 0.0
        %873 = vmatprep.mubr.f32.mxu0 %v793
        %874 = vmatmul.mubr.f32.gmra.mrb[0].mxu0 %v760
        %v875 = vpop.f32.mrb[0].mxu0
        %v876 = vadd.f32 %v791, %v875
        %v877 = vpop.f32.mrb[0].mxu0
        %878 = vmatprep.mubr.f32.mxu0 %v795
        %879 = vmatmul.mubr.f32.gmra.mrb[0].mxu0 %v761
        %v880 = vpop.f32.mrb[0].mxu0
        %v881 = vadd.f32 %v791, %v880
        %v882 = vpop.f32.mrb[0].mxu0
        %883 = vmatprep.mubr.f32.mxu0 %v797
        %884 = vmatmul.mubr.f32.gmra.mrb[0].mxu0 %v762
        %v885 = vpop.f32.mrb[0].mxu0
        %v886 = vadd.f32 %v791, %v885
        %v887 = vpop.f32.mrb[0].mxu0
        %888 = vmatprep.mubr.f32.mxu0 %v799
        %889 = vmatmul.mubr.f32.gmra.mrb[0].mxu0 %v763
        %v890 = vpop.f32.mrb[0].mxu0
        %v891 = vadd.f32 %v791, %v890
        %v892 = vpop.f32.mrb[0].mxu0
        %893 = vmatprep.mubr.f32.mxu0 %v801
        %894 = vmatmul.mubr.f32.gmra.mrb[0].mxu0 %v764
        %v895 = vpop.f32.mrb[0].mxu0
        %v896 = vadd.f32 %v791, %v895
        %v897 = vpop.f32.mrb[0].mxu0
        %898 = vmatprep.mubr.f32.mxu0 %v803
        %899 = vmatmul.mubr.f32.gmra.mrb[0].mxu0 %v765
        %v900 = vpop.f32.mrb[0].mxu0
        %v901 = vadd.f32 %v791, %v900
        %v902 = vpop.f32.mrb[0].mxu0
        %903 = vmatprep.mubr.f32.mxu0 %v805
        %904 = vmatmul.mubr.f32.gmra.mrb[0].mxu0 %v766
        %v905 = vpop.f32.mrb[0].mxu0
        %v906 = vadd.f32 %v791, %v905
        %v907 = vpop.f32.mrb[0].mxu0
        %908 = vmatprep.mubr.f32.mxu0 %v807
        %909 = vmatmul.mubr.f32.gmra.mrb[0].mxu0 %v767
        %v910 = vpop.f32.mrb[0].mxu0
        %v911 = vadd.f32 %v791, %v910
        %v912 = vpop.f32.mrb[0].mxu0
        %913 = vdwg.mxu0
        %914 = vst.msk [vmem:[#allocation3] sm:$0xff] %vm375, 0.0
        %915 = vst.msk [vmem:[#allocation3 + $0x8] sm:$0x3] %vm377, 0.0
        %s916 = scalar_lea.vmem [#allocation3], 144
        %917 = vst.msk [vmem:[%s916] sm:$0xff] %vm375, 0.0
        %918 = vst.msk [vmem:[%s916 + $0x8] sm:$0x3] %vm377, 0.0
        %919 = vst.msk [vmem:[#allocation3] sm:$0x1] %vm382, 0.0
        %920 = vst.msk [vmem:[#allocation3 + $0x10] sm:$0x1] %vm382, 0.0
        %921 = vst.msk [vmem:[#allocation3 + $0x20] sm:$0x1] %vm382, 0.0
        %922 = vst.msk [vmem:[#allocation3 + $0x30] sm:$0x1] %vm382, 0.0
        %923 = vst.msk [vmem:[#allocation3 + $0x40] sm:$0x1] %vm382, 0.0
        %924 = vst.msk [vmem:[#allocation3 + $0x50] sm:$0x1] %vm382, 0.0
        %925 = vst.msk [vmem:[#allocation3 + $0x60] sm:$0x1] %vm382, 0.0
        %926 = vst.msk [vmem:[#allocation3 + $0x70] sm:$0x1] %vm382, 0.0
        %927 = vst.msk [vmem:[#allocation3 + $0x80] sm:$0x1] %vm382, 0.0
        %928 = vst.msk [vmem:[#allocation3 + $0x90] sm:$0x1] %vm382, 0.0
        %929 = vst.msk [vmem:[#allocation3 + $0x9] sm:$0x1] %vm382, 0.0
        %930 = vst.msk [vmem:[#allocation3 + $0x19] sm:$0x1] %vm382, 0.0
        %931 = vst.msk [vmem:[#allocation3 + $0x29] sm:$0x1] %vm382, 0.0
        %932 = vst.msk [vmem:[#allocation3 + $0x39] sm:$0x1] %vm382, 0.0
        %933 = vst.msk [vmem:[#allocation3 + $0x49] sm:$0x1] %vm382, 0.0
        %934 = vst.msk [vmem:[#allocation3 + $0x59] sm:$0x1] %vm382, 0.0
        %935 = vst.msk [vmem:[#allocation3 + $0x69] sm:$0x1] %vm382, 0.0
        %936 = vst.msk [vmem:[#allocation3 + $0x79] sm:$0x1] %vm382, 0.0
        %937 = vst.msk [vmem:[#allocation3 + $0x89] sm:$0x1] %vm382, 0.0
        %938 = vst.msk [vmem:[#allocation3 + $0x99] sm:$0x1] %vm382, 0.0
        %vm939 = vcmp.gt.f32.partialorder %v876, 0.0
        %vm940 = vcmp.gt.f32.partialorder %v881, 0.0
        %vm941 = vcmp.gt.f32.partialorder %v886, 0.0
        %vm942 = vcmp.gt.f32.partialorder %v891, 0.0
        %vm943 = vcmp.gt.f32.partialorder %v896, 0.0
        %vm944 = vcmp.gt.f32.partialorder %v901, 0.0
        %vm945 = vcmp.gt.f32.partialorder %v906, 0.0
        %vm946 = vcmp.gt.f32.partialorder %v911, 0.0
        %v947 = vmul.f32 %v876, 0.2
        %v948 = vmul.f32 %v881, 0.2
        %v949 = vmul.f32 %v886, 0.2
        %v950 = vmul.f32 %v891, 0.2
        %v951 = vmul.f32 %v896, 0.2
        %v952 = vmul.f32 %v901, 0.2
        %v953 = vmul.f32 %v906, 0.2
        %v954 = vmul.f32 %v911, 0.2
        %v955 = vsel %vm939, %v876, %v947
        %v956 = vsel %vm940, %v881, %v948
        %v957 = vsel %vm941, %v886, %v949
        %v958 = vsel %vm942, %v891, %v950
        %v959 = vsel %vm943, %v896, %v951
        %v960 = vsel %vm944, %v901, %v952
        %v961 = vsel %vm945, %v906, %v953
        %v962 = vsel %vm946, %v911, %v954
        %s963 = scalar_lea.vmem [#allocation3], 16
        %964 = vst.msk [vmem:[%s963 + $0x1] sm:$0xff] %vm375, %v955
        %965 = vst.msk [vmem:[%s963 + $0x11] sm:$0xff] %vm375, %v956
        %966 = vst.msk [vmem:[%s963 + $0x21] sm:$0xff] %vm375, %v957
        %967 = vst.msk [vmem:[%s963 + $0x31] sm:$0xff] %vm375, %v958
        %968 = vst.msk [vmem:[%s963 + $0x41] sm:$0xff] %vm375, %v959
        %969 = vst.msk [vmem:[%s963 + $0x51] sm:$0xff] %vm375, %v960
        %970 = vst.msk [vmem:[%s963 + $0x61] sm:$0xff] %vm375, %v961
        %971 = vst.msk [vmem:[%s963 + $0x71] sm:$0xff] %vm375, %v962
        %v972 = vld [vmem:[#allocation3] sm:$0xff]
        %v973 = vld [vmem:[#allocation3 + $0x8] sm:$0x3]
        %v974 = vld [vmem:[#allocation3 + $0x10] sm:$0xff]
        %v975 = vld [vmem:[#allocation3 + $0x18] sm:$0x3]
        %v976 = vld [vmem:[#allocation3 + $0x20] sm:$0xff]
        %v977 = vld [vmem:[#allocation3 + $0x28] sm:$0x3]
        %v978 = vld [vmem:[#allocation3 + $0x30] sm:$0xff]
        %v979 = vld [vmem:[#allocation3 + $0x38] sm:$0x3]
        %v980 = vld [vmem:[#allocation3 + $0x40] sm:$0xff]
        %v981 = vld [vmem:[#allocation3 + $0x48] sm:$0x3]
        %v982 = vld [vmem:[#allocation3 + $0x50] sm:$0xff]
        %v983 = vld [vmem:[#allocation3 + $0x58] sm:$0x3]
        %v984 = vld [vmem:[#allocation3 + $0x60] sm:$0xff]
        %v985 = vld [vmem:[#allocation3 + $0x68] sm:$0x3]
        %v986 = vld [vmem:[#allocation3 + $0x70] sm:$0xff]
        %v987 = vld [vmem:[#allocation3 + $0x78] sm:$0x3]
        %v988 = vld [vmem:[#allocation3 + $0x80] sm:$0xff]
        %v989 = vld [vmem:[#allocation3 + $0x88] sm:$0x3]
        %v990 = vld [vmem:[#allocation3 + $0x90] sm:$0xff]
        %v991 = vld [vmem:[#allocation3 + $0x98] sm:$0x3]
        %v1008 = vrot.slane %v972, 1
        %v1009 = vrot.slane %v973, 1
        %v1010 = vsel %vm472, %v1008, %v1009
        %v1011 = vrot.slane %v974, 1
        %v1012 = vrot.slane %v975, 1
        %v1013 = vsel %vm472, %v1011, %v1012
        %v1014 = vrot.slane %v976, 1
        %v1015 = vrot.slane %v977, 1
        %v1016 = vsel %vm472, %v1014, %v1015
        %v1017 = vrot.slane %v978, 1
        %v1018 = vrot.slane %v979, 1
        %v1019 = vsel %vm472, %v1017, %v1018
        %v1020 = vrot.slane %v980, 1
        %v1021 = vrot.slane %v981, 1
        %v1022 = vsel %vm472, %v1020, %v1021
        %v1023 = vrot.slane %v982, 1
        %v1024 = vrot.slane %v983, 1
        %v1025 = vsel %vm472, %v1023, %v1024
        %v1026 = vrot.slane %v984, 1
        %v1027 = vrot.slane %v985, 1
        %v1028 = vsel %vm472, %v1026, %v1027
        %v1029 = vrot.slane %v986, 1
        %v1030 = vrot.slane %v987, 1
        %v1031 = vsel %vm472, %v1029, %v1030
        %v1032 = vrot.slane %v972, 2
        %v1033 = vrot.slane %v973, 2
        %v1034 = vsel %vm497, %v1032, %v1033
        %v1035 = vrot.slane %v974, 2
        %v1036 = vrot.slane %v975, 2
        %v1037 = vsel %vm497, %v1035, %v1036
        %v1038 = vrot.slane %v976, 2
        %v1039 = vrot.slane %v977, 2
        %v1040 = vsel %vm497, %v1038, %v1039
        %v1041 = vrot.slane %v978, 2
        %v1042 = vrot.slane %v979, 2
        %v1043 = vsel %vm497, %v1041, %v1042
        %v1044 = vrot.slane %v980, 2
        %v1045 = vrot.slane %v981, 2
        %v1046 = vsel %vm497, %v1044, %v1045
        %v1047 = vrot.slane %v982, 2
        %v1048 = vrot.slane %v983, 2
        %v1049 = vsel %vm497, %v1047, %v1048
        %v1050 = vrot.slane %v984, 2
        %v1051 = vrot.slane %v985, 2
        %v1052 = vsel %vm497, %v1050, %v1051
        %v1053 = vrot.slane %v986, 2
        %v1054 = vrot.slane %v987, 2
        %v1055 = vsel %vm497, %v1053, %v1054
        %v1058 = vrot.slane %v988, 1
        %v1059 = vrot.slane %v989, 1
        %v1060 = vsel %vm472, %v1058, %v1059
        %v1061 = vrot.slane %v988, 2
        %v1062 = vrot.slane %v989, 2
        %v1063 = vsel %vm497, %v1061, %v1062
        %v1066 = vrot.slane %v990, 1
        %v1067 = vrot.slane %v991, 1
        %v1068 = vsel %vm472, %v1066, %v1067
        %v1069 = vrot.slane %v990, 2
        %v1070 = vrot.slane %v991, 2
        %v1071 = vsel %vm497, %v1069, %v1070
        %1072 = vrot.lane.b32.xlu0 %v1010, 16
        %v1073 = vpop.permute.xlu0 %1072
        %1074 = vrot.lane.b32.xlu0 %v1013, 16
        %v1075 = vpop.permute.xlu0 %1074
        %1076 = vrot.lane.b32.xlu0 %v1016, 16
        %v1077 = vpop.permute.xlu0 %1076
        %1078 = vrot.lane.b32.xlu0 %v1019, 16
        %v1079 = vpop.permute.xlu0 %1078
        %1080 = vrot.lane.b32.xlu0 %v1022, 16
        %v1081 = vpop.permute.xlu0 %1080
        %1082 = vrot.lane.b32.xlu0 %v1025, 16
        %v1083 = vpop.permute.xlu0 %1082
        %1084 = vrot.lane.b32.xlu0 %v1028, 16
        %v1085 = vpop.permute.xlu0 %1084
        %1086 = vrot.lane.b32.xlu0 %v1031, 16
        %v1087 = vpop.permute.xlu0 %1086
        %1096 = vrot.lane.b32.xlu0 %v1034, 32
        %v1097 = vpop.permute.xlu0 %1096
        %1098 = vrot.lane.b32.xlu0 %v1037, 32
        %v1099 = vpop.permute.xlu0 %1098
        %1100 = vrot.lane.b32.xlu0 %v1040, 32
        %v1101 = vpop.permute.xlu0 %1100
        %1102 = vrot.lane.b32.xlu0 %v1043, 32
        %v1103 = vpop.permute.xlu0 %1102
        %1104 = vrot.lane.b32.xlu0 %v1046, 32
        %v1105 = vpop.permute.xlu0 %1104
        %1106 = vrot.lane.b32.xlu0 %v1049, 32
        %v1107 = vpop.permute.xlu0 %1106
        %1108 = vrot.lane.b32.xlu0 %v1052, 32
        %v1109 = vpop.permute.xlu0 %1108
        %1110 = vrot.lane.b32.xlu0 %v1055, 32
        %v1111 = vpop.permute.xlu0 %1110
        %1120 = vrot.lane.b32.xlu0 %v974, 48
        %v1121 = vpop.permute.xlu0 %1120
        %1122 = vrot.lane.b32.xlu0 %v976, 48
        %v1123 = vpop.permute.xlu0 %1122
        %1124 = vrot.lane.b32.xlu0 %v978, 48
        %v1125 = vpop.permute.xlu0 %1124
        %1126 = vrot.lane.b32.xlu0 %v980, 48
        %v1127 = vpop.permute.xlu0 %1126
        %1128 = vrot.lane.b32.xlu0 %v982, 48
        %v1129 = vpop.permute.xlu0 %1128
        %1130 = vrot.lane.b32.xlu0 %v984, 48
        %v1131 = vpop.permute.xlu0 %1130
        %1132 = vrot.lane.b32.xlu0 %v986, 48
        %v1133 = vpop.permute.xlu0 %1132
        %1134 = vrot.lane.b32.xlu0 %v988, 48
        %v1135 = vpop.permute.xlu0 %1134
        %1144 = vrot.lane.b32.xlu0 %v1013, 64
        %v1145 = vpop.permute.xlu0 %1144
        %1146 = vrot.lane.b32.xlu0 %v1016, 64
        %v1147 = vpop.permute.xlu0 %1146
        %1148 = vrot.lane.b32.xlu0 %v1019, 64
        %v1149 = vpop.permute.xlu0 %1148
        %1150 = vrot.lane.b32.xlu0 %v1022, 64
        %v1151 = vpop.permute.xlu0 %1150
        %1152 = vrot.lane.b32.xlu0 %v1025, 64
        %v1153 = vpop.permute.xlu0 %1152
        %1154 = vrot.lane.b32.xlu0 %v1028, 64
        %v1155 = vpop.permute.xlu0 %1154
        %1156 = vrot.lane.b32.xlu0 %v1031, 64
        %v1157 = vpop.permute.xlu0 %1156
        %1158 = vrot.lane.b32.xlu0 %v1060, 64
        %v1159 = vpop.permute.xlu0 %1158
        %1168 = vrot.lane.b32.xlu0 %v1037, 80
        %v1169 = vpop.permute.xlu0 %1168
        %1170 = vrot.lane.b32.xlu0 %v1040, 80
        %v1171 = vpop.permute.xlu0 %1170
        %1172 = vrot.lane.b32.xlu0 %v1043, 80
        %v1173 = vpop.permute.xlu0 %1172
        %1174 = vrot.lane.b32.xlu0 %v1046, 80
        %v1175 = vpop.permute.xlu0 %1174
        %1176 = vrot.lane.b32.xlu0 %v1049, 80
        %v1177 = vpop.permute.xlu0 %1176
        %1178 = vrot.lane.b32.xlu0 %v1052, 80
        %v1179 = vpop.permute.xlu0 %1178
        %1180 = vrot.lane.b32.xlu0 %v1055, 80
        %v1181 = vpop.permute.xlu0 %1180
        %1182 = vrot.lane.b32.xlu0 %v1063, 80
        %v1183 = vpop.permute.xlu0 %1182
        %1192 = vrot.lane.b32.xlu0 %v976, 96
        %v1193 = vpop.permute.xlu0 %1192
        %1194 = vrot.lane.b32.xlu0 %v978, 96
        %v1195 = vpop.permute.xlu0 %1194
        %1196 = vrot.lane.b32.xlu0 %v980, 96
        %v1197 = vpop.permute.xlu0 %1196
        %1198 = vrot.lane.b32.xlu0 %v982, 96
        %v1199 = vpop.permute.xlu0 %1198
        %1200 = vrot.lane.b32.xlu0 %v984, 96
        %v1201 = vpop.permute.xlu0 %1200
        %1202 = vrot.lane.b32.xlu0 %v986, 96
        %v1203 = vpop.permute.xlu0 %1202
        %1204 = vrot.lane.b32.xlu0 %v988, 96
        %v1205 = vpop.permute.xlu0 %1204
        %1206 = vrot.lane.b32.xlu0 %v990, 96
        %v1207 = vpop.permute.xlu0 %1206
        %1216 = vrot.lane.b32.xlu0 %v1016, 112
        %v1217 = vpop.permute.xlu0 %1216
        %1218 = vrot.lane.b32.xlu0 %v1019, 112
        %v1219 = vpop.permute.xlu0 %1218
        %1220 = vrot.lane.b32.xlu0 %v1022, 112
        %v1221 = vpop.permute.xlu0 %1220
        %1222 = vrot.lane.b32.xlu0 %v1025, 112
        %v1223 = vpop.permute.xlu0 %1222
        %1224 = vrot.lane.b32.xlu0 %v1028, 112
        %v1225 = vpop.permute.xlu0 %1224
        %1226 = vrot.lane.b32.xlu0 %v1031, 112
        %v1227 = vpop.permute.xlu0 %1226
        %1228 = vrot.lane.b32.xlu0 %v1060, 112
        %v1229 = vpop.permute.xlu0 %1228
        %1230 = vrot.lane.b32.xlu0 %v1068, 112
        %v1231 = vpop.permute.xlu0 %1230
        %v1240 = vsel %vm375, %v972, %v1073
        %v1241 = vsel %vm375, %v974, %v1075
        %v1242 = vsel %vm375, %v976, %v1077
        %v1243 = vsel %vm375, %v978, %v1079
        %v1244 = vsel %vm375, %v980, %v1081
        %v1245 = vsel %vm375, %v982, %v1083
        %v1246 = vsel %vm375, %v984, %v1085
        %v1247 = vsel %vm375, %v986, %v1087
        %v1248 = vsel %vm714, %v1240, %v1097
        %v1249 = vsel %vm714, %v1241, %v1099
        %v1250 = vsel %vm714, %v1242, %v1101
        %v1251 = vsel %vm714, %v1243, %v1103
        %v1252 = vsel %vm714, %v1244, %v1105
        %v1253 = vsel %vm714, %v1245, %v1107
        %v1254 = vsel %vm714, %v1246, %v1109
        %v1255 = vsel %vm714, %v1247, %v1111
        %v1256 = vsel %vm723, %v1248, %v1121
        %v1257 = vsel %vm723, %v1249, %v1123
        %v1258 = vsel %vm723, %v1250, %v1125
        %v1259 = vsel %vm723, %v1251, %v1127
        %v1260 = vsel %vm723, %v1252, %v1129
        %v1261 = vsel %vm723, %v1253, %v1131
        %v1262 = vsel %vm723, %v1254, %v1133
        %v1263 = vsel %vm723, %v1255, %v1135
        %v1264 = vsel %vm732, %v1256, %v1145
        %v1265 = vsel %vm732, %v1257, %v1147
        %v1266 = vsel %vm732, %v1258, %v1149
        %v1267 = vsel %vm732, %v1259, %v1151
        %v1268 = vsel %vm732, %v1260, %v1153
        %v1269 = vsel %vm732, %v1261, %v1155
        %v1270 = vsel %vm732, %v1262, %v1157
        %v1271 = vsel %vm732, %v1263, %v1159
        %v1272 = vsel %vm741, %v1264, %v1169
        %v1273 = vsel %vm741, %v1265, %v1171
        %v1274 = vsel %vm741, %v1266, %v1173
        %v1275 = vsel %vm741, %v1267, %v1175
        %v1276 = vsel %vm741, %v1268, %v1177
        %v1277 = vsel %vm741, %v1269, %v1179
        %v1278 = vsel %vm741, %v1270, %v1181
        %v1279 = vsel %vm741, %v1271, %v1183
        %v1280 = vsel %vm750, %v1272, %v1193
        %v1281 = vsel %vm750, %v1273, %v1195
        %v1282 = vsel %vm750, %v1274, %v1197
        %v1283 = vsel %vm750, %v1275, %v1199
        %v1284 = vsel %vm750, %v1276, %v1201
        %v1285 = vsel %vm750, %v1277, %v1203
        %v1286 = vsel %vm750, %v1278, %v1205
        %v1287 = vsel %vm750, %v1279, %v1207
        %v1288 = vsel %vm759, %v1280, %v1217
        %v1289 = vsel %vm759, %v1281, %v1219
        %v1290 = vsel %vm759, %v1282, %v1221
        %v1291 = vsel %vm759, %v1283, %v1223
        %v1292 = vsel %vm759, %v1284, %v1225
        %v1293 = vsel %vm759, %v1285, %v1227
        %v1294 = vsel %vm759, %v1286, %v1229
        %v1295 = vsel %vm759, %v1287, %v1231
        %v1296 = vld [vmem:[#allocation11] sm:$0xff]
        %v1297 = vld [vmem:[#allocation11 + $0x8] sm:$0xff]
        %v1298 = vld [vmem:[#allocation11 + $0x10] sm:$0xff]
        %v1299 = vld [vmem:[#allocation11 + $0x18] sm:$0xff]
        %v1300 = vld [vmem:[#allocation11 + $0x20] sm:$0xff]
        %v1301 = vld [vmem:[#allocation11 + $0x28] sm:$0xff]
        %v1302 = vld [vmem:[#allocation11 + $0x30] sm:$0xff]
        %v1303 = vld [vmem:[#allocation11 + $0x38] sm:$0xff]
        %v1304 = vld [vmem:[#allocation11 + $0x40] sm:$0xff]
        %v1305 = vld [vmem:[#allocation11 + $0x48] sm:$0xff]
        %v1306 = vld [vmem:[#allocation11 + $0x50] sm:$0xff]
        %v1307 = vld [vmem:[#allocation11 + $0x58] sm:$0xff]
        %v1308 = vld [vmem:[#allocation11 + $0x60] sm:$0xff]
        %v1309 = vld [vmem:[#allocation11 + $0x68] sm:$0xff]
        %v1310 = vld [vmem:[#allocation11 + $0x70] sm:$0xff]
        %v1311 = vld [vmem:[#allocation11 + $0x78] sm:$0xff]
        %v1312 = vld [vmem:[#allocation11 + $0x80] sm:$0xff]
        %v1313 = vld [vmem:[#allocation11 + $0x88] sm:$0xff]
        %v1314 = vld [vmem:[#allocation13] sm:$0x1]
        %v1316 = vlaneseq
        %v1317 = vshrl.u32 %v1316, 7
        %v1318 = vsub.s32 0, %v1317
        %v1319 = vrot.slane %v1314, %v1318
        %v1321 = vsel %vm375, %v1040, 0
        %v1323 = vsel %vm375, %v1043, 0
        %v1325 = vsel %vm375, %v1046, 0
        %v1327 = vsel %vm375, %v1049, 0
        %v1329 = vsel %vm375, %v1052, 0
        %v1331 = vsel %vm375, %v1055, 0
        %v1333 = vsel %vm375, %v1063, 0
        %v1335 = vsel %vm375, %v1071, 0
        %1337 = vmatprep.subr.mxu0 0.0
        %1338 = vmatpush1.msra.mxu0 %v1296
        %1339 = vmatprep.subr.mxu0 0.0
        %1340 = vmatpush1.msra.mxu0 %v1297
        %1341 = vmatprep.subr.mxu0 0.0
        %1342 = vmatpush1.msra.mxu0 %v1298
        %1343 = vmatprep.subr.mxu0 0.0
        %1344 = vmatpush1.msra.mxu0 %v1299
        %1345 = vmatprep.subr.mxu0 0.0
        %1346 = vmatpush1.msra.mxu0 %v1300
        %1347 = vmatprep.subr.mxu0 0.0
        %1348 = vmatpush1.msra.mxu0 %v1301
        %1349 = vmatprep.subr.mxu0 0.0
        %1350 = vmatpush1.msra.mxu0 %v1302
        %1351 = vmatprep.subr.mxu0 0.0
        %1352 = vmatpush1.msra.mxu0 %v1303
        %1353 = vmatprep.subr.mxu0 0.0
        %1354 = vmatpush1.msra.mxu0 %v1304
        %1355 = vmatprep.subr.mxu0 0.0
        %1356 = vmatpush1.msra.mxu0 %v1305
        %1357 = vmatprep.subr.mxu0 0.0
        %1358 = vmatpush1.msra.mxu0 %v1306
        %1359 = vmatprep.subr.mxu0 0.0
        %1360 = vmatpush1.msra.mxu0 %v1307
        %1361 = vmatprep.subr.mxu0 0.0
        %1362 = vmatpush1.msra.mxu0 %v1308
        %1363 = vmatprep.subr.mxu0 0.0
        %1364 = vmatpush1.msra.mxu0 %v1309
        %1365 = vmatprep.subr.mxu0 0.0
        %1366 = vmatpush1.msra.mxu0 %v1310
        %1367 = vmatprep.subr.mxu0 0.0
        %1368 = vmatpush1.msra.mxu0 %v1311
        %1369 = vmatprep.subr.mxu0 0.0
        %1370 = vmatpush1.msra.mxu0 %v1312
        %1371 = vmatprep.subr.mxu0 0.0
        %1372 = vmatpush1.msra.mxu0 %v1313
        %1373 = vmatprep.subr.mxu0 0.0
        %1374 = vmatpush1.msra.mxu0 0.0
        %1375 = vmatprep.subr.mxu0 0.0
        %1376 = vmatpush1.msra.mxu0 0.0
        %1377 = vmatprep.subr.mxu0 0.0
        %1378 = vmatpush1.msra.mxu0 0.0
        %1379 = vmatprep.subr.mxu0 0.0
        %1380 = vmatpush1.msra.mxu0 0.0
        %1381 = vmatprep.subr.mxu0 0.0
        %1382 = vmatpush1.msra.mxu0 0.0
        %1383 = vmatprep.subr.mxu0 0.0
        %1384 = vmatpush1.msra.mxu0 0.0
        %1385 = vmatprep.subr.mxu0 0.0
        %1386 = vmatpush1.msra.mxu0 0.0
        %1387 = vmatprep.subr.mxu0 0.0
        %1388 = vmatpush1.msra.mxu0 0.0
        %1389 = vmatprep.subr.mxu0 0.0
        %1390 = vmatpush1.msra.mxu0 0.0
        %1391 = vmatprep.subr.mxu0 0.0
        %1392 = vmatpush1.msra.mxu0 0.0
        %1393 = vmatprep.subr.mxu0 0.0
        %1394 = vmatpush1.msra.mxu0 0.0
        %1395 = vmatprep.subr.mxu0 0.0
        %1396 = vmatpush1.msra.mxu0 0.0
        %1397 = vmatprep.subr.mxu0 0.0
        %1398 = vmatpush1.msra.mxu0 0.0
        %1399 = vmatprep.subr.mxu0 0.0
        %1400 = vmatpush1.msra.mxu0 0.0
        %1401 = vmatprep.mubr.f32.mxu0 %v1321
        %1402 = vmatmul.mubr.f32.gmra.mrb[0].mxu0 %v1288
        %v1403 = vpop.f32.mrb[0].mxu0
        %v1404 = vadd.f32 %v1319, %v1403
        %v1405 = vpop.f32.mrb[0].mxu0
        %1406 = vmatprep.mubr.f32.mxu0 %v1323
        %1407 = vmatmul.mubr.f32.gmra.mrb[0].mxu0 %v1289
        %v1408 = vpop.f32.mrb[0].mxu0
        %v1409 = vadd.f32 %v1319, %v1408
        %v1410 = vpop.f32.mrb[0].mxu0
        %1411 = vmatprep.mubr.f32.mxu0 %v1325
        %1412 = vmatmul.mubr.f32.gmra.mrb[0].mxu0 %v1290
        %v1413 = vpop.f32.mrb[0].mxu0
        %v1414 = vadd.f32 %v1319, %v1413
        %v1415 = vpop.f32.mrb[0].mxu0
        %1416 = vmatprep.mubr.f32.mxu0 %v1327
        %1417 = vmatmul.mubr.f32.gmra.mrb[0].mxu0 %v1291
        %v1418 = vpop.f32.mrb[0].mxu0
        %v1419 = vadd.f32 %v1319, %v1418
        %v1420 = vpop.f32.mrb[0].mxu0
        %1421 = vmatprep.mubr.f32.mxu0 %v1329
        %1422 = vmatmul.mubr.f32.gmra.mrb[0].mxu0 %v1292
        %v1423 = vpop.f32.mrb[0].mxu0
        %v1424 = vadd.f32 %v1319, %v1423
        %v1425 = vpop.f32.mrb[0].mxu0
        %1426 = vmatprep.mubr.f32.mxu0 %v1331
        %1427 = vmatmul.mubr.f32.gmra.mrb[0].mxu0 %v1293
        %v1428 = vpop.f32.mrb[0].mxu0
        %v1429 = vadd.f32 %v1319, %v1428
        %v1430 = vpop.f32.mrb[0].mxu0
        %1431 = vmatprep.mubr.f32.mxu0 %v1333
        %1432 = vmatmul.mubr.f32.gmra.mrb[0].mxu0 %v1294
        %v1433 = vpop.f32.mrb[0].mxu0
        %v1434 = vadd.f32 %v1319, %v1433
        %v1435 = vpop.f32.mrb[0].mxu0
        %1436 = vmatprep.mubr.f32.mxu0 %v1335
        %1437 = vmatmul.mubr.f32.gmra.mrb[0].mxu0 %v1295
        %v1438 = vpop.f32.mrb[0].mxu0
        %v1439 = vadd.f32 %v1319, %v1438
        %v1440 = vpop.f32.mrb[0].mxu0
        %1441 = vdwg.mxu0
        %v1442 = vld [vmem:[#allocation14] sm:$0xff]
        %v1443 = vld [vmem:[#allocation14 + $0x8] sm:$0xff]
        %v1445 = vsel %vm375, %v367, 0
        %v1448 = vsel %vm375, %v368, 0
        %v1451 = vsel %vm375, %v369, 0
        %v1454 = vsel %vm375, %v370, 0
        %v1457 = vsel %vm375, %v371, 0
        %v1460 = vsel %vm375, %v372, 0
        %v1463 = vsel %vm375, %v373, 0
        %v1466 = vsel %vm375, %v374, 0
        %1468 = vmatprep.subr.mxu0 0.0
        %1469 = vmatpush1.msra.mxu0 %v1442
        %1470 = vmatprep.subr.mxu0 0.0
        %1471 = vmatpush1.msra.mxu0 %v1443
        %1472 = vmatprep.subr.mxu0 0.0
        %1473 = vmatpush1.msra.mxu0 0.0
        %1474 = vmatprep.subr.mxu0 0.0
        %1475 = vmatpush1.msra.mxu0 0.0
        %1476 = vmatprep.subr.mxu0 0.0
        %1477 = vmatpush1.msra.mxu0 0.0
        %1478 = vmatprep.subr.mxu0 0.0
        %1479 = vmatpush1.msra.mxu0 0.0
        %1480 = vmatprep.subr.mxu0 0.0
        %1481 = vmatpush1.msra.mxu0 0.0
        %1482 = vmatprep.subr.mxu0 0.0
        %1483 = vmatpush1.msra.mxu0 0.0
        %1484 = vmatprep.subr.mxu0 0.0
        %1485 = vmatpush1.msra.mxu0 0.0
        %1486 = vmatprep.subr.mxu0 0.0
        %1487 = vmatpush1.msra.mxu0 0.0
        %1488 = vmatprep.subr.mxu0 0.0
        %1489 = vmatpush1.msra.mxu0 0.0
        %1490 = vmatprep.subr.mxu0 0.0
        %1491 = vmatpush1.msra.mxu0 0.0
        %1492 = vmatprep.subr.mxu0 0.0
        %1493 = vmatpush1.msra.mxu0 0.0
        %1494 = vmatprep.subr.mxu0 0.0
        %1495 = vmatpush1.msra.mxu0 0.0
        %1496 = vmatprep.subr.mxu0 0.0
        %1497 = vmatpush1.msra.mxu0 0.0
        %1498 = vmatprep.subr.mxu0 0.0
        %1499 = vmatpush1.msra.mxu0 0.0
        %1500 = vmatprep.subr.mxu0 0.0
        %1501 = vmatpush1.msra.mxu0 0.0
        %1502 = vmatprep.subr.mxu0 0.0
        %1503 = vmatpush1.msra.mxu0 0.0
        %1504 = vmatprep.subr.mxu0 0.0
        %1505 = vmatpush1.msra.mxu0 0.0
        %1506 = vmatprep.subr.mxu0 0.0
        %1507 = vmatpush1.msra.mxu0 0.0
        %1508 = vmatprep.subr.mxu0 0.0
        %1509 = vmatpush1.msra.mxu0 0.0
        %1510 = vmatprep.subr.mxu0 0.0
        %1511 = vmatpush1.msra.mxu0 0.0
        %1512 = vmatprep.subr.mxu0 0.0
        %1513 = vmatpush1.msra.mxu0 0.0
        %1514 = vmatprep.subr.mxu0 0.0
        %1515 = vmatpush1.msra.mxu0 0.0
        %1516 = vmatprep.subr.mxu0 0.0
        %1517 = vmatpush1.msra.mxu0 0.0
        %1518 = vmatprep.subr.mxu0 0.0
        %1519 = vmatpush1.msra.mxu0 0.0
        %1520 = vmatprep.subr.mxu0 0.0
        %1521 = vmatpush1.msra.mxu0 0.0
        %1522 = vmatprep.subr.mxu0 0.0
        %1523 = vmatpush1.msra.mxu0 0.0
        %1524 = vmatprep.subr.mxu0 0.0
        %1525 = vmatpush1.msra.mxu0 0.0
        %1526 = vmatprep.subr.mxu0 0.0
        %1527 = vmatpush1.msra.mxu0 0.0
        %1528 = vmatprep.subr.mxu0 0.0
        %1529 = vmatpush1.msra.mxu0 0.0
        %1530 = vmatprep.subr.mxu0 0.0
        %1531 = vmatpush1.msra.mxu0 0.0
        %1532 = vmatprep.mubr.f32.mxu0 0.0
        %1533 = vmatmul.mubr.f32.gmra.mrb[0].mxu0 %v1445
        %v1534 = vpop.f32.mrb[0].mxu0
        %v1535 = vadd.f32 0.0, %v1534
        %v1536 = vpop.f32.mrb[0].mxu0
        %1537 = vmatprep.mubr.f32.mxu0 0.0
        %1538 = vmatmul.mubr.f32.gmra.mrb[0].mxu0 %v1448
        %v1539 = vpop.f32.mrb[0].mxu0
        %v1540 = vadd.f32 0.0, %v1539
        %v1541 = vpop.f32.mrb[0].mxu0
        %1542 = vmatprep.mubr.f32.mxu0 0.0
        %1543 = vmatmul.mubr.f32.gmra.mrb[0].mxu0 %v1451
        %v1544 = vpop.f32.mrb[0].mxu0
        %v1545 = vadd.f32 0.0, %v1544
        %v1546 = vpop.f32.mrb[0].mxu0
        %1547 = vmatprep.mubr.f32.mxu0 0.0
        %1548 = vmatmul.mubr.f32.gmra.mrb[0].mxu0 %v1454
        %v1549 = vpop.f32.mrb[0].mxu0
        %v1550 = vadd.f32 0.0, %v1549
        %v1551 = vpop.f32.mrb[0].mxu0
        %1552 = vmatprep.mubr.f32.mxu0 0.0
        %1553 = vmatmul.mubr.f32.gmra.mrb[0].mxu0 %v1457
        %v1554 = vpop.f32.mrb[0].mxu0
        %v1555 = vadd.f32 0.0, %v1554
        %v1556 = vpop.f32.mrb[0].mxu0
        %1557 = vmatprep.mubr.f32.mxu0 0.0
        %1558 = vmatmul.mubr.f32.gmra.mrb[0].mxu0 %v1460
        %v1559 = vpop.f32.mrb[0].mxu0
        %v1560 = vadd.f32 0.0, %v1559
        %v1561 = vpop.f32.mrb[0].mxu0
        %1562 = vmatprep.mubr.f32.mxu0 0.0
        %1563 = vmatmul.mubr.f32.gmra.mrb[0].mxu0 %v1463
        %v1564 = vpop.f32.mrb[0].mxu0
        %v1565 = vadd.f32 0.0, %v1564
        %v1566 = vpop.f32.mrb[0].mxu0
        %1567 = vmatprep.mubr.f32.mxu0 0.0
        %1568 = vmatmul.mubr.f32.gmra.mrb[0].mxu0 %v1466
        %v1569 = vpop.f32.mrb[0].mxu0
        %v1570 = vadd.f32 0.0, %v1569
        %v1571 = vpop.f32.mrb[0].mxu0
        %1572 = vdwg.mxu0
        %s1573 = sld [smem:[#allocation4]]
        %v1574 = vstv %s1573
        %v1575 = vmul.f32 %v1574, %v1404
        %v1576 = vmul.f32 %v1574, %v1409
        %v1577 = vmul.f32 %v1574, %v1414
        %v1578 = vmul.f32 %v1574, %v1419
        %v1579 = vmul.f32 %v1574, %v1424
        %v1580 = vmul.f32 %v1574, %v1429
        %v1581 = vmul.f32 %v1574, %v1434
        %v1582 = vmul.f32 %v1574, %v1439
        %v1583 = vadd.f32 %v1575, %v1535
        %v1584 = vadd.f32 %v1576, %v1540
        %v1585 = vadd.f32 %v1577, %v1545
        %v1586 = vadd.f32 %v1578, %v1550
        %v1587 = vadd.f32 %v1579, %v1555
        %v1588 = vadd.f32 %v1580, %v1560
        %v1589 = vadd.f32 %v1581, %v1565
        %v1590 = vadd.f32 %v1582, %v1570
        %1591 = vst.msk [vmem:[%s366] sm:$0xff] %vm375, %v1583
        %1592 = vst.msk [vmem:[%s366 + $0x8] sm:$0xff] %vm375, %v1584
        %1593 = vst.msk [vmem:[%s366 + $0x10] sm:$0xff] %vm375, %v1585
        %1594 = vst.msk [vmem:[%s366 + $0x18] sm:$0xff] %vm375, %v1586
        %1595 = vst.msk [vmem:[%s366 + $0x20] sm:$0xff] %vm375, %v1587
        %1596 = vst.msk [vmem:[%s366 + $0x28] sm:$0xff] %vm375, %v1588
        %1597 = vst.msk [vmem:[%s366 + $0x30] sm:$0xff] %vm375, %v1589
        %1598 = vst.msk [vmem:[%s366 + $0x38] sm:$0xff] %vm375, %v1590
        %s1599 = sand.u32 %s188, 1
        %s1600 = scalar_lea.sflag [#allocation7], %s1599
        %s1601 = sand.u32 %s188, 1
        %s1602 = smul.addr %s1601, 64
        %s1603 = scalar_lea.vmem [#allocation16], %s1602
        // Predicated region
        $region73: #{res_generator_forward.4} parent=47 // pred_check
          %p1604 = pneg %p198
        $region74: #{res_generator_forward.4} parent=47 // pred_check_branch
          %1606 = sbr.rel (%p1604) target = $region76
        $region75: #{res_generator_forward.4} parent=47 // pred_region
          %s1608 = ssub.s32 1024, 1024
          %1609 = vsyncadd %s1600, %s1608
          %s1610 = smul.addr %s28, 8
          %s1611 = smul.addr %s1610, 128
          %s1612 = scalar_lea.hbm %s7, %s1611
          %s1613 = sshll.u32 %s1603, 4
          %s1614 = int_to_ptr.vmem [resolvable:$true] %s1613
          %1619 = dma.vmem_to_hbm [thread:$0]  %s1614, 1024, %s1612, %s1600, 128, 128, 8
        $region76: #{res_generator_forward.4} parent=47 // pred_fallthru
          _
      $region48: #{res_generator_forward.4} parent=5 // pred_fallthru
        _
      %p1620 = scmp.le.s32.totalorder 2, %s23
      // Predicated region
      $region77: #{res_generator_forward.4} parent=5 // pred_check
        %p1621 = pneg %p1620
      $region78: #{res_generator_forward.4} parent=5 // pred_check_branch
        %1623 = sbr.rel (%p1621) target = $region80
      $region79: #{res_generator_forward.4} parent=5 // pred_region
        %s1624 = ssub.s32 %s23, 2
        // Predicated region
        $region81: #{res_generator_forward.4} parent=79 // pred_check
          %p1625 = pneg %p204
        $region82: #{res_generator_forward.4} parent=79 // pred_check_branch
          %1627 = sbr.rel (%p1625) target = $region84
        $region83: #{res_generator_forward.4} parent=79 // pred_region
          %s1628 = sand.u32 %s189, 1
          %s1629 = scalar_lea.sflag [#allocation7], %s1628
          %s1630 = sand.u32 %s189, 1
          %s1631 = smul.addr %s1630, 64
          %s1632 = scalar_lea.vmem [#allocation16], %s1631
          %1633 = dma.done %s1629, 1024
        $region84: #{res_generator_forward.4} parent=79 // pred_fallthru
          _
      $region80: #{res_generator_forward.4} parent=5 // pred_fallthru
        _
    $region6: #{res_generator_forward.4} parent=1 // loop_footer
      %s27 = sadd.s32 1, %s23
    $region7: #{res_generator_forward.4} parent=1 // loop_footer_branch
      %22 = sbr.rel target = $region3
    $region8: #{res_generator_forward.4} parent=1 // loop_exit
      _
    %1634 = vsyncpa [#allocation6], 1
    %s1635 = scalar_lea.sflag [#allocation6], 1
    %1636 = vsyncpa %s1635, 1
    %1637 = vsyncpa [#allocation9], 1
    %1638 = vsyncpa [#allocation12], 1
    %1639 = vsyncpa [#allocation15], 1
    %1640 = vsyncpa [#allocation7], 1
    %s1641 = scalar_lea.sflag [#allocation7], 1
    %1642 = vsyncpa %s1641, 1

// kernel: res_generator_forward.5
$region0: #{res_generator_forward.5}
  #allocation0 [shape = 'u32[]', space=smem, size = 0x4, offset = 0x4, fixed_abs, tag = 'smem constant byte address 0x4 - core index']
  #allocation1 [shape = 'u32[144,128]{1,0:T(1,128)}', space=vmem, size = 0x12000, scoped, tag = 'internal scratch']
  #allocation2 [shape = 'f32[1,18,18,16]{3,2,1,0:T(8,128)}', space=vmem, size = 0x36000, scoped, tag = 'scratch operand']
  #allocation3 [shape = 'f32[1,18,18,8]{3,2,1,0:T(8,128)}', space=vmem, size = 0x36000, scoped, tag = 'scratch operand']
  #allocation4 [shape = 'f32[1]{0:T(128)S(6)}', space=smem, size = 0x200, scoped, tag = 'scoped memory for res_generator_forward.5']
  %s0 = inlined_call_operand.<no memory space> [shape: f32[1], index: 0, kind: input, shape index: {}]
  %s1 = inlined_call_operand.hbm [shape: f32[2,16,16,16], index: 1, kind: input, shape index: {}]
  %s2 = inlined_call_operand.hbm [shape: f32[144,8], index: 2, kind: input, shape index: {}]
  %s3 = inlined_call_operand.hbm [shape: f32[1,8], index: 3, kind: input, shape index: {}]
  %s4 = inlined_call_operand.hbm [shape: f32[72,8], index: 4, kind: input, shape index: {}]
  %s5 = inlined_call_operand.hbm [shape: f32[1,8], index: 5, kind: input, shape index: {}]
  %s6 = inlined_call_operand.hbm [shape: f32[16,8], index: 6, kind: input, shape index: {}]
  %s7 = inlined_call_operand.hbm [shape: f32[2,16,16,8], index: 7, kind: output, shape index: {}]
  %s8 = sld [smem:[#allocation0]]
  $region85: #{res_generator_forward.5} parent=0
    _
  %s10 = ssub.s32 1, %s8
  %s11 = scalar_select 0, %s10, %s8
  %12 = sst [smem:[#allocation4]] %s0
  $region1: #{res_generator_forward.5} parent=0
    #allocation5 [shape = 'u8[262144]{0}', space=vmem, size = 0x40000, scoped, tag = 'input window, operand 1']
    #allocation6 [shape = 's32[2]{0}', space=sflag, size = 0x8, scoped, tag = 'scoped memory for res_generator_forward.5']
    #allocation7 [shape = 's32[2]{0}', space=sflag, size = 0x8, scoped, tag = 'scoped memory for res_generator_forward.5']
    #allocation8 [shape = 'u8[73728]{0}', space=vmem, size = 0x12000, scoped, tag = 'input window, operand 2, single buffered']
    #allocation9 [shape = 's32[1]{0}', space=sflag, size = 0x4, scoped, tag = 'scoped memory for res_generator_forward.5']
    #allocation10 [shape = 'u8[512]{0}', space=vmem, size = 0x400, scoped, tag = 'input window, operand 3, single buffered']
    #allocation11 [shape = 'u8[36864]{0}', space=vmem, size = 0x9000, scoped, tag = 'input window, operand 4, single buffered']
    #allocation12 [shape = 's32[1]{0}', space=sflag, size = 0x4, scoped, tag = 'scoped memory for res_generator_forward.5']
    #allocation13 [shape = 'u8[512]{0}', space=vmem, size = 0x400, scoped, tag = 'input window, operand 5, single buffered']
    #allocation14 [shape = 'u8[8192]{0}', space=vmem, size = 0x2000, scoped, tag = 'input window, operand 6, single buffered']
    #allocation15 [shape = 's32[1]{0}', space=sflag, size = 0x4, scoped, tag = 'scoped memory for res_generator_forward.5']
    #allocation16 [shape = 'u8[262144]{0}', space=vmem, size = 0x40000, scoped, tag = 'output window, operand 0']
    %13 = vsyncpa [#allocation6], 0
    %s14 = scalar_lea.sflag [#allocation6], 1
    %15 = vsyncpa %s14, 0
    %16 = vsyncpa [#allocation9], 0
    %17 = vsyncpa [#allocation12], 0
    %18 = vsyncpa [#allocation15], 0
    %19 = vsyncpa [#allocation7], 0
    %s20 = scalar_lea.sflag [#allocation7], 1
    %21 = vsyncpa %s20, 0
    loop: start=0, step=1, limit=4
    $region2: #{res_generator_forward.5} parent=1 // loop_pre_header
      _
    $region3: #{res_generator_forward.5} parent=1 // loop_header
      %s23 = sphi 0, %s27
      %p24 = scmp.ge.s32.totalorder %s23, 4
      %s31 = sphi 0, %s31
      %s33 = sphi 0, %s31
      %s34 = sphi 0, %s33
      %s48 = sphi 0, %s34
      %s54 = sphi 0, %s56
      %s57 = sphi 0, %s54
      %s58 = sphi 0, %s57
      %s74 = sphi 0, %s58
      %s78 = sphi 0, %s78
      %s80 = sphi 0, %s78
      %s81 = sphi 0, %s80
      %s95 = sphi 0, %s81
      %s99 = sphi 0, %s99
      %s101 = sphi 0, %s99
      %s102 = sphi 0, %s101
      %s116 = sphi 0, %s102
      %s120 = sphi 0, %s120
      %s122 = sphi 0, %s120
      %s123 = sphi 0, %s122
      %s137 = sphi 0, %s123
      %s141 = sphi 0, %s141
      %s143 = sphi 0, %s141
      %s144 = sphi 0, %s143
      %s158 = sphi 0, %s144
      %s162 = sphi 0, %s162
      %s164 = sphi 0, %s162
      %s165 = sphi 0, %s164
      %s179 = sphi 0, %s165
      %s185 = sphi 0, %s187
      %s188 = sphi 0, %s185
      %s189 = sphi 0, %s188
      %s205 = sphi 0, %s189
    $region4: #{res_generator_forward.5} parent=1 // loop_header_branch
      %26 = sbr.rel (%p24) target = $region8
    $region5: #{res_generator_forward.5} parent=1 // loop_body
      %s28 = ssub.s32 %s23, 1
      %s29 = ssub.s32 %s23, 2
      %s30 = sadd.s32 %s23, 1
      %s32 = sadd.s32 %s31, 1
      %p35 = scmp.eq.s32.totalorder %s23, 1
      %p36 = scmp.ne.s32.totalorder %s31, %s33
      %p37 = scmp.eq.s32.totalorder %s23, 0
      %p38 = por %p36, %p37
      %p39 = scmp.ne.s32.totalorder %s31, %s33
      %p40 = scmp.eq.s32.totalorder %s28, 1
      %p41 = por %p39, %p40
      %p42 = scmp.ne.s32.totalorder %s33, %s34
      %p43 = scmp.eq.s32.totalorder %s28, 0
      %p44 = por %p42, %p43
      %p45 = scmp.ne.s32.totalorder %s33, %s34
      %p46 = scmp.eq.s32.totalorder %s29, 1
      %p47 = por %p45, %p46
      %p49 = scmp.ne.s32.totalorder %s34, %s48
      %p50 = scmp.eq.s32.totalorder %s29, 0
      %p51 = por %p49, %p50
      %s52 = ssub.s32 %s23, %s30
      %p53 = scmp.eq.s32.totalorder %s52, 0
      %s55 = sadd.s32 %s54, 1
      %s56 = scalar_select %p53, %s54, %s55
      %p59 = pneg %p53
      %p60 = scmp.eq.s32.totalorder %s23, 1
      %p61 = por %p59, %p60
      %p62 = scmp.ne.s32.totalorder %s54, %s57
      %p63 = scmp.eq.s32.totalorder %s23, 0
      %p64 = por %p62, %p63
      %p65 = scmp.ne.s32.totalorder %s54, %s57
      %p66 = scmp.eq.s32.totalorder %s28, 1
      %p67 = por %p65, %p66
      %p68 = scmp.ne.s32.totalorder %s57, %s58
      %p69 = scmp.eq.s32.totalorder %s28, 0
      %p70 = por %p68, %p69
      %p71 = scmp.ne.s32.totalorder %s57, %s58
      %p72 = scmp.eq.s32.totalorder %s29, 1
      %p73 = por %p71, %p72
      %p75 = scmp.ne.s32.totalorder %s58, %s74
      %p76 = scmp.eq.s32.totalorder %s29, 0
      %p77 = por %p75, %p76
      %s79 = sadd.s32 %s78, 1
      %p82 = scmp.eq.s32.totalorder %s23, 1
      %p83 = scmp.ne.s32.totalorder %s78, %s80
      %p84 = scmp.eq.s32.totalorder %s23, 0
      %p85 = por %p83, %p84
      %p86 = scmp.ne.s32.totalorder %s78, %s80
      %p87 = scmp.eq.s32.totalorder %s28, 1
      %p88 = por %p86, %p87
      %p89 = scmp.ne.s32.totalorder %s80, %s81
      %p90 = scmp.eq.s32.totalorder %s28, 0
      %p91 = por %p89, %p90
      %p92 = scmp.ne.s32.totalorder %s80, %s81
      %p93 = scmp.eq.s32.totalorder %s29, 1
      %p94 = por %p92, %p93
      %p96 = scmp.ne.s32.totalorder %s81, %s95
      %p97 = scmp.eq.s32.totalorder %s29, 0
      %p98 = por %p96, %p97
      %s100 = sadd.s32 %s99, 1
      %p103 = scmp.eq.s32.totalorder %s23, 1
      %p104 = scmp.ne.s32.totalorder %s99, %s101
      %p105 = scmp.eq.s32.totalorder %s23, 0
      %p106 = por %p104, %p105
      %p107 = scmp.ne.s32.totalorder %s99, %s101
      %p108 = scmp.eq.s32.totalorder %s28, 1
      %p109 = por %p107, %p108
      %p110 = scmp.ne.s32.totalorder %s101, %s102
      %p111 = scmp.eq.s32.totalorder %s28, 0
      %p112 = por %p110, %p111
      %p113 = scmp.ne.s32.totalorder %s101, %s102
      %p114 = scmp.eq.s32.totalorder %s29, 1
      %p115 = por %p113, %p114
      %p117 = scmp.ne.s32.totalorder %s102, %s116
      %p118 = scmp.eq.s32.totalorder %s29, 0
      %p119 = por %p117, %p118
      %s121 = sadd.s32 %s120, 1
      %p124 = scmp.eq.s32.totalorder %s23, 1
      %p125 = scmp.ne.s32.totalorder %s120, %s122
      %p126 = scmp.eq.s32.totalorder %s23, 0
      %p127 = por %p125, %p126
      %p128 = scmp.ne.s32.totalorder %s120, %s122
      %p129 = scmp.eq.s32.totalorder %s28, 1
      %p130 = por %p128, %p129
      %p131 = scmp.ne.s32.totalorder %s122, %s123
      %p132 = scmp.eq.s32.totalorder %s28, 0
      %p133 = por %p131, %p132
      %p134 = scmp.ne.s32.totalorder %s122, %s123
      %p135 = scmp.eq.s32.totalorder %s29, 1
      %p136 = por %p134, %p135
      %p138 = scmp.ne.s32.totalorder %s123, %s137
      %p139 = scmp.eq.s32.totalorder %s29, 0
      %p140 = por %p138, %p139
      %s142 = sadd.s32 %s141, 1
      %p145 = scmp.eq.s32.totalorder %s23, 1
      %p146 = scmp.ne.s32.totalorder %s141, %s143
      %p147 = scmp.eq.s32.totalorder %s23, 0
      %p148 = por %p146, %p147
      %p149 = scmp.ne.s32.totalorder %s141, %s143
      %p150 = scmp.eq.s32.totalorder %s28, 1
      %p151 = por %p149, %p150
      %p152 = scmp.ne.s32.totalorder %s143, %s144
      %p153 = scmp.eq.s32.totalorder %s28, 0
      %p154 = por %p152, %p153
      %p155 = scmp.ne.s32.totalorder %s143, %s144
      %p156 = scmp.eq.s32.totalorder %s29, 1
      %p157 = por %p155, %p156
      %p159 = scmp.ne.s32.totalorder %s144, %s158
      %p160 = scmp.eq.s32.totalorder %s29, 0
      %p161 = por %p159, %p160
      %s163 = sadd.s32 %s162, 1
      %p166 = scmp.eq.s32.totalorder %s23, 1
      %p167 = scmp.ne.s32.totalorder %s162, %s164
      %p168 = scmp.eq.s32.totalorder %s23, 0
      %p169 = por %p167, %p168
      %p170 = scmp.ne.s32.totalorder %s162, %s164
      %p171 = scmp.eq.s32.totalorder %s28, 1
      %p172 = por %p170, %p171
      %p173 = scmp.ne.s32.totalorder %s164, %s165
      %p174 = scmp.eq.s32.totalorder %s28, 0
      %p175 = por %p173, %p174
      %p176 = scmp.ne.s32.totalorder %s164, %s165
      %p177 = scmp.eq.s32.totalorder %s29, 1
      %p178 = por %p176, %p177
      %p180 = scmp.ne.s32.totalorder %s165, %s179
      %p181 = scmp.eq.s32.totalorder %s29, 0
      %p182 = por %p180, %p181
      %s183 = ssub.s32 %s23, %s30
      %p184 = scmp.eq.s32.totalorder %s183, 0
      %s186 = sadd.s32 %s185, 1
      %s187 = scalar_select %p184, %s185, %s186
      %p190 = pneg %p184
      %p191 = scmp.eq.s32.totalorder %s23, 1
      %p192 = por %p190, %p191
      %p193 = scmp.ne.s32.totalorder %s185, %s188
      %p194 = scmp.eq.s32.totalorder %s23, 0
      %p195 = por %p193, %p194
      %p196 = scmp.ne.s32.totalorder %s185, %s188
      %p197 = scmp.eq.s32.totalorder %s28, 1
      %p198 = por %p196, %p197
      %p199 = scmp.ne.s32.totalorder %s188, %s189
      %p200 = scmp.eq.s32.totalorder %s28, 0
      %p201 = por %p199, %p200
      %p202 = scmp.ne.s32.totalorder %s188, %s189
      %p203 = scmp.eq.s32.totalorder %s29, 1
      %p204 = por %p202, %p203
      %p206 = scmp.ne.s32.totalorder %s189, %s205
      %p207 = scmp.eq.s32.totalorder %s29, 0
      %p208 = por %p206, %p207
      %p209 = scmp.le.s32.totalorder 1, %s23
      %p210 = scmp.lt.s32.totalorder %s23, 3
      %p211 = pnand %p209, %p210
      %p212 = pneg %p211
      // Predicated region
      $region9: #{res_generator_forward.5} parent=5 // pred_check
        _
      $region10: #{res_generator_forward.5} parent=5 // pred_check_branch
        %214 = sbr.rel (%p211) target = $region12
      $region11: #{res_generator_forward.5} parent=5 // pred_region
        %s215 = ssub.s32 %s23, 1
        // Predicated region
        $region13: #{res_generator_forward.5} parent=11 // pred_check
          %p216 = pneg %p44
        $region14: #{res_generator_forward.5} parent=11 // pred_check_branch
          %218 = sbr.rel (%p216) target = $region16
        $region15: #{res_generator_forward.5} parent=11 // pred_region
          _
        $region16: #{res_generator_forward.5} parent=11 // pred_fallthru
          _
        // Predicated region
        $region17: #{res_generator_forward.5} parent=11 // pred_check
          %p219 = pneg %p91
        $region18: #{res_generator_forward.5} parent=11 // pred_check_branch
          %221 = sbr.rel (%p219) target = $region20
        $region19: #{res_generator_forward.5} parent=11 // pred_region
          %s223 = ssub.s32 2304, 2304
          %224 = vsyncadd [#allocation9], %s223
          %s225 = sshll.u32 [#allocation8], 4
          %s226 = int_to_ptr.vmem [resolvable:$true] %s225
          %231 = dma.hbm_to_vmem [thread:$0]  %s2, 2304, %s226, [#allocation9], 128, 128, 8
        $region20: #{res_generator_forward.5} parent=11 // pred_fallthru
          _
        // Predicated region
        $region21: #{res_generator_forward.5} parent=11 // pred_check
          %p232 = pneg %p112
        $region22: #{res_generator_forward.5} parent=11 // pred_check_branch
          %234 = sbr.rel (%p232) target = $region24
        $region23: #{res_generator_forward.5} parent=11 // pred_region
          %s236 = ssub.s32 16, 16
          %237 = vsyncadd [#allocation9], %s236
          %s239 = sshll.u32 [#allocation10], 4
          %s240 = int_to_ptr.vmem [resolvable:$true] %s239
          %242 = dma.hbm_to_vmem [thread:$0]  %s3, 16, %s240, [#allocation9]
        $region24: #{res_generator_forward.5} parent=11 // pred_fallthru
          _
        // Predicated region
        $region25: #{res_generator_forward.5} parent=11 // pred_check
          %p243 = pneg %p133
        $region26: #{res_generator_forward.5} parent=11 // pred_check_branch
          %245 = sbr.rel (%p243) target = $region28
        $region27: #{res_generator_forward.5} parent=11 // pred_region
          %s247 = ssub.s32 1152, 1152
          %248 = vsyncadd [#allocation12], %s247
          %s249 = sshll.u32 [#allocation11], 4
          %s250 = int_to_ptr.vmem [resolvable:$true] %s249
          %255 = dma.hbm_to_vmem [thread:$0]  %s4, 1152, %s250, [#allocation12], 128, 128, 8
        $region28: #{res_generator_forward.5} parent=11 // pred_fallthru
          _
        // Predicated region
        $region29: #{res_generator_forward.5} parent=11 // pred_check
          %p256 = pneg %p154
        $region30: #{res_generator_forward.5} parent=11 // pred_check_branch
          %258 = sbr.rel (%p256) target = $region32
        $region31: #{res_generator_forward.5} parent=11 // pred_region
          %s260 = ssub.s32 16, 16
          %261 = vsyncadd [#allocation12], %s260
          %s263 = sshll.u32 [#allocation13], 4
          %s264 = int_to_ptr.vmem [resolvable:$true] %s263
          %266 = dma.hbm_to_vmem [thread:$0]  %s5, 16, %s264, [#allocation12]
        $region32: #{res_generator_forward.5} parent=11 // pred_fallthru
          _
        // Predicated region
        $region33: #{res_generator_forward.5} parent=11 // pred_check
          %p267 = pneg %p175
        $region34: #{res_generator_forward.5} parent=11 // pred_check_branch
          %269 = sbr.rel (%p267) target = $region36
        $region35: #{res_generator_forward.5} parent=11 // pred_region
          %s271 = ssub.s32 256, 256
          %272 = vsyncadd [#allocation15], %s271
          %s273 = sshll.u32 [#allocation14], 4
          %s274 = int_to_ptr.vmem [resolvable:$true] %s273
          %279 = dma.hbm_to_vmem [thread:$0]  %s6, 256, %s274, [#allocation15], 128, 128, 8
        $region36: #{res_generator_forward.5} parent=11 // pred_fallthru
          _
      $region12: #{res_generator_forward.5} parent=5 // pred_fallthru
        _
      %p280 = scmp.lt.s32.totalorder %s23, 2
      // Predicated region
      $region37: #{res_generator_forward.5} parent=5 // pred_check
        %p281 = pneg %p280
      $region38: #{res_generator_forward.5} parent=5 // pred_check_branch
        %283 = sbr.rel (%p281) target = $region40
      $region39: #{res_generator_forward.5} parent=5 // pred_region
        // Predicated region
        $region41: #{res_generator_forward.5} parent=39 // pred_check
          %p284 = pneg %p64
        $region42: #{res_generator_forward.5} parent=39 // pred_check_branch
          %286 = sbr.rel (%p284) target = $region44
        $region43: #{res_generator_forward.5} parent=39 // pred_region
          %s287 = sand.u32 %s54, 1
          %s288 = scalar_lea.sflag [#allocation6], %s287
          %s289 = sand.u32 %s54, 1
          %s290 = smul.addr %s289, 256
          %s291 = scalar_lea.vmem [#allocation5], %s290
          %s293 = ssub.s32 4096, 4096
          %294 = vsyncadd %s288, %s293
          %s295 = smul.addr %s23, 32
          %s296 = smul.addr %s295, 128
          %s297 = scalar_lea.hbm %s1, %s296
          %s298 = sshll.u32 %s291, 4
          %s299 = int_to_ptr.vmem [resolvable:$true] %s298
          %304 = dma.hbm_to_vmem [thread:$0]  %s297, 4096, %s299, %s288, 128, 128, 8
        $region44: #{res_generator_forward.5} parent=39 // pred_fallthru
          _
      $region40: #{res_generator_forward.5} parent=5 // pred_fallthru
        _
      %p305 = scmp.le.s32.totalorder 1, %s23
      %p306 = scmp.lt.s32.totalorder %s23, 3
      %p307 = pnand %p305, %p306
      %p308 = pneg %p307
      // Predicated region
      $region45: #{res_generator_forward.5} parent=5 // pred_check
        _
      $region46: #{res_generator_forward.5} parent=5 // pred_check_branch
        %310 = sbr.rel (%p307) target = $region48
      $region47: #{res_generator_forward.5} parent=5 // pred_region
        %s311 = ssub.s32 %s23, 1
        %s312 = sand.u32 %s57, 1
        %s313 = scalar_lea.sflag [#allocation6], %s312
        %s314 = sand.u32 %s57, 1
        %s315 = smul.addr %s314, 256
        %s316 = scalar_lea.vmem [#allocation5], %s315
        // Predicated region
        $region49: #{res_generator_forward.5} parent=47 // pred_check
          %p317 = pneg %p70
        $region50: #{res_generator_forward.5} parent=47 // pred_check_branch
          %319 = sbr.rel (%p317) target = $region52
        $region51: #{res_generator_forward.5} parent=47 // pred_region
          %320 = dma.done %s313, 4096
        $region52: #{res_generator_forward.5} parent=47 // pred_fallthru
          _
        // Predicated region
        $region53: #{res_generator_forward.5} parent=47 // pred_check
          %p321 = pneg %p91
        $region54: #{res_generator_forward.5} parent=47 // pred_check_branch
          %323 = sbr.rel (%p321) target = $region56
        $region55: #{res_generator_forward.5} parent=47 // pred_region
          %324 = dma.done [#allocation9], 2304
        $region56: #{res_generator_forward.5} parent=47 // pred_fallthru
          _
        // Predicated region
        $region57: #{res_generator_forward.5} parent=47 // pred_check
          %p325 = pneg %p112
        $region58: #{res_generator_forward.5} parent=47 // pred_check_branch
          %327 = sbr.rel (%p325) target = $region60
        $region59: #{res_generator_forward.5} parent=47 // pred_region
          %328 = dma.done [#allocation9], 16
        $region60: #{res_generator_forward.5} parent=47 // pred_fallthru
          _
        // Predicated region
        $region61: #{res_generator_forward.5} parent=47 // pred_check
          %p329 = pneg %p133
        $region62: #{res_generator_forward.5} parent=47 // pred_check_branch
          %331 = sbr.rel (%p329) target = $region64
        $region63: #{res_generator_forward.5} parent=47 // pred_region
          %332 = dma.done [#allocation12], 1152
        $region64: #{res_generator_forward.5} parent=47 // pred_fallthru
          _
        // Predicated region
        $region65: #{res_generator_forward.5} parent=47 // pred_check
          %p333 = pneg %p154
        $region66: #{res_generator_forward.5} parent=47 // pred_check_branch
          %335 = sbr.rel (%p333) target = $region68
        $region67: #{res_generator_forward.5} parent=47 // pred_region
          %336 = dma.done [#allocation12], 16
        $region68: #{res_generator_forward.5} parent=47 // pred_fallthru
          _
        // Predicated region
        $region69: #{res_generator_forward.5} parent=47 // pred_check
          %p337 = pneg %p175
        $region70: #{res_generator_forward.5} parent=47 // pred_check_branch
          %339 = sbr.rel (%p337) target = $region72
        $region71: #{res_generator_forward.5} parent=47 // pred_region
          %340 = dma.done [#allocation15], 256
        $region72: #{res_generator_forward.5} parent=47 // pred_fallthru
          _
        %p341 = pneg %p44
        %p342 = pneg %p41
        %s343 = sand.u32 %s57, 1
        %s344 = scalar_lea.sflag [#allocation6], %s343
        %s345 = sand.u32 %s57, 1
        %s346 = smul.addr %s345, 256
        %s347 = scalar_lea.vmem [#allocation5], %s346
        %p348 = pneg %p70
        %p349 = pneg %p67
        %p350 = pneg %p91
        %p351 = pneg %p88
        %p352 = pneg %p112
        %p353 = pneg %p109
        %p354 = pneg %p133
        %p355 = pneg %p130
        %p356 = pneg %p154
        %p357 = pneg %p151
        %p358 = pneg %p175
        %p359 = pneg %p172
        %p360 = pneg %p201
        %p361 = pneg %p198
        %s362 = sand.u32 %s188, 1
        %s363 = scalar_lea.sflag [#allocation7], %s362
        %s364 = sand.u32 %s188, 1
        %s365 = smul.addr %s364, 256
        %s366 = scalar_lea.vmem [#allocation16], %s365
        %v367 = vld [vmem:[%s316] sm:$0xff]
        %v368 = vld [vmem:[%s316 + $0x8] sm:$0xff]
        %v369 = vld [vmem:[%s316 + $0x10] sm:$0xff]
        %v370 = vld [vmem:[%s316 + $0x18] sm:$0xff]
        %v371 = vld [vmem:[%s316 + $0x20] sm:$0xff]
        %v372 = vld [vmem:[%s316 + $0x28] sm:$0xff]
        %v373 = vld [vmem:[%s316 + $0x30] sm:$0xff]
        %v374 = vld [vmem:[%s316 + $0x38] sm:$0xff]
        %v375 = vld [vmem:[%s316 + $0x40] sm:$0xff]
        %v376 = vld [vmem:[%s316 + $0x48] sm:$0xff]
        %v377 = vld [vmem:[%s316 + $0x50] sm:$0xff]
        %v378 = vld [vmem:[%s316 + $0x58] sm:$0xff]
        %v379 = vld [vmem:[%s316 + $0x60] sm:$0xff]
        %v380 = vld [vmem:[%s316 + $0x68] sm:$0xff]
        %v381 = vld [vmem:[%s316 + $0x70] sm:$0xff]
        %v382 = vld [vmem:[%s316 + $0x78] sm:$0xff]
        %v383 = vld [vmem:[%s316 + $0x80] sm:$0xff]
        %v384 = vld [vmem:[%s316 + $0x88] sm:$0xff]
        %v385 = vld [vmem:[%s316 + $0x90] sm:$0xff]
        %v386 = vld [vmem:[%s316 + $0x98] sm:$0xff]
        %v387 = vld [vmem:[%s316 + $0xa0] sm:$0xff]
        %v388 = vld [vmem:[%s316 + $0xa8] sm:$0xff]
        %v389 = vld [vmem:[%s316 + $0xb0] sm:$0xff]
        %v390 = vld [vmem:[%s316 + $0xb8] sm:$0xff]
        %v391 = vld [vmem:[%s316 + $0xc0] sm:$0xff]
        %v392 = vld [vmem:[%s316 + $0xc8] sm:$0xff]
        %v393 = vld [vmem:[%s316 + $0xd0] sm:$0xff]
        %v394 = vld [vmem:[%s316 + $0xd8] sm:$0xff]
        %v395 = vld [vmem:[%s316 + $0xe0] sm:$0xff]
        %v396 = vld [vmem:[%s316 + $0xe8] sm:$0xff]
        %v397 = vld [vmem:[%s316 + $0xf0] sm:$0xff]
        %v398 = vld [vmem:[%s316 + $0xf8] sm:$0xff]
        %vm399 = vcmask 130048
        %400 = vst.msk [vmem:[#allocation2] sm:$0xff] %vm399, 0.0
        %401 = vst.msk [vmem:[#allocation2 + $0x8] sm:$0xff] %vm399, 0.0
        %vm402 = vcmask 123904
        %403 = vst.msk [vmem:[#allocation2 + $0x10] sm:$0x3] %vm402, 0.0
        %s404 = scalar_lea.vmem [#allocation2], 408
        %405 = vst.msk [vmem:[%s404] sm:$0xff] %vm399, 0.0
        %406 = vst.msk [vmem:[%s404 + $0x8] sm:$0xff] %vm399, 0.0
        %407 = vst.msk [vmem:[%s404 + $0x10] sm:$0x3] %vm402, 0.0
        %vm408 = vcmask 122880
        %409 = vst.msk [vmem:[#allocation2] sm:$0x1] %vm408, 0.0
        %410 = vst.msk [vmem:[#allocation2 + $0x18] sm:$0x1] %vm408, 0.0
        %411 = vst.msk [vmem:[#allocation2 + $0x30] sm:$0x1] %vm408, 0.0
        %412 = vst.msk [vmem:[#allocation2 + $0x48] sm:$0x1] %vm408, 0.0
        %413 = vst.msk [vmem:[#allocation2 + $0x60] sm:$0x1] %vm408, 0.0
        %414 = vst.msk [vmem:[#allocation2 + $0x78] sm:$0x1] %vm408, 0.0
        %415 = vst.msk [vmem:[#allocation2 + $0x90] sm:$0x1] %vm408, 0.0
        %416 = vst.msk [vmem:[#allocation2 + $0xa8] sm:$0x1] %vm408, 0.0
        %417 = vst.msk [vmem:[#allocation2 + $0xc0] sm:$0x1] %vm408, 0.0
        %418 = vst.msk [vmem:[#allocation2 + $0xd8] sm:$0x1] %vm408, 0.0
        %419 = vst.msk [vmem:[#allocation2 + $0xf0] sm:$0x1] %vm408, 0.0
        %420 = vst.msk [vmem:[#allocation2 + $0x108] sm:$0x1] %vm408, 0.0
        %421 = vst.msk [vmem:[#allocation2 + $0x120] sm:$0x1] %vm408, 0.0
        %422 = vst.msk [vmem:[#allocation2 + $0x138] sm:$0x1] %vm408, 0.0
        %423 = vst.msk [vmem:[#allocation2 + $0x150] sm:$0x1] %vm408, 0.0
        %424 = vst.msk [vmem:[#allocation2 + $0x168] sm:$0x1] %vm408, 0.0
        %425 = vst.msk [vmem:[#allocation2 + $0x180] sm:$0x1] %vm408, 0.0
        %426 = vst.msk [vmem:[#allocation2 + $0x198] sm:$0x1] %vm408, 0.0
        %427 = vst.msk [vmem:[#allocation2 + $0x11] sm:$0x1] %vm408, 0.0
        %428 = vst.msk [vmem:[#allocation2 + $0x29] sm:$0x1] %vm408, 0.0
        %429 = vst.msk [vmem:[#allocation2 + $0x41] sm:$0x1] %vm408, 0.0
        %430 = vst.msk [vmem:[#allocation2 + $0x59] sm:$0x1] %vm408, 0.0
        %431 = vst.msk [vmem:[#allocation2 + $0x71] sm:$0x1] %vm408, 0.0
        %432 = vst.msk [vmem:[#allocation2 + $0x89] sm:$0x1] %vm408, 0.0
        %433 = vst.msk [vmem:[#allocation2 + $0xa1] sm:$0x1] %vm408, 0.0
        %434 = vst.msk [vmem:[#allocation2 + $0xb9] sm:$0x1] %vm408, 0.0
        %435 = vst.msk [vmem:[#allocation2 + $0xd1] sm:$0x1] %vm408, 0.0
        %436 = vst.msk [vmem:[#allocation2 + $0xe9] sm:$0x1] %vm408, 0.0
        %437 = vst.msk [vmem:[#allocation2 + $0x101] sm:$0x1] %vm408, 0.0
        %438 = vst.msk [vmem:[#allocation2 + $0x119] sm:$0x1] %vm408, 0.0
        %439 = vst.msk [vmem:[#allocation2 + $0x131] sm:$0x1] %vm408, 0.0
        %440 = vst.msk [vmem:[#allocation2 + $0x149] sm:$0x1] %vm408, 0.0
        %441 = vst.msk [vmem:[#allocation2 + $0x161] sm:$0x1] %vm408, 0.0
        %442 = vst.msk [vmem:[#allocation2 + $0x179] sm:$0x1] %vm408, 0.0
        %443 = vst.msk [vmem:[#allocation2 + $0x191] sm:$0x1] %vm408, 0.0
        %444 = vst.msk [vmem:[#allocation2 + $0x1a9] sm:$0x1] %vm408, 0.0
        %vm445 = vcmp.gt.f32.partialorder %v367, 0.0
        %vm446 = vcmp.gt.f32.partialorder %v368, 0.0
        %vm447 = vcmp.gt.f32.partialorder %v369, 0.0
        %vm448 = vcmp.gt.f32.partialorder %v370, 0.0
        %vm449 = vcmp.gt.f32.partialorder %v371, 0.0
        %vm450 = vcmp.gt.f32.partialorder %v372, 0.0
        %vm451 = vcmp.gt.f32.partialorder %v373, 0.0
        %vm452 = vcmp.gt.f32.partialorder %v374, 0.0
        %vm453 = vcmp.gt.f32.partialorder %v375, 0.0
        %vm454 = vcmp.gt.f32.partialorder %v376, 0.0
        %vm455 = vcmp.gt.f32.partialorder %v377, 0.0
        %vm456 = vcmp.gt.f32.partialorder %v378, 0.0
        %vm457 = vcmp.gt.f32.partialorder %v379, 0.0
        %vm458 = vcmp.gt.f32.partialorder %v380, 0.0
        %vm459 = vcmp.gt.f32.partialorder %v381, 0.0
        %vm460 = vcmp.gt.f32.partialorder %v382, 0.0
        %vm461 = vcmp.gt.f32.partialorder %v383, 0.0
        %vm462 = vcmp.gt.f32.partialorder %v384, 0.0
        %vm463 = vcmp.gt.f32.partialorder %v385, 0.0
        %vm464 = vcmp.gt.f32.partialorder %v386, 0.0
        %vm465 = vcmp.gt.f32.partialorder %v387, 0.0
        %vm466 = vcmp.gt.f32.partialorder %v388, 0.0
        %vm467 = vcmp.gt.f32.partialorder %v389, 0.0
        %vm468 = vcmp.gt.f32.partialorder %v390, 0.0
        %vm469 = vcmp.gt.f32.partialorder %v391, 0.0
        %vm470 = vcmp.gt.f32.partialorder %v392, 0.0
        %vm471 = vcmp.gt.f32.partialorder %v393, 0.0
        %vm472 = vcmp.gt.f32.partialorder %v394, 0.0
        %vm473 = vcmp.gt.f32.partialorder %v395, 0.0
        %vm474 = vcmp.gt.f32.partialorder %v396, 0.0
        %vm475 = vcmp.gt.f32.partialorder %v397, 0.0
        %vm476 = vcmp.gt.f32.partialorder %v398, 0.0
        %v477 = vmul.f32 %v367, 0.2
        %v478 = vmul.f32 %v368, 0.2
        %v479 = vmul.f32 %v369, 0.2
        %v480 = vmul.f32 %v370, 0.2
        %v481 = vmul.f32 %v371, 0.2
        %v482 = vmul.f32 %v372, 0.2
        %v483 = vmul.f32 %v373, 0.2
        %v484 = vmul.f32 %v374, 0.2
        %v485 = vmul.f32 %v375, 0.2
        %v486 = vmul.f32 %v376, 0.2
        %v487 = vmul.f32 %v377, 0.2
        %v488 = vmul.f32 %v378, 0.2
        %v489 = vmul.f32 %v379, 0.2
        %v490 = vmul.f32 %v380, 0.2
        %v491 = vmul.f32 %v381, 0.2
        %v492 = vmul.f32 %v382, 0.2
        %v493 = vmul.f32 %v383, 0.2
        %v494 = vmul.f32 %v384, 0.2
        %v495 = vmul.f32 %v385, 0.2
        %v496 = vmul.f32 %v386, 0.2
        %v497 = vmul.f32 %v387, 0.2
        %v498 = vmul.f32 %v388, 0.2
        %v499 = vmul.f32 %v389, 0.2
        %v500 = vmul.f32 %v390, 0.2
        %v501 = vmul.f32 %v391, 0.2
        %v502 = vmul.f32 %v392, 0.2
        %v503 = vmul.f32 %v393, 0.2
        %v504 = vmul.f32 %v394, 0.2
        %v505 = vmul.f32 %v395, 0.2
        %v506 = vmul.f32 %v396, 0.2
        %v507 = vmul.f32 %v397, 0.2
        %v508 = vmul.f32 %v398, 0.2
        %v509 = vsel %vm445, %v367, %v477
        %v510 = vsel %vm446, %v368, %v478
        %v511 = vsel %vm447, %v369, %v479
        %v512 = vsel %vm448, %v370, %v480
        %v513 = vsel %vm449, %v371, %v481
        %v514 = vsel %vm450, %v372, %v482
        %v515 = vsel %vm451, %v373, %v483
        %v516 = vsel %vm452, %v374, %v484
        %v517 = vsel %vm453, %v375, %v485
        %v518 = vsel %vm454, %v376, %v486
        %v519 = vsel %vm455, %v377, %v487
        %v520 = vsel %vm456, %v378, %v488
        %v521 = vsel %vm457, %v379, %v489
        %v522 = vsel %vm458, %v380, %v490
        %v523 = vsel %vm459, %v381, %v491
        %v524 = vsel %vm460, %v382, %v492
        %v525 = vsel %vm461, %v383, %v493
        %v526 = vsel %vm462, %v384, %v494
        %v527 = vsel %vm463, %v385, %v495
        %v528 = vsel %vm464, %v386, %v496
        %v529 = vsel %vm465, %v387, %v497
        %v530 = vsel %vm466, %v388, %v498
        %v531 = vsel %vm467, %v389, %v499
        %v532 = vsel %vm468, %v390, %v500
        %v533 = vsel %vm469, %v391, %v501
        %v534 = vsel %vm470, %v392, %v502
        %v535 = vsel %vm471, %v393, %v503
        %v536 = vsel %vm472, %v394, %v504
        %v537 = vsel %vm473, %v395, %v505
        %v538 = vsel %vm474, %v396, %v506
        %v539 = vsel %vm475, %v397, %v507
        %v540 = vsel %vm476, %v398, %v508
        %s541 = scalar_lea.vmem [#allocation2], 24
        %542 = vst.msk [vmem:[%s541 + $0x1] sm:$0xff] %vm399, %v509
        %543 = vst.msk [vmem:[%s541 + $0x9] sm:$0xff] %vm399, %v510
        %544 = vst.msk [vmem:[%s541 + $0x19] sm:$0xff] %vm399, %v511
        %545 = vst.msk [vmem:[%s541 + $0x21] sm:$0xff] %vm399, %v512
        %546 = vst.msk [vmem:[%s541 + $0x31] sm:$0xff] %vm399, %v513
        %547 = vst.msk [vmem:[%s541 + $0x39] sm:$0xff] %vm399, %v514
        %548 = vst.msk [vmem:[%s541 + $0x49] sm:$0xff] %vm399, %v515
        %549 = vst.msk [vmem:[%s541 + $0x51] sm:$0xff] %vm399, %v516
        %550 = vst.msk [vmem:[%s541 + $0x61] sm:$0xff] %vm399, %v517
        %551 = vst.msk [vmem:[%s541 + $0x69] sm:$0xff] %vm399, %v518
        %552 = vst.msk [vmem:[%s541 + $0x79] sm:$0xff] %vm399, %v519
        %553 = vst.msk [vmem:[%s541 + $0x81] sm:$0xff] %vm399, %v520
        %554 = vst.msk [vmem:[%s541 + $0x91] sm:$0xff] %vm399, %v521
        %555 = vst.msk [vmem:[%s541 + $0x99] sm:$0xff] %vm399, %v522
        %556 = vst.msk [vmem:[%s541 + $0xa9] sm:$0xff] %vm399, %v523
        %557 = vst.msk [vmem:[%s541 + $0xb1] sm:$0xff] %vm399, %v524
        %558 = vst.msk [vmem:[%s541 + $0xc1] sm:$0xff] %vm399, %v525
        %559 = vst.msk [vmem:[%s541 + $0xc9] sm:$0xff] %vm399, %v526
        %560 = vst.msk [vmem:[%s541 + $0xd9] sm:$0xff] %vm399, %v527
        %561 = vst.msk [vmem:[%s541 + $0xe1] sm:$0xff] %vm399, %v528
        %562 = vst.msk [vmem:[%s541 + $0xf1] sm:$0xff] %vm399, %v529
        %563 = vst.msk [vmem:[%s541 + $0xf9] sm:$0xff] %vm399, %v530
        %564 = vst.msk [vmem:[%s541 + $0x109] sm:$0xff] %vm399, %v531
        %565 = vst.msk [vmem:[%s541 + $0x111] sm:$0xff] %vm399, %v532
        %566 = vst.msk [vmem:[%s541 + $0x121] sm:$0xff] %vm399, %v533
        %567 = vst.msk [vmem:[%s541 + $0x129] sm:$0xff] %vm399, %v534
        %568 = vst.msk [vmem:[%s541 + $0x139] sm:$0xff] %vm399, %v535
        %569 = vst.msk [vmem:[%s541 + $0x141] sm:$0xff] %vm399, %v536
        %570 = vst.msk [vmem:[%s541 + $0x151] sm:$0xff] %vm399, %v537
        %571 = vst.msk [vmem:[%s541 + $0x159] sm:$0xff] %vm399, %v538
        %572 = vst.msk [vmem:[%s541 + $0x169] sm:$0xff] %vm399, %v539
        %573 = vst.msk [vmem:[%s541 + $0x171] sm:$0xff] %vm399, %v540
        %v574 = vld [vmem:[#allocation2] sm:$0xff]
        %v575 = vld [vmem:[#allocation2 + $0x8] sm:$0xff]
        %v576 = vld [vmem:[#allocation2 + $0x10] sm:$0x3]
        %v577 = vld [vmem:[#allocation2 + $0x18] sm:$0xff]
        %v578 = vld [vmem:[#allocation2 + $0x20] sm:$0xff]
        %v579 = vld [vmem:[#allocation2 + $0x28] sm:$0x3]
        %v580 = vld [vmem:[#allocation2 + $0x30] sm:$0xff]
        %v581 = vld [vmem:[#allocation2 + $0x38] sm:$0xff]
        %v582 = vld [vmem:[#allocation2 + $0x40] sm:$0x3]
        %v583 = vld [vmem:[#allocation2 + $0x48] sm:$0xff]
        %v584 = vld [vmem:[#allocation2 + $0x50] sm:$0xff]
        %v585 = vld [vmem:[#allocation2 + $0x58] sm:$0x3]
        %v586 = vld [vmem:[#allocation2 + $0x60] sm:$0xff]
        %v587 = vld [vmem:[#allocation2 + $0x68] sm:$0xff]
        %v588 = vld [vmem:[#allocation2 + $0x70] sm:$0x3]
        %v589 = vld [vmem:[#allocation2 + $0x78] sm:$0xff]
        %v590 = vld [vmem:[#allocation2 + $0x80] sm:$0xff]
        %v591 = vld [vmem:[#allocation2 + $0x88] sm:$0x3]
        %v592 = vld [vmem:[#allocation2 + $0x90] sm:$0xff]
        %v593 = vld [vmem:[#allocation2 + $0x98] sm:$0xff]
        %v594 = vld [vmem:[#allocation2 + $0xa0] sm:$0x3]
        %v595 = vld [vmem:[#allocation2 + $0xa8] sm:$0xff]
        %v596 = vld [vmem:[#allocation2 + $0xb0] sm:$0xff]
        %v597 = vld [vmem:[#allocation2 + $0xb8] sm:$0x3]
        %v598 = vld [vmem:[#allocation2 + $0xc0] sm:$0xff]
        %v599 = vld [vmem:[#allocation2 + $0xc8] sm:$0xff]
        %v600 = vld [vmem:[#allocation2 + $0xd0] sm:$0x3]
        %v601 = vld [vmem:[#allocation2 + $0xd8] sm:$0xff]
        %v602 = vld [vmem:[#allocation2 + $0xe0] sm:$0xff]
        %v603 = vld [vmem:[#allocation2 + $0xe8] sm:$0x3]
        %v604 = vld [vmem:[#allocation2 + $0xf0] sm:$0xff]
        %v605 = vld [vmem:[#allocation2 + $0xf8] sm:$0xff]
        %v606 = vld [vmem:[#allocation2 + $0x100] sm:$0x3]
        %v607 = vld [vmem:[#allocation2 + $0x108] sm:$0xff]
        %v608 = vld [vmem:[#allocation2 + $0x110] sm:$0xff]
        %v609 = vld [vmem:[#allocation2 + $0x118] sm:$0x3]
        %v610 = vld [vmem:[#allocation2 + $0x120] sm:$0xff]
        %v611 = vld [vmem:[#allocation2 + $0x128] sm:$0xff]
        %v612 = vld [vmem:[#allocation2 + $0x130] sm:$0x3]
        %v613 = vld [vmem:[#allocation2 + $0x138] sm:$0xff]
        %v614 = vld [vmem:[#allocation2 + $0x140] sm:$0xff]
        %v615 = vld [vmem:[#allocation2 + $0x148] sm:$0x3]
        %v616 = vld [vmem:[#allocation2 + $0x150] sm:$0xff]
        %v617 = vld [vmem:[#allocation2 + $0x158] sm:$0xff]
        %v618 = vld [vmem:[#allocation2 + $0x160] sm:$0x3]
        %v619 = vld [vmem:[#allocation2 + $0x168] sm:$0xff]
        %v620 = vld [vmem:[#allocation2 + $0x170] sm:$0xff]
        %v621 = vld [vmem:[#allocation2 + $0x178] sm:$0x3]
        %v622 = vld [vmem:[#allocation2 + $0x180] sm:$0xff]
        %v623 = vld [vmem:[#allocation2 + $0x188] sm:$0xff]
        %v624 = vld [vmem:[#allocation2 + $0x190] sm:$0x3]
        %v625 = vld [vmem:[#allocation2 + $0x198] sm:$0xff]
        %v626 = vld [vmem:[#allocation2 + $0x1a0] sm:$0xff]
        %v627 = vld [vmem:[#allocation2 + $0x1a8] sm:$0x3]
        %vm676 = vcmask 1046528
        %v677 = vrot.slane %v574, 1
        %v678 = vrot.slane %v575, 1
        %v679 = vsel %vm676, %v677, %v678
        %v680 = vrot.slane %v576, 1
        %v681 = vsel %vm676, %v678, %v680
        %v682 = vrot.slane %v577, 1
        %v683 = vrot.slane %v578, 1
        %v684 = vsel %vm676, %v682, %v683
        %v685 = vrot.slane %v579, 1
        %v686 = vsel %vm676, %v683, %v685
        %v687 = vrot.slane %v580, 1
        %v688 = vrot.slane %v581, 1
        %v689 = vsel %vm676, %v687, %v688
        %v690 = vrot.slane %v582, 1
        %v691 = vsel %vm676, %v688, %v690
        %v692 = vrot.slane %v583, 1
        %v693 = vrot.slane %v584, 1
        %v694 = vsel %vm676, %v692, %v693
        %v695 = vrot.slane %v585, 1
        %v696 = vsel %vm676, %v693, %v695
        %v697 = vrot.slane %v586, 1
        %v698 = vrot.slane %v587, 1
        %v699 = vsel %vm676, %v697, %v698
        %v700 = vrot.slane %v588, 1
        %v701 = vsel %vm676, %v698, %v700
        %v702 = vrot.slane %v589, 1
        %v703 = vrot.slane %v590, 1
        %v704 = vsel %vm676, %v702, %v703
        %v705 = vrot.slane %v591, 1
        %v706 = vsel %vm676, %v703, %v705
        %v707 = vrot.slane %v592, 1
        %v708 = vrot.slane %v593, 1
        %v709 = vsel %vm676, %v707, %v708
        %v710 = vrot.slane %v594, 1
        %v711 = vsel %vm676, %v708, %v710
        %v712 = vrot.slane %v595, 1
        %v713 = vrot.slane %v596, 1
        %v714 = vsel %vm676, %v712, %v713
        %v715 = vrot.slane %v597, 1
        %v716 = vsel %vm676, %v713, %v715
        %v717 = vrot.slane %v598, 1
        %v718 = vrot.slane %v599, 1
        %v719 = vsel %vm676, %v717, %v718
        %v720 = vrot.slane %v600, 1
        %v721 = vsel %vm676, %v718, %v720
        %v722 = vrot.slane %v601, 1
        %v723 = vrot.slane %v602, 1
        %v724 = vsel %vm676, %v722, %v723
        %v725 = vrot.slane %v603, 1
        %v726 = vsel %vm676, %v723, %v725
        %v727 = vrot.slane %v604, 1
        %v728 = vrot.slane %v605, 1
        %v729 = vsel %vm676, %v727, %v728
        %v730 = vrot.slane %v606, 1
        %v731 = vsel %vm676, %v728, %v730
        %v732 = vrot.slane %v607, 1
        %v733 = vrot.slane %v608, 1
        %v734 = vsel %vm676, %v732, %v733
        %v735 = vrot.slane %v609, 1
        %v736 = vsel %vm676, %v733, %v735
        %v737 = vrot.slane %v610, 1
        %v738 = vrot.slane %v611, 1
        %v739 = vsel %vm676, %v737, %v738
        %v740 = vrot.slane %v612, 1
        %v741 = vsel %vm676, %v738, %v740
        %v742 = vrot.slane %v613, 1
        %v743 = vrot.slane %v614, 1
        %v744 = vsel %vm676, %v742, %v743
        %v745 = vrot.slane %v615, 1
        %v746 = vsel %vm676, %v743, %v745
        %v747 = vrot.slane %v616, 1
        %v748 = vrot.slane %v617, 1
        %v749 = vsel %vm676, %v747, %v748
        %v750 = vrot.slane %v618, 1
        %v751 = vsel %vm676, %v748, %v750
        %v752 = vrot.slane %v619, 1
        %v753 = vrot.slane %v620, 1
        %v754 = vsel %vm676, %v752, %v753
        %v755 = vrot.slane %v621, 1
        %v756 = vsel %vm676, %v753, %v755
        %vm757 = vcmask 1045504
        %v758 = vrot.slane %v574, 2
        %v759 = vrot.slane %v575, 2
        %v760 = vsel %vm757, %v758, %v759
        %v761 = vrot.slane %v576, 2
        %v762 = vsel %vm757, %v759, %v761
        %v763 = vrot.slane %v577, 2
        %v764 = vrot.slane %v578, 2
        %v765 = vsel %vm757, %v763, %v764
        %v766 = vrot.slane %v579, 2
        %v767 = vsel %vm757, %v764, %v766
        %v768 = vrot.slane %v580, 2
        %v769 = vrot.slane %v581, 2
        %v770 = vsel %vm757, %v768, %v769
        %v771 = vrot.slane %v582, 2
        %v772 = vsel %vm757, %v769, %v771
        %v773 = vrot.slane %v583, 2
        %v774 = vrot.slane %v584, 2
        %v775 = vsel %vm757, %v773, %v774
        %v776 = vrot.slane %v585, 2
        %v777 = vsel %vm757, %v774, %v776
        %v778 = vrot.slane %v586, 2
        %v779 = vrot.slane %v587, 2
        %v780 = vsel %vm757, %v778, %v779
        %v781 = vrot.slane %v588, 2
        %v782 = vsel %vm757, %v779, %v781
        %v783 = vrot.slane %v589, 2
        %v784 = vrot.slane %v590, 2
        %v785 = vsel %vm757, %v783, %v784
        %v786 = vrot.slane %v591, 2
        %v787 = vsel %vm757, %v784, %v786
        %v788 = vrot.slane %v592, 2
        %v789 = vrot.slane %v593, 2
        %v790 = vsel %vm757, %v788, %v789
        %v791 = vrot.slane %v594, 2
        %v792 = vsel %vm757, %v789, %v791
        %v793 = vrot.slane %v595, 2
        %v794 = vrot.slane %v596, 2
        %v795 = vsel %vm757, %v793, %v794
        %v796 = vrot.slane %v597, 2
        %v797 = vsel %vm757, %v794, %v796
        %v798 = vrot.slane %v598, 2
        %v799 = vrot.slane %v599, 2
        %v800 = vsel %vm757, %v798, %v799
        %v801 = vrot.slane %v600, 2
        %v802 = vsel %vm757, %v799, %v801
        %v803 = vrot.slane %v601, 2
        %v804 = vrot.slane %v602, 2
        %v805 = vsel %vm757, %v803, %v804
        %v806 = vrot.slane %v603, 2
        %v807 = vsel %vm757, %v804, %v806
        %v808 = vrot.slane %v604, 2
        %v809 = vrot.slane %v605, 2
        %v810 = vsel %vm757, %v808, %v809
        %v811 = vrot.slane %v606, 2
        %v812 = vsel %vm757, %v809, %v811
        %v813 = vrot.slane %v607, 2
        %v814 = vrot.slane %v608, 2
        %v815 = vsel %vm757, %v813, %v814
        %v816 = vrot.slane %v609, 2
        %v817 = vsel %vm757, %v814, %v816
        %v818 = vrot.slane %v610, 2
        %v819 = vrot.slane %v611, 2
        %v820 = vsel %vm757, %v818, %v819
        %v821 = vrot.slane %v612, 2
        %v822 = vsel %vm757, %v819, %v821
        %v823 = vrot.slane %v613, 2
        %v824 = vrot.slane %v614, 2
        %v825 = vsel %vm757, %v823, %v824
        %v826 = vrot.slane %v615, 2
        %v827 = vsel %vm757, %v824, %v826
        %v828 = vrot.slane %v616, 2
        %v829 = vrot.slane %v617, 2
        %v830 = vsel %vm757, %v828, %v829
        %v831 = vrot.slane %v618, 2
        %v832 = vsel %vm757, %v829, %v831
        %v833 = vrot.slane %v619, 2
        %v834 = vrot.slane %v620, 2
        %v835 = vsel %vm757, %v833, %v834
        %v836 = vrot.slane %v621, 2
        %v837 = vsel %vm757, %v834, %v836
        %v841 = vrot.slane %v622, 1
        %v842 = vrot.slane %v623, 1
        %v843 = vsel %vm676, %v841, %v842
        %v844 = vrot.slane %v624, 1
        %v845 = vsel %vm676, %v842, %v844
        %v846 = vrot.slane %v622, 2
        %v847 = vrot.slane %v623, 2
        %v848 = vsel %vm757, %v846, %v847
        %v849 = vrot.slane %v624, 2
        %v850 = vsel %vm757, %v847, %v849
        %v854 = vrot.slane %v625, 1
        %v855 = vrot.slane %v626, 1
        %v856 = vsel %vm676, %v854, %v855
        %v857 = vrot.slane %v627, 1
        %v858 = vsel %vm676, %v855, %v857
        %v859 = vrot.slane %v625, 2
        %v860 = vrot.slane %v626, 2
        %v861 = vsel %vm757, %v859, %v860
        %v862 = vrot.slane %v627, 2
        %v863 = vsel %vm757, %v860, %v862
        %864 = vrot.lane.b32.xlu0 %v679, 16
        %v865 = vpop.permute.xlu0 %864
        %866 = vrot.lane.b32.xlu0 %v681, 16
        %v867 = vpop.permute.xlu0 %866
        %868 = vrot.lane.b32.xlu0 %v684, 16
        %v869 = vpop.permute.xlu0 %868
        %870 = vrot.lane.b32.xlu0 %v686, 16
        %v871 = vpop.permute.xlu0 %870
        %872 = vrot.lane.b32.xlu0 %v689, 16
        %v873 = vpop.permute.xlu0 %872
        %874 = vrot.lane.b32.xlu0 %v691, 16
        %v875 = vpop.permute.xlu0 %874
        %876 = vrot.lane.b32.xlu0 %v694, 16
        %v877 = vpop.permute.xlu0 %876
        %878 = vrot.lane.b32.xlu0 %v696, 16
        %v879 = vpop.permute.xlu0 %878
        %880 = vrot.lane.b32.xlu0 %v699, 16
        %v881 = vpop.permute.xlu0 %880
        %882 = vrot.lane.b32.xlu0 %v701, 16
        %v883 = vpop.permute.xlu0 %882
        %884 = vrot.lane.b32.xlu0 %v704, 16
        %v885 = vpop.permute.xlu0 %884
        %886 = vrot.lane.b32.xlu0 %v706, 16
        %v887 = vpop.permute.xlu0 %886
        %888 = vrot.lane.b32.xlu0 %v709, 16
        %v889 = vpop.permute.xlu0 %888
        %890 = vrot.lane.b32.xlu0 %v711, 16
        %v891 = vpop.permute.xlu0 %890
        %892 = vrot.lane.b32.xlu0 %v714, 16
        %v893 = vpop.permute.xlu0 %892
        %894 = vrot.lane.b32.xlu0 %v716, 16
        %v895 = vpop.permute.xlu0 %894
        %896 = vrot.lane.b32.xlu0 %v719, 16
        %v897 = vpop.permute.xlu0 %896
        %898 = vrot.lane.b32.xlu0 %v721, 16
        %v899 = vpop.permute.xlu0 %898
        %900 = vrot.lane.b32.xlu0 %v724, 16
        %v901 = vpop.permute.xlu0 %900
        %902 = vrot.lane.b32.xlu0 %v726, 16
        %v903 = vpop.permute.xlu0 %902
        %904 = vrot.lane.b32.xlu0 %v729, 16
        %v905 = vpop.permute.xlu0 %904
        %906 = vrot.lane.b32.xlu0 %v731, 16
        %v907 = vpop.permute.xlu0 %906
        %908 = vrot.lane.b32.xlu0 %v734, 16
        %v909 = vpop.permute.xlu0 %908
        %910 = vrot.lane.b32.xlu0 %v736, 16
        %v911 = vpop.permute.xlu0 %910
        %912 = vrot.lane.b32.xlu0 %v739, 16
        %v913 = vpop.permute.xlu0 %912
        %914 = vrot.lane.b32.xlu0 %v741, 16
        %v915 = vpop.permute.xlu0 %914
        %916 = vrot.lane.b32.xlu0 %v744, 16
        %v917 = vpop.permute.xlu0 %916
        %918 = vrot.lane.b32.xlu0 %v746, 16
        %v919 = vpop.permute.xlu0 %918
        %920 = vrot.lane.b32.xlu0 %v749, 16
        %v921 = vpop.permute.xlu0 %920
        %922 = vrot.lane.b32.xlu0 %v751, 16
        %v923 = vpop.permute.xlu0 %922
        %924 = vrot.lane.b32.xlu0 %v754, 16
        %v925 = vpop.permute.xlu0 %924
        %926 = vrot.lane.b32.xlu0 %v756, 16
        %v927 = vpop.permute.xlu0 %926
        %960 = vrot.lane.b32.xlu0 %v760, 32
        %v961 = vpop.permute.xlu0 %960
        %962 = vrot.lane.b32.xlu0 %v762, 32
        %v963 = vpop.permute.xlu0 %962
        %964 = vrot.lane.b32.xlu0 %v765, 32
        %v965 = vpop.permute.xlu0 %964
        %966 = vrot.lane.b32.xlu0 %v767, 32
        %v967 = vpop.permute.xlu0 %966
        %968 = vrot.lane.b32.xlu0 %v770, 32
        %v969 = vpop.permute.xlu0 %968
        %970 = vrot.lane.b32.xlu0 %v772, 32
        %v971 = vpop.permute.xlu0 %970
        %972 = vrot.lane.b32.xlu0 %v775, 32
        %v973 = vpop.permute.xlu0 %972
        %974 = vrot.lane.b32.xlu0 %v777, 32
        %v975 = vpop.permute.xlu0 %974
        %976 = vrot.lane.b32.xlu0 %v780, 32
        %v977 = vpop.permute.xlu0 %976
        %978 = vrot.lane.b32.xlu0 %v782, 32
        %v979 = vpop.permute.xlu0 %978
        %980 = vrot.lane.b32.xlu0 %v785, 32
        %v981 = vpop.permute.xlu0 %980
        %982 = vrot.lane.b32.xlu0 %v787, 32
        %v983 = vpop.permute.xlu0 %982
        %984 = vrot.lane.b32.xlu0 %v790, 32
        %v985 = vpop.permute.xlu0 %984
        %986 = vrot.lane.b32.xlu0 %v792, 32
        %v987 = vpop.permute.xlu0 %986
        %988 = vrot.lane.b32.xlu0 %v795, 32
        %v989 = vpop.permute.xlu0 %988
        %990 = vrot.lane.b32.xlu0 %v797, 32
        %v991 = vpop.permute.xlu0 %990
        %992 = vrot.lane.b32.xlu0 %v800, 32
        %v993 = vpop.permute.xlu0 %992
        %994 = vrot.lane.b32.xlu0 %v802, 32
        %v995 = vpop.permute.xlu0 %994
        %996 = vrot.lane.b32.xlu0 %v805, 32
        %v997 = vpop.permute.xlu0 %996
        %998 = vrot.lane.b32.xlu0 %v807, 32
        %v999 = vpop.permute.xlu0 %998
        %1000 = vrot.lane.b32.xlu0 %v810, 32
        %v1001 = vpop.permute.xlu0 %1000
        %1002 = vrot.lane.b32.xlu0 %v812, 32
        %v1003 = vpop.permute.xlu0 %1002
        %1004 = vrot.lane.b32.xlu0 %v815, 32
        %v1005 = vpop.permute.xlu0 %1004
        %1006 = vrot.lane.b32.xlu0 %v817, 32
        %v1007 = vpop.permute.xlu0 %1006
        %1008 = vrot.lane.b32.xlu0 %v820, 32
        %v1009 = vpop.permute.xlu0 %1008
        %1010 = vrot.lane.b32.xlu0 %v822, 32
        %v1011 = vpop.permute.xlu0 %1010
        %1012 = vrot.lane.b32.xlu0 %v825, 32
        %v1013 = vpop.permute.xlu0 %1012
        %1014 = vrot.lane.b32.xlu0 %v827, 32
        %v1015 = vpop.permute.xlu0 %1014
        %1016 = vrot.lane.b32.xlu0 %v830, 32
        %v1017 = vpop.permute.xlu0 %1016
        %1018 = vrot.lane.b32.xlu0 %v832, 32
        %v1019 = vpop.permute.xlu0 %1018
        %1020 = vrot.lane.b32.xlu0 %v835, 32
        %v1021 = vpop.permute.xlu0 %1020
        %1022 = vrot.lane.b32.xlu0 %v837, 32
        %v1023 = vpop.permute.xlu0 %1022
        %1056 = vrot.lane.b32.xlu0 %v577, 48
        %v1057 = vpop.permute.xlu0 %1056
        %1058 = vrot.lane.b32.xlu0 %v578, 48
        %v1059 = vpop.permute.xlu0 %1058
        %1060 = vrot.lane.b32.xlu0 %v580, 48
        %v1061 = vpop.permute.xlu0 %1060
        %1062 = vrot.lane.b32.xlu0 %v581, 48
        %v1063 = vpop.permute.xlu0 %1062
        %1064 = vrot.lane.b32.xlu0 %v583, 48
        %v1065 = vpop.permute.xlu0 %1064
        %1066 = vrot.lane.b32.xlu0 %v584, 48
        %v1067 = vpop.permute.xlu0 %1066
        %1068 = vrot.lane.b32.xlu0 %v586, 48
        %v1069 = vpop.permute.xlu0 %1068
        %1070 = vrot.lane.b32.xlu0 %v587, 48
        %v1071 = vpop.permute.xlu0 %1070
        %1072 = vrot.lane.b32.xlu0 %v589, 48
        %v1073 = vpop.permute.xlu0 %1072
        %1074 = vrot.lane.b32.xlu0 %v590, 48
        %v1075 = vpop.permute.xlu0 %1074
        %1076 = vrot.lane.b32.xlu0 %v592, 48
        %v1077 = vpop.permute.xlu0 %1076
        %1078 = vrot.lane.b32.xlu0 %v593, 48
        %v1079 = vpop.permute.xlu0 %1078
        %1080 = vrot.lane.b32.xlu0 %v595, 48
        %v1081 = vpop.permute.xlu0 %1080
        %1082 = vrot.lane.b32.xlu0 %v596, 48
        %v1083 = vpop.permute.xlu0 %1082
        %1084 = vrot.lane.b32.xlu0 %v598, 48
        %v1085 = vpop.permute.xlu0 %1084
        %1086 = vrot.lane.b32.xlu0 %v599, 48
        %v1087 = vpop.permute.xlu0 %1086
        %1088 = vrot.lane.b32.xlu0 %v601, 48
        %v1089 = vpop.permute.xlu0 %1088
        %1090 = vrot.lane.b32.xlu0 %v602, 48
        %v1091 = vpop.permute.xlu0 %1090
        %1092 = vrot.lane.b32.xlu0 %v604, 48
        %v1093 = vpop.permute.xlu0 %1092
        %1094 = vrot.lane.b32.xlu0 %v605, 48
        %v1095 = vpop.permute.xlu0 %1094
        %1096 = vrot.lane.b32.xlu0 %v607, 48
        %v1097 = vpop.permute.xlu0 %1096
        %1098 = vrot.lane.b32.xlu0 %v608, 48
        %v1099 = vpop.permute.xlu0 %1098
        %1100 = vrot.lane.b32.xlu0 %v610, 48
        %v1101 = vpop.permute.xlu0 %1100
        %1102 = vrot.lane.b32.xlu0 %v611, 48
        %v1103 = vpop.permute.xlu0 %1102
        %1104 = vrot.lane.b32.xlu0 %v613, 48
        %v1105 = vpop.permute.xlu0 %1104
        %1106 = vrot.lane.b32.xlu0 %v614, 48
        %v1107 = vpop.permute.xlu0 %1106
        %1108 = vrot.lane.b32.xlu0 %v616, 48
        %v1109 = vpop.permute.xlu0 %1108
        %1110 = vrot.lane.b32.xlu0 %v617, 48
        %v1111 = vpop.permute.xlu0 %1110
        %1112 = vrot.lane.b32.xlu0 %v619, 48
        %v1113 = vpop.permute.xlu0 %1112
        %1114 = vrot.lane.b32.xlu0 %v620, 48
        %v1115 = vpop.permute.xlu0 %1114
        %1116 = vrot.lane.b32.xlu0 %v622, 48
        %v1117 = vpop.permute.xlu0 %1116
        %1118 = vrot.lane.b32.xlu0 %v623, 48
        %v1119 = vpop.permute.xlu0 %1118
        %1152 = vrot.lane.b32.xlu0 %v684, 64
        %v1153 = vpop.permute.xlu0 %1152
        %1154 = vrot.lane.b32.xlu0 %v686, 64
        %v1155 = vpop.permute.xlu0 %1154
        %1156 = vrot.lane.b32.xlu0 %v689, 64
        %v1157 = vpop.permute.xlu0 %1156
        %1158 = vrot.lane.b32.xlu0 %v691, 64
        %v1159 = vpop.permute.xlu0 %1158
        %1160 = vrot.lane.b32.xlu0 %v694, 64
        %v1161 = vpop.permute.xlu0 %1160
        %1162 = vrot.lane.b32.xlu0 %v696, 64
        %v1163 = vpop.permute.xlu0 %1162
        %1164 = vrot.lane.b32.xlu0 %v699, 64
        %v1165 = vpop.permute.xlu0 %1164
        %1166 = vrot.lane.b32.xlu0 %v701, 64
        %v1167 = vpop.permute.xlu0 %1166
        %1168 = vrot.lane.b32.xlu0 %v704, 64
        %v1169 = vpop.permute.xlu0 %1168
        %1170 = vrot.lane.b32.xlu0 %v706, 64
        %v1171 = vpop.permute.xlu0 %1170
        %1172 = vrot.lane.b32.xlu0 %v709, 64
        %v1173 = vpop.permute.xlu0 %1172
        %1174 = vrot.lane.b32.xlu0 %v711, 64
        %v1175 = vpop.permute.xlu0 %1174
        %1176 = vrot.lane.b32.xlu0 %v714, 64
        %v1177 = vpop.permute.xlu0 %1176
        %1178 = vrot.lane.b32.xlu0 %v716, 64
        %v1179 = vpop.permute.xlu0 %1178
        %1180 = vrot.lane.b32.xlu0 %v719, 64
        %v1181 = vpop.permute.xlu0 %1180
        %1182 = vrot.lane.b32.xlu0 %v721, 64
        %v1183 = vpop.permute.xlu0 %1182
        %1184 = vrot.lane.b32.xlu0 %v724, 64
        %v1185 = vpop.permute.xlu0 %1184
        %1186 = vrot.lane.b32.xlu0 %v726, 64
        %v1187 = vpop.permute.xlu0 %1186
        %1188 = vrot.lane.b32.xlu0 %v729, 64
        %v1189 = vpop.permute.xlu0 %1188
        %1190 = vrot.lane.b32.xlu0 %v731, 64
        %v1191 = vpop.permute.xlu0 %1190
        %1192 = vrot.lane.b32.xlu0 %v734, 64
        %v1193 = vpop.permute.xlu0 %1192
        %1194 = vrot.lane.b32.xlu0 %v736, 64
        %v1195 = vpop.permute.xlu0 %1194
        %1196 = vrot.lane.b32.xlu0 %v739, 64
        %v1197 = vpop.permute.xlu0 %1196
        %1198 = vrot.lane.b32.xlu0 %v741, 64
        %v1199 = vpop.permute.xlu0 %1198
        %1200 = vrot.lane.b32.xlu0 %v744, 64
        %v1201 = vpop.permute.xlu0 %1200
        %1202 = vrot.lane.b32.xlu0 %v746, 64
        %v1203 = vpop.permute.xlu0 %1202
        %1204 = vrot.lane.b32.xlu0 %v749, 64
        %v1205 = vpop.permute.xlu0 %1204
        %1206 = vrot.lane.b32.xlu0 %v751, 64
        %v1207 = vpop.permute.xlu0 %1206
        %1208 = vrot.lane.b32.xlu0 %v754, 64
        %v1209 = vpop.permute.xlu0 %1208
        %1210 = vrot.lane.b32.xlu0 %v756, 64
        %v1211 = vpop.permute.xlu0 %1210
        %1212 = vrot.lane.b32.xlu0 %v843, 64
        %v1213 = vpop.permute.xlu0 %1212
        %1214 = vrot.lane.b32.xlu0 %v845, 64
        %v1215 = vpop.permute.xlu0 %1214
        %1248 = vrot.lane.b32.xlu0 %v765, 80
        %v1249 = vpop.permute.xlu0 %1248
        %1250 = vrot.lane.b32.xlu0 %v767, 80
        %v1251 = vpop.permute.xlu0 %1250
        %1252 = vrot.lane.b32.xlu0 %v770, 80
        %v1253 = vpop.permute.xlu0 %1252
        %1254 = vrot.lane.b32.xlu0 %v772, 80
        %v1255 = vpop.permute.xlu0 %1254
        %1256 = vrot.lane.b32.xlu0 %v775, 80
        %v1257 = vpop.permute.xlu0 %1256
        %1258 = vrot.lane.b32.xlu0 %v777, 80
        %v1259 = vpop.permute.xlu0 %1258
        %1260 = vrot.lane.b32.xlu0 %v780, 80
        %v1261 = vpop.permute.xlu0 %1260
        %1262 = vrot.lane.b32.xlu0 %v782, 80
        %v1263 = vpop.permute.xlu0 %1262
        %1264 = vrot.lane.b32.xlu0 %v785, 80
        %v1265 = vpop.permute.xlu0 %1264
        %1266 = vrot.lane.b32.xlu0 %v787, 80
        %v1267 = vpop.permute.xlu0 %1266
        %1268 = vrot.lane.b32.xlu0 %v790, 80
        %v1269 = vpop.permute.xlu0 %1268
        %1270 = vrot.lane.b32.xlu0 %v792, 80
        %v1271 = vpop.permute.xlu0 %1270
        %1272 = vrot.lane.b32.xlu0 %v795, 80
        %v1273 = vpop.permute.xlu0 %1272
        %1274 = vrot.lane.b32.xlu0 %v797, 80
        %v1275 = vpop.permute.xlu0 %1274
        %1276 = vrot.lane.b32.xlu0 %v800, 80
        %v1277 = vpop.permute.xlu0 %1276
        %1278 = vrot.lane.b32.xlu0 %v802, 80
        %v1279 = vpop.permute.xlu0 %1278
        %1280 = vrot.lane.b32.xlu0 %v805, 80
        %v1281 = vpop.permute.xlu0 %1280
        %1282 = vrot.lane.b32.xlu0 %v807, 80
        %v1283 = vpop.permute.xlu0 %1282
        %1284 = vrot.lane.b32.xlu0 %v810, 80
        %v1285 = vpop.permute.xlu0 %1284
        %1286 = vrot.lane.b32.xlu0 %v812, 80
        %v1287 = vpop.permute.xlu0 %1286
        %1288 = vrot.lane.b32.xlu0 %v815, 80
        %v1289 = vpop.permute.xlu0 %1288
        %1290 = vrot.lane.b32.xlu0 %v817, 80
        %v1291 = vpop.permute.xlu0 %1290
        %1292 = vrot.lane.b32.xlu0 %v820, 80
        %v1293 = vpop.permute.xlu0 %1292
        %1294 = vrot.lane.b32.xlu0 %v822, 80
        %v1295 = vpop.permute.xlu0 %1294
        %1296 = vrot.lane.b32.xlu0 %v825, 80
        %v1297 = vpop.permute.xlu0 %1296
        %1298 = vrot.lane.b32.xlu0 %v827, 80
        %v1299 = vpop.permute.xlu0 %1298
        %1300 = vrot.lane.b32.xlu0 %v830, 80
        %v1301 = vpop.permute.xlu0 %1300
        %1302 = vrot.lane.b32.xlu0 %v832, 80
        %v1303 = vpop.permute.xlu0 %1302
        %1304 = vrot.lane.b32.xlu0 %v835, 80
        %v1305 = vpop.permute.xlu0 %1304
        %1306 = vrot.lane.b32.xlu0 %v837, 80
        %v1307 = vpop.permute.xlu0 %1306
        %1308 = vrot.lane.b32.xlu0 %v848, 80
        %v1309 = vpop.permute.xlu0 %1308
        %1310 = vrot.lane.b32.xlu0 %v850, 80
        %v1311 = vpop.permute.xlu0 %1310
        %1344 = vrot.lane.b32.xlu0 %v580, 96
        %v1345 = vpop.permute.xlu0 %1344
        %1346 = vrot.lane.b32.xlu0 %v581, 96
        %v1347 = vpop.permute.xlu0 %1346
        %1348 = vrot.lane.b32.xlu0 %v583, 96
        %v1349 = vpop.permute.xlu0 %1348
        %1350 = vrot.lane.b32.xlu0 %v584, 96
        %v1351 = vpop.permute.xlu0 %1350
        %1352 = vrot.lane.b32.xlu0 %v586, 96
        %v1353 = vpop.permute.xlu0 %1352
        %1354 = vrot.lane.b32.xlu0 %v587, 96
        %v1355 = vpop.permute.xlu0 %1354
        %1356 = vrot.lane.b32.xlu0 %v589, 96
        %v1357 = vpop.permute.xlu0 %1356
        %1358 = vrot.lane.b32.xlu0 %v590, 96
        %v1359 = vpop.permute.xlu0 %1358
        %1360 = vrot.lane.b32.xlu0 %v592, 96
        %v1361 = vpop.permute.xlu0 %1360
        %1362 = vrot.lane.b32.xlu0 %v593, 96
        %v1363 = vpop.permute.xlu0 %1362
        %1364 = vrot.lane.b32.xlu0 %v595, 96
        %v1365 = vpop.permute.xlu0 %1364
        %1366 = vrot.lane.b32.xlu0 %v596, 96
        %v1367 = vpop.permute.xlu0 %1366
        %1368 = vrot.lane.b32.xlu0 %v598, 96
        %v1369 = vpop.permute.xlu0 %1368
        %1370 = vrot.lane.b32.xlu0 %v599, 96
        %v1371 = vpop.permute.xlu0 %1370
        %1372 = vrot.lane.b32.xlu0 %v601, 96
        %v1373 = vpop.permute.xlu0 %1372
        %1374 = vrot.lane.b32.xlu0 %v602, 96
        %v1375 = vpop.permute.xlu0 %1374
        %1376 = vrot.lane.b32.xlu0 %v604, 96
        %v1377 = vpop.permute.xlu0 %1376
        %1378 = vrot.lane.b32.xlu0 %v605, 96
        %v1379 = vpop.permute.xlu0 %1378
        %1380 = vrot.lane.b32.xlu0 %v607, 96
        %v1381 = vpop.permute.xlu0 %1380
        %1382 = vrot.lane.b32.xlu0 %v608, 96
        %v1383 = vpop.permute.xlu0 %1382
        %1384 = vrot.lane.b32.xlu0 %v610, 96
        %v1385 = vpop.permute.xlu0 %1384
        %1386 = vrot.lane.b32.xlu0 %v611, 96
        %v1387 = vpop.permute.xlu0 %1386
        %1388 = vrot.lane.b32.xlu0 %v613, 96
        %v1389 = vpop.permute.xlu0 %1388
        %1390 = vrot.lane.b32.xlu0 %v614, 96
        %v1391 = vpop.permute.xlu0 %1390
        %1392 = vrot.lane.b32.xlu0 %v616, 96
        %v1393 = vpop.permute.xlu0 %1392
        %1394 = vrot.lane.b32.xlu0 %v617, 96
        %v1395 = vpop.permute.xlu0 %1394
        %1396 = vrot.lane.b32.xlu0 %v619, 96
        %v1397 = vpop.permute.xlu0 %1396
        %1398 = vrot.lane.b32.xlu0 %v620, 96
        %v1399 = vpop.permute.xlu0 %1398
        %1400 = vrot.lane.b32.xlu0 %v622, 96
        %v1401 = vpop.permute.xlu0 %1400
        %1402 = vrot.lane.b32.xlu0 %v623, 96
        %v1403 = vpop.permute.xlu0 %1402
        %1404 = vrot.lane.b32.xlu0 %v625, 96
        %v1405 = vpop.permute.xlu0 %1404
        %1406 = vrot.lane.b32.xlu0 %v626, 96
        %v1407 = vpop.permute.xlu0 %1406
        %1440 = vrot.lane.b32.xlu0 %v689, 112
        %v1441 = vpop.permute.xlu0 %1440
        %1442 = vrot.lane.b32.xlu0 %v691, 112
        %v1443 = vpop.permute.xlu0 %1442
        %1444 = vrot.lane.b32.xlu0 %v694, 112
        %v1445 = vpop.permute.xlu0 %1444
        %1446 = vrot.lane.b32.xlu0 %v696, 112
        %v1447 = vpop.permute.xlu0 %1446
        %1448 = vrot.lane.b32.xlu0 %v699, 112
        %v1449 = vpop.permute.xlu0 %1448
        %1450 = vrot.lane.b32.xlu0 %v701, 112
        %v1451 = vpop.permute.xlu0 %1450
        %1452 = vrot.lane.b32.xlu0 %v704, 112
        %v1453 = vpop.permute.xlu0 %1452
        %1454 = vrot.lane.b32.xlu0 %v706, 112
        %v1455 = vpop.permute.xlu0 %1454
        %1456 = vrot.lane.b32.xlu0 %v709, 112
        %v1457 = vpop.permute.xlu0 %1456
        %1458 = vrot.lane.b32.xlu0 %v711, 112
        %v1459 = vpop.permute.xlu0 %1458
        %1460 = vrot.lane.b32.xlu0 %v714, 112
        %v1461 = vpop.permute.xlu0 %1460
        %1462 = vrot.lane.b32.xlu0 %v716, 112
        %v1463 = vpop.permute.xlu0 %1462
        %1464 = vrot.lane.b32.xlu0 %v719, 112
        %v1465 = vpop.permute.xlu0 %1464
        %1466 = vrot.lane.b32.xlu0 %v721, 112
        %v1467 = vpop.permute.xlu0 %1466
        %1468 = vrot.lane.b32.xlu0 %v724, 112
        %v1469 = vpop.permute.xlu0 %1468
        %1470 = vrot.lane.b32.xlu0 %v726, 112
        %v1471 = vpop.permute.xlu0 %1470
        %1472 = vrot.lane.b32.xlu0 %v729, 112
        %v1473 = vpop.permute.xlu0 %1472
        %1474 = vrot.lane.b32.xlu0 %v731, 112
        %v1475 = vpop.permute.xlu0 %1474
        %1476 = vrot.lane.b32.xlu0 %v734, 112
        %v1477 = vpop.permute.xlu0 %1476
        %1478 = vrot.lane.b32.xlu0 %v736, 112
        %v1479 = vpop.permute.xlu0 %1478
        %1480 = vrot.lane.b32.xlu0 %v739, 112
        %v1481 = vpop.permute.xlu0 %1480
        %1482 = vrot.lane.b32.xlu0 %v741, 112
        %v1483 = vpop.permute.xlu0 %1482
        %1484 = vrot.lane.b32.xlu0 %v744, 112
        %v1485 = vpop.permute.xlu0 %1484
        %1486 = vrot.lane.b32.xlu0 %v746, 112
        %v1487 = vpop.permute.xlu0 %1486
        %1488 = vrot.lane.b32.xlu0 %v749, 112
        %v1489 = vpop.permute.xlu0 %1488
        %1490 = vrot.lane.b32.xlu0 %v751, 112
        %v1491 = vpop.permute.xlu0 %1490
        %1492 = vrot.lane.b32.xlu0 %v754, 112
        %v1493 = vpop.permute.xlu0 %1492
        %1494 = vrot.lane.b32.xlu0 %v756, 112
        %v1495 = vpop.permute.xlu0 %1494
        %1496 = vrot.lane.b32.xlu0 %v843, 112
        %v1497 = vpop.permute.xlu0 %1496
        %1498 = vrot.lane.b32.xlu0 %v845, 112
        %v1499 = vpop.permute.xlu0 %1498
        %1500 = vrot.lane.b32.xlu0 %v856, 112
        %v1501 = vpop.permute.xlu0 %1500
        %1502 = vrot.lane.b32.xlu0 %v858, 112
        %v1503 = vpop.permute.xlu0 %1502
        %v1536 = vsel %vm399, %v574, %v865
        %v1537 = vsel %vm399, %v575, %v867
        %v1538 = vsel %vm399, %v577, %v869
        %v1539 = vsel %vm399, %v578, %v871
        %v1540 = vsel %vm399, %v580, %v873
        %v1541 = vsel %vm399, %v581, %v875
        %v1542 = vsel %vm399, %v583, %v877
        %v1543 = vsel %vm399, %v584, %v879
        %v1544 = vsel %vm399, %v586, %v881
        %v1545 = vsel %vm399, %v587, %v883
        %v1546 = vsel %vm399, %v589, %v885
        %v1547 = vsel %vm399, %v590, %v887
        %v1548 = vsel %vm399, %v592, %v889
        %v1549 = vsel %vm399, %v593, %v891
        %v1550 = vsel %vm399, %v595, %v893
        %v1551 = vsel %vm399, %v596, %v895
        %v1552 = vsel %vm399, %v598, %v897
        %v1553 = vsel %vm399, %v599, %v899
        %v1554 = vsel %vm399, %v601, %v901
        %v1555 = vsel %vm399, %v602, %v903
        %v1556 = vsel %vm399, %v604, %v905
        %v1557 = vsel %vm399, %v605, %v907
        %v1558 = vsel %vm399, %v607, %v909
        %v1559 = vsel %vm399, %v608, %v911
        %v1560 = vsel %vm399, %v610, %v913
        %v1561 = vsel %vm399, %v611, %v915
        %v1562 = vsel %vm399, %v613, %v917
        %v1563 = vsel %vm399, %v614, %v919
        %v1564 = vsel %vm399, %v616, %v921
        %v1565 = vsel %vm399, %v617, %v923
        %v1566 = vsel %vm399, %v619, %v925
        %v1567 = vsel %vm399, %v620, %v927
        %vm1568 = vcmask 261120
        %v1569 = vsel %vm1568, %v1536, %v961
        %v1570 = vsel %vm1568, %v1537, %v963
        %v1571 = vsel %vm1568, %v1538, %v965
        %v1572 = vsel %vm1568, %v1539, %v967
        %v1573 = vsel %vm1568, %v1540, %v969
        %v1574 = vsel %vm1568, %v1541, %v971
        %v1575 = vsel %vm1568, %v1542, %v973
        %v1576 = vsel %vm1568, %v1543, %v975
        %v1577 = vsel %vm1568, %v1544, %v977
        %v1578 = vsel %vm1568, %v1545, %v979
        %v1579 = vsel %vm1568, %v1546, %v981
        %v1580 = vsel %vm1568, %v1547, %v983
        %v1581 = vsel %vm1568, %v1548, %v985
        %v1582 = vsel %vm1568, %v1549, %v987
        %v1583 = vsel %vm1568, %v1550, %v989
        %v1584 = vsel %vm1568, %v1551, %v991
        %v1585 = vsel %vm1568, %v1552, %v993
        %v1586 = vsel %vm1568, %v1553, %v995
        %v1587 = vsel %vm1568, %v1554, %v997
        %v1588 = vsel %vm1568, %v1555, %v999
        %v1589 = vsel %vm1568, %v1556, %v1001
        %v1590 = vsel %vm1568, %v1557, %v1003
        %v1591 = vsel %vm1568, %v1558, %v1005
        %v1592 = vsel %vm1568, %v1559, %v1007
        %v1593 = vsel %vm1568, %v1560, %v1009
        %v1594 = vsel %vm1568, %v1561, %v1011
        %v1595 = vsel %vm1568, %v1562, %v1013
        %v1596 = vsel %vm1568, %v1563, %v1015
        %v1597 = vsel %vm1568, %v1564, %v1017
        %v1598 = vsel %vm1568, %v1565, %v1019
        %v1599 = vsel %vm1568, %v1566, %v1021
        %v1600 = vsel %vm1568, %v1567, %v1023
        %vm1601 = vcmask 392192
        %v1602 = vsel %vm1601, %v1569, %v1057
        %v1603 = vsel %vm1601, %v1570, %v1059
        %v1604 = vsel %vm1601, %v1571, %v1061
        %v1605 = vsel %vm1601, %v1572, %v1063
        %v1606 = vsel %vm1601, %v1573, %v1065
        %v1607 = vsel %vm1601, %v1574, %v1067
        %v1608 = vsel %vm1601, %v1575, %v1069
        %v1609 = vsel %vm1601, %v1576, %v1071
        %v1610 = vsel %vm1601, %v1577, %v1073
        %v1611 = vsel %vm1601, %v1578, %v1075
        %v1612 = vsel %vm1601, %v1579, %v1077
        %v1613 = vsel %vm1601, %v1580, %v1079
        %v1614 = vsel %vm1601, %v1581, %v1081
        %v1615 = vsel %vm1601, %v1582, %v1083
        %v1616 = vsel %vm1601, %v1583, %v1085
        %v1617 = vsel %vm1601, %v1584, %v1087
        %v1618 = vsel %vm1601, %v1585, %v1089
        %v1619 = vsel %vm1601, %v1586, %v1091
        %v1620 = vsel %vm1601, %v1587, %v1093
        %v1621 = vsel %vm1601, %v1588, %v1095
        %v1622 = vsel %vm1601, %v1589, %v1097
        %v1623 = vsel %vm1601, %v1590, %v1099
        %v1624 = vsel %vm1601, %v1591, %v1101
        %v1625 = vsel %vm1601, %v1592, %v1103
        %v1626 = vsel %vm1601, %v1593, %v1105
        %v1627 = vsel %vm1601, %v1594, %v1107
        %v1628 = vsel %vm1601, %v1595, %v1109
        %v1629 = vsel %vm1601, %v1596, %v1111
        %v1630 = vsel %vm1601, %v1597, %v1113
        %v1631 = vsel %vm1601, %v1598, %v1115
        %v1632 = vsel %vm1601, %v1599, %v1117
        %v1633 = vsel %vm1601, %v1600, %v1119
        %vm1634 = vcmask 523264
        %v1635 = vsel %vm1634, %v1602, %v1153
        %v1636 = vsel %vm1634, %v1603, %v1155
        %v1637 = vsel %vm1634, %v1604, %v1157
        %v1638 = vsel %vm1634, %v1605, %v1159
        %v1639 = vsel %vm1634, %v1606, %v1161
        %v1640 = vsel %vm1634, %v1607, %v1163
        %v1641 = vsel %vm1634, %v1608, %v1165
        %v1642 = vsel %vm1634, %v1609, %v1167
        %v1643 = vsel %vm1634, %v1610, %v1169
        %v1644 = vsel %vm1634, %v1611, %v1171
        %v1645 = vsel %vm1634, %v1612, %v1173
        %v1646 = vsel %vm1634, %v1613, %v1175
        %v1647 = vsel %vm1634, %v1614, %v1177
        %v1648 = vsel %vm1634, %v1615, %v1179
        %v1649 = vsel %vm1634, %v1616, %v1181
        %v1650 = vsel %vm1634, %v1617, %v1183
        %v1651 = vsel %vm1634, %v1618, %v1185
        %v1652 = vsel %vm1634, %v1619, %v1187
        %v1653 = vsel %vm1634, %v1620, %v1189
        %v1654 = vsel %vm1634, %v1621, %v1191
        %v1655 = vsel %vm1634, %v1622, %v1193
        %v1656 = vsel %vm1634, %v1623, %v1195
        %v1657 = vsel %vm1634, %v1624, %v1197
        %v1658 = vsel %vm1634, %v1625, %v1199
        %v1659 = vsel %vm1634, %v1626, %v1201
        %v1660 = vsel %vm1634, %v1627, %v1203
        %v1661 = vsel %vm1634, %v1628, %v1205
        %v1662 = vsel %vm1634, %v1629, %v1207
        %v1663 = vsel %vm1634, %v1630, %v1209
        %v1664 = vsel %vm1634, %v1631, %v1211
        %v1665 = vsel %vm1634, %v1632, %v1213
        %v1666 = vsel %vm1634, %v1633, %v1215
        %vm1667 = vcmask 654336
        %v1668 = vsel %vm1667, %v1635, %v1249
        %v1669 = vsel %vm1667, %v1636, %v1251
        %v1670 = vsel %vm1667, %v1637, %v1253
        %v1671 = vsel %vm1667, %v1638, %v1255
        %v1672 = vsel %vm1667, %v1639, %v1257
        %v1673 = vsel %vm1667, %v1640, %v1259
        %v1674 = vsel %vm1667, %v1641, %v1261
        %v1675 = vsel %vm1667, %v1642, %v1263
        %v1676 = vsel %vm1667, %v1643, %v1265
        %v1677 = vsel %vm1667, %v1644, %v1267
        %v1678 = vsel %vm1667, %v1645, %v1269
        %v1679 = vsel %vm1667, %v1646, %v1271
        %v1680 = vsel %vm1667, %v1647, %v1273
        %v1681 = vsel %vm1667, %v1648, %v1275
        %v1682 = vsel %vm1667, %v1649, %v1277
        %v1683 = vsel %vm1667, %v1650, %v1279
        %v1684 = vsel %vm1667, %v1651, %v1281
        %v1685 = vsel %vm1667, %v1652, %v1283
        %v1686 = vsel %vm1667, %v1653, %v1285
        %v1687 = vsel %vm1667, %v1654, %v1287
        %v1688 = vsel %vm1667, %v1655, %v1289
        %v1689 = vsel %vm1667, %v1656, %v1291
        %v1690 = vsel %vm1667, %v1657, %v1293
        %v1691 = vsel %vm1667, %v1658, %v1295
        %v1692 = vsel %vm1667, %v1659, %v1297
        %v1693 = vsel %vm1667, %v1660, %v1299
        %v1694 = vsel %vm1667, %v1661, %v1301
        %v1695 = vsel %vm1667, %v1662, %v1303
        %v1696 = vsel %vm1667, %v1663, %v1305
        %v1697 = vsel %vm1667, %v1664, %v1307
        %v1698 = vsel %vm1667, %v1665, %v1309
        %v1699 = vsel %vm1667, %v1666, %v1311
        %vm1700 = vcmask 785408
        %v1701 = vsel %vm1700, %v1668, %v1345
        %v1702 = vsel %vm1700, %v1669, %v1347
        %v1703 = vsel %vm1700, %v1670, %v1349
        %v1704 = vsel %vm1700, %v1671, %v1351
        %v1705 = vsel %vm1700, %v1672, %v1353
        %v1706 = vsel %vm1700, %v1673, %v1355
        %v1707 = vsel %vm1700, %v1674, %v1357
        %v1708 = vsel %vm1700, %v1675, %v1359
        %v1709 = vsel %vm1700, %v1676, %v1361
        %v1710 = vsel %vm1700, %v1677, %v1363
        %v1711 = vsel %vm1700, %v1678, %v1365
        %v1712 = vsel %vm1700, %v1679, %v1367
        %v1713 = vsel %vm1700, %v1680, %v1369
        %v1714 = vsel %vm1700, %v1681, %v1371
        %v1715 = vsel %vm1700, %v1682, %v1373
        %v1716 = vsel %vm1700, %v1683, %v1375
        %v1717 = vsel %vm1700, %v1684, %v1377
        %v1718 = vsel %vm1700, %v1685, %v1379
        %v1719 = vsel %vm1700, %v1686, %v1381
        %v1720 = vsel %vm1700, %v1687, %v1383
        %v1721 = vsel %vm1700, %v1688, %v1385
        %v1722 = vsel %vm1700, %v1689, %v1387
        %v1723 = vsel %vm1700, %v1690, %v1389
        %v1724 = vsel %vm1700, %v1691, %v1391
        %v1725 = vsel %vm1700, %v1692, %v1393
        %v1726 = vsel %vm1700, %v1693, %v1395
        %v1727 = vsel %vm1700, %v1694, %v1397
        %v1728 = vsel %vm1700, %v1695, %v1399
        %v1729 = vsel %vm1700, %v1696, %v1401
        %v1730 = vsel %vm1700, %v1697, %v1403
        %v1731 = vsel %vm1700, %v1698, %v1405
        %v1732 = vsel %vm1700, %v1699, %v1407
        %vm1733 = vcmask 916480
        %v1734 = vsel %vm1733, %v1701, %v1441
        %v1735 = vsel %vm1733, %v1702, %v1443
        %v1736 = vsel %vm1733, %v1703, %v1445
        %v1737 = vsel %vm1733, %v1704, %v1447
        %v1738 = vsel %vm1733, %v1705, %v1449
        %v1739 = vsel %vm1733, %v1706, %v1451
        %v1740 = vsel %vm1733, %v1707, %v1453
        %v1741 = vsel %vm1733, %v1708, %v1455
        %v1742 = vsel %vm1733, %v1709, %v1457
        %v1743 = vsel %vm1733, %v1710, %v1459
        %v1744 = vsel %vm1733, %v1711, %v1461
        %v1745 = vsel %vm1733, %v1712, %v1463
        %v1746 = vsel %vm1733, %v1713, %v1465
        %v1747 = vsel %vm1733, %v1714, %v1467
        %v1748 = vsel %vm1733, %v1715, %v1469
        %v1749 = vsel %vm1733, %v1716, %v1471
        %v1750 = vsel %vm1733, %v1717, %v1473
        %v1751 = vsel %vm1733, %v1718, %v1475
        %v1752 = vsel %vm1733, %v1719, %v1477
        %v1753 = vsel %vm1733, %v1720, %v1479
        %v1754 = vsel %vm1733, %v1721, %v1481
        %v1755 = vsel %vm1733, %v1722, %v1483
        %v1756 = vsel %vm1733, %v1723, %v1485
        %v1757 = vsel %vm1733, %v1724, %v1487
        %v1758 = vsel %vm1733, %v1725, %v1489
        %v1759 = vsel %vm1733, %v1726, %v1491
        %v1760 = vsel %vm1733, %v1727, %v1493
        %v1761 = vsel %vm1733, %v1728, %v1495
        %v1762 = vsel %vm1733, %v1729, %v1497
        %v1763 = vsel %vm1733, %v1730, %v1499
        %v1764 = vsel %vm1733, %v1731, %v1501
        %v1765 = vsel %vm1733, %v1732, %v1503
        %v1766 = vld [vmem:[#allocation8] sm:$0xff]
        %v1767 = vld [vmem:[#allocation8 + $0x8] sm:$0xff]
        %v1768 = vld [vmem:[#allocation8 + $0x10] sm:$0xff]
        %v1769 = vld [vmem:[#allocation8 + $0x18] sm:$0xff]
        %v1770 = vld [vmem:[#allocation8 + $0x20] sm:$0xff]
        %v1771 = vld [vmem:[#allocation8 + $0x28] sm:$0xff]
        %v1772 = vld [vmem:[#allocation8 + $0x30] sm:$0xff]
        %v1773 = vld [vmem:[#allocation8 + $0x38] sm:$0xff]
        %v1774 = vld [vmem:[#allocation8 + $0x40] sm:$0xff]
        %v1775 = vld [vmem:[#allocation8 + $0x48] sm:$0xff]
        %v1776 = vld [vmem:[#allocation8 + $0x50] sm:$0xff]
        %v1777 = vld [vmem:[#allocation8 + $0x58] sm:$0xff]
        %v1778 = vld [vmem:[#allocation8 + $0x60] sm:$0xff]
        %v1779 = vld [vmem:[#allocation8 + $0x68] sm:$0xff]
        %v1780 = vld [vmem:[#allocation8 + $0x70] sm:$0xff]
        %v1781 = vld [vmem:[#allocation8 + $0x78] sm:$0xff]
        %v1782 = vld [vmem:[#allocation8 + $0x80] sm:$0xff]
        %v1783 = vld [vmem:[#allocation8 + $0x88] sm:$0xff]
        %v1784 = vld [vmem:[#allocation10] sm:$0x1]
        %v1786 = vlaneseq
        %v1787 = vshrl.u32 %v1786, 7
        %v1788 = vsub.s32 0, %v1787
        %v1789 = vrot.slane %v1784, %v1788
        %v1791 = vsel %vm399, %v770, 0
        %v1793 = vsel %vm399, %v772, 0
        %v1795 = vsel %vm399, %v775, 0
        %v1797 = vsel %vm399, %v777, 0
        %v1799 = vsel %vm399, %v780, 0
        %v1801 = vsel %vm399, %v782, 0
        %v1803 = vsel %vm399, %v785, 0
        %v1805 = vsel %vm399, %v787, 0
        %v1807 = vsel %vm399, %v790, 0
        %v1809 = vsel %vm399, %v792, 0
        %v1811 = vsel %vm399, %v795, 0
        %v1813 = vsel %vm399, %v797, 0
        %v1815 = vsel %vm399, %v800, 0
        %v1817 = vsel %vm399, %v802, 0
        %v1819 = vsel %vm399, %v805, 0
        %v1821 = vsel %vm399, %v807, 0
        %v1823 = vsel %vm399, %v810, 0
        %v1825 = vsel %vm399, %v812, 0
        %v1827 = vsel %vm399, %v815, 0
        %v1829 = vsel %vm399, %v817, 0
        %v1831 = vsel %vm399, %v820, 0
        %v1833 = vsel %vm399, %v822, 0
        %v1835 = vsel %vm399, %v825, 0
        %v1837 = vsel %vm399, %v827, 0
        %v1839 = vsel %vm399, %v830, 0
        %v1841 = vsel %vm399, %v832, 0
        %v1843 = vsel %vm399, %v835, 0
        %v1845 = vsel %vm399, %v837, 0
        %v1847 = vsel %vm399, %v848, 0
        %v1849 = vsel %vm399, %v850, 0
        %v1851 = vsel %vm399, %v861, 0
        %v1853 = vsel %vm399, %v863, 0
        %1855 = vmatprep.subr.mxu0 0.0
        %1856 = vmatpush1.msra.mxu0 %v1766
        %1857 = vmatprep.subr.mxu0 0.0
        %1858 = vmatpush1.msra.mxu0 %v1767
        %1859 = vmatprep.subr.mxu0 0.0
        %1860 = vmatpush1.msra.mxu0 %v1768
        %1861 = vmatprep.subr.mxu0 0.0
        %1862 = vmatpush1.msra.mxu0 %v1769
        %1863 = vmatprep.subr.mxu0 0.0
        %1864 = vmatpush1.msra.mxu0 %v1770
        %1865 = vmatprep.subr.mxu0 0.0
        %1866 = vmatpush1.msra.mxu0 %v1771
        %1867 = vmatprep.subr.mxu0 0.0
        %1868 = vmatpush1.msra.mxu0 %v1772
        %1869 = vmatprep.subr.mxu0 0.0
        %1870 = vmatpush1.msra.mxu0 %v1773
        %1871 = vmatprep.subr.mxu0 0.0
        %1872 = vmatpush1.msra.mxu0 %v1774
        %1873 = vmatprep.subr.mxu0 0.0
        %1874 = vmatpush1.msra.mxu0 %v1775
        %1875 = vmatprep.subr.mxu0 0.0
        %1876 = vmatpush1.msra.mxu0 %v1776
        %1877 = vmatprep.subr.mxu0 0.0
        %1878 = vmatpush1.msra.mxu0 %v1777
        %1879 = vmatprep.subr.mxu0 0.0
        %1880 = vmatpush1.msra.mxu0 %v1778
        %1881 = vmatprep.subr.mxu0 0.0
        %1882 = vmatpush1.msra.mxu0 %v1779
        %1883 = vmatprep.subr.mxu0 0.0
        %1884 = vmatpush1.msra.mxu0 %v1780
        %1885 = vmatprep.subr.mxu0 0.0
        %1886 = vmatpush1.msra.mxu0 %v1781
        %1887 = vmatprep.subr.mxu0 0.0
        %1888 = vmatpush1.msra.mxu0 %v1782
        %1889 = vmatprep.subr.mxu0 0.0
        %1890 = vmatpush1.msra.mxu0 %v1783
        %1891 = vmatprep.subr.mxu0 0.0
        %1892 = vmatpush1.msra.mxu0 0.0
        %1893 = vmatprep.subr.mxu0 0.0
        %1894 = vmatpush1.msra.mxu0 0.0
        %1895 = vmatprep.subr.mxu0 0.0
        %1896 = vmatpush1.msra.mxu0 0.0
        %1897 = vmatprep.subr.mxu0 0.0
        %1898 = vmatpush1.msra.mxu0 0.0
        %1899 = vmatprep.subr.mxu0 0.0
        %1900 = vmatpush1.msra.mxu0 0.0
        %1901 = vmatprep.subr.mxu0 0.0
        %1902 = vmatpush1.msra.mxu0 0.0
        %1903 = vmatprep.subr.mxu0 0.0
        %1904 = vmatpush1.msra.mxu0 0.0
        %1905 = vmatprep.subr.mxu0 0.0
        %1906 = vmatpush1.msra.mxu0 0.0
        %1907 = vmatprep.subr.mxu0 0.0
        %1908 = vmatpush1.msra.mxu0 0.0
        %1909 = vmatprep.subr.mxu0 0.0
        %1910 = vmatpush1.msra.mxu0 0.0
        %1911 = vmatprep.subr.mxu0 0.0
        %1912 = vmatpush1.msra.mxu0 0.0
        %1913 = vmatprep.subr.mxu0 0.0
        %1914 = vmatpush1.msra.mxu0 0.0
        %1915 = vmatprep.subr.mxu0 0.0
        %1916 = vmatpush1.msra.mxu0 0.0
        %1917 = vmatprep.subr.mxu0 0.0
        %1918 = vmatpush1.msra.mxu0 0.0
        %1919 = vmatprep.mubr.f32.mxu0 %v1791
        %1920 = vmatmul.mubr.f32.gmra.mrb[0].mxu0 %v1734
        %v1921 = vpop.f32.mrb[0].mxu0
        %v1922 = vadd.f32 %v1789, %v1921
        %v1923 = vpop.f32.mrb[0].mxu0
        %1924 = vmatprep.mubr.f32.mxu0 %v1793
        %1925 = vmatmul.mubr.f32.gmra.mrb[0].mxu0 %v1735
        %v1926 = vpop.f32.mrb[0].mxu0
        %v1927 = vadd.f32 %v1789, %v1926
        %v1928 = vpop.f32.mrb[0].mxu0
        %1929 = vmatprep.mubr.f32.mxu0 %v1795
        %1930 = vmatmul.mubr.f32.gmra.mrb[0].mxu0 %v1736
        %v1931 = vpop.f32.mrb[0].mxu0
        %v1932 = vadd.f32 %v1789, %v1931
        %v1933 = vpop.f32.mrb[0].mxu0
        %1934 = vmatprep.mubr.f32.mxu0 %v1797
        %1935 = vmatmul.mubr.f32.gmra.mrb[0].mxu0 %v1737
        %v1936 = vpop.f32.mrb[0].mxu0
        %v1937 = vadd.f32 %v1789, %v1936
        %v1938 = vpop.f32.mrb[0].mxu0
        %1939 = vmatprep.mubr.f32.mxu0 %v1799
        %1940 = vmatmul.mubr.f32.gmra.mrb[0].mxu0 %v1738
        %v1941 = vpop.f32.mrb[0].mxu0
        %v1942 = vadd.f32 %v1789, %v1941
        %v1943 = vpop.f32.mrb[0].mxu0
        %1944 = vmatprep.mubr.f32.mxu0 %v1801
        %1945 = vmatmul.mubr.f32.gmra.mrb[0].mxu0 %v1739
        %v1946 = vpop.f32.mrb[0].mxu0
        %v1947 = vadd.f32 %v1789, %v1946
        %v1948 = vpop.f32.mrb[0].mxu0
        %1949 = vmatprep.mubr.f32.mxu0 %v1803
        %1950 = vmatmul.mubr.f32.gmra.mrb[0].mxu0 %v1740
        %v1951 = vpop.f32.mrb[0].mxu0
        %v1952 = vadd.f32 %v1789, %v1951
        %v1953 = vpop.f32.mrb[0].mxu0
        %1954 = vmatprep.mubr.f32.mxu0 %v1805
        %1955 = vmatmul.mubr.f32.gmra.mrb[0].mxu0 %v1741
        %v1956 = vpop.f32.mrb[0].mxu0
        %v1957 = vadd.f32 %v1789, %v1956
        %v1958 = vpop.f32.mrb[0].mxu0
        %1959 = vmatprep.mubr.f32.mxu0 %v1807
        %1960 = vmatmul.mubr.f32.gmra.mrb[0].mxu0 %v1742
        %v1961 = vpop.f32.mrb[0].mxu0
        %v1962 = vadd.f32 %v1789, %v1961
        %v1963 = vpop.f32.mrb[0].mxu0
        %1964 = vmatprep.mubr.f32.mxu0 %v1809
        %1965 = vmatmul.mubr.f32.gmra.mrb[0].mxu0 %v1743
        %v1966 = vpop.f32.mrb[0].mxu0
        %v1967 = vadd.f32 %v1789, %v1966
        %v1968 = vpop.f32.mrb[0].mxu0
        %1969 = vmatprep.mubr.f32.mxu0 %v1811
        %1970 = vmatmul.mubr.f32.gmra.mrb[0].mxu0 %v1744
        %v1971 = vpop.f32.mrb[0].mxu0
        %v1972 = vadd.f32 %v1789, %v1971
        %v1973 = vpop.f32.mrb[0].mxu0
        %1974 = vmatprep.mubr.f32.mxu0 %v1813
        %1975 = vmatmul.mubr.f32.gmra.mrb[0].mxu0 %v1745
        %v1976 = vpop.f32.mrb[0].mxu0
        %v1977 = vadd.f32 %v1789, %v1976
        %v1978 = vpop.f32.mrb[0].mxu0
        %1979 = vmatprep.mubr.f32.mxu0 %v1815
        %1980 = vmatmul.mubr.f32.gmra.mrb[0].mxu0 %v1746
        %v1981 = vpop.f32.mrb[0].mxu0
        %v1982 = vadd.f32 %v1789, %v1981
        %v1983 = vpop.f32.mrb[0].mxu0
        %1984 = vmatprep.mubr.f32.mxu0 %v1817
        %1985 = vmatmul.mubr.f32.gmra.mrb[0].mxu0 %v1747
        %v1986 = vpop.f32.mrb[0].mxu0
        %v1987 = vadd.f32 %v1789, %v1986
        %v1988 = vpop.f32.mrb[0].mxu0
        %1989 = vmatprep.mubr.f32.mxu0 %v1819
        %1990 = vmatmul.mubr.f32.gmra.mrb[0].mxu0 %v1748
        %v1991 = vpop.f32.mrb[0].mxu0
        %v1992 = vadd.f32 %v1789, %v1991
        %v1993 = vpop.f32.mrb[0].mxu0
        %1994 = vmatprep.mubr.f32.mxu0 %v1821
        %1995 = vmatmul.mubr.f32.gmra.mrb[0].mxu0 %v1749
        %v1996 = vpop.f32.mrb[0].mxu0
        %v1997 = vadd.f32 %v1789, %v1996
        %v1998 = vpop.f32.mrb[0].mxu0
        %1999 = vmatprep.mubr.f32.mxu0 %v1823
        %2000 = vmatmul.mubr.f32.gmra.mrb[0].mxu0 %v1750
        %v2001 = vpop.f32.mrb[0].mxu0
        %v2002 = vadd.f32 %v1789, %v2001
        %v2003 = vpop.f32.mrb[0].mxu0
        %2004 = vmatprep.mubr.f32.mxu0 %v1825
        %2005 = vmatmul.mubr.f32.gmra.mrb[0].mxu0 %v1751
        %v2006 = vpop.f32.mrb[0].mxu0
        %v2007 = vadd.f32 %v1789, %v2006
        %v2008 = vpop.f32.mrb[0].mxu0
        %2009 = vmatprep.mubr.f32.mxu0 %v1827
        %2010 = vmatmul.mubr.f32.gmra.mrb[0].mxu0 %v1752
        %v2011 = vpop.f32.mrb[0].mxu0
        %v2012 = vadd.f32 %v1789, %v2011
        %v2013 = vpop.f32.mrb[0].mxu0
        %2014 = vmatprep.mubr.f32.mxu0 %v1829
        %2015 = vmatmul.mubr.f32.gmra.mrb[0].mxu0 %v1753
        %v2016 = vpop.f32.mrb[0].mxu0
        %v2017 = vadd.f32 %v1789, %v2016
        %v2018 = vpop.f32.mrb[0].mxu0
        %2019 = vmatprep.mubr.f32.mxu0 %v1831
        %2020 = vmatmul.mubr.f32.gmra.mrb[0].mxu0 %v1754
        %v2021 = vpop.f32.mrb[0].mxu0
        %v2022 = vadd.f32 %v1789, %v2021
        %v2023 = vpop.f32.mrb[0].mxu0
        %2024 = vmatprep.mubr.f32.mxu0 %v1833
        %2025 = vmatmul.mubr.f32.gmra.mrb[0].mxu0 %v1755
        %v2026 = vpop.f32.mrb[0].mxu0
        %v2027 = vadd.f32 %v1789, %v2026
        %v2028 = vpop.f32.mrb[0].mxu0
        %2029 = vmatprep.mubr.f32.mxu0 %v1835
        %2030 = vmatmul.mubr.f32.gmra.mrb[0].mxu0 %v1756
        %v2031 = vpop.f32.mrb[0].mxu0
        %v2032 = vadd.f32 %v1789, %v2031
        %v2033 = vpop.f32.mrb[0].mxu0
        %2034 = vmatprep.mubr.f32.mxu0 %v1837
        %2035 = vmatmul.mubr.f32.gmra.mrb[0].mxu0 %v1757
        %v2036 = vpop.f32.mrb[0].mxu0
        %v2037 = vadd.f32 %v1789, %v2036
        %v2038 = vpop.f32.mrb[0].mxu0
        %2039 = vmatprep.mubr.f32.mxu0 %v1839
        %2040 = vmatmul.mubr.f32.gmra.mrb[0].mxu0 %v1758
        %v2041 = vpop.f32.mrb[0].mxu0
        %v2042 = vadd.f32 %v1789, %v2041
        %v2043 = vpop.f32.mrb[0].mxu0
        %2044 = vmatprep.mubr.f32.mxu0 %v1841
        %2045 = vmatmul.mubr.f32.gmra.mrb[0].mxu0 %v1759
        %v2046 = vpop.f32.mrb[0].mxu0
        %v2047 = vadd.f32 %v1789, %v2046
        %v2048 = vpop.f32.mrb[0].mxu0
        %2049 = vmatprep.mubr.f32.mxu0 %v1843
        %2050 = vmatmul.mubr.f32.gmra.mrb[0].mxu0 %v1760
        %v2051 = vpop.f32.mrb[0].mxu0
        %v2052 = vadd.f32 %v1789, %v2051
        %v2053 = vpop.f32.mrb[0].mxu0
        %2054 = vmatprep.mubr.f32.mxu0 %v1845
        %2055 = vmatmul.mubr.f32.gmra.mrb[0].mxu0 %v1761
        %v2056 = vpop.f32.mrb[0].mxu0
        %v2057 = vadd.f32 %v1789, %v2056
        %v2058 = vpop.f32.mrb[0].mxu0
        %2059 = vmatprep.mubr.f32.mxu0 %v1847
        %2060 = vmatmul.mubr.f32.gmra.mrb[0].mxu0 %v1762
        %v2061 = vpop.f32.mrb[0].mxu0
        %v2062 = vadd.f32 %v1789, %v2061
        %v2063 = vpop.f32.mrb[0].mxu0
        %2064 = vmatprep.mubr.f32.mxu0 %v1849
        %2065 = vmatmul.mubr.f32.gmra.mrb[0].mxu0 %v1763
        %v2066 = vpop.f32.mrb[0].mxu0
        %v2067 = vadd.f32 %v1789, %v2066
        %v2068 = vpop.f32.mrb[0].mxu0
        %2069 = vmatprep.mubr.f32.mxu0 %v1851
        %2070 = vmatmul.mubr.f32.gmra.mrb[0].mxu0 %v1764
        %v2071 = vpop.f32.mrb[0].mxu0
        %v2072 = vadd.f32 %v1789, %v2071
        %v2073 = vpop.f32.mrb[0].mxu0
        %2074 = vmatprep.mubr.f32.mxu0 %v1853
        %2075 = vmatmul.mubr.f32.gmra.mrb[0].mxu0 %v1765
        %v2076 = vpop.f32.mrb[0].mxu0
        %v2077 = vadd.f32 %v1789, %v2076
        %v2078 = vpop.f32.mrb[0].mxu0
        %2079 = vdwg.mxu0
        %vm2080 = vcmask 64512
        %2081 = vst.msk [vmem:[#allocation3] sm:$0xff] %vm2080, 0.0
        %2082 = vst.msk [vmem:[#allocation3 + $0x8] sm:$0xff] %vm2080, 0.0
        %vm2083 = vcmask 58368
        %2084 = vst.msk [vmem:[#allocation3 + $0x10] sm:$0x3] %vm2083, 0.0
        %s2085 = scalar_lea.vmem [#allocation3], 408
        %2086 = vst.msk [vmem:[%s2085] sm:$0xff] %vm2080, 0.0
        %2087 = vst.msk [vmem:[%s2085 + $0x8] sm:$0xff] %vm2080, 0.0
        %2088 = vst.msk [vmem:[%s2085 + $0x10] sm:$0x3] %vm2083, 0.0
        %vm2089 = vcmask 57344
        %2090 = vst.msk [vmem:[#allocation3] sm:$0x1] %vm2089, 0.0
        %2091 = vst.msk [vmem:[#allocation3 + $0x18] sm:$0x1] %vm2089, 0.0
        %2092 = vst.msk [vmem:[#allocation3 + $0x30] sm:$0x1] %vm2089, 0.0
        %2093 = vst.msk [vmem:[#allocation3 + $0x48] sm:$0x1] %vm2089, 0.0
        %2094 = vst.msk [vmem:[#allocation3 + $0x60] sm:$0x1] %vm2089, 0.0
        %2095 = vst.msk [vmem:[#allocation3 + $0x78] sm:$0x1] %vm2089, 0.0
        %2096 = vst.msk [vmem:[#allocation3 + $0x90] sm:$0x1] %vm2089, 0.0
        %2097 = vst.msk [vmem:[#allocation3 + $0xa8] sm:$0x1] %vm2089, 0.0
        %2098 = vst.msk [vmem:[#allocation3 + $0xc0] sm:$0x1] %vm2089, 0.0
        %2099 = vst.msk [vmem:[#allocation3 + $0xd8] sm:$0x1] %vm2089, 0.0
        %2100 = vst.msk [vmem:[#allocation3 + $0xf0] sm:$0x1] %vm2089, 0.0
        %2101 = vst.msk [vmem:[#allocation3 + $0x108] sm:$0x1] %vm2089, 0.0
        %2102 = vst.msk [vmem:[#allocation3 + $0x120] sm:$0x1] %vm2089, 0.0
        %2103 = vst.msk [vmem:[#allocation3 + $0x138] sm:$0x1] %vm2089, 0.0
        %2104 = vst.msk [vmem:[#allocation3 + $0x150] sm:$0x1] %vm2089, 0.0
        %2105 = vst.msk [vmem:[#allocation3 + $0x168] sm:$0x1] %vm2089, 0.0
        %2106 = vst.msk [vmem:[#allocation3 + $0x180] sm:$0x1] %vm2089, 0.0
        %2107 = vst.msk [vmem:[#allocation3 + $0x198] sm:$0x1] %vm2089, 0.0
        %2108 = vst.msk [vmem:[#allocation3 + $0x11] sm:$0x1] %vm2089, 0.0
        %2109 = vst.msk [vmem:[#allocation3 + $0x29] sm:$0x1] %vm2089, 0.0
        %2110 = vst.msk [vmem:[#allocation3 + $0x41] sm:$0x1] %vm2089, 0.0
        %2111 = vst.msk [vmem:[#allocation3 + $0x59] sm:$0x1] %vm2089, 0.0
        %2112 = vst.msk [vmem:[#allocation3 + $0x71] sm:$0x1] %vm2089, 0.0
        %2113 = vst.msk [vmem:[#allocation3 + $0x89] sm:$0x1] %vm2089, 0.0
        %2114 = vst.msk [vmem:[#allocation3 + $0xa1] sm:$0x1] %vm2089, 0.0
        %2115 = vst.msk [vmem:[#allocation3 + $0xb9] sm:$0x1] %vm2089, 0.0
        %2116 = vst.msk [vmem:[#allocation3 + $0xd1] sm:$0x1] %vm2089, 0.0
        %2117 = vst.msk [vmem:[#allocation3 + $0xe9] sm:$0x1] %vm2089, 0.0
        %2118 = vst.msk [vmem:[#allocation3 + $0x101] sm:$0x1] %vm2089, 0.0
        %2119 = vst.msk [vmem:[#allocation3 + $0x119] sm:$0x1] %vm2089, 0.0
        %2120 = vst.msk [vmem:[#allocation3 + $0x131] sm:$0x1] %vm2089, 0.0
        %2121 = vst.msk [vmem:[#allocation3 + $0x149] sm:$0x1] %vm2089, 0.0
        %2122 = vst.msk [vmem:[#allocation3 + $0x161] sm:$0x1] %vm2089, 0.0
        %2123 = vst.msk [vmem:[#allocation3 + $0x179] sm:$0x1] %vm2089, 0.0
        %2124 = vst.msk [vmem:[#allocation3 + $0x191] sm:$0x1] %vm2089, 0.0
        %2125 = vst.msk [vmem:[#allocation3 + $0x1a9] sm:$0x1] %vm2089, 0.0
        %vm2126 = vcmp.gt.f32.partialorder %v1922, 0.0
        %vm2127 = vcmp.gt.f32.partialorder %v1927, 0.0
        %vm2128 = vcmp.gt.f32.partialorder %v1932, 0.0
        %vm2129 = vcmp.gt.f32.partialorder %v1937, 0.0
        %vm2130 = vcmp.gt.f32.partialorder %v1942, 0.0
        %vm2131 = vcmp.gt.f32.partialorder %v1947, 0.0
        %vm2132 = vcmp.gt.f32.partialorder %v1952, 0.0
        %vm2133 = vcmp.gt.f32.partialorder %v1957, 0.0
        %vm2134 = vcmp.gt.f32.partialorder %v1962, 0.0
        %vm2135 = vcmp.gt.f32.partialorder %v1967, 0.0
        %vm2136 = vcmp.gt.f32.partialorder %v1972, 0.0
        %vm2137 = vcmp.gt.f32.partialorder %v1977, 0.0
        %vm2138 = vcmp.gt.f32.partialorder %v1982, 0.0
        %vm2139 = vcmp.gt.f32.partialorder %v1987, 0.0
        %vm2140 = vcmp.gt.f32.partialorder %v1992, 0.0
        %vm2141 = vcmp.gt.f32.partialorder %v1997, 0.0
        %vm2142 = vcmp.gt.f32.partialorder %v2002, 0.0
        %vm2143 = vcmp.gt.f32.partialorder %v2007, 0.0
        %vm2144 = vcmp.gt.f32.partialorder %v2012, 0.0
        %vm2145 = vcmp.gt.f32.partialorder %v2017, 0.0
        %vm2146 = vcmp.gt.f32.partialorder %v2022, 0.0
        %vm2147 = vcmp.gt.f32.partialorder %v2027, 0.0
        %vm2148 = vcmp.gt.f32.partialorder %v2032, 0.0
        %vm2149 = vcmp.gt.f32.partialorder %v2037, 0.0
        %vm2150 = vcmp.gt.f32.partialorder %v2042, 0.0
        %vm2151 = vcmp.gt.f32.partialorder %v2047, 0.0
        %vm2152 = vcmp.gt.f32.partialorder %v2052, 0.0
        %vm2153 = vcmp.gt.f32.partialorder %v2057, 0.0
        %vm2154 = vcmp.gt.f32.partialorder %v2062, 0.0
        %vm2155 = vcmp.gt.f32.partialorder %v2067, 0.0
        %vm2156 = vcmp.gt.f32.partialorder %v2072, 0.0
        %vm2157 = vcmp.gt.f32.partialorder %v2077, 0.0
        %v2158 = vmul.f32 %v1922, 0.2
        %v2159 = vmul.f32 %v1927, 0.2
        %v2160 = vmul.f32 %v1932, 0.2
        %v2161 = vmul.f32 %v1937, 0.2
        %v2162 = vmul.f32 %v1942, 0.2
        %v2163 = vmul.f32 %v1947, 0.2
        %v2164 = vmul.f32 %v1952, 0.2
        %v2165 = vmul.f32 %v1957, 0.2
        %v2166 = vmul.f32 %v1962, 0.2
        %v2167 = vmul.f32 %v1967, 0.2
        %v2168 = vmul.f32 %v1972, 0.2
        %v2169 = vmul.f32 %v1977, 0.2
        %v2170 = vmul.f32 %v1982, 0.2
        %v2171 = vmul.f32 %v1987, 0.2
        %v2172 = vmul.f32 %v1992, 0.2
        %v2173 = vmul.f32 %v1997, 0.2
        %v2174 = vmul.f32 %v2002, 0.2
        %v2175 = vmul.f32 %v2007, 0.2
        %v2176 = vmul.f32 %v2012, 0.2
        %v2177 = vmul.f32 %v2017, 0.2
        %v2178 = vmul.f32 %v2022, 0.2
        %v2179 = vmul.f32 %v2027, 0.2
        %v2180 = vmul.f32 %v2032, 0.2
        %v2181 = vmul.f32 %v2037, 0.2
        %v2182 = vmul.f32 %v2042, 0.2
        %v2183 = vmul.f32 %v2047, 0.2
        %v2184 = vmul.f32 %v2052, 0.2
        %v2185 = vmul.f32 %v2057, 0.2
        %v2186 = vmul.f32 %v2062, 0.2
        %v2187 = vmul.f32 %v2067, 0.2
        %v2188 = vmul.f32 %v2072, 0.2
        %v2189 = vmul.f32 %v2077, 0.2
        %v2190 = vsel %vm2126, %v1922, %v2158
        %v2191 = vsel %vm2127, %v1927, %v2159
        %v2192 = vsel %vm2128, %v1932, %v2160
        %v2193 = vsel %vm2129, %v1937, %v2161
        %v2194 = vsel %vm2130, %v1942, %v2162
        %v2195 = vsel %vm2131, %v1947, %v2163
        %v2196 = vsel %vm2132, %v1952, %v2164
        %v2197 = vsel %vm2133, %v1957, %v2165
        %v2198 = vsel %vm2134, %v1962, %v2166
        %v2199 = vsel %vm2135, %v1967, %v2167
        %v2200 = vsel %vm2136, %v1972, %v2168
        %v2201 = vsel %vm2137, %v1977, %v2169
        %v2202 = vsel %vm2138, %v1982, %v2170
        %v2203 = vsel %vm2139, %v1987, %v2171
        %v2204 = vsel %vm2140, %v1992, %v2172
        %v2205 = vsel %vm2141, %v1997, %v2173
        %v2206 = vsel %vm2142, %v2002, %v2174
        %v2207 = vsel %vm2143, %v2007, %v2175
        %v2208 = vsel %vm2144, %v2012, %v2176
        %v2209 = vsel %vm2145, %v2017, %v2177
        %v2210 = vsel %vm2146, %v2022, %v2178
        %v2211 = vsel %vm2147, %v2027, %v2179
        %v2212 = vsel %vm2148, %v2032, %v2180
        %v2213 = vsel %vm2149, %v2037, %v2181
        %v2214 = vsel %vm2150, %v2042, %v2182
        %v2215 = vsel %vm2151, %v2047, %v2183
        %v2216 = vsel %vm2152, %v2052, %v2184
        %v2217 = vsel %vm2153, %v2057, %v2185
        %v2218 = vsel %vm2154, %v2062, %v2186
        %v2219 = vsel %vm2155, %v2067, %v2187
        %v2220 = vsel %vm2156, %v2072, %v2188
        %v2221 = vsel %vm2157, %v2077, %v2189
        %s2222 = scalar_lea.vmem [#allocation3], 24
        %2223 = vst.msk [vmem:[%s2222 + $0x1] sm:$0xff] %vm2080, %v2190
        %2224 = vst.msk [vmem:[%s2222 + $0x9] sm:$0xff] %vm2080, %v2191
        %2225 = vst.msk [vmem:[%s2222 + $0x19] sm:$0xff] %vm2080, %v2192
        %2226 = vst.msk [vmem:[%s2222 + $0x21] sm:$0xff] %vm2080, %v2193
        %2227 = vst.msk [vmem:[%s2222 + $0x31] sm:$0xff] %vm2080, %v2194
        %2228 = vst.msk [vmem:[%s2222 + $0x39] sm:$0xff] %vm2080, %v2195
        %2229 = vst.msk [vmem:[%s2222 + $0x49] sm:$0xff] %vm2080, %v2196
        %2230 = vst.msk [vmem:[%s2222 + $0x51] sm:$0xff] %vm2080, %v2197
        %2231 = vst.msk [vmem:[%s2222 + $0x61] sm:$0xff] %vm2080, %v2198
        %2232 = vst.msk [vmem:[%s2222 + $0x69] sm:$0xff] %vm2080, %v2199
        %2233 = vst.msk [vmem:[%s2222 + $0x79] sm:$0xff] %vm2080, %v2200
        %2234 = vst.msk [vmem:[%s2222 + $0x81] sm:$0xff] %vm2080, %v2201
        %2235 = vst.msk [vmem:[%s2222 + $0x91] sm:$0xff] %vm2080, %v2202
        %2236 = vst.msk [vmem:[%s2222 + $0x99] sm:$0xff] %vm2080, %v2203
        %2237 = vst.msk [vmem:[%s2222 + $0xa9] sm:$0xff] %vm2080, %v2204
        %2238 = vst.msk [vmem:[%s2222 + $0xb1] sm:$0xff] %vm2080, %v2205
        %2239 = vst.msk [vmem:[%s2222 + $0xc1] sm:$0xff] %vm2080, %v2206
        %2240 = vst.msk [vmem:[%s2222 + $0xc9] sm:$0xff] %vm2080, %v2207
        %2241 = vst.msk [vmem:[%s2222 + $0xd9] sm:$0xff] %vm2080, %v2208
        %2242 = vst.msk [vmem:[%s2222 + $0xe1] sm:$0xff] %vm2080, %v2209
        %2243 = vst.msk [vmem:[%s2222 + $0xf1] sm:$0xff] %vm2080, %v2210
        %2244 = vst.msk [vmem:[%s2222 + $0xf9] sm:$0xff] %vm2080, %v2211
        %2245 = vst.msk [vmem:[%s2222 + $0x109] sm:$0xff] %vm2080, %v2212
        %2246 = vst.msk [vmem:[%s2222 + $0x111] sm:$0xff] %vm2080, %v2213
        %2247 = vst.msk [vmem:[%s2222 + $0x121] sm:$0xff] %vm2080, %v2214
        %2248 = vst.msk [vmem:[%s2222 + $0x129] sm:$0xff] %vm2080, %v2215
        %2249 = vst.msk [vmem:[%s2222 + $0x139] sm:$0xff] %vm2080, %v2216
        %2250 = vst.msk [vmem:[%s2222 + $0x141] sm:$0xff] %vm2080, %v2217
        %2251 = vst.msk [vmem:[%s2222 + $0x151] sm:$0xff] %vm2080, %v2218
        %2252 = vst.msk [vmem:[%s2222 + $0x159] sm:$0xff] %vm2080, %v2219
        %2253 = vst.msk [vmem:[%s2222 + $0x169] sm:$0xff] %vm2080, %v2220
        %2254 = vst.msk [vmem:[%s2222 + $0x171] sm:$0xff] %vm2080, %v2221
        %v2255 = vld [vmem:[#allocation3] sm:$0xff]
        %v2256 = vld [vmem:[#allocation3 + $0x8] sm:$0xff]
        %v2257 = vld [vmem:[#allocation3 + $0x10] sm:$0x3]
        %v2258 = vld [vmem:[#allocation3 + $0x18] sm:$0xff]
        %v2259 = vld [vmem:[#allocation3 + $0x20] sm:$0xff]
        %v2260 = vld [vmem:[#allocation3 + $0x28] sm:$0x3]
        %v2261 = vld [vmem:[#allocation3 + $0x30] sm:$0xff]
        %v2262 = vld [vmem:[#allocation3 + $0x38] sm:$0xff]
        %v2263 = vld [vmem:[#allocation3 + $0x40] sm:$0x3]
        %v2264 = vld [vmem:[#allocation3 + $0x48] sm:$0xff]
        %v2265 = vld [vmem:[#allocation3 + $0x50] sm:$0xff]
        %v2266 = vld [vmem:[#allocation3 + $0x58] sm:$0x3]
        %v2267 = vld [vmem:[#allocation3 + $0x60] sm:$0xff]
        %v2268 = vld [vmem:[#allocation3 + $0x68] sm:$0xff]
        %v2269 = vld [vmem:[#allocation3 + $0x70] sm:$0x3]
        %v2270 = vld [vmem:[#allocation3 + $0x78] sm:$0xff]
        %v2271 = vld [vmem:[#allocation3 + $0x80] sm:$0xff]
        %v2272 = vld [vmem:[#allocation3 + $0x88] sm:$0x3]
        %v2273 = vld [vmem:[#allocation3 + $0x90] sm:$0xff]
        %v2274 = vld [vmem:[#allocation3 + $0x98] sm:$0xff]
        %v2275 = vld [vmem:[#allocation3 + $0xa0] sm:$0x3]
        %v2276 = vld [vmem:[#allocation3 + $0xa8] sm:$0xff]
        %v2277 = vld [vmem:[#allocation3 + $0xb0] sm:$0xff]
        %v2278 = vld [vmem:[#allocation3 + $0xb8] sm:$0x3]
        %v2279 = vld [vmem:[#allocation3 + $0xc0] sm:$0xff]
        %v2280 = vld [vmem:[#allocation3 + $0xc8] sm:$0xff]
        %v2281 = vld [vmem:[#allocation3 + $0xd0] sm:$0x3]
        %v2282 = vld [vmem:[#allocation3 + $0xd8] sm:$0xff]
        %v2283 = vld [vmem:[#allocation3 + $0xe0] sm:$0xff]
        %v2284 = vld [vmem:[#allocation3 + $0xe8] sm:$0x3]
        %v2285 = vld [vmem:[#allocation3 + $0xf0] sm:$0xff]
        %v2286 = vld [vmem:[#allocation3 + $0xf8] sm:$0xff]
        %v2287 = vld [vmem:[#allocation3 + $0x100] sm:$0x3]
        %v2288 = vld [vmem:[#allocation3 + $0x108] sm:$0xff]
        %v2289 = vld [vmem:[#allocation3 + $0x110] sm:$0xff]
        %v2290 = vld [vmem:[#allocation3 + $0x118] sm:$0x3]
        %v2291 = vld [vmem:[#allocation3 + $0x120] sm:$0xff]
        %v2292 = vld [vmem:[#allocation3 + $0x128] sm:$0xff]
        %v2293 = vld [vmem:[#allocation3 + $0x130] sm:$0x3]
        %v2294 = vld [vmem:[#allocation3 + $0x138] sm:$0xff]
        %v2295 = vld [vmem:[#allocation3 + $0x140] sm:$0xff]
        %v2296 = vld [vmem:[#allocation3 + $0x148] sm:$0x3]
        %v2297 = vld [vmem:[#allocation3 + $0x150] sm:$0xff]
        %v2298 = vld [vmem:[#allocation3 + $0x158] sm:$0xff]
        %v2299 = vld [vmem:[#allocation3 + $0x160] sm:$0x3]
        %v2300 = vld [vmem:[#allocation3 + $0x168] sm:$0xff]
        %v2301 = vld [vmem:[#allocation3 + $0x170] sm:$0xff]
        %v2302 = vld [vmem:[#allocation3 + $0x178] sm:$0x3]
        %v2303 = vld [vmem:[#allocation3 + $0x180] sm:$0xff]
        %v2304 = vld [vmem:[#allocation3 + $0x188] sm:$0xff]
        %v2305 = vld [vmem:[#allocation3 + $0x190] sm:$0x3]
        %v2306 = vld [vmem:[#allocation3 + $0x198] sm:$0xff]
        %v2307 = vld [vmem:[#allocation3 + $0x1a0] sm:$0xff]
        %v2308 = vld [vmem:[#allocation3 + $0x1a8] sm:$0x3]
        %v2357 = vrot.slane %v2255, 1
        %v2358 = vrot.slane %v2256, 1
        %v2359 = vsel %vm676, %v2357, %v2358
        %v2360 = vrot.slane %v2257, 1
        %v2361 = vsel %vm676, %v2358, %v2360
        %v2362 = vrot.slane %v2258, 1
        %v2363 = vrot.slane %v2259, 1
        %v2364 = vsel %vm676, %v2362, %v2363
        %v2365 = vrot.slane %v2260, 1
        %v2366 = vsel %vm676, %v2363, %v2365
        %v2367 = vrot.slane %v2261, 1
        %v2368 = vrot.slane %v2262, 1
        %v2369 = vsel %vm676, %v2367, %v2368
        %v2370 = vrot.slane %v2263, 1
        %v2371 = vsel %vm676, %v2368, %v2370
        %v2372 = vrot.slane %v2264, 1
        %v2373 = vrot.slane %v2265, 1
        %v2374 = vsel %vm676, %v2372, %v2373
        %v2375 = vrot.slane %v2266, 1
        %v2376 = vsel %vm676, %v2373, %v2375
        %v2377 = vrot.slane %v2267, 1
        %v2378 = vrot.slane %v2268, 1
        %v2379 = vsel %vm676, %v2377, %v2378
        %v2380 = vrot.slane %v2269, 1
        %v2381 = vsel %vm676, %v2378, %v2380
        %v2382 = vrot.slane %v2270, 1
        %v2383 = vrot.slane %v2271, 1
        %v2384 = vsel %vm676, %v2382, %v2383
        %v2385 = vrot.slane %v2272, 1
        %v2386 = vsel %vm676, %v2383, %v2385
        %v2387 = vrot.slane %v2273, 1
        %v2388 = vrot.slane %v2274, 1
        %v2389 = vsel %vm676, %v2387, %v2388
        %v2390 = vrot.slane %v2275, 1
        %v2391 = vsel %vm676, %v2388, %v2390
        %v2392 = vrot.slane %v2276, 1
        %v2393 = vrot.slane %v2277, 1
        %v2394 = vsel %vm676, %v2392, %v2393
        %v2395 = vrot.slane %v2278, 1
        %v2396 = vsel %vm676, %v2393, %v2395
        %v2397 = vrot.slane %v2279, 1
        %v2398 = vrot.slane %v2280, 1
        %v2399 = vsel %vm676, %v2397, %v2398
        %v2400 = vrot.slane %v2281, 1
        %v2401 = vsel %vm676, %v2398, %v2400
        %v2402 = vrot.slane %v2282, 1
        %v2403 = vrot.slane %v2283, 1
        %v2404 = vsel %vm676, %v2402, %v2403
        %v2405 = vrot.slane %v2284, 1
        %v2406 = vsel %vm676, %v2403, %v2405
        %v2407 = vrot.slane %v2285, 1
        %v2408 = vrot.slane %v2286, 1
        %v2409 = vsel %vm676, %v2407, %v2408
        %v2410 = vrot.slane %v2287, 1
        %v2411 = vsel %vm676, %v2408, %v2410
        %v2412 = vrot.slane %v2288, 1
        %v2413 = vrot.slane %v2289, 1
        %v2414 = vsel %vm676, %v2412, %v2413
        %v2415 = vrot.slane %v2290, 1
        %v2416 = vsel %vm676, %v2413, %v2415
        %v2417 = vrot.slane %v2291, 1
        %v2418 = vrot.slane %v2292, 1
        %v2419 = vsel %vm676, %v2417, %v2418
        %v2420 = vrot.slane %v2293, 1
        %v2421 = vsel %vm676, %v2418, %v2420
        %v2422 = vrot.slane %v2294, 1
        %v2423 = vrot.slane %v2295, 1
        %v2424 = vsel %vm676, %v2422, %v2423
        %v2425 = vrot.slane %v2296, 1
        %v2426 = vsel %vm676, %v2423, %v2425
        %v2427 = vrot.slane %v2297, 1
        %v2428 = vrot.slane %v2298, 1
        %v2429 = vsel %vm676, %v2427, %v2428
        %v2430 = vrot.slane %v2299, 1
        %v2431 = vsel %vm676, %v2428, %v2430
        %v2432 = vrot.slane %v2300, 1
        %v2433 = vrot.slane %v2301, 1
        %v2434 = vsel %vm676, %v2432, %v2433
        %v2435 = vrot.slane %v2302, 1
        %v2436 = vsel %vm676, %v2433, %v2435
        %v2437 = vrot.slane %v2255, 2
        %v2438 = vrot.slane %v2256, 2
        %v2439 = vsel %vm757, %v2437, %v2438
        %v2440 = vrot.slane %v2257, 2
        %v2441 = vsel %vm757, %v2438, %v2440
        %v2442 = vrot.slane %v2258, 2
        %v2443 = vrot.slane %v2259, 2
        %v2444 = vsel %vm757, %v2442, %v2443
        %v2445 = vrot.slane %v2260, 2
        %v2446 = vsel %vm757, %v2443, %v2445
        %v2447 = vrot.slane %v2261, 2
        %v2448 = vrot.slane %v2262, 2
        %v2449 = vsel %vm757, %v2447, %v2448
        %v2450 = vrot.slane %v2263, 2
        %v2451 = vsel %vm757, %v2448, %v2450
        %v2452 = vrot.slane %v2264, 2
        %v2453 = vrot.slane %v2265, 2
        %v2454 = vsel %vm757, %v2452, %v2453
        %v2455 = vrot.slane %v2266, 2
        %v2456 = vsel %vm757, %v2453, %v2455
        %v2457 = vrot.slane %v2267, 2
        %v2458 = vrot.slane %v2268, 2
        %v2459 = vsel %vm757, %v2457, %v2458
        %v2460 = vrot.slane %v2269, 2
        %v2461 = vsel %vm757, %v2458, %v2460
        %v2462 = vrot.slane %v2270, 2
        %v2463 = vrot.slane %v2271, 2
        %v2464 = vsel %vm757, %v2462, %v2463
        %v2465 = vrot.slane %v2272, 2
        %v2466 = vsel %vm757, %v2463, %v2465
        %v2467 = vrot.slane %v2273, 2
        %v2468 = vrot.slane %v2274, 2
        %v2469 = vsel %vm757, %v2467, %v2468
        %v2470 = vrot.slane %v2275, 2
        %v2471 = vsel %vm757, %v2468, %v2470
        %v2472 = vrot.slane %v2276, 2
        %v2473 = vrot.slane %v2277, 2
        %v2474 = vsel %vm757, %v2472, %v2473
        %v2475 = vrot.slane %v2278, 2
        %v2476 = vsel %vm757, %v2473, %v2475
        %v2477 = vrot.slane %v2279, 2
        %v2478 = vrot.slane %v2280, 2
        %v2479 = vsel %vm757, %v2477, %v2478
        %v2480 = vrot.slane %v2281, 2
        %v2481 = vsel %vm757, %v2478, %v2480
        %v2482 = vrot.slane %v2282, 2
        %v2483 = vrot.slane %v2283, 2
        %v2484 = vsel %vm757, %v2482, %v2483
        %v2485 = vrot.slane %v2284, 2
        %v2486 = vsel %vm757, %v2483, %v2485
        %v2487 = vrot.slane %v2285, 2
        %v2488 = vrot.slane %v2286, 2
        %v2489 = vsel %vm757, %v2487, %v2488
        %v2490 = vrot.slane %v2287, 2
        %v2491 = vsel %vm757, %v2488, %v2490
        %v2492 = vrot.slane %v2288, 2
        %v2493 = vrot.slane %v2289, 2
        %v2494 = vsel %vm757, %v2492, %v2493
        %v2495 = vrot.slane %v2290, 2
        %v2496 = vsel %vm757, %v2493, %v2495
        %v2497 = vrot.slane %v2291, 2
        %v2498 = vrot.slane %v2292, 2
        %v2499 = vsel %vm757, %v2497, %v2498
        %v2500 = vrot.slane %v2293, 2
        %v2501 = vsel %vm757, %v2498, %v2500
        %v2502 = vrot.slane %v2294, 2
        %v2503 = vrot.slane %v2295, 2
        %v2504 = vsel %vm757, %v2502, %v2503
        %v2505 = vrot.slane %v2296, 2
        %v2506 = vsel %vm757, %v2503, %v2505
        %v2507 = vrot.slane %v2297, 2
        %v2508 = vrot.slane %v2298, 2
        %v2509 = vsel %vm757, %v2507, %v2508
        %v2510 = vrot.slane %v2299, 2
        %v2511 = vsel %vm757, %v2508, %v2510
        %v2512 = vrot.slane %v2300, 2
        %v2513 = vrot.slane %v2301, 2
        %v2514 = vsel %vm757, %v2512, %v2513
        %v2515 = vrot.slane %v2302, 2
        %v2516 = vsel %vm757, %v2513, %v2515
        %v2520 = vrot.slane %v2303, 1
        %v2521 = vrot.slane %v2304, 1
        %v2522 = vsel %vm676, %v2520, %v2521
        %v2523 = vrot.slane %v2305, 1
        %v2524 = vsel %vm676, %v2521, %v2523
        %v2525 = vrot.slane %v2303, 2
        %v2526 = vrot.slane %v2304, 2
        %v2527 = vsel %vm757, %v2525, %v2526
        %v2528 = vrot.slane %v2305, 2
        %v2529 = vsel %vm757, %v2526, %v2528
        %v2533 = vrot.slane %v2306, 1
        %v2534 = vrot.slane %v2307, 1
        %v2535 = vsel %vm676, %v2533, %v2534
        %v2536 = vrot.slane %v2308, 1
        %v2537 = vsel %vm676, %v2534, %v2536
        %v2538 = vrot.slane %v2306, 2
        %v2539 = vrot.slane %v2307, 2
        %v2540 = vsel %vm757, %v2538, %v2539
        %v2541 = vrot.slane %v2308, 2
        %v2542 = vsel %vm757, %v2539, %v2541
        %2543 = vrot.lane.b32.xlu0 %v2359, 8
        %v2544 = vpop.permute.xlu0 %2543
        %2545 = vrot.lane.b32.xlu0 %v2361, 8
        %v2546 = vpop.permute.xlu0 %2545
        %2547 = vrot.lane.b32.xlu0 %v2364, 8
        %v2548 = vpop.permute.xlu0 %2547
        %2549 = vrot.lane.b32.xlu0 %v2366, 8
        %v2550 = vpop.permute.xlu0 %2549
        %2551 = vrot.lane.b32.xlu0 %v2369, 8
        %v2552 = vpop.permute.xlu0 %2551
        %2553 = vrot.lane.b32.xlu0 %v2371, 8
        %v2554 = vpop.permute.xlu0 %2553
        %2555 = vrot.lane.b32.xlu0 %v2374, 8
        %v2556 = vpop.permute.xlu0 %2555
        %2557 = vrot.lane.b32.xlu0 %v2376, 8
        %v2558 = vpop.permute.xlu0 %2557
        %2559 = vrot.lane.b32.xlu0 %v2379, 8
        %v2560 = vpop.permute.xlu0 %2559
        %2561 = vrot.lane.b32.xlu0 %v2381, 8
        %v2562 = vpop.permute.xlu0 %2561
        %2563 = vrot.lane.b32.xlu0 %v2384, 8
        %v2564 = vpop.permute.xlu0 %2563
        %2565 = vrot.lane.b32.xlu0 %v2386, 8
        %v2566 = vpop.permute.xlu0 %2565
        %2567 = vrot.lane.b32.xlu0 %v2389, 8
        %v2568 = vpop.permute.xlu0 %2567
        %2569 = vrot.lane.b32.xlu0 %v2391, 8
        %v2570 = vpop.permute.xlu0 %2569
        %2571 = vrot.lane.b32.xlu0 %v2394, 8
        %v2572 = vpop.permute.xlu0 %2571
        %2573 = vrot.lane.b32.xlu0 %v2396, 8
        %v2574 = vpop.permute.xlu0 %2573
        %2575 = vrot.lane.b32.xlu0 %v2399, 8
        %v2576 = vpop.permute.xlu0 %2575
        %2577 = vrot.lane.b32.xlu0 %v2401, 8
        %v2578 = vpop.permute.xlu0 %2577
        %2579 = vrot.lane.b32.xlu0 %v2404, 8
        %v2580 = vpop.permute.xlu0 %2579
        %2581 = vrot.lane.b32.xlu0 %v2406, 8
        %v2582 = vpop.permute.xlu0 %2581
        %2583 = vrot.lane.b32.xlu0 %v2409, 8
        %v2584 = vpop.permute.xlu0 %2583
        %2585 = vrot.lane.b32.xlu0 %v2411, 8
        %v2586 = vpop.permute.xlu0 %2585
        %2587 = vrot.lane.b32.xlu0 %v2414, 8
        %v2588 = vpop.permute.xlu0 %2587
        %2589 = vrot.lane.b32.xlu0 %v2416, 8
        %v2590 = vpop.permute.xlu0 %2589
        %2591 = vrot.lane.b32.xlu0 %v2419, 8
        %v2592 = vpop.permute.xlu0 %2591
        %2593 = vrot.lane.b32.xlu0 %v2421, 8
        %v2594 = vpop.permute.xlu0 %2593
        %2595 = vrot.lane.b32.xlu0 %v2424, 8
        %v2596 = vpop.permute.xlu0 %2595
        %2597 = vrot.lane.b32.xlu0 %v2426, 8
        %v2598 = vpop.permute.xlu0 %2597
        %2599 = vrot.lane.b32.xlu0 %v2429, 8
        %v2600 = vpop.permute.xlu0 %2599
        %2601 = vrot.lane.b32.xlu0 %v2431, 8
        %v2602 = vpop.permute.xlu0 %2601
        %2603 = vrot.lane.b32.xlu0 %v2434, 8
        %v2604 = vpop.permute.xlu0 %2603
        %2605 = vrot.lane.b32.xlu0 %v2436, 8
        %v2606 = vpop.permute.xlu0 %2605
        %2639 = vrot.lane.b32.xlu0 %v2439, 16
        %v2640 = vpop.permute.xlu0 %2639
        %2641 = vrot.lane.b32.xlu0 %v2441, 16
        %v2642 = vpop.permute.xlu0 %2641
        %2643 = vrot.lane.b32.xlu0 %v2444, 16
        %v2644 = vpop.permute.xlu0 %2643
        %2645 = vrot.lane.b32.xlu0 %v2446, 16
        %v2646 = vpop.permute.xlu0 %2645
        %2647 = vrot.lane.b32.xlu0 %v2449, 16
        %v2648 = vpop.permute.xlu0 %2647
        %2649 = vrot.lane.b32.xlu0 %v2451, 16
        %v2650 = vpop.permute.xlu0 %2649
        %2651 = vrot.lane.b32.xlu0 %v2454, 16
        %v2652 = vpop.permute.xlu0 %2651
        %2653 = vrot.lane.b32.xlu0 %v2456, 16
        %v2654 = vpop.permute.xlu0 %2653
        %2655 = vrot.lane.b32.xlu0 %v2459, 16
        %v2656 = vpop.permute.xlu0 %2655
        %2657 = vrot.lane.b32.xlu0 %v2461, 16
        %v2658 = vpop.permute.xlu0 %2657
        %2659 = vrot.lane.b32.xlu0 %v2464, 16
        %v2660 = vpop.permute.xlu0 %2659
        %2661 = vrot.lane.b32.xlu0 %v2466, 16
        %v2662 = vpop.permute.xlu0 %2661
        %2663 = vrot.lane.b32.xlu0 %v2469, 16
        %v2664 = vpop.permute.xlu0 %2663
        %2665 = vrot.lane.b32.xlu0 %v2471, 16
        %v2666 = vpop.permute.xlu0 %2665
        %2667 = vrot.lane.b32.xlu0 %v2474, 16
        %v2668 = vpop.permute.xlu0 %2667
        %2669 = vrot.lane.b32.xlu0 %v2476, 16
        %v2670 = vpop.permute.xlu0 %2669
        %2671 = vrot.lane.b32.xlu0 %v2479, 16
        %v2672 = vpop.permute.xlu0 %2671
        %2673 = vrot.lane.b32.xlu0 %v2481, 16
        %v2674 = vpop.permute.xlu0 %2673
        %2675 = vrot.lane.b32.xlu0 %v2484, 16
        %v2676 = vpop.permute.xlu0 %2675
        %2677 = vrot.lane.b32.xlu0 %v2486, 16
        %v2678 = vpop.permute.xlu0 %2677
        %2679 = vrot.lane.b32.xlu0 %v2489, 16
        %v2680 = vpop.permute.xlu0 %2679
        %2681 = vrot.lane.b32.xlu0 %v2491, 16
        %v2682 = vpop.permute.xlu0 %2681
        %2683 = vrot.lane.b32.xlu0 %v2494, 16
        %v2684 = vpop.permute.xlu0 %2683
        %2685 = vrot.lane.b32.xlu0 %v2496, 16
        %v2686 = vpop.permute.xlu0 %2685
        %2687 = vrot.lane.b32.xlu0 %v2499, 16
        %v2688 = vpop.permute.xlu0 %2687
        %2689 = vrot.lane.b32.xlu0 %v2501, 16
        %v2690 = vpop.permute.xlu0 %2689
        %2691 = vrot.lane.b32.xlu0 %v2504, 16
        %v2692 = vpop.permute.xlu0 %2691
        %2693 = vrot.lane.b32.xlu0 %v2506, 16
        %v2694 = vpop.permute.xlu0 %2693
        %2695 = vrot.lane.b32.xlu0 %v2509, 16
        %v2696 = vpop.permute.xlu0 %2695
        %2697 = vrot.lane.b32.xlu0 %v2511, 16
        %v2698 = vpop.permute.xlu0 %2697
        %2699 = vrot.lane.b32.xlu0 %v2514, 16
        %v2700 = vpop.permute.xlu0 %2699
        %2701 = vrot.lane.b32.xlu0 %v2516, 16
        %v2702 = vpop.permute.xlu0 %2701
        %2735 = vrot.lane.b32.xlu0 %v2258, 24
        %v2736 = vpop.permute.xlu0 %2735
        %2737 = vrot.lane.b32.xlu0 %v2259, 24
        %v2738 = vpop.permute.xlu0 %2737
        %2739 = vrot.lane.b32.xlu0 %v2261, 24
        %v2740 = vpop.permute.xlu0 %2739
        %2741 = vrot.lane.b32.xlu0 %v2262, 24
        %v2742 = vpop.permute.xlu0 %2741
        %2743 = vrot.lane.b32.xlu0 %v2264, 24
        %v2744 = vpop.permute.xlu0 %2743
        %2745 = vrot.lane.b32.xlu0 %v2265, 24
        %v2746 = vpop.permute.xlu0 %2745
        %2747 = vrot.lane.b32.xlu0 %v2267, 24
        %v2748 = vpop.permute.xlu0 %2747
        %2749 = vrot.lane.b32.xlu0 %v2268, 24
        %v2750 = vpop.permute.xlu0 %2749
        %2751 = vrot.lane.b32.xlu0 %v2270, 24
        %v2752 = vpop.permute.xlu0 %2751
        %2753 = vrot.lane.b32.xlu0 %v2271, 24
        %v2754 = vpop.permute.xlu0 %2753
        %2755 = vrot.lane.b32.xlu0 %v2273, 24
        %v2756 = vpop.permute.xlu0 %2755
        %2757 = vrot.lane.b32.xlu0 %v2274, 24
        %v2758 = vpop.permute.xlu0 %2757
        %2759 = vrot.lane.b32.xlu0 %v2276, 24
        %v2760 = vpop.permute.xlu0 %2759
        %2761 = vrot.lane.b32.xlu0 %v2277, 24
        %v2762 = vpop.permute.xlu0 %2761
        %2763 = vrot.lane.b32.xlu0 %v2279, 24
        %v2764 = vpop.permute.xlu0 %2763
        %2765 = vrot.lane.b32.xlu0 %v2280, 24
        %v2766 = vpop.permute.xlu0 %2765
        %2767 = vrot.lane.b32.xlu0 %v2282, 24
        %v2768 = vpop.permute.xlu0 %2767
        %2769 = vrot.lane.b32.xlu0 %v2283, 24
        %v2770 = vpop.permute.xlu0 %2769
        %2771 = vrot.lane.b32.xlu0 %v2285, 24
        %v2772 = vpop.permute.xlu0 %2771
        %2773 = vrot.lane.b32.xlu0 %v2286, 24
        %v2774 = vpop.permute.xlu0 %2773
        %2775 = vrot.lane.b32.xlu0 %v2288, 24
        %v2776 = vpop.permute.xlu0 %2775
        %2777 = vrot.lane.b32.xlu0 %v2289, 24
        %v2778 = vpop.permute.xlu0 %2777
        %2779 = vrot.lane.b32.xlu0 %v2291, 24
        %v2780 = vpop.permute.xlu0 %2779
        %2781 = vrot.lane.b32.xlu0 %v2292, 24
        %v2782 = vpop.permute.xlu0 %2781
        %2783 = vrot.lane.b32.xlu0 %v2294, 24
        %v2784 = vpop.permute.xlu0 %2783
        %2785 = vrot.lane.b32.xlu0 %v2295, 24
        %v2786 = vpop.permute.xlu0 %2785
        %2787 = vrot.lane.b32.xlu0 %v2297, 24
        %v2788 = vpop.permute.xlu0 %2787
        %2789 = vrot.lane.b32.xlu0 %v2298, 24
        %v2790 = vpop.permute.xlu0 %2789
        %2791 = vrot.lane.b32.xlu0 %v2300, 24
        %v2792 = vpop.permute.xlu0 %2791
        %2793 = vrot.lane.b32.xlu0 %v2301, 24
        %v2794 = vpop.permute.xlu0 %2793
        %2795 = vrot.lane.b32.xlu0 %v2303, 24
        %v2796 = vpop.permute.xlu0 %2795
        %2797 = vrot.lane.b32.xlu0 %v2304, 24
        %v2798 = vpop.permute.xlu0 %2797
        %2831 = vrot.lane.b32.xlu0 %v2364, 32
        %v2832 = vpop.permute.xlu0 %2831
        %2833 = vrot.lane.b32.xlu0 %v2366, 32
        %v2834 = vpop.permute.xlu0 %2833
        %2835 = vrot.lane.b32.xlu0 %v2369, 32
        %v2836 = vpop.permute.xlu0 %2835
        %2837 = vrot.lane.b32.xlu0 %v2371, 32
        %v2838 = vpop.permute.xlu0 %2837
        %2839 = vrot.lane.b32.xlu0 %v2374, 32
        %v2840 = vpop.permute.xlu0 %2839
        %2841 = vrot.lane.b32.xlu0 %v2376, 32
        %v2842 = vpop.permute.xlu0 %2841
        %2843 = vrot.lane.b32.xlu0 %v2379, 32
        %v2844 = vpop.permute.xlu0 %2843
        %2845 = vrot.lane.b32.xlu0 %v2381, 32
        %v2846 = vpop.permute.xlu0 %2845
        %2847 = vrot.lane.b32.xlu0 %v2384, 32
        %v2848 = vpop.permute.xlu0 %2847
        %2849 = vrot.lane.b32.xlu0 %v2386, 32
        %v2850 = vpop.permute.xlu0 %2849
        %2851 = vrot.lane.b32.xlu0 %v2389, 32
        %v2852 = vpop.permute.xlu0 %2851
        %2853 = vrot.lane.b32.xlu0 %v2391, 32
        %v2854 = vpop.permute.xlu0 %2853
        %2855 = vrot.lane.b32.xlu0 %v2394, 32
        %v2856 = vpop.permute.xlu0 %2855
        %2857 = vrot.lane.b32.xlu0 %v2396, 32
        %v2858 = vpop.permute.xlu0 %2857
        %2859 = vrot.lane.b32.xlu0 %v2399, 32
        %v2860 = vpop.permute.xlu0 %2859
        %2861 = vrot.lane.b32.xlu0 %v2401, 32
        %v2862 = vpop.permute.xlu0 %2861
        %2863 = vrot.lane.b32.xlu0 %v2404, 32
        %v2864 = vpop.permute.xlu0 %2863
        %2865 = vrot.lane.b32.xlu0 %v2406, 32
        %v2866 = vpop.permute.xlu0 %2865
        %2867 = vrot.lane.b32.xlu0 %v2409, 32
        %v2868 = vpop.permute.xlu0 %2867
        %2869 = vrot.lane.b32.xlu0 %v2411, 32
        %v2870 = vpop.permute.xlu0 %2869
        %2871 = vrot.lane.b32.xlu0 %v2414, 32
        %v2872 = vpop.permute.xlu0 %2871
        %2873 = vrot.lane.b32.xlu0 %v2416, 32
        %v2874 = vpop.permute.xlu0 %2873
        %2875 = vrot.lane.b32.xlu0 %v2419, 32
        %v2876 = vpop.permute.xlu0 %2875
        %2877 = vrot.lane.b32.xlu0 %v2421, 32
        %v2878 = vpop.permute.xlu0 %2877
        %2879 = vrot.lane.b32.xlu0 %v2424, 32
        %v2880 = vpop.permute.xlu0 %2879
        %2881 = vrot.lane.b32.xlu0 %v2426, 32
        %v2882 = vpop.permute.xlu0 %2881
        %2883 = vrot.lane.b32.xlu0 %v2429, 32
        %v2884 = vpop.permute.xlu0 %2883
        %2885 = vrot.lane.b32.xlu0 %v2431, 32
        %v2886 = vpop.permute.xlu0 %2885
        %2887 = vrot.lane.b32.xlu0 %v2434, 32
        %v2888 = vpop.permute.xlu0 %2887
        %2889 = vrot.lane.b32.xlu0 %v2436, 32
        %v2890 = vpop.permute.xlu0 %2889
        %2891 = vrot.lane.b32.xlu0 %v2522, 32
        %v2892 = vpop.permute.xlu0 %2891
        %2893 = vrot.lane.b32.xlu0 %v2524, 32
        %v2894 = vpop.permute.xlu0 %2893
        %2927 = vrot.lane.b32.xlu0 %v2444, 40
        %v2928 = vpop.permute.xlu0 %2927
        %2929 = vrot.lane.b32.xlu0 %v2446, 40
        %v2930 = vpop.permute.xlu0 %2929
        %2931 = vrot.lane.b32.xlu0 %v2449, 40
        %v2932 = vpop.permute.xlu0 %2931
        %2933 = vrot.lane.b32.xlu0 %v2451, 40
        %v2934 = vpop.permute.xlu0 %2933
        %2935 = vrot.lane.b32.xlu0 %v2454, 40
        %v2936 = vpop.permute.xlu0 %2935
        %2937 = vrot.lane.b32.xlu0 %v2456, 40
        %v2938 = vpop.permute.xlu0 %2937
        %2939 = vrot.lane.b32.xlu0 %v2459, 40
        %v2940 = vpop.permute.xlu0 %2939
        %2941 = vrot.lane.b32.xlu0 %v2461, 40
        %v2942 = vpop.permute.xlu0 %2941
        %2943 = vrot.lane.b32.xlu0 %v2464, 40
        %v2944 = vpop.permute.xlu0 %2943
        %2945 = vrot.lane.b32.xlu0 %v2466, 40
        %v2946 = vpop.permute.xlu0 %2945
        %2947 = vrot.lane.b32.xlu0 %v2469, 40
        %v2948 = vpop.permute.xlu0 %2947
        %2949 = vrot.lane.b32.xlu0 %v2471, 40
        %v2950 = vpop.permute.xlu0 %2949
        %2951 = vrot.lane.b32.xlu0 %v2474, 40
        %v2952 = vpop.permute.xlu0 %2951
        %2953 = vrot.lane.b32.xlu0 %v2476, 40
        %v2954 = vpop.permute.xlu0 %2953
        %2955 = vrot.lane.b32.xlu0 %v2479, 40
        %v2956 = vpop.permute.xlu0 %2955
        %2957 = vrot.lane.b32.xlu0 %v2481, 40
        %v2958 = vpop.permute.xlu0 %2957
        %2959 = vrot.lane.b32.xlu0 %v2484, 40
        %v2960 = vpop.permute.xlu0 %2959
        %2961 = vrot.lane.b32.xlu0 %v2486, 40
        %v2962 = vpop.permute.xlu0 %2961
        %2963 = vrot.lane.b32.xlu0 %v2489, 40
        %v2964 = vpop.permute.xlu0 %2963
        %2965 = vrot.lane.b32.xlu0 %v2491, 40
        %v2966 = vpop.permute.xlu0 %2965
        %2967 = vrot.lane.b32.xlu0 %v2494, 40
        %v2968 = vpop.permute.xlu0 %2967
        %2969 = vrot.lane.b32.xlu0 %v2496, 40
        %v2970 = vpop.permute.xlu0 %2969
        %2971 = vrot.lane.b32.xlu0 %v2499, 40
        %v2972 = vpop.permute.xlu0 %2971
        %2973 = vrot.lane.b32.xlu0 %v2501, 40
        %v2974 = vpop.permute.xlu0 %2973
        %2975 = vrot.lane.b32.xlu0 %v2504, 40
        %v2976 = vpop.permute.xlu0 %2975
        %2977 = vrot.lane.b32.xlu0 %v2506, 40
        %v2978 = vpop.permute.xlu0 %2977
        %2979 = vrot.lane.b32.xlu0 %v2509, 40
        %v2980 = vpop.permute.xlu0 %2979
        %2981 = vrot.lane.b32.xlu0 %v2511, 40
        %v2982 = vpop.permute.xlu0 %2981
        %2983 = vrot.lane.b32.xlu0 %v2514, 40
        %v2984 = vpop.permute.xlu0 %2983
        %2985 = vrot.lane.b32.xlu0 %v2516, 40
        %v2986 = vpop.permute.xlu0 %2985
        %2987 = vrot.lane.b32.xlu0 %v2527, 40
        %v2988 = vpop.permute.xlu0 %2987
        %2989 = vrot.lane.b32.xlu0 %v2529, 40
        %v2990 = vpop.permute.xlu0 %2989
        %3023 = vrot.lane.b32.xlu0 %v2261, 48
        %v3024 = vpop.permute.xlu0 %3023
        %3025 = vrot.lane.b32.xlu0 %v2262, 48
        %v3026 = vpop.permute.xlu0 %3025
        %3027 = vrot.lane.b32.xlu0 %v2264, 48
        %v3028 = vpop.permute.xlu0 %3027
        %3029 = vrot.lane.b32.xlu0 %v2265, 48
        %v3030 = vpop.permute.xlu0 %3029
        %3031 = vrot.lane.b32.xlu0 %v2267, 48
        %v3032 = vpop.permute.xlu0 %3031
        %3033 = vrot.lane.b32.xlu0 %v2268, 48
        %v3034 = vpop.permute.xlu0 %3033
        %3035 = vrot.lane.b32.xlu0 %v2270, 48
        %v3036 = vpop.permute.xlu0 %3035
        %3037 = vrot.lane.b32.xlu0 %v2271, 48
        %v3038 = vpop.permute.xlu0 %3037
        %3039 = vrot.lane.b32.xlu0 %v2273, 48
        %v3040 = vpop.permute.xlu0 %3039
        %3041 = vrot.lane.b32.xlu0 %v2274, 48
        %v3042 = vpop.permute.xlu0 %3041
        %3043 = vrot.lane.b32.xlu0 %v2276, 48
        %v3044 = vpop.permute.xlu0 %3043
        %3045 = vrot.lane.b32.xlu0 %v2277, 48
        %v3046 = vpop.permute.xlu0 %3045
        %3047 = vrot.lane.b32.xlu0 %v2279, 48
        %v3048 = vpop.permute.xlu0 %3047
        %3049 = vrot.lane.b32.xlu0 %v2280, 48
        %v3050 = vpop.permute.xlu0 %3049
        %3051 = vrot.lane.b32.xlu0 %v2282, 48
        %v3052 = vpop.permute.xlu0 %3051
        %3053 = vrot.lane.b32.xlu0 %v2283, 48
        %v3054 = vpop.permute.xlu0 %3053
        %3055 = vrot.lane.b32.xlu0 %v2285, 48
        %v3056 = vpop.permute.xlu0 %3055
        %3057 = vrot.lane.b32.xlu0 %v2286, 48
        %v3058 = vpop.permute.xlu0 %3057
        %3059 = vrot.lane.b32.xlu0 %v2288, 48
        %v3060 = vpop.permute.xlu0 %3059
        %3061 = vrot.lane.b32.xlu0 %v2289, 48
        %v3062 = vpop.permute.xlu0 %3061
        %3063 = vrot.lane.b32.xlu0 %v2291, 48
        %v3064 = vpop.permute.xlu0 %3063
        %3065 = vrot.lane.b32.xlu0 %v2292, 48
        %v3066 = vpop.permute.xlu0 %3065
        %3067 = vrot.lane.b32.xlu0 %v2294, 48
        %v3068 = vpop.permute.xlu0 %3067
        %3069 = vrot.lane.b32.xlu0 %v2295, 48
        %v3070 = vpop.permute.xlu0 %3069
        %3071 = vrot.lane.b32.xlu0 %v2297, 48
        %v3072 = vpop.permute.xlu0 %3071
        %3073 = vrot.lane.b32.xlu0 %v2298, 48
        %v3074 = vpop.permute.xlu0 %3073
        %3075 = vrot.lane.b32.xlu0 %v2300, 48
        %v3076 = vpop.permute.xlu0 %3075
        %3077 = vrot.lane.b32.xlu0 %v2301, 48
        %v3078 = vpop.permute.xlu0 %3077
        %3079 = vrot.lane.b32.xlu0 %v2303, 48
        %v3080 = vpop.permute.xlu0 %3079
        %3081 = vrot.lane.b32.xlu0 %v2304, 48
        %v3082 = vpop.permute.xlu0 %3081
        %3083 = vrot.lane.b32.xlu0 %v2306, 48
        %v3084 = vpop.permute.xlu0 %3083
        %3085 = vrot.lane.b32.xlu0 %v2307, 48
        %v3086 = vpop.permute.xlu0 %3085
        %3119 = vrot.lane.b32.xlu0 %v2369, 56
        %v3120 = vpop.permute.xlu0 %3119
        %3121 = vrot.lane.b32.xlu0 %v2371, 56
        %v3122 = vpop.permute.xlu0 %3121
        %3123 = vrot.lane.b32.xlu0 %v2374, 56
        %v3124 = vpop.permute.xlu0 %3123
        %3125 = vrot.lane.b32.xlu0 %v2376, 56
        %v3126 = vpop.permute.xlu0 %3125
        %3127 = vrot.lane.b32.xlu0 %v2379, 56
        %v3128 = vpop.permute.xlu0 %3127
        %3129 = vrot.lane.b32.xlu0 %v2381, 56
        %v3130 = vpop.permute.xlu0 %3129
        %3131 = vrot.lane.b32.xlu0 %v2384, 56
        %v3132 = vpop.permute.xlu0 %3131
        %3133 = vrot.lane.b32.xlu0 %v2386, 56
        %v3134 = vpop.permute.xlu0 %3133
        %3135 = vrot.lane.b32.xlu0 %v2389, 56
        %v3136 = vpop.permute.xlu0 %3135
        %3137 = vrot.lane.b32.xlu0 %v2391, 56
        %v3138 = vpop.permute.xlu0 %3137
        %3139 = vrot.lane.b32.xlu0 %v2394, 56
        %v3140 = vpop.permute.xlu0 %3139
        %3141 = vrot.lane.b32.xlu0 %v2396, 56
        %v3142 = vpop.permute.xlu0 %3141
        %3143 = vrot.lane.b32.xlu0 %v2399, 56
        %v3144 = vpop.permute.xlu0 %3143
        %3145 = vrot.lane.b32.xlu0 %v2401, 56
        %v3146 = vpop.permute.xlu0 %3145
        %3147 = vrot.lane.b32.xlu0 %v2404, 56
        %v3148 = vpop.permute.xlu0 %3147
        %3149 = vrot.lane.b32.xlu0 %v2406, 56
        %v3150 = vpop.permute.xlu0 %3149
        %3151 = vrot.lane.b32.xlu0 %v2409, 56
        %v3152 = vpop.permute.xlu0 %3151
        %3153 = vrot.lane.b32.xlu0 %v2411, 56
        %v3154 = vpop.permute.xlu0 %3153
        %3155 = vrot.lane.b32.xlu0 %v2414, 56
        %v3156 = vpop.permute.xlu0 %3155
        %3157 = vrot.lane.b32.xlu0 %v2416, 56
        %v3158 = vpop.permute.xlu0 %3157
        %3159 = vrot.lane.b32.xlu0 %v2419, 56
        %v3160 = vpop.permute.xlu0 %3159
        %3161 = vrot.lane.b32.xlu0 %v2421, 56
        %v3162 = vpop.permute.xlu0 %3161
        %3163 = vrot.lane.b32.xlu0 %v2424, 56
        %v3164 = vpop.permute.xlu0 %3163
        %3165 = vrot.lane.b32.xlu0 %v2426, 56
        %v3166 = vpop.permute.xlu0 %3165
        %3167 = vrot.lane.b32.xlu0 %v2429, 56
        %v3168 = vpop.permute.xlu0 %3167
        %3169 = vrot.lane.b32.xlu0 %v2431, 56
        %v3170 = vpop.permute.xlu0 %3169
        %3171 = vrot.lane.b32.xlu0 %v2434, 56
        %v3172 = vpop.permute.xlu0 %3171
        %3173 = vrot.lane.b32.xlu0 %v2436, 56
        %v3174 = vpop.permute.xlu0 %3173
        %3175 = vrot.lane.b32.xlu0 %v2522, 56
        %v3176 = vpop.permute.xlu0 %3175
        %3177 = vrot.lane.b32.xlu0 %v2524, 56
        %v3178 = vpop.permute.xlu0 %3177
        %3179 = vrot.lane.b32.xlu0 %v2535, 56
        %v3180 = vpop.permute.xlu0 %3179
        %3181 = vrot.lane.b32.xlu0 %v2537, 56
        %v3182 = vpop.permute.xlu0 %3181
        %3215 = vrot.lane.b32.xlu0 %v2449, 64
        %v3216 = vpop.permute.xlu0 %3215
        %3217 = vrot.lane.b32.xlu0 %v2451, 64
        %v3218 = vpop.permute.xlu0 %3217
        %3219 = vrot.lane.b32.xlu0 %v2454, 64
        %v3220 = vpop.permute.xlu0 %3219
        %3221 = vrot.lane.b32.xlu0 %v2456, 64
        %v3222 = vpop.permute.xlu0 %3221
        %3223 = vrot.lane.b32.xlu0 %v2459, 64
        %v3224 = vpop.permute.xlu0 %3223
        %3225 = vrot.lane.b32.xlu0 %v2461, 64
        %v3226 = vpop.permute.xlu0 %3225
        %3227 = vrot.lane.b32.xlu0 %v2464, 64
        %v3228 = vpop.permute.xlu0 %3227
        %3229 = vrot.lane.b32.xlu0 %v2466, 64
        %v3230 = vpop.permute.xlu0 %3229
        %3231 = vrot.lane.b32.xlu0 %v2469, 64
        %v3232 = vpop.permute.xlu0 %3231
        %3233 = vrot.lane.b32.xlu0 %v2471, 64
        %v3234 = vpop.permute.xlu0 %3233
        %3235 = vrot.lane.b32.xlu0 %v2474, 64
        %v3236 = vpop.permute.xlu0 %3235
        %3237 = vrot.lane.b32.xlu0 %v2476, 64
        %v3238 = vpop.permute.xlu0 %3237
        %3239 = vrot.lane.b32.xlu0 %v2479, 64
        %v3240 = vpop.permute.xlu0 %3239
        %3241 = vrot.lane.b32.xlu0 %v2481, 64
        %v3242 = vpop.permute.xlu0 %3241
        %3243 = vrot.lane.b32.xlu0 %v2484, 64
        %v3244 = vpop.permute.xlu0 %3243
        %3245 = vrot.lane.b32.xlu0 %v2486, 64
        %v3246 = vpop.permute.xlu0 %3245
        %3247 = vrot.lane.b32.xlu0 %v2489, 64
        %v3248 = vpop.permute.xlu0 %3247
        %3249 = vrot.lane.b32.xlu0 %v2491, 64
        %v3250 = vpop.permute.xlu0 %3249
        %3251 = vrot.lane.b32.xlu0 %v2494, 64
        %v3252 = vpop.permute.xlu0 %3251
        %3253 = vrot.lane.b32.xlu0 %v2496, 64
        %v3254 = vpop.permute.xlu0 %3253
        %3255 = vrot.lane.b32.xlu0 %v2499, 64
        %v3256 = vpop.permute.xlu0 %3255
        %3257 = vrot.lane.b32.xlu0 %v2501, 64
        %v3258 = vpop.permute.xlu0 %3257
        %3259 = vrot.lane.b32.xlu0 %v2504, 64
        %v3260 = vpop.permute.xlu0 %3259
        %3261 = vrot.lane.b32.xlu0 %v2506, 64
        %v3262 = vpop.permute.xlu0 %3261
        %3263 = vrot.lane.b32.xlu0 %v2509, 64
        %v3264 = vpop.permute.xlu0 %3263
        %3265 = vrot.lane.b32.xlu0 %v2511, 64
        %v3266 = vpop.permute.xlu0 %3265
        %3267 = vrot.lane.b32.xlu0 %v2514, 64
        %v3268 = vpop.permute.xlu0 %3267
        %3269 = vrot.lane.b32.xlu0 %v2516, 64
        %v3270 = vpop.permute.xlu0 %3269
        %3271 = vrot.lane.b32.xlu0 %v2527, 64
        %v3272 = vpop.permute.xlu0 %3271
        %3273 = vrot.lane.b32.xlu0 %v2529, 64
        %v3274 = vpop.permute.xlu0 %3273
        %3275 = vrot.lane.b32.xlu0 %v2540, 64
        %v3276 = vpop.permute.xlu0 %3275
        %3277 = vrot.lane.b32.xlu0 %v2542, 64
        %v3278 = vpop.permute.xlu0 %3277
        %v3311 = vsel %vm2080, %v2255, %v2544
        %v3312 = vsel %vm2080, %v2256, %v2546
        %v3313 = vsel %vm2080, %v2258, %v2548
        %v3314 = vsel %vm2080, %v2259, %v2550
        %v3315 = vsel %vm2080, %v2261, %v2552
        %v3316 = vsel %vm2080, %v2262, %v2554
        %v3317 = vsel %vm2080, %v2264, %v2556
        %v3318 = vsel %vm2080, %v2265, %v2558
        %v3319 = vsel %vm2080, %v2267, %v2560
        %v3320 = vsel %vm2080, %v2268, %v2562
        %v3321 = vsel %vm2080, %v2270, %v2564
        %v3322 = vsel %vm2080, %v2271, %v2566
        %v3323 = vsel %vm2080, %v2273, %v2568
        %v3324 = vsel %vm2080, %v2274, %v2570
        %v3325 = vsel %vm2080, %v2276, %v2572
        %v3326 = vsel %vm2080, %v2277, %v2574
        %v3327 = vsel %vm2080, %v2279, %v2576
        %v3328 = vsel %vm2080, %v2280, %v2578
        %v3329 = vsel %vm2080, %v2282, %v2580
        %v3330 = vsel %vm2080, %v2283, %v2582
        %v3331 = vsel %vm2080, %v2285, %v2584
        %v3332 = vsel %vm2080, %v2286, %v2586
        %v3333 = vsel %vm2080, %v2288, %v2588
        %v3334 = vsel %vm2080, %v2289, %v2590
        %v3335 = vsel %vm2080, %v2291, %v2592
        %v3336 = vsel %vm2080, %v2292, %v2594
        %v3337 = vsel %vm2080, %v2294, %v2596
        %v3338 = vsel %vm2080, %v2295, %v2598
        %v3339 = vsel %vm2080, %v2297, %v2600
        %v3340 = vsel %vm2080, %v2298, %v2602
        %v3341 = vsel %vm2080, %v2300, %v2604
        %v3342 = vsel %vm2080, %v2301, %v2606
        %v3343 = vsel %vm399, %v3311, %v2640
        %v3344 = vsel %vm399, %v3312, %v2642
        %v3345 = vsel %vm399, %v3313, %v2644
        %v3346 = vsel %vm399, %v3314, %v2646
        %v3347 = vsel %vm399, %v3315, %v2648
        %v3348 = vsel %vm399, %v3316, %v2650
        %v3349 = vsel %vm399, %v3317, %v2652
        %v3350 = vsel %vm399, %v3318, %v2654
        %v3351 = vsel %vm399, %v3319, %v2656
        %v3352 = vsel %vm399, %v3320, %v2658
        %v3353 = vsel %vm399, %v3321, %v2660
        %v3354 = vsel %vm399, %v3322, %v2662
        %v3355 = vsel %vm399, %v3323, %v2664
        %v3356 = vsel %vm399, %v3324, %v2666
        %v3357 = vsel %vm399, %v3325, %v2668
        %v3358 = vsel %vm399, %v3326, %v2670
        %v3359 = vsel %vm399, %v3327, %v2672
        %v3360 = vsel %vm399, %v3328, %v2674
        %v3361 = vsel %vm399, %v3329, %v2676
        %v3362 = vsel %vm399, %v3330, %v2678
        %v3363 = vsel %vm399, %v3331, %v2680
        %v3364 = vsel %vm399, %v3332, %v2682
        %v3365 = vsel %vm399, %v3333, %v2684
        %v3366 = vsel %vm399, %v3334, %v2686
        %v3367 = vsel %vm399, %v3335, %v2688
        %v3368 = vsel %vm399, %v3336, %v2690
        %v3369 = vsel %vm399, %v3337, %v2692
        %v3370 = vsel %vm399, %v3338, %v2694
        %v3371 = vsel %vm399, %v3339, %v2696
        %v3372 = vsel %vm399, %v3340, %v2698
        %v3373 = vsel %vm399, %v3341, %v2700
        %v3374 = vsel %vm399, %v3342, %v2702
        %vm3375 = vcmask 195584
        %v3376 = vsel %vm3375, %v3343, %v2736
        %v3377 = vsel %vm3375, %v3344, %v2738
        %v3378 = vsel %vm3375, %v3345, %v2740
        %v3379 = vsel %vm3375, %v3346, %v2742
        %v3380 = vsel %vm3375, %v3347, %v2744
        %v3381 = vsel %vm3375, %v3348, %v2746
        %v3382 = vsel %vm3375, %v3349, %v2748
        %v3383 = vsel %vm3375, %v3350, %v2750
        %v3384 = vsel %vm3375, %v3351, %v2752
        %v3385 = vsel %vm3375, %v3352, %v2754
        %v3386 = vsel %vm3375, %v3353, %v2756
        %v3387 = vsel %vm3375, %v3354, %v2758
        %v3388 = vsel %vm3375, %v3355, %v2760
        %v3389 = vsel %vm3375, %v3356, %v2762
        %v3390 = vsel %vm3375, %v3357, %v2764
        %v3391 = vsel %vm3375, %v3358, %v2766
        %v3392 = vsel %vm3375, %v3359, %v2768
        %v3393 = vsel %vm3375, %v3360, %v2770
        %v3394 = vsel %vm3375, %v3361, %v2772
        %v3395 = vsel %vm3375, %v3362, %v2774
        %v3396 = vsel %vm3375, %v3363, %v2776
        %v3397 = vsel %vm3375, %v3364, %v2778
        %v3398 = vsel %vm3375, %v3365, %v2780
        %v3399 = vsel %vm3375, %v3366, %v2782
        %v3400 = vsel %vm3375, %v3367, %v2784
        %v3401 = vsel %vm3375, %v3368, %v2786
        %v3402 = vsel %vm3375, %v3369, %v2788
        %v3403 = vsel %vm3375, %v3370, %v2790
        %v3404 = vsel %vm3375, %v3371, %v2792
        %v3405 = vsel %vm3375, %v3372, %v2794
        %v3406 = vsel %vm3375, %v3373, %v2796
        %v3407 = vsel %vm3375, %v3374, %v2798
        %v3408 = vsel %vm1568, %v3376, %v2832
        %v3409 = vsel %vm1568, %v3377, %v2834
        %v3410 = vsel %vm1568, %v3378, %v2836
        %v3411 = vsel %vm1568, %v3379, %v2838
        %v3412 = vsel %vm1568, %v3380, %v2840
        %v3413 = vsel %vm1568, %v3381, %v2842
        %v3414 = vsel %vm1568, %v3382, %v2844
        %v3415 = vsel %vm1568, %v3383, %v2846
        %v3416 = vsel %vm1568, %v3384, %v2848
        %v3417 = vsel %vm1568, %v3385, %v2850
        %v3418 = vsel %vm1568, %v3386, %v2852
        %v3419 = vsel %vm1568, %v3387, %v2854
        %v3420 = vsel %vm1568, %v3388, %v2856
        %v3421 = vsel %vm1568, %v3389, %v2858
        %v3422 = vsel %vm1568, %v3390, %v2860
        %v3423 = vsel %vm1568, %v3391, %v2862
        %v3424 = vsel %vm1568, %v3392, %v2864
        %v3425 = vsel %vm1568, %v3393, %v2866
        %v3426 = vsel %vm1568, %v3394, %v2868
        %v3427 = vsel %vm1568, %v3395, %v2870
        %v3428 = vsel %vm1568, %v3396, %v2872
        %v3429 = vsel %vm1568, %v3397, %v2874
        %v3430 = vsel %vm1568, %v3398, %v2876
        %v3431 = vsel %vm1568, %v3399, %v2878
        %v3432 = vsel %vm1568, %v3400, %v2880
        %v3433 = vsel %vm1568, %v3401, %v2882
        %v3434 = vsel %vm1568, %v3402, %v2884
        %v3435 = vsel %vm1568, %v3403, %v2886
        %v3436 = vsel %vm1568, %v3404, %v2888
        %v3437 = vsel %vm1568, %v3405, %v2890
        %v3438 = vsel %vm1568, %v3406, %v2892
        %v3439 = vsel %vm1568, %v3407, %v2894
        %vm3440 = vcmask 326656
        %v3441 = vsel %vm3440, %v3408, %v2928
        %v3442 = vsel %vm3440, %v3409, %v2930
        %v3443 = vsel %vm3440, %v3410, %v2932
        %v3444 = vsel %vm3440, %v3411, %v2934
        %v3445 = vsel %vm3440, %v3412, %v2936
        %v3446 = vsel %vm3440, %v3413, %v2938
        %v3447 = vsel %vm3440, %v3414, %v2940
        %v3448 = vsel %vm3440, %v3415, %v2942
        %v3449 = vsel %vm3440, %v3416, %v2944
        %v3450 = vsel %vm3440, %v3417, %v2946
        %v3451 = vsel %vm3440, %v3418, %v2948
        %v3452 = vsel %vm3440, %v3419, %v2950
        %v3453 = vsel %vm3440, %v3420, %v2952
        %v3454 = vsel %vm3440, %v3421, %v2954
        %v3455 = vsel %vm3440, %v3422, %v2956
        %v3456 = vsel %vm3440, %v3423, %v2958
        %v3457 = vsel %vm3440, %v3424, %v2960
        %v3458 = vsel %vm3440, %v3425, %v2962
        %v3459 = vsel %vm3440, %v3426, %v2964
        %v3460 = vsel %vm3440, %v3427, %v2966
        %v3461 = vsel %vm3440, %v3428, %v2968
        %v3462 = vsel %vm3440, %v3429, %v2970
        %v3463 = vsel %vm3440, %v3430, %v2972
        %v3464 = vsel %vm3440, %v3431, %v2974
        %v3465 = vsel %vm3440, %v3432, %v2976
        %v3466 = vsel %vm3440, %v3433, %v2978
        %v3467 = vsel %vm3440, %v3434, %v2980
        %v3468 = vsel %vm3440, %v3435, %v2982
        %v3469 = vsel %vm3440, %v3436, %v2984
        %v3470 = vsel %vm3440, %v3437, %v2986
        %v3471 = vsel %vm3440, %v3438, %v2988
        %v3472 = vsel %vm3440, %v3439, %v2990
        %v3473 = vsel %vm1601, %v3441, %v3024
        %v3474 = vsel %vm1601, %v3442, %v3026
        %v3475 = vsel %vm1601, %v3443, %v3028
        %v3476 = vsel %vm1601, %v3444, %v3030
        %v3477 = vsel %vm1601, %v3445, %v3032
        %v3478 = vsel %vm1601, %v3446, %v3034
        %v3479 = vsel %vm1601, %v3447, %v3036
        %v3480 = vsel %vm1601, %v3448, %v3038
        %v3481 = vsel %vm1601, %v3449, %v3040
        %v3482 = vsel %vm1601, %v3450, %v3042
        %v3483 = vsel %vm1601, %v3451, %v3044
        %v3484 = vsel %vm1601, %v3452, %v3046
        %v3485 = vsel %vm1601, %v3453, %v3048
        %v3486 = vsel %vm1601, %v3454, %v3050
        %v3487 = vsel %vm1601, %v3455, %v3052
        %v3488 = vsel %vm1601, %v3456, %v3054
        %v3489 = vsel %vm1601, %v3457, %v3056
        %v3490 = vsel %vm1601, %v3458, %v3058
        %v3491 = vsel %vm1601, %v3459, %v3060
        %v3492 = vsel %vm1601, %v3460, %v3062
        %v3493 = vsel %vm1601, %v3461, %v3064
        %v3494 = vsel %vm1601, %v3462, %v3066
        %v3495 = vsel %vm1601, %v3463, %v3068
        %v3496 = vsel %vm1601, %v3464, %v3070
        %v3497 = vsel %vm1601, %v3465, %v3072
        %v3498 = vsel %vm1601, %v3466, %v3074
        %v3499 = vsel %vm1601, %v3467, %v3076
        %v3500 = vsel %vm1601, %v3468, %v3078
        %v3501 = vsel %vm1601, %v3469, %v3080
        %v3502 = vsel %vm1601, %v3470, %v3082
        %v3503 = vsel %vm1601, %v3471, %v3084
        %v3504 = vsel %vm1601, %v3472, %v3086
        %vm3505 = vcmask 457728
        %v3506 = vsel %vm3505, %v3473, %v3120
        %v3507 = vsel %vm3505, %v3474, %v3122
        %v3508 = vsel %vm3505, %v3475, %v3124
        %v3509 = vsel %vm3505, %v3476, %v3126
        %v3510 = vsel %vm3505, %v3477, %v3128
        %v3511 = vsel %vm3505, %v3478, %v3130
        %v3512 = vsel %vm3505, %v3479, %v3132
        %v3513 = vsel %vm3505, %v3480, %v3134
        %v3514 = vsel %vm3505, %v3481, %v3136
        %v3515 = vsel %vm3505, %v3482, %v3138
        %v3516 = vsel %vm3505, %v3483, %v3140
        %v3517 = vsel %vm3505, %v3484, %v3142
        %v3518 = vsel %vm3505, %v3485, %v3144
        %v3519 = vsel %vm3505, %v3486, %v3146
        %v3520 = vsel %vm3505, %v3487, %v3148
        %v3521 = vsel %vm3505, %v3488, %v3150
        %v3522 = vsel %vm3505, %v3489, %v3152
        %v3523 = vsel %vm3505, %v3490, %v3154
        %v3524 = vsel %vm3505, %v3491, %v3156
        %v3525 = vsel %vm3505, %v3492, %v3158
        %v3526 = vsel %vm3505, %v3493, %v3160
        %v3527 = vsel %vm3505, %v3494, %v3162
        %v3528 = vsel %vm3505, %v3495, %v3164
        %v3529 = vsel %vm3505, %v3496, %v3166
        %v3530 = vsel %vm3505, %v3497, %v3168
        %v3531 = vsel %vm3505, %v3498, %v3170
        %v3532 = vsel %vm3505, %v3499, %v3172
        %v3533 = vsel %vm3505, %v3500, %v3174
        %v3534 = vsel %vm3505, %v3501, %v3176
        %v3535 = vsel %vm3505, %v3502, %v3178
        %v3536 = vsel %vm3505, %v3503, %v3180
        %v3537 = vsel %vm3505, %v3504, %v3182
        %v3538 = vsel %vm1634, %v3506, %v3216
        %v3539 = vsel %vm1634, %v3507, %v3218
        %v3540 = vsel %vm1634, %v3508, %v3220
        %v3541 = vsel %vm1634, %v3509, %v3222
        %v3542 = vsel %vm1634, %v3510, %v3224
        %v3543 = vsel %vm1634, %v3511, %v3226
        %v3544 = vsel %vm1634, %v3512, %v3228
        %v3545 = vsel %vm1634, %v3513, %v3230
        %v3546 = vsel %vm1634, %v3514, %v3232
        %v3547 = vsel %vm1634, %v3515, %v3234
        %v3548 = vsel %vm1634, %v3516, %v3236
        %v3549 = vsel %vm1634, %v3517, %v3238
        %v3550 = vsel %vm1634, %v3518, %v3240
        %v3551 = vsel %vm1634, %v3519, %v3242
        %v3552 = vsel %vm1634, %v3520, %v3244
        %v3553 = vsel %vm1634, %v3521, %v3246
        %v3554 = vsel %vm1634, %v3522, %v3248
        %v3555 = vsel %vm1634, %v3523, %v3250
        %v3556 = vsel %vm1634, %v3524, %v3252
        %v3557 = vsel %vm1634, %v3525, %v3254
        %v3558 = vsel %vm1634, %v3526, %v3256
        %v3559 = vsel %vm1634, %v3527, %v3258
        %v3560 = vsel %vm1634, %v3528, %v3260
        %v3561 = vsel %vm1634, %v3529, %v3262
        %v3562 = vsel %vm1634, %v3530, %v3264
        %v3563 = vsel %vm1634, %v3531, %v3266
        %v3564 = vsel %vm1634, %v3532, %v3268
        %v3565 = vsel %vm1634, %v3533, %v3270
        %v3566 = vsel %vm1634, %v3534, %v3272
        %v3567 = vsel %vm1634, %v3535, %v3274
        %v3568 = vsel %vm1634, %v3536, %v3276
        %v3569 = vsel %vm1634, %v3537, %v3278
        %v3570 = vld [vmem:[#allocation11] sm:$0xff]
        %v3571 = vld [vmem:[#allocation11 + $0x8] sm:$0xff]
        %v3572 = vld [vmem:[#allocation11 + $0x10] sm:$0xff]
        %v3573 = vld [vmem:[#allocation11 + $0x18] sm:$0xff]
        %v3574 = vld [vmem:[#allocation11 + $0x20] sm:$0xff]
        %v3575 = vld [vmem:[#allocation11 + $0x28] sm:$0xff]
        %v3576 = vld [vmem:[#allocation11 + $0x30] sm:$0xff]
        %v3577 = vld [vmem:[#allocation11 + $0x38] sm:$0xff]
        %v3578 = vld [vmem:[#allocation11 + $0x40] sm:$0xff]
        %v3579 = vld [vmem:[#allocation13] sm:$0x1]
        %v3581 = vlaneseq
        %v3582 = vshrl.u32 %v3581, 7
        %v3583 = vsub.s32 0, %v3582
        %v3584 = vrot.slane %v3579, %v3583
        %vm3586 = vcmask 588800
        %v3588 = vsel %vm3586, %v3538, 0
        %v3591 = vsel %vm3586, %v3539, 0
        %v3594 = vsel %vm3586, %v3540, 0
        %v3597 = vsel %vm3586, %v3541, 0
        %v3600 = vsel %vm3586, %v3542, 0
        %v3603 = vsel %vm3586, %v3543, 0
        %v3606 = vsel %vm3586, %v3544, 0
        %v3609 = vsel %vm3586, %v3545, 0
        %v3612 = vsel %vm3586, %v3546, 0
        %v3615 = vsel %vm3586, %v3547, 0
        %v3618 = vsel %vm3586, %v3548, 0
        %v3621 = vsel %vm3586, %v3549, 0
        %v3624 = vsel %vm3586, %v3550, 0
        %v3627 = vsel %vm3586, %v3551, 0
        %v3630 = vsel %vm3586, %v3552, 0
        %v3633 = vsel %vm3586, %v3553, 0
        %v3636 = vsel %vm3586, %v3554, 0
        %v3639 = vsel %vm3586, %v3555, 0
        %v3642 = vsel %vm3586, %v3556, 0
        %v3645 = vsel %vm3586, %v3557, 0
        %v3648 = vsel %vm3586, %v3558, 0
        %v3651 = vsel %vm3586, %v3559, 0
        %v3654 = vsel %vm3586, %v3560, 0
        %v3657 = vsel %vm3586, %v3561, 0
        %v3660 = vsel %vm3586, %v3562, 0
        %v3663 = vsel %vm3586, %v3563, 0
        %v3666 = vsel %vm3586, %v3564, 0
        %v3669 = vsel %vm3586, %v3565, 0
        %v3672 = vsel %vm3586, %v3566, 0
        %v3675 = vsel %vm3586, %v3567, 0
        %v3678 = vsel %vm3586, %v3568, 0
        %v3681 = vsel %vm3586, %v3569, 0
        %3683 = vmatprep.subr.mxu0 0.0
        %3684 = vmatpush1.msra.mxu0 %v3570
        %3685 = vmatprep.subr.mxu0 0.0
        %3686 = vmatpush1.msra.mxu0 %v3571
        %3687 = vmatprep.subr.mxu0 0.0
        %3688 = vmatpush1.msra.mxu0 %v3572
        %3689 = vmatprep.subr.mxu0 0.0
        %3690 = vmatpush1.msra.mxu0 %v3573
        %3691 = vmatprep.subr.mxu0 0.0
        %3692 = vmatpush1.msra.mxu0 %v3574
        %3693 = vmatprep.subr.mxu0 0.0
        %3694 = vmatpush1.msra.mxu0 %v3575
        %3695 = vmatprep.subr.mxu0 0.0
        %3696 = vmatpush1.msra.mxu0 %v3576
        %3697 = vmatprep.subr.mxu0 0.0
        %3698 = vmatpush1.msra.mxu0 %v3577
        %3699 = vmatprep.subr.mxu0 0.0
        %3700 = vmatpush1.msra.mxu0 %v3578
        %3701 = vmatprep.subr.mxu0 0.0
        %3702 = vmatpush1.msra.mxu0 0.0
        %3703 = vmatprep.subr.mxu0 0.0
        %3704 = vmatpush1.msra.mxu0 0.0
        %3705 = vmatprep.subr.mxu0 0.0
        %3706 = vmatpush1.msra.mxu0 0.0
        %3707 = vmatprep.subr.mxu0 0.0
        %3708 = vmatpush1.msra.mxu0 0.0
        %3709 = vmatprep.subr.mxu0 0.0
        %3710 = vmatpush1.msra.mxu0 0.0
        %3711 = vmatprep.subr.mxu0 0.0
        %3712 = vmatpush1.msra.mxu0 0.0
        %3713 = vmatprep.subr.mxu0 0.0
        %3714 = vmatpush1.msra.mxu0 0.0
        %3715 = vmatprep.subr.mxu0 0.0
        %3716 = vmatpush1.msra.mxu0 0.0
        %3717 = vmatprep.subr.mxu0 0.0
        %3718 = vmatpush1.msra.mxu0 0.0
        %3719 = vmatprep.subr.mxu0 0.0
        %3720 = vmatpush1.msra.mxu0 0.0
        %3721 = vmatprep.subr.mxu0 0.0
        %3722 = vmatpush1.msra.mxu0 0.0
        %3723 = vmatprep.subr.mxu0 0.0
        %3724 = vmatpush1.msra.mxu0 0.0
        %3725 = vmatprep.subr.mxu0 0.0
        %3726 = vmatpush1.msra.mxu0 0.0
        %3727 = vmatprep.subr.mxu0 0.0
        %3728 = vmatpush1.msra.mxu0 0.0
        %3729 = vmatprep.subr.mxu0 0.0
        %3730 = vmatpush1.msra.mxu0 0.0
        %3731 = vmatprep.subr.mxu0 0.0
        %3732 = vmatpush1.msra.mxu0 0.0
        %3733 = vmatprep.subr.mxu0 0.0
        %3734 = vmatpush1.msra.mxu0 0.0
        %3735 = vmatprep.subr.mxu0 0.0
        %3736 = vmatpush1.msra.mxu0 0.0
        %3737 = vmatprep.subr.mxu0 0.0
        %3738 = vmatpush1.msra.mxu0 0.0
        %3739 = vmatprep.subr.mxu0 0.0
        %3740 = vmatpush1.msra.mxu0 0.0
        %3741 = vmatprep.subr.mxu0 0.0
        %3742 = vmatpush1.msra.mxu0 0.0
        %3743 = vmatprep.subr.mxu0 0.0
        %3744 = vmatpush1.msra.mxu0 0.0
        %3745 = vmatprep.subr.mxu0 0.0
        %3746 = vmatpush1.msra.mxu0 0.0
        %3747 = vmatprep.mubr.f32.mxu0 0.0
        %3748 = vmatmul.mubr.f32.gmra.mrb[0].mxu0 %v3588
        %v3749 = vpop.f32.mrb[0].mxu0
        %v3750 = vadd.f32 %v3584, %v3749
        %v3751 = vpop.f32.mrb[0].mxu0
        %3752 = vmatprep.mubr.f32.mxu0 0.0
        %3753 = vmatmul.mubr.f32.gmra.mrb[0].mxu0 %v3591
        %v3754 = vpop.f32.mrb[0].mxu0
        %v3755 = vadd.f32 %v3584, %v3754
        %v3756 = vpop.f32.mrb[0].mxu0
        %3757 = vmatprep.mubr.f32.mxu0 0.0
        %3758 = vmatmul.mubr.f32.gmra.mrb[0].mxu0 %v3594
        %v3759 = vpop.f32.mrb[0].mxu0
        %v3760 = vadd.f32 %v3584, %v3759
        %v3761 = vpop.f32.mrb[0].mxu0
        %3762 = vmatprep.mubr.f32.mxu0 0.0
        %3763 = vmatmul.mubr.f32.gmra.mrb[0].mxu0 %v3597
        %v3764 = vpop.f32.mrb[0].mxu0
        %v3765 = vadd.f32 %v3584, %v3764
        %v3766 = vpop.f32.mrb[0].mxu0
        %3767 = vmatprep.mubr.f32.mxu0 0.0
        %3768 = vmatmul.mubr.f32.gmra.mrb[0].mxu0 %v3600
        %v3769 = vpop.f32.mrb[0].mxu0
        %v3770 = vadd.f32 %v3584, %v3769
        %v3771 = vpop.f32.mrb[0].mxu0
        %3772 = vmatprep.mubr.f32.mxu0 0.0
        %3773 = vmatmul.mubr.f32.gmra.mrb[0].mxu0 %v3603
        %v3774 = vpop.f32.mrb[0].mxu0
        %v3775 = vadd.f32 %v3584, %v3774
        %v3776 = vpop.f32.mrb[0].mxu0
        %3777 = vmatprep.mubr.f32.mxu0 0.0
        %3778 = vmatmul.mubr.f32.gmra.mrb[0].mxu0 %v3606
        %v3779 = vpop.f32.mrb[0].mxu0
        %v3780 = vadd.f32 %v3584, %v3779
        %v3781 = vpop.f32.mrb[0].mxu0
        %3782 = vmatprep.mubr.f32.mxu0 0.0
        %3783 = vmatmul.mubr.f32.gmra.mrb[0].mxu0 %v3609
        %v3784 = vpop.f32.mrb[0].mxu0
        %v3785 = vadd.f32 %v3584, %v3784
        %v3786 = vpop.f32.mrb[0].mxu0
        %3787 = vmatprep.mubr.f32.mxu0 0.0
        %3788 = vmatmul.mubr.f32.gmra.mrb[0].mxu0 %v3612
        %v3789 = vpop.f32.mrb[0].mxu0
        %v3790 = vadd.f32 %v3584, %v3789
        %v3791 = vpop.f32.mrb[0].mxu0
        %3792 = vmatprep.mubr.f32.mxu0 0.0
        %3793 = vmatmul.mubr.f32.gmra.mrb[0].mxu0 %v3615
        %v3794 = vpop.f32.mrb[0].mxu0
        %v3795 = vadd.f32 %v3584, %v3794
        %v3796 = vpop.f32.mrb[0].mxu0
        %3797 = vmatprep.mubr.f32.mxu0 0.0
        %3798 = vmatmul.mubr.f32.gmra.mrb[0].mxu0 %v3618
        %v3799 = vpop.f32.mrb[0].mxu0
        %v3800 = vadd.f32 %v3584, %v3799
        %v3801 = vpop.f32.mrb[0].mxu0
        %3802 = vmatprep.mubr.f32.mxu0 0.0
        %3803 = vmatmul.mubr.f32.gmra.mrb[0].mxu0 %v3621
        %v3804 = vpop.f32.mrb[0].mxu0
        %v3805 = vadd.f32 %v3584, %v3804
        %v3806 = vpop.f32.mrb[0].mxu0
        %3807 = vmatprep.mubr.f32.mxu0 0.0
        %3808 = vmatmul.mubr.f32.gmra.mrb[0].mxu0 %v3624
        %v3809 = vpop.f32.mrb[0].mxu0
        %v3810 = vadd.f32 %v3584, %v3809
        %v3811 = vpop.f32.mrb[0].mxu0
        %3812 = vmatprep.mubr.f32.mxu0 0.0
        %3813 = vmatmul.mubr.f32.gmra.mrb[0].mxu0 %v3627
        %v3814 = vpop.f32.mrb[0].mxu0
        %v3815 = vadd.f32 %v3584, %v3814
        %v3816 = vpop.f32.mrb[0].mxu0
        %3817 = vmatprep.mubr.f32.mxu0 0.0
        %3818 = vmatmul.mubr.f32.gmra.mrb[0].mxu0 %v3630
        %v3819 = vpop.f32.mrb[0].mxu0
        %v3820 = vadd.f32 %v3584, %v3819
        %v3821 = vpop.f32.mrb[0].mxu0
        %3822 = vmatprep.mubr.f32.mxu0 0.0
        %3823 = vmatmul.mubr.f32.gmra.mrb[0].mxu0 %v3633
        %v3824 = vpop.f32.mrb[0].mxu0
        %v3825 = vadd.f32 %v3584, %v3824
        %v3826 = vpop.f32.mrb[0].mxu0
        %3827 = vmatprep.mubr.f32.mxu0 0.0
        %3828 = vmatmul.mubr.f32.gmra.mrb[0].mxu0 %v3636
        %v3829 = vpop.f32.mrb[0].mxu0
        %v3830 = vadd.f32 %v3584, %v3829
        %v3831 = vpop.f32.mrb[0].mxu0
        %3832 = vmatprep.mubr.f32.mxu0 0.0
        %3833 = vmatmul.mubr.f32.gmra.mrb[0].mxu0 %v3639
        %v3834 = vpop.f32.mrb[0].mxu0
        %v3835 = vadd.f32 %v3584, %v3834
        %v3836 = vpop.f32.mrb[0].mxu0
        %3837 = vmatprep.mubr.f32.mxu0 0.0
        %3838 = vmatmul.mubr.f32.gmra.mrb[0].mxu0 %v3642
        %v3839 = vpop.f32.mrb[0].mxu0
        %v3840 = vadd.f32 %v3584, %v3839
        %v3841 = vpop.f32.mrb[0].mxu0
        %3842 = vmatprep.mubr.f32.mxu0 0.0
        %3843 = vmatmul.mubr.f32.gmra.mrb[0].mxu0 %v3645
        %v3844 = vpop.f32.mrb[0].mxu0
        %v3845 = vadd.f32 %v3584, %v3844
        %v3846 = vpop.f32.mrb[0].mxu0
        %3847 = vmatprep.mubr.f32.mxu0 0.0
        %3848 = vmatmul.mubr.f32.gmra.mrb[0].mxu0 %v3648
        %v3849 = vpop.f32.mrb[0].mxu0
        %v3850 = vadd.f32 %v3584, %v3849
        %v3851 = vpop.f32.mrb[0].mxu0
        %3852 = vmatprep.mubr.f32.mxu0 0.0
        %3853 = vmatmul.mubr.f32.gmra.mrb[0].mxu0 %v3651
        %v3854 = vpop.f32.mrb[0].mxu0
        %v3855 = vadd.f32 %v3584, %v3854
        %v3856 = vpop.f32.mrb[0].mxu0
        %3857 = vmatprep.mubr.f32.mxu0 0.0
        %3858 = vmatmul.mubr.f32.gmra.mrb[0].mxu0 %v3654
        %v3859 = vpop.f32.mrb[0].mxu0
        %v3860 = vadd.f32 %v3584, %v3859
        %v3861 = vpop.f32.mrb[0].mxu0
        %3862 = vmatprep.mubr.f32.mxu0 0.0
        %3863 = vmatmul.mubr.f32.gmra.mrb[0].mxu0 %v3657
        %v3864 = vpop.f32.mrb[0].mxu0
        %v3865 = vadd.f32 %v3584, %v3864
        %v3866 = vpop.f32.mrb[0].mxu0
        %3867 = vmatprep.mubr.f32.mxu0 0.0
        %3868 = vmatmul.mubr.f32.gmra.mrb[0].mxu0 %v3660
        %v3869 = vpop.f32.mrb[0].mxu0
        %v3870 = vadd.f32 %v3584, %v3869
        %v3871 = vpop.f32.mrb[0].mxu0
        %3872 = vmatprep.mubr.f32.mxu0 0.0
        %3873 = vmatmul.mubr.f32.gmra.mrb[0].mxu0 %v3663
        %v3874 = vpop.f32.mrb[0].mxu0
        %v3875 = vadd.f32 %v3584, %v3874
        %v3876 = vpop.f32.mrb[0].mxu0
        %3877 = vmatprep.mubr.f32.mxu0 0.0
        %3878 = vmatmul.mubr.f32.gmra.mrb[0].mxu0 %v3666
        %v3879 = vpop.f32.mrb[0].mxu0
        %v3880 = vadd.f32 %v3584, %v3879
        %v3881 = vpop.f32.mrb[0].mxu0
        %3882 = vmatprep.mubr.f32.mxu0 0.0
        %3883 = vmatmul.mubr.f32.gmra.mrb[0].mxu0 %v3669
        %v3884 = vpop.f32.mrb[0].mxu0
        %v3885 = vadd.f32 %v3584, %v3884
        %v3886 = vpop.f32.mrb[0].mxu0
        %3887 = vmatprep.mubr.f32.mxu0 0.0
        %3888 = vmatmul.mubr.f32.gmra.mrb[0].mxu0 %v3672
        %v3889 = vpop.f32.mrb[0].mxu0
        %v3890 = vadd.f32 %v3584, %v3889
        %v3891 = vpop.f32.mrb[0].mxu0
        %3892 = vmatprep.mubr.f32.mxu0 0.0
        %3893 = vmatmul.mubr.f32.gmra.mrb[0].mxu0 %v3675
        %v3894 = vpop.f32.mrb[0].mxu0
        %v3895 = vadd.f32 %v3584, %v3894
        %v3896 = vpop.f32.mrb[0].mxu0
        %3897 = vmatprep.mubr.f32.mxu0 0.0
        %3898 = vmatmul.mubr.f32.gmra.mrb[0].mxu0 %v3678
        %v3899 = vpop.f32.mrb[0].mxu0
        %v3900 = vadd.f32 %v3584, %v3899
        %v3901 = vpop.f32.mrb[0].mxu0
        %3902 = vmatprep.mubr.f32.mxu0 0.0
        %3903 = vmatmul.mubr.f32.gmra.mrb[0].mxu0 %v3681
        %v3904 = vpop.f32.mrb[0].mxu0
        %v3905 = vadd.f32 %v3584, %v3904
        %v3906 = vpop.f32.mrb[0].mxu0
        %3907 = vdwg.mxu0
        %v3908 = vld [vmem:[#allocation14] sm:$0xff]
        %v3909 = vld [vmem:[#allocation14 + $0x8] sm:$0xff]
        %v3911 = vsel %vm399, %v367, 0
        %v3914 = vsel %vm399, %v368, 0
        %v3917 = vsel %vm399, %v369, 0
        %v3920 = vsel %vm399, %v370, 0
        %v3923 = vsel %vm399, %v371, 0
        %v3926 = vsel %vm399, %v372, 0
        %v3929 = vsel %vm399, %v373, 0
        %v3932 = vsel %vm399, %v374, 0
        %v3935 = vsel %vm399, %v375, 0
        %v3938 = vsel %vm399, %v376, 0
        %v3941 = vsel %vm399, %v377, 0
        %v3944 = vsel %vm399, %v378, 0
        %v3947 = vsel %vm399, %v379, 0
        %v3950 = vsel %vm399, %v380, 0
        %v3953 = vsel %vm399, %v381, 0
        %v3956 = vsel %vm399, %v382, 0
        %v3959 = vsel %vm399, %v383, 0
        %v3962 = vsel %vm399, %v384, 0
        %v3965 = vsel %vm399, %v385, 0
        %v3968 = vsel %vm399, %v386, 0
        %v3971 = vsel %vm399, %v387, 0
        %v3974 = vsel %vm399, %v388, 0
        %v3977 = vsel %vm399, %v389, 0
        %v3980 = vsel %vm399, %v390, 0
        %v3983 = vsel %vm399, %v391, 0
        %v3986 = vsel %vm399, %v392, 0
        %v3989 = vsel %vm399, %v393, 0
        %v3992 = vsel %vm399, %v394, 0
        %v3995 = vsel %vm399, %v395, 0
        %v3998 = vsel %vm399, %v396, 0
        %v4001 = vsel %vm399, %v397, 0
        %v4004 = vsel %vm399, %v398, 0
        %4006 = vmatprep.subr.mxu0 0.0
        %4007 = vmatpush1.msra.mxu0 %v3908
        %4008 = vmatprep.subr.mxu0 0.0
        %4009 = vmatpush1.msra.mxu0 %v3909
        %4010 = vmatprep.subr.mxu0 0.0
        %4011 = vmatpush1.msra.mxu0 0.0
        %4012 = vmatprep.subr.mxu0 0.0
        %4013 = vmatpush1.msra.mxu0 0.0
        %4014 = vmatprep.subr.mxu0 0.0
        %4015 = vmatpush1.msra.mxu0 0.0
        %4016 = vmatprep.subr.mxu0 0.0
        %4017 = vmatpush1.msra.mxu0 0.0
        %4018 = vmatprep.subr.mxu0 0.0
        %4019 = vmatpush1.msra.mxu0 0.0
        %4020 = vmatprep.subr.mxu0 0.0
        %4021 = vmatpush1.msra.mxu0 0.0
        %4022 = vmatprep.subr.mxu0 0.0
        %4023 = vmatpush1.msra.mxu0 0.0
        %4024 = vmatprep.subr.mxu0 0.0
        %4025 = vmatpush1.msra.mxu0 0.0
        %4026 = vmatprep.subr.mxu0 0.0
        %4027 = vmatpush1.msra.mxu0 0.0
        %4028 = vmatprep.subr.mxu0 0.0
        %4029 = vmatpush1.msra.mxu0 0.0
        %4030 = vmatprep.subr.mxu0 0.0
        %4031 = vmatpush1.msra.mxu0 0.0
        %4032 = vmatprep.subr.mxu0 0.0
        %4033 = vmatpush1.msra.mxu0 0.0
        %4034 = vmatprep.subr.mxu0 0.0
        %4035 = vmatpush1.msra.mxu0 0.0
        %4036 = vmatprep.subr.mxu0 0.0
        %4037 = vmatpush1.msra.mxu0 0.0
        %4038 = vmatprep.subr.mxu0 0.0
        %4039 = vmatpush1.msra.mxu0 0.0
        %4040 = vmatprep.subr.mxu0 0.0
        %4041 = vmatpush1.msra.mxu0 0.0
        %4042 = vmatprep.subr.mxu0 0.0
        %4043 = vmatpush1.msra.mxu0 0.0
        %4044 = vmatprep.subr.mxu0 0.0
        %4045 = vmatpush1.msra.mxu0 0.0
        %4046 = vmatprep.subr.mxu0 0.0
        %4047 = vmatpush1.msra.mxu0 0.0
        %4048 = vmatprep.subr.mxu0 0.0
        %4049 = vmatpush1.msra.mxu0 0.0
        %4050 = vmatprep.subr.mxu0 0.0
        %4051 = vmatpush1.msra.mxu0 0.0
        %4052 = vmatprep.subr.mxu0 0.0
        %4053 = vmatpush1.msra.mxu0 0.0
        %4054 = vmatprep.subr.mxu0 0.0
        %4055 = vmatpush1.msra.mxu0 0.0
        %4056 = vmatprep.subr.mxu0 0.0
        %4057 = vmatpush1.msra.mxu0 0.0
        %4058 = vmatprep.subr.mxu0 0.0
        %4059 = vmatpush1.msra.mxu0 0.0
        %4060 = vmatprep.subr.mxu0 0.0
        %4061 = vmatpush1.msra.mxu0 0.0
        %4062 = vmatprep.subr.mxu0 0.0
        %4063 = vmatpush1.msra.mxu0 0.0
        %4064 = vmatprep.subr.mxu0 0.0
        %4065 = vmatpush1.msra.mxu0 0.0
        %4066 = vmatprep.subr.mxu0 0.0
        %4067 = vmatpush1.msra.mxu0 0.0
        %4068 = vmatprep.subr.mxu0 0.0
        %4069 = vmatpush1.msra.mxu0 0.0
        %4070 = vmatprep.mubr.f32.mxu0 0.0
        %4071 = vmatmul.mubr.f32.gmra.mrb[0].mxu0 %v3911
        %v4072 = vpop.f32.mrb[0].mxu0
        %v4073 = vadd.f32 0.0, %v4072
        %v4074 = vpop.f32.mrb[0].mxu0
        %4075 = vmatprep.mubr.f32.mxu0 0.0
        %4076 = vmatmul.mubr.f32.gmra.mrb[0].mxu0 %v3914
        %v4077 = vpop.f32.mrb[0].mxu0
        %v4078 = vadd.f32 0.0, %v4077
        %v4079 = vpop.f32.mrb[0].mxu0
        %4080 = vmatprep.mubr.f32.mxu0 0.0
        %4081 = vmatmul.mubr.f32.gmra.mrb[0].mxu0 %v3917
        %v4082 = vpop.f32.mrb[0].mxu0
        %v4083 = vadd.f32 0.0, %v4082
        %v4084 = vpop.f32.mrb[0].mxu0
        %4085 = vmatprep.mubr.f32.mxu0 0.0
        %4086 = vmatmul.mubr.f32.gmra.mrb[0].mxu0 %v3920
        %v4087 = vpop.f32.mrb[0].mxu0
        %v4088 = vadd.f32 0.0, %v4087
        %v4089 = vpop.f32.mrb[0].mxu0
        %4090 = vmatprep.mubr.f32.mxu0 0.0
        %4091 = vmatmul.mubr.f32.gmra.mrb[0].mxu0 %v3923
        %v4092 = vpop.f32.mrb[0].mxu0
        %v4093 = vadd.f32 0.0, %v4092
        %v4094 = vpop.f32.mrb[0].mxu0
        %4095 = vmatprep.mubr.f32.mxu0 0.0
        %4096 = vmatmul.mubr.f32.gmra.mrb[0].mxu0 %v3926
        %v4097 = vpop.f32.mrb[0].mxu0
        %v4098 = vadd.f32 0.0, %v4097
        %v4099 = vpop.f32.mrb[0].mxu0
        %4100 = vmatprep.mubr.f32.mxu0 0.0
        %4101 = vmatmul.mubr.f32.gmra.mrb[0].mxu0 %v3929
        %v4102 = vpop.f32.mrb[0].mxu0
        %v4103 = vadd.f32 0.0, %v4102
        %v4104 = vpop.f32.mrb[0].mxu0
        %4105 = vmatprep.mubr.f32.mxu0 0.0
        %4106 = vmatmul.mubr.f32.gmra.mrb[0].mxu0 %v3932
        %v4107 = vpop.f32.mrb[0].mxu0
        %v4108 = vadd.f32 0.0, %v4107
        %v4109 = vpop.f32.mrb[0].mxu0
        %4110 = vmatprep.mubr.f32.mxu0 0.0
        %4111 = vmatmul.mubr.f32.gmra.mrb[0].mxu0 %v3935
        %v4112 = vpop.f32.mrb[0].mxu0
        %v4113 = vadd.f32 0.0, %v4112
        %v4114 = vpop.f32.mrb[0].mxu0
        %4115 = vmatprep.mubr.f32.mxu0 0.0
        %4116 = vmatmul.mubr.f32.gmra.mrb[0].mxu0 %v3938
        %v4117 = vpop.f32.mrb[0].mxu0
        %v4118 = vadd.f32 0.0, %v4117
        %v4119 = vpop.f32.mrb[0].mxu0
        %4120 = vmatprep.mubr.f32.mxu0 0.0
        %4121 = vmatmul.mubr.f32.gmra.mrb[0].mxu0 %v3941
        %v4122 = vpop.f32.mrb[0].mxu0
        %v4123 = vadd.f32 0.0, %v4122
        %v4124 = vpop.f32.mrb[0].mxu0
        %4125 = vmatprep.mubr.f32.mxu0 0.0
        %4126 = vmatmul.mubr.f32.gmra.mrb[0].mxu0 %v3944
        %v4127 = vpop.f32.mrb[0].mxu0
        %v4128 = vadd.f32 0.0, %v4127
        %v4129 = vpop.f32.mrb[0].mxu0
        %4130 = vmatprep.mubr.f32.mxu0 0.0
        %4131 = vmatmul.mubr.f32.gmra.mrb[0].mxu0 %v3947
        %v4132 = vpop.f32.mrb[0].mxu0
        %v4133 = vadd.f32 0.0, %v4132
        %v4134 = vpop.f32.mrb[0].mxu0
        %4135 = vmatprep.mubr.f32.mxu0 0.0
        %4136 = vmatmul.mubr.f32.gmra.mrb[0].mxu0 %v3950
        %v4137 = vpop.f32.mrb[0].mxu0
        %v4138 = vadd.f32 0.0, %v4137
        %v4139 = vpop.f32.mrb[0].mxu0
        %4140 = vmatprep.mubr.f32.mxu0 0.0
        %4141 = vmatmul.mubr.f32.gmra.mrb[0].mxu0 %v3953
        %v4142 = vpop.f32.mrb[0].mxu0
        %v4143 = vadd.f32 0.0, %v4142
        %v4144 = vpop.f32.mrb[0].mxu0
        %4145 = vmatprep.mubr.f32.mxu0 0.0
        %4146 = vmatmul.mubr.f32.gmra.mrb[0].mxu0 %v3956
        %v4147 = vpop.f32.mrb[0].mxu0
        %v4148 = vadd.f32 0.0, %v4147
        %v4149 = vpop.f32.mrb[0].mxu0
        %4150 = vmatprep.mubr.f32.mxu0 0.0
        %4151 = vmatmul.mubr.f32.gmra.mrb[0].mxu0 %v3959
        %v4152 = vpop.f32.mrb[0].mxu0
        %v4153 = vadd.f32 0.0, %v4152
        %v4154 = vpop.f32.mrb[0].mxu0
        %4155 = vmatprep.mubr.f32.mxu0 0.0
        %4156 = vmatmul.mubr.f32.gmra.mrb[0].mxu0 %v3962
        %v4157 = vpop.f32.mrb[0].mxu0
        %v4158 = vadd.f32 0.0, %v4157
        %v4159 = vpop.f32.mrb[0].mxu0
        %4160 = vmatprep.mubr.f32.mxu0 0.0
        %4161 = vmatmul.mubr.f32.gmra.mrb[0].mxu0 %v3965
        %v4162 = vpop.f32.mrb[0].mxu0
        %v4163 = vadd.f32 0.0, %v4162
        %v4164 = vpop.f32.mrb[0].mxu0
        %4165 = vmatprep.mubr.f32.mxu0 0.0
        %4166 = vmatmul.mubr.f32.gmra.mrb[0].mxu0 %v3968
        %v4167 = vpop.f32.mrb[0].mxu0
        %v4168 = vadd.f32 0.0, %v4167
        %v4169 = vpop.f32.mrb[0].mxu0
        %4170 = vmatprep.mubr.f32.mxu0 0.0
        %4171 = vmatmul.mubr.f32.gmra.mrb[0].mxu0 %v3971
        %v4172 = vpop.f32.mrb[0].mxu0
        %v4173 = vadd.f32 0.0, %v4172
        %v4174 = vpop.f32.mrb[0].mxu0
        %4175 = vmatprep.mubr.f32.mxu0 0.0
        %4176 = vmatmul.mubr.f32.gmra.mrb[0].mxu0 %v3974
        %v4177 = vpop.f32.mrb[0].mxu0
        %v4178 = vadd.f32 0.0, %v4177
        %v4179 = vpop.f32.mrb[0].mxu0
        %4180 = vmatprep.mubr.f32.mxu0 0.0
        %4181 = vmatmul.mubr.f32.gmra.mrb[0].mxu0 %v3977
        %v4182 = vpop.f32.mrb[0].mxu0
        %v4183 = vadd.f32 0.0, %v4182
        %v4184 = vpop.f32.mrb[0].mxu0
        %4185 = vmatprep.mubr.f32.mxu0 0.0
        %4186 = vmatmul.mubr.f32.gmra.mrb[0].mxu0 %v3980
        %v4187 = vpop.f32.mrb[0].mxu0
        %v4188 = vadd.f32 0.0, %v4187
        %v4189 = vpop.f32.mrb[0].mxu0
        %4190 = vmatprep.mubr.f32.mxu0 0.0
        %4191 = vmatmul.mubr.f32.gmra.mrb[0].mxu0 %v3983
        %v4192 = vpop.f32.mrb[0].mxu0
        %v4193 = vadd.f32 0.0, %v4192
        %v4194 = vpop.f32.mrb[0].mxu0
        %4195 = vmatprep.mubr.f32.mxu0 0.0
        %4196 = vmatmul.mubr.f32.gmra.mrb[0].mxu0 %v3986
        %v4197 = vpop.f32.mrb[0].mxu0
        %v4198 = vadd.f32 0.0, %v4197
        %v4199 = vpop.f32.mrb[0].mxu0
        %4200 = vmatprep.mubr.f32.mxu0 0.0
        %4201 = vmatmul.mubr.f32.gmra.mrb[0].mxu0 %v3989
        %v4202 = vpop.f32.mrb[0].mxu0
        %v4203 = vadd.f32 0.0, %v4202
        %v4204 = vpop.f32.mrb[0].mxu0
        %4205 = vmatprep.mubr.f32.mxu0 0.0
        %4206 = vmatmul.mubr.f32.gmra.mrb[0].mxu0 %v3992
        %v4207 = vpop.f32.mrb[0].mxu0
        %v4208 = vadd.f32 0.0, %v4207
        %v4209 = vpop.f32.mrb[0].mxu0
        %4210 = vmatprep.mubr.f32.mxu0 0.0
        %4211 = vmatmul.mubr.f32.gmra.mrb[0].mxu0 %v3995
        %v4212 = vpop.f32.mrb[0].mxu0
        %v4213 = vadd.f32 0.0, %v4212
        %v4214 = vpop.f32.mrb[0].mxu0
        %4215 = vmatprep.mubr.f32.mxu0 0.0
        %4216 = vmatmul.mubr.f32.gmra.mrb[0].mxu0 %v3998
        %v4217 = vpop.f32.mrb[0].mxu0
        %v4218 = vadd.f32 0.0, %v4217
        %v4219 = vpop.f32.mrb[0].mxu0
        %4220 = vmatprep.mubr.f32.mxu0 0.0
        %4221 = vmatmul.mubr.f32.gmra.mrb[0].mxu0 %v4001
        %v4222 = vpop.f32.mrb[0].mxu0
        %v4223 = vadd.f32 0.0, %v4222
        %v4224 = vpop.f32.mrb[0].mxu0
        %4225 = vmatprep.mubr.f32.mxu0 0.0
        %4226 = vmatmul.mubr.f32.gmra.mrb[0].mxu0 %v4004
        %v4227 = vpop.f32.mrb[0].mxu0
        %v4228 = vadd.f32 0.0, %v4227
        %v4229 = vpop.f32.mrb[0].mxu0
        %4230 = vdwg.mxu0
        %s4231 = sld [smem:[#allocation4]]
        %v4232 = vstv %s4231
        %v4233 = vmul.f32 %v4232, %v3750
        %v4234 = vmul.f32 %v4232, %v3755
        %v4235 = vmul.f32 %v4232, %v3760
        %v4236 = vmul.f32 %v4232, %v3765
        %v4237 = vmul.f32 %v4232, %v3770
        %v4238 = vmul.f32 %v4232, %v3775
        %v4239 = vmul.f32 %v4232, %v3780
        %v4240 = vmul.f32 %v4232, %v3785
        %v4241 = vmul.f32 %v4232, %v3790
        %v4242 = vmul.f32 %v4232, %v3795
        %v4243 = vmul.f32 %v4232, %v3800
        %v4244 = vmul.f32 %v4232, %v3805
        %v4245 = vmul.f32 %v4232, %v3810
        %v4246 = vmul.f32 %v4232, %v3815
        %v4247 = vmul.f32 %v4232, %v3820
        %v4248 = vmul.f32 %v4232, %v3825
        %v4249 = vmul.f32 %v4232, %v3830
        %v4250 = vmul.f32 %v4232, %v3835
        %v4251 = vmul.f32 %v4232, %v3840
        %v4252 = vmul.f32 %v4232, %v3845
        %v4253 = vmul.f32 %v4232, %v3850
        %v4254 = vmul.f32 %v4232, %v3855
        %v4255 = vmul.f32 %v4232, %v3860
        %v4256 = vmul.f32 %v4232, %v3865
        %v4257 = vmul.f32 %v4232, %v3870
        %v4258 = vmul.f32 %v4232, %v3875
        %v4259 = vmul.f32 %v4232, %v3880
        %v4260 = vmul.f32 %v4232, %v3885
        %v4261 = vmul.f32 %v4232, %v3890
        %v4262 = vmul.f32 %v4232, %v3895
        %v4263 = vmul.f32 %v4232, %v3900
        %v4264 = vmul.f32 %v4232, %v3905
        %v4265 = vadd.f32 %v4233, %v4073
        %v4266 = vadd.f32 %v4234, %v4078
        %v4267 = vadd.f32 %v4235, %v4083
        %v4268 = vadd.f32 %v4236, %v4088
        %v4269 = vadd.f32 %v4237, %v4093
        %v4270 = vadd.f32 %v4238, %v4098
        %v4271 = vadd.f32 %v4239, %v4103
        %v4272 = vadd.f32 %v4240, %v4108
        %v4273 = vadd.f32 %v4241, %v4113
        %v4274 = vadd.f32 %v4242, %v4118
        %v4275 = vadd.f32 %v4243, %v4123
        %v4276 = vadd.f32 %v4244, %v4128
        %v4277 = vadd.f32 %v4245, %v4133
        %v4278 = vadd.f32 %v4246, %v4138
        %v4279 = vadd.f32 %v4247, %v4143
        %v4280 = vadd.f32 %v4248, %v4148
        %v4281 = vadd.f32 %v4249, %v4153
        %v4282 = vadd.f32 %v4250, %v4158
        %v4283 = vadd.f32 %v4251, %v4163
        %v4284 = vadd.f32 %v4252, %v4168
        %v4285 = vadd.f32 %v4253, %v4173
        %v4286 = vadd.f32 %v4254, %v4178
        %v4287 = vadd.f32 %v4255, %v4183
        %v4288 = vadd.f32 %v4256, %v4188
        %v4289 = vadd.f32 %v4257, %v4193
        %v4290 = vadd.f32 %v4258, %v4198
        %v4291 = vadd.f32 %v4259, %v4203
        %v4292 = vadd.f32 %v4260, %v4208
        %v4293 = vadd.f32 %v4261, %v4213
        %v4294 = vadd.f32 %v4262, %v4218
        %v4295 = vadd.f32 %v4263, %v4223
        %v4296 = vadd.f32 %v4264, %v4228
        %4297 = vst.msk [vmem:[%s366] sm:$0xff] %vm2080, %v4265
        %4298 = vst.msk [vmem:[%s366 + $0x8] sm:$0xff] %vm2080, %v4266
        %4299 = vst.msk [vmem:[%s366 + $0x10] sm:$0xff] %vm2080, %v4267
        %4300 = vst.msk [vmem:[%s366 + $0x18] sm:$0xff] %vm2080, %v4268
        %4301 = vst.msk [vmem:[%s366 + $0x20] sm:$0xff] %vm2080, %v4269
        %4302 = vst.msk [vmem:[%s366 + $0x28] sm:$0xff] %vm2080, %v4270
        %4303 = vst.msk [vmem:[%s366 + $0x30] sm:$0xff] %vm2080, %v4271
        %4304 = vst.msk [vmem:[%s366 + $0x38] sm:$0xff] %vm2080, %v4272
        %4305 = vst.msk [vmem:[%s366 + $0x40] sm:$0xff] %vm2080, %v4273
        %4306 = vst.msk [vmem:[%s366 + $0x48] sm:$0xff] %vm2080, %v4274
        %4307 = vst.msk [vmem:[%s366 + $0x50] sm:$0xff] %vm2080, %v4275
        %4308 = vst.msk [vmem:[%s366 + $0x58] sm:$0xff] %vm2080, %v4276
        %4309 = vst.msk [vmem:[%s366 + $0x60] sm:$0xff] %vm2080, %v4277
        %4310 = vst.msk [vmem:[%s366 + $0x68] sm:$0xff] %vm2080, %v4278
        %4311 = vst.msk [vmem:[%s366 + $0x70] sm:$0xff] %vm2080, %v4279
        %4312 = vst.msk [vmem:[%s366 + $0x78] sm:$0xff] %vm2080, %v4280
        %4313 = vst.msk [vmem:[%s366 + $0x80] sm:$0xff] %vm2080, %v4281
        %4314 = vst.msk [vmem:[%s366 + $0x88] sm:$0xff] %vm2080, %v4282
        %4315 = vst.msk [vmem:[%s366 + $0x90] sm:$0xff] %vm2080, %v4283
        %4316 = vst.msk [vmem:[%s366 + $0x98] sm:$0xff] %vm2080, %v4284
        %4317 = vst.msk [vmem:[%s366 + $0xa0] sm:$0xff] %vm2080, %v4285
        %4318 = vst.msk [vmem:[%s366 + $0xa8] sm:$0xff] %vm2080, %v4286
        %4319 = vst.msk [vmem:[%s366 + $0xb0] sm:$0xff] %vm2080, %v4287
        %4320 = vst.msk [vmem:[%s366 + $0xb8] sm:$0xff] %vm2080, %v4288
        %4321 = vst.msk [vmem:[%s366 + $0xc0] sm:$0xff] %vm2080, %v4289
        %4322 = vst.msk [vmem:[%s366 + $0xc8] sm:$0xff] %vm2080, %v4290
        %4323 = vst.msk [vmem:[%s366 + $0xd0] sm:$0xff] %vm2080, %v4291
        %4324 = vst.msk [vmem:[%s366 + $0xd8] sm:$0xff] %vm2080, %v4292
        %4325 = vst.msk [vmem:[%s366 + $0xe0] sm:$0xff] %vm2080, %v4293
        %4326 = vst.msk [vmem:[%s366 + $0xe8] sm:$0xff] %vm2080, %v4294
        %4327 = vst.msk [vmem:[%s366 + $0xf0] sm:$0xff] %vm2080, %v4295
        %4328 = vst.msk [vmem:[%s366 + $0xf8] sm:$0xff] %vm2080, %v4296
        %s4329 = sand.u32 %s188, 1
        %s4330 = scalar_lea.sflag [#allocation7], %s4329
        %s4331 = sand.u32 %s188, 1
        %s4332 = smul.addr %s4331, 256
        %s4333 = scalar_lea.vmem [#allocation16], %s4332
        // Predicated region
        $region73: #{res_generator_forward.5} parent=47 // pred_check
          %p4334 = pneg %p198
        $region74: #{res_generator_forward.5} parent=47 // pred_check_branch
          %4336 = sbr.rel (%p4334) target = $region76
        $region75: #{res_generator_forward.5} parent=47 // pred_region
          %s4338 = ssub.s32 4096, 4096
          %4339 = vsyncadd %s4330, %s4338
          %s4340 = smul.addr %s28, 32
          %s4341 = smul.addr %s4340, 128
          %s4342 = scalar_lea.hbm %s7, %s4341
          %s4343 = sshll.u32 %s4333, 4
          %s4344 = int_to_ptr.vmem [resolvable:$true] %s4343
          %4349 = dma.vmem_to_hbm [thread:$0]  %s4344, 4096, %s4342, %s4330, 128, 128, 8
        $region76: #{res_generator_forward.5} parent=47 // pred_fallthru
          _
      $region48: #{res_generator_forward.5} parent=5 // pred_fallthru
        _
      %p4350 = scmp.le.s32.totalorder 2, %s23
      // Predicated region
      $region77: #{res_generator_forward.5} parent=5 // pred_check
        %p4351 = pneg %p4350
      $region78: #{res_generator_forward.5} parent=5 // pred_check_branch
        %4353 = sbr.rel (%p4351) target = $region80
      $region79: #{res_generator_forward.5} parent=5 // pred_region
        %s4354 = ssub.s32 %s23, 2
        // Predicated region
        $region81: #{res_generator_forward.5} parent=79 // pred_check
          %p4355 = pneg %p204
        $region82: #{res_generator_forward.5} parent=79 // pred_check_branch
          %4357 = sbr.rel (%p4355) target = $region84
        $region83: #{res_generator_forward.5} parent=79 // pred_region
          %s4358 = sand.u32 %s189, 1
          %s4359 = scalar_lea.sflag [#allocation7], %s4358
          %s4360 = sand.u32 %s189, 1
          %s4361 = smul.addr %s4360, 256
          %s4362 = scalar_lea.vmem [#allocation16], %s4361
          %4363 = dma.done %s4359, 4096
        $region84: #{res_generator_forward.5} parent=79 // pred_fallthru
          _
      $region80: #{res_generator_forward.5} parent=5 // pred_fallthru
        _
    $region6: #{res_generator_forward.5} parent=1 // loop_footer
      %s27 = sadd.s32 1, %s23
    $region7: #{res_generator_forward.5} parent=1 // loop_footer_branch
      %22 = sbr.rel target = $region3
    $region8: #{res_generator_forward.5} parent=1 // loop_exit
      _
    %4364 = vsyncpa [#allocation6], 1
    %s4365 = scalar_lea.sflag [#allocation6], 1
    %4366 = vsyncpa %s4365, 1
    %4367 = vsyncpa [#allocation9], 1
    %4368 = vsyncpa [#allocation12], 1
    %4369 = vsyncpa [#allocation15], 1
    %4370 = vsyncpa [#allocation7], 1
    %s4371 = scalar_lea.sflag [#allocation7], 1
    %4372 = vsyncpa %s4371, 1

</llo_original>
